<compile_context>
chip_gen: v5e
topology: v5e:2x2
jax: 0.10.0
libtpu: 0.0.40
codegen_flags: <defaults>
</compile_context>

<pallas_src>
import math

import jax
import jax.numpy as jnp
from jax.experimental import pallas as pl
from jax.experimental.pallas import tpu as pltpu


# ----------------------------------------------------------------------------
# Fused Pallas kernel: conv1+ReLU+pool1+conv2+ReLU+pool2+fc1+ReLU+fc2
# ----------------------------------------------------------------------------
def _net_kernel(cols1_ref, w1_ref, b1_ref, w2_ref, b2_ref,
                wf1_ref, bf1_ref, wf2_ref, bf2_ref,
                o_ref, y1s_ref, cols2_ref, y2s_ref):
    """Whole Net forward on one TensorCore; everything stays in VMEM."""
    B = o_ref.shape[0]
    f32 = jnp.float32
    bf16 = jnp.bfloat16

    # ---- layer1: Conv2d(1,16,8,stride=2,pad=3) + ReLU (MXU matmuls) ---------
    # cols1 rows are ordered (parity-class pc, batch b, u, v) with
    # pc = 2*(out-row parity) + (out-col parity).  y1s[pc, b, u, v, :] holds
    # the conv1+ReLU output at output position (2u + rowpar, 2v + colpar).
    for pc in range(4):
        for b in range(B):
            base = (pc * B + b) * 49
            acc = jnp.dot(cols1_ref[base:base + 49, :], w1_ref[...],
                          preferred_element_type=f32)               # (49, 16)
            acc = jnp.maximum(acc + b1_ref[...], 0.0)
            for u in range(7):
                y1s_ref[pc, b, u, :, :] = acc[u * 7:(u + 1) * 7, :]  # (7, 16)

    # ---- pool1: MaxPool2d(2, stride=1), kept parity-split -------------------
    def pool1(rho, gam):
        """p1[:, a, v, :] = pooled layer-1 output at spatial (2a+rho, 2v+gam)."""
        R, C = 7 - rho, 7 - gam          # 13 pooled rows/cols = 7 even + 6 odd
        out = None
        for dr in range(2):
            for dc in range(2):
                pc = ((rho + dr) % 2) * 2 + ((gam + dc) % 2)
                r0, c0 = (rho + dr) // 2, (gam + dc) // 2
                t = y1s_ref[pc, :, r0:r0 + R, c0:c0 + C, :]          # (B,R,C,16)
                out = t if out is None else jnp.maximum(out, t)
        return out

    # ---- layer2 im2col: gather conv2 patches into a VMEM block --------------
    # cols2[b, ho, wo, (kh*4+kw)*16 + ci] = pool1[b, 2ho+kh, 2wo+kw, ci]
    for rho in range(2):
        for gam in range(2):
            p1c = pool1(rho, gam)                                    # (B,R,C,16)
            for kh in (rho, rho + 2):                                # kh % 2 == rho
                for kw in (gam, gam + 2):                            # kw % 2 == gam
                    a0, c0 = kh // 2, kw // 2
                    xk = p1c[:, a0:a0 + 5, c0:c0 + 5, :]             # (B,5,5,16)
                    k = kh * 4 + kw
                    cols2_ref[:, :, :, k * 16:(k + 1) * 16] = xk.astype(bf16)

    # ---- layer2: Conv2d(16,32,4,stride=2) + ReLU (one matmul per row strip) -
    for b in range(B):
        for ho in range(5):
            acc = jnp.dot(cols2_ref[b, ho, :, :], w2_ref[...],
                          preferred_element_type=f32)                # (5, 32)
            y2s_ref[b, ho, :, :] = jnp.maximum(acc + b2_ref[...], 0.0)

    # ---- pool2 (2x2, stride 1) fused into the fc1 gather + Linear(512,32) ---
    # PyTorch flatten order (C, H, W) is folded into wf1's per-position layout.
    acc1 = jnp.zeros((B, 32), f32)
    for h in range(4):
        for w in range(4):
            pos = jnp.maximum(
                jnp.maximum(y2s_ref[:, h, w, :], y2s_ref[:, h, w + 1, :]),
                jnp.maximum(y2s_ref[:, h + 1, w, :], y2s_ref[:, h + 1, w + 1, :]))
            acc1 = acc1 + jnp.dot(pos.astype(bf16), wf1_ref[h * 4 + w, :, :],
                                  preferred_element_type=f32)        # (B, 32)
    h1 = jnp.maximum(acc1 + bf1_ref[...], 0.0)

    # ---- Linear(32, 10) ------------------------------------------------------
    logits = jnp.dot(h1.astype(bf16), wf2_ref[...], preferred_element_type=f32)
    o_ref[...] = logits + bf2_ref[...]


# ----------------------------------------------------------------------------
# Tiny XLA prologue: conv1 im2col patches (parity-ordered rows), bf16
# ----------------------------------------------------------------------------
def _build_cols1(x):
    """im2col for conv1 (8x8, stride 2, pad 3).

    Rows ordered (row-parity, col-parity, batch, u, v); columns ordered (kh, kw).
    """
    B = x.shape[0]
    xp = jnp.pad(x[:, 0], ((0, 0), (3, 3), (3, 3)))                  # (B, 34, 34)
    cols = []
    for kh in range(8):
        for kw in range(8):
            cols.append(jax.lax.slice(xp, (0, kh, kw), (B, kh + 27, kw + 27),
                                      (1, 2, 2)))                    # (B, 14, 14)
    cols = jnp.stack(cols, axis=-1)                                  # (B,14,14,64)
    cols = cols.reshape(B, 7, 2, 7, 2, 64)                           # i=(u,s), j=(v,t)
    cols = cols.transpose(2, 4, 0, 1, 3, 5)                          # (s,t,B,u,v,64)
    return cols.reshape(4 * B * 49, 64).astype(jnp.bfloat16)


def net_forward(kp, x):
    """x: (B, 1, 28, 28) float32 -> logits (B, 10). Single fused pallas_call."""
    B = x.shape[0]
    cols1 = _build_cols1(x)
    vmem = pl.BlockSpec(memory_space=pltpu.MemorySpace.VMEM)
    return pl.pallas_call(
        _net_kernel,
        out_shape=jax.ShapeDtypeStruct((B, 10), jnp.float32),
        in_specs=[vmem] * 9,
        out_specs=vmem,
        scratch_shapes=[
            pltpu.VMEM((4, B, 7, 7, 16), jnp.float32),   # layer1 out, parity-split
            pltpu.VMEM((B, 5, 5, 256), jnp.bfloat16),    # conv2 im2col block
            pltpu.VMEM((B, 5, 5, 32), jnp.float32),      # layer2 out (pre-pool)
        ],
    )(cols1, kp["w1"], kp["b1"], kp["w2"], kp["b2"],
      kp["wf1"], kp["bf1"], kp["wf2"], kp["bf2"])


# ----------------------------------------------------------------------------
# Parameters
# ----------------------------------------------------------------------------
def init_params(key):
    """PyTorch-layout params, PyTorch-default-style init U(+-1/sqrt(fan_in))."""
    ks = jax.random.split(key, 8)

    def unif(k, shape, fan_in):
        bound = 1.0 / math.sqrt(fan_in)
        return jax.random.uniform(k, shape, jnp.float32, -bound, bound)

    p = {}
    p["conv1_w"] = unif(ks[0], (16, 1, 8, 8), 1 * 8 * 8)
    p["conv1_b"] = unif(ks[1], (16,), 1 * 8 * 8)
    p["conv2_w"] = unif(ks[2], (32, 16, 4, 4), 16 * 4 * 4)
    p["conv2_b"] = unif(ks[3], (32,), 16 * 4 * 4)
    p["fc1_w"] = unif(ks[4], (32, 512), 512)   # PyTorch Linear: (out, in)
    p["fc1_b"] = unif(ks[5], (32,), 512)
    p["fc2_w"] = unif(ks[6], (10, 32), 32)
    p["fc2_b"] = unif(ks[7], (32,), 32) if False else unif(ks[7], (10,), 32)
    return p


def prepare_params(p):
    """One-time re-layout into kernel-ready (bf16) matmul operands."""
    kp = {}
    # conv1: (16,1,8,8) -> (K=64 (kh,kw), 16)
    kp["w1"] = p["conv1_w"].reshape(16, 64).T.astype(jnp.bfloat16)
    kp["b1"] = p["conv1_b"].reshape(1, 16).astype(jnp.float32)
    # conv2: (32,16,4,4) -> (K=256 (kh,kw,ci), 32)
    kp["w2"] = (p["conv2_w"].transpose(2, 3, 1, 0)
                .reshape(256, 32).astype(jnp.bfloat16))
    kp["b2"] = p["conv2_b"].reshape(1, 32).astype(jnp.float32)
    # fc1: (32,512) with flat index c*16+h*4+w -> per-position (16, 32in, 32out)
    kp["wf1"] = (p["fc1_w"].reshape(32, 32, 4, 4)
                 .transpose(2, 3, 1, 0).reshape(16, 32, 32).astype(jnp.bfloat16))
    kp["bf1"] = p["fc1_b"].reshape(1, 32).astype(jnp.float32)
    # fc2: (10,32) -> (32, 10)
    kp["wf2"] = p["fc2_w"].T.astype(jnp.bfloat16)
    kp["bf2"] = p["fc2_b"].reshape(1, 10).astype(jnp.float32)
    return kp


# ----------------------------------------------------------------------------
# Pure-JAX reference (f32) for a sanity check of the fused Pallas path
# ----------------------------------------------------------------------------
def net_forward_ref(params, x):
    dn = jax.lax.conv_dimension_numbers(x.shape, params["conv1_w"].shape,
                                        ("NCHW", "OIHW", "NCHW"))
    y = jax.lax.conv_general_dilated(x, params["conv1_w"], (2, 2),
                                     ((3, 3), (3, 3)), dimension_numbers=dn)
    y = jax.nn.relu(y + params["conv1_b"][None, :, None, None])
    y = jax.lax.reduce_window(y, -jnp.inf, jax.lax.max,
                              (1, 1, 2, 2), (1, 1, 1, 1), "VALID")
    dn = jax.lax.conv_dimension_numbers(y.shape, params["conv2_w"].shape,
                                        ("NCHW", "OIHW", "NCHW"))
    y = jax.lax.conv_general_dilated(y, params["conv2_w"], (2, 2),
                                     ((0, 0), (0, 0)), dimension_numbers=dn)
    y = jax.nn.relu(y + params["conv2_b"][None, :, None, None])
    y = jax.lax.reduce_window(y, -jnp.inf, jax.lax.max,
                              (1, 1, 2, 2), (1, 1, 1, 1), "VALID")
    y = y.reshape(y.shape[0], -1)
    y = jax.nn.relu(y @ params["fc1_w"].T + params["fc1_b"])
    return y @ params["fc2_w"].T + params["fc2_b"]


if __name__ == "__main__":
    key = jax.random.PRNGKey(0)
    k_param, k_x = jax.random.split(key)

    params = init_params(k_param)
    kparams = prepare_params(params)

    # Input shape implied by the module: (B, 1, 28, 28) -> fc expects 32*4*4.
    x = jax.random.normal(k_x, (2, 1, 28, 28), jnp.float32)

    out = jax.block_until_ready(jax.jit(net_forward)(kparams, x))
    assert out.shape == (2, 10), out.shape

    ref = jax.block_until_ready(jax.jit(net_forward_ref)(params, x))
    # bf16 MXU operands with f32 accumulation -> a couple of 1e-3 of abs error.
    assert jnp.allclose(out, ref, atol=2e-2, rtol=2e-2), (out, ref)

    print("KERNEL_OK")
</pallas_src>

<mosaic_0001>
module attributes {stable_mosaic.version = 11 : i64} {
  func.func @_net_kernel(%arg0: memref<392x64xbf16, #tpu.memory_space<vmem>>, %arg1: memref<64x16xbf16, #tpu.memory_space<vmem>>, %arg2: memref<1x16xf32, #tpu.memory_space<vmem>>, %arg3: memref<256x32xbf16, #tpu.memory_space<vmem>>, %arg4: memref<1x32xf32, #tpu.memory_space<vmem>>, %arg5: memref<16x32x32xbf16, #tpu.memory_space<vmem>>, %arg6: memref<1x32xf32, #tpu.memory_space<vmem>>, %arg7: memref<32x10xbf16, #tpu.memory_space<vmem>>, %arg8: memref<1x10xf32, #tpu.memory_space<vmem>>, %arg9: memref<2x10xf32, #tpu.memory_space<vmem>>, %arg10: memref<4x2x7x7x16xf32, #tpu.memory_space<vmem>>, %arg11: memref<2x5x5x256xbf16, #tpu.memory_space<vmem>>, %arg12: memref<2x5x5x32xf32, #tpu.memory_space<vmem>>) attributes {dimension_semantics = [], scalar_prefetch = 0 : i64, scratch_operands = 3 : i64, tpu.core_type = #tpu.core_type<tc>} {
    %c0 = arith.constant 0 : index
    %c0_0 = arith.constant 0 : index
    %0 = vector.load %arg0[%c0, %c0_0] : memref<392x64xbf16, #tpu.memory_space<vmem>>, vector<49x64xbf16>
    %c0_1 = arith.constant 0 : index
    %c0_2 = arith.constant 0 : index
    %1 = vector.load %arg1[%c0_1, %c0_2] : memref<64x16xbf16, #tpu.memory_space<vmem>>, vector<64x16xbf16>
    %cst = arith.constant dense<0.000000e+00> : vector<49x16xf32>
    %2 = tpu.matmul %0, %1, %cst {dimension_numbers = #tpu.dot_dimension_numbers<[1], [0], [0], [1], [0, 0, 1, 1], [], []>} : vector<49x64xbf16>, vector<64x16xbf16>, vector<49x16xf32> -> vector<49x16xf32>
    %c0_3 = arith.constant 0 : index
    %c0_4 = arith.constant 0 : index
    %3 = vector.load %arg2[%c0_3, %c0_4] : memref<1x16xf32, #tpu.memory_space<vmem>>, vector<1x16xf32>
    %4 = vector.broadcast %3 : vector<1x16xf32> to vector<49x16xf32>
    %5 = arith.addf %2, %4 : vector<49x16xf32>
    %cst_5 = arith.constant 0.000000e+00 : f32
    %6 = vector.broadcast %cst_5 : f32 to vector<49x16xf32>
    %7 = arith.maximumf %5, %6 : vector<49x16xf32>
    %8 = vector.extract_strided_slice %7 {offsets = [0, 0], sizes = [7, 16], strides = [1, 1]} : vector<49x16xf32> to vector<7x16xf32>
    %c0_6 = arith.constant 0 : index
    %c0_7 = arith.constant 0 : index
    %c0_8 = arith.constant 0 : index
    %c0_9 = arith.constant 0 : index
    %c0_10 = arith.constant 0 : index
    %9 = vector.load %arg10[%c0_6, %c0_7, %c0_8, %c0_9, %c0_10] : memref<4x2x7x7x16xf32, #tpu.memory_space<vmem>>, vector<1x1x1x7x16xf32>
    %10 = vector.shape_cast %9 : vector<1x1x1x7x16xf32> to vector<7x16xf32>
    %11 = vector.shape_cast %8 : vector<7x16xf32> to vector<1x1x1x7x16xf32>
    tpu.vector_store %arg10[%c0_6, %c0_7, %c0_8, %c0_9, %c0_10], %11 {strides = array<i32>} : memref<4x2x7x7x16xf32, #tpu.memory_space<vmem>>, vector<1x1x1x7x16xf32>,
    %12 = vector.extract_strided_slice %7 {offsets = [7, 0], sizes = [7, 16], strides = [1, 1]} : vector<49x16xf32> to vector<7x16xf32>
    %c0_11 = arith.constant 0 : index
    %c0_12 = arith.constant 0 : index
    %c1 = arith.constant 1 : index
    %c0_13 = arith.constant 0 : index
    %c0_14 = arith.constant 0 : index
    %13 = vector.load %arg10[%c0_11, %c0_12, %c1, %c0_13, %c0_14] : memref<4x2x7x7x16xf32, #tpu.memory_space<vmem>>, vector<1x1x1x7x16xf32>
    %14 = vector.shape_cast %13 : vector<1x1x1x7x16xf32> to vector<7x16xf32>
    %15 = vector.shape_cast %12 : vector<7x16xf32> to vector<1x1x1x7x16xf32>
    tpu.vector_store %arg10[%c0_11, %c0_12, %c1, %c0_13, %c0_14], %15 {strides = array<i32>} : memref<4x2x7x7x16xf32, #tpu.memory_space<vmem>>, vector<1x1x1x7x16xf32>,
    %16 = vector.extract_strided_slice %7 {offsets = [14, 0], sizes = [7, 16], strides = [1, 1]} : vector<49x16xf32> to vector<7x16xf32>
    %c0_15 = arith.constant 0 : index
    %c0_16 = arith.constant 0 : index
    %c2 = arith.constant 2 : index
    %c0_17 = arith.constant 0 : index
    %c0_18 = arith.constant 0 : index
    %17 = vector.load %arg10[%c0_15, %c0_16, %c2, %c0_17, %c0_18] : memref<4x2x7x7x16xf32, #tpu.memory_space<vmem>>, vector<1x1x1x7x16xf32>
    %18 = vector.shape_cast %17 : vector<1x1x1x7x16xf32> to vector<7x16xf32>
    %19 = vector.shape_cast %16 : vector<7x16xf32> to vector<1x1x1x7x16xf32>
    tpu.vector_store %arg10[%c0_15, %c0_16, %c2, %c0_17, %c0_18], %19 {strides = array<i32>} : memref<4x2x7x7x16xf32, #tpu.memory_space<vmem>>, vector<1x1x1x7x16xf32>,
    %20 = vector.extract_strided_slice %7 {offsets = [21, 0], sizes = [7, 16], strides = [1, 1]} : vector<49x16xf32> to vector<7x16xf32>
    %c0_19 = arith.constant 0 : index
    %c0_20 = arith.constant 0 : index
    %c3 = arith.constant 3 : index
    %c0_21 = arith.constant 0 : index
    %c0_22 = arith.constant 0 : index
    %21 = vector.load %arg10[%c0_19, %c0_20, %c3, %c0_21, %c0_22] : memref<4x2x7x7x16xf32, #tpu.memory_space<vmem>>, vector<1x1x1x7x16xf32>
    %22 = vector.shape_cast %21 : vector<1x1x1x7x16xf32> to vector<7x16xf32>
    %23 = vector.shape_cast %20 : vector<7x16xf32> to vector<1x1x1x7x16xf32>
    tpu.vector_store %arg10[%c0_19, %c0_20, %c3, %c0_21, %c0_22], %23 {strides = array<i32>} : memref<4x2x7x7x16xf32, #tpu.memory_space<vmem>>, vector<1x1x1x7x16xf32>,
    %24 = vector.extract_strided_slice %7 {offsets = [28, 0], sizes = [7, 16], strides = [1, 1]} : vector<49x16xf32> to vector<7x16xf32>
    %c0_23 = arith.constant 0 : index
    %c0_24 = arith.constant 0 : index
    %c4 = arith.constant 4 : index
    %c0_25 = arith.constant 0 : index
    %c0_26 = arith.constant 0 : index
    %25 = vector.load %arg10[%c0_23, %c0_24, %c4, %c0_25, %c0_26] : memref<4x2x7x7x16xf32, #tpu.memory_space<vmem>>, vector<1x1x1x7x16xf32>
    %26 = vector.shape_cast %25 : vector<1x1x1x7x16xf32> to vector<7x16xf32>
    %27 = vector.shape_cast %24 : vector<7x16xf32> to vector<1x1x1x7x16xf32>
    tpu.vector_store %arg10[%c0_23, %c0_24, %c4, %c0_25, %c0_26], %27 {strides = array<i32>} : memref<4x2x7x7x16xf32, #tpu.memory_space<vmem>>, vector<1x1x1x7x16xf32>,
    %28 = vector.extract_strided_slice %7 {offsets = [35, 0], sizes = [7, 16], strides = [1, 1]} : vector<49x16xf32> to vector<7x16xf32>
    %c0_27 = arith.constant 0 : index
    %c0_28 = arith.constant 0 : index
    %c5 = arith.constant 5 : index
    %c0_29 = arith.constant 0 : index
    %c0_30 = arith.constant 0 : index
    %29 = vector.load %arg10[%c0_27, %c0_28, %c5, %c0_29, %c0_30] : memref<4x2x7x7x16xf32, #tpu.memory_space<vmem>>, vector<1x1x1x7x16xf32>
    %30 = vector.shape_cast %29 : vector<1x1x1x7x16xf32> to vector<7x16xf32>
    %31 = vector.shape_cast %28 : vector<7x16xf32> to vector<1x1x1x7x16xf32>
    tpu.vector_store %arg10[%c0_27, %c0_28, %c5, %c0_29, %c0_30], %31 {strides = array<i32>} : memref<4x2x7x7x16xf32, #tpu.memory_space<vmem>>, vector<1x1x1x7x16xf32>,
    %32 = vector.extract_strided_slice %7 {offsets = [42, 0], sizes = [7, 16], strides = [1, 1]} : vector<49x16xf32> to vector<7x16xf32>
    %c0_31 = arith.constant 0 : index
    %c0_32 = arith.constant 0 : index
    %c6 = arith.constant 6 : index
    %c0_33 = arith.constant 0 : index
    %c0_34 = arith.constant 0 : index
    %33 = vector.load %arg10[%c0_31, %c0_32, %c6, %c0_33, %c0_34] : memref<4x2x7x7x16xf32, #tpu.memory_space<vmem>>, vector<1x1x1x7x16xf32>
    %34 = vector.shape_cast %33 : vector<1x1x1x7x16xf32> to vector<7x16xf32>
    %35 = vector.shape_cast %32 : vector<7x16xf32> to vector<1x1x1x7x16xf32>
    tpu.vector_store %arg10[%c0_31, %c0_32, %c6, %c0_33, %c0_34], %35 {strides = array<i32>} : memref<4x2x7x7x16xf32, #tpu.memory_space<vmem>>, vector<1x1x1x7x16xf32>,
    %c49 = arith.constant 49 : index
    %c0_35 = arith.constant 0 : index
    %36 = vector.load %arg0[%c49, %c0_35] : memref<392x64xbf16, #tpu.memory_space<vmem>>, vector<49x64xbf16>
    %c0_36 = arith.constant 0 : index
    %c0_37 = arith.constant 0 : index
    %37 = vector.load %arg1[%c0_36, %c0_37] : memref<64x16xbf16, #tpu.memory_space<vmem>>, vector<64x16xbf16>
    %cst_38 = arith.constant dense<0.000000e+00> : vector<49x16xf32>
    %38 = tpu.matmul %36, %37, %cst_38 {dimension_numbers = #tpu.dot_dimension_numbers<[1], [0], [0], [1], [0, 0, 1, 1], [], []>} : vector<49x64xbf16>, vector<64x16xbf16>, vector<49x16xf32> -> vector<49x16xf32>
    %c0_39 = arith.constant 0 : index
    %c0_40 = arith.constant 0 : index
    %39 = vector.load %arg2[%c0_39, %c0_40] : memref<1x16xf32, #tpu.memory_space<vmem>>, vector<1x16xf32>
    %40 = vector.broadcast %39 : vector<1x16xf32> to vector<49x16xf32>
    %41 = arith.addf %38, %40 : vector<49x16xf32>
    %cst_41 = arith.constant 0.000000e+00 : f32
    %42 = vector.broadcast %cst_41 : f32 to vector<49x16xf32>
    %43 = arith.maximumf %41, %42 : vector<49x16xf32>
    %44 = vector.extract_strided_slice %43 {offsets = [0, 0], sizes = [7, 16], strides = [1, 1]} : vector<49x16xf32> to vector<7x16xf32>
    %c0_42 = arith.constant 0 : index
    %c1_43 = arith.constant 1 : index
    %c0_44 = arith.constant 0 : index
    %c0_45 = arith.constant 0 : index
    %c0_46 = arith.constant 0 : index
    %45 = vector.load %arg10[%c0_42, %c1_43, %c0_44, %c0_45, %c0_46] : memref<4x2x7x7x16xf32, #tpu.memory_space<vmem>>, vector<1x1x1x7x16xf32>
    %46 = vector.shape_cast %45 : vector<1x1x1x7x16xf32> to vector<7x16xf32>
    %47 = vector.shape_cast %44 : vector<7x16xf32> to vector<1x1x1x7x16xf32>
    tpu.vector_store %arg10[%c0_42, %c1_43, %c0_44, %c0_45, %c0_46], %47 {strides = array<i32>} : memref<4x2x7x7x16xf32, #tpu.memory_space<vmem>>, vector<1x1x1x7x16xf32>,
    %48 = vector.extract_strided_slice %43 {offsets = [7, 0], sizes = [7, 16], strides = [1, 1]} : vector<49x16xf32> to vector<7x16xf32>
    %c0_47 = arith.constant 0 : index
    %c1_48 = arith.constant 1 : index
    %c1_49 = arith.constant 1 : index
    %c0_50 = arith.constant 0 : index
    %c0_51 = arith.constant 0 : index
    %49 = vector.load %arg10[%c0_47, %c1_48, %c1_49, %c0_50, %c0_51] : memref<4x2x7x7x16xf32, #tpu.memory_space<vmem>>, vector<1x1x1x7x16xf32>
    %50 = vector.shape_cast %49 : vector<1x1x1x7x16xf32> to vector<7x16xf32>
    %51 = vector.shape_cast %48 : vector<7x16xf32> to vector<1x1x1x7x16xf32>
    tpu.vector_store %arg10[%c0_47, %c1_48, %c1_49, %c0_50, %c0_51], %51 {strides = array<i32>} : memref<4x2x7x7x16xf32, #tpu.memory_space<vmem>>, vector<1x1x1x7x16xf32>,
    %52 = vector.extract_strided_slice %43 {offsets = [14, 0], sizes = [7, 16], strides = [1, 1]} : vector<49x16xf32> to vector<7x16xf32>
    %c0_52 = arith.constant 0 : index
    %c1_53 = arith.constant 1 : index
    %c2_54 = arith.constant 2 : index
    %c0_55 = arith.constant 0 : index
    %c0_56 = arith.constant 0 : index
    %53 = vector.load %arg10[%c0_52, %c1_53, %c2_54, %c0_55, %c0_56] : memref<4x2x7x7x16xf32, #tpu.memory_space<vmem>>, vector<1x1x1x7x16xf32>
    %54 = vector.shape_cast %53 : vector<1x1x1x7x16xf32> to vector<7x16xf32>
    %55 = vector.shape_cast %52 : vector<7x16xf32> to vector<1x1x1x7x16xf32>
    tpu.vector_store %arg10[%c0_52, %c1_53, %c2_54, %c0_55, %c0_56], %55 {strides = array<i32>} : memref<4x2x7x7x16xf32, #tpu.memory_space<vmem>>, vector<1x1x1x7x16xf32>,
    %56 = vector.extract_strided_slice %43 {offsets = [21, 0], sizes = [7, 16], strides = [1, 1]} : vector<49x16xf32> to vector<7x16xf32>
    %c0_57 = arith.constant 0 : index
    %c1_58 = arith.constant 1 : index
    %c3_59 = arith.constant 3 : index
    %c0_60 = arith.constant 0 : index
    %c0_61 = arith.constant 0 : index
    %57 = vector.load %arg10[%c0_57, %c1_58, %c3_59, %c0_60, %c0_61] : memref<4x2x7x7x16xf32, #tpu.memory_space<vmem>>, vector<1x1x1x7x16xf32>
    %58 = vector.shape_cast %57 : vector<1x1x1x7x16xf32> to vector<7x16xf32>
    %59 = vector.shape_cast %56 : vector<7x16xf32> to vector<1x1x1x7x16xf32>
    tpu.vector_store %arg10[%c0_57, %c1_58, %c3_59, %c0_60, %c0_61], %59 {strides = array<i32>} : memref<4x2x7x7x16xf32, #tpu.memory_space<vmem>>, vector<1x1x1x7x16xf32>,
    %60 = vector.extract_strided_slice %43 {offsets = [28, 0], sizes = [7, 16], strides = [1, 1]} : vector<49x16xf32> to vector<7x16xf32>
    %c0_62 = arith.constant 0 : index
    %c1_63 = arith.constant 1 : index
    %c4_64 = arith.constant 4 : index
    %c0_65 = arith.constant 0 : index
    %c0_66 = arith.constant 0 : index
    %61 = vector.load %arg10[%c0_62, %c1_63, %c4_64, %c0_65, %c0_66] : memref<4x2x7x7x16xf32, #tpu.memory_space<vmem>>, vector<1x1x1x7x16xf32>
    %62 = vector.shape_cast %61 : vector<1x1x1x7x16xf32> to vector<7x16xf32>
    %63 = vector.shape_cast %60 : vector<7x16xf32> to vector<1x1x1x7x16xf32>
    tpu.vector_store %arg10[%c0_62, %c1_63, %c4_64, %c0_65, %c0_66], %63 {strides = array<i32>} : memref<4x2x7x7x16xf32, #tpu.memory_space<vmem>>, vector<1x1x1x7x16xf32>,
    %64 = vector.extract_strided_slice %43 {offsets = [35, 0], sizes = [7, 16], strides = [1, 1]} : vector<49x16xf32> to vector<7x16xf32>
    %c0_67 = arith.constant 0 : index
    %c1_68 = arith.constant 1 : index
    %c5_69 = arith.constant 5 : index
    %c0_70 = arith.constant 0 : index
    %c0_71 = arith.constant 0 : index
    %65 = vector.load %arg10[%c0_67, %c1_68, %c5_69, %c0_70, %c0_71] : memref<4x2x7x7x16xf32, #tpu.memory_space<vmem>>, vector<1x1x1x7x16xf32>
    %66 = vector.shape_cast %65 : vector<1x1x1x7x16xf32> to vector<7x16xf32>
    %67 = vector.shape_cast %64 : vector<7x16xf32> to vector<1x1x1x7x16xf32>
    tpu.vector_store %arg10[%c0_67, %c1_68, %c5_69, %c0_70, %c0_71], %67 {strides = array<i32>} : memref<4x2x7x7x16xf32, #tpu.memory_space<vmem>>, vector<1x1x1x7x16xf32>,
    %68 = vector.extract_strided_slice %43 {offsets = [42, 0], sizes = [7, 16], strides = [1, 1]} : vector<49x16xf32> to vector<7x16xf32>
    %c0_72 = arith.constant 0 : index
    %c1_73 = arith.constant 1 : index
    %c6_74 = arith.constant 6 : index
    %c0_75 = arith.constant 0 : index
    %c0_76 = arith.constant 0 : index
    %69 = vector.load %arg10[%c0_72, %c1_73, %c6_74, %c0_75, %c0_76] : memref<4x2x7x7x16xf32, #tpu.memory_space<vmem>>, vector<1x1x1x7x16xf32>
    %70 = vector.shape_cast %69 : vector<1x1x1x7x16xf32> to vector<7x16xf32>
    %71 = vector.shape_cast %68 : vector<7x16xf32> to vector<1x1x1x7x16xf32>
    tpu.vector_store %arg10[%c0_72, %c1_73, %c6_74, %c0_75, %c0_76], %71 {strides = array<i32>} : memref<4x2x7x7x16xf32, #tpu.memory_space<vmem>>, vector<1x1x1x7x16xf32>,
    %c98 = arith.constant 98 : index
    %c0_77 = arith.constant 0 : index
    %72 = vector.load %arg0[%c98, %c0_77] : memref<392x64xbf16, #tpu.memory_space<vmem>>, vector<49x64xbf16>
    %c0_78 = arith.constant 0 : index
    %c0_79 = arith.constant 0 : index
    %73 = vector.load %arg1[%c0_78, %c0_79] : memref<64x16xbf16, #tpu.memory_space<vmem>>, vector<64x16xbf16>
    %cst_80 = arith.constant dense<0.000000e+00> : vector<49x16xf32>
    %74 = tpu.matmul %72, %73, %cst_80 {dimension_numbers = #tpu.dot_dimension_numbers<[1], [0], [0], [1], [0, 0, 1, 1], [], []>} : vector<49x64xbf16>, vector<64x16xbf16>, vector<49x16xf32> -> vector<49x16xf32>
    %c0_81 = arith.constant 0 : index
    %c0_82 = arith.constant 0 : index
    %75 = vector.load %arg2[%c0_81, %c0_82] : memref<1x16xf32, #tpu.memory_space<vmem>>, vector<1x16xf32>
    %76 = vector.broadcast %75 : vector<1x16xf32> to vector<49x16xf32>
    %77 = arith.addf %74, %76 : vector<49x16xf32>
    %cst_83 = arith.constant 0.000000e+00 : f32
    %78 = vector.broadcast %cst_83 : f32 to vector<49x16xf32>
    %79 = arith.maximumf %77, %78 : vector<49x16xf32>
    %80 = vector.extract_strided_slice %79 {offsets = [0, 0], sizes = [7, 16], strides = [1, 1]} : vector<49x16xf32> to vector<7x16xf32>
    %c1_84 = arith.constant 1 : index
    %c0_85 = arith.constant 0 : index
    %c0_86 = arith.constant 0 : index
    %c0_87 = arith.constant 0 : index
    %c0_88 = arith.constant 0 : index
    %81 = vector.load %arg10[%c1_84, %c0_85, %c0_86, %c0_87, %c0_88] : memref<4x2x7x7x16xf32, #tpu.memory_space<vmem>>, vector<1x1x1x7x16xf32>
    %82 = vector.shape_cast %81 : vector<1x1x1x7x16xf32> to vector<7x16xf32>
    %83 = vector.shape_cast %80 : vector<7x16xf32> to vector<1x1x1x7x16xf32>
    tpu.vector_store %arg10[%c1_84, %c0_85, %c0_86, %c0_87, %c0_88], %83 {strides = array<i32>} : memref<4x2x7x7x16xf32, #tpu.memory_space<vmem>>, vector<1x1x1x7x16xf32>,
    %84 = vector.extract_strided_slice %79 {offsets = [7, 0], sizes = [7, 16], strides = [1, 1]} : vector<49x16xf32> to vector<7x16xf32>
    %c1_89 = arith.constant 1 : index
    %c0_90 = arith.constant 0 : index
    %c1_91 = arith.constant 1 : index
    %c0_92 = arith.constant 0 : index
    %c0_93 = arith.constant 0 : index
    %85 = vector.load %arg10[%c1_89, %c0_90, %c1_91, %c0_92, %c0_93] : memref<4x2x7x7x16xf32, #tpu.memory_space<vmem>>, vector<1x1x1x7x16xf32>
    %86 = vector.shape_cast %85 : vector<1x1x1x7x16xf32> to vector<7x16xf32>
    %87 = vector.shape_cast %84 : vector<7x16xf32> to vector<1x1x1x7x16xf32>
    tpu.vector_store %arg10[%c1_89, %c0_90, %c1_91, %c0_92, %c0_93], %87 {strides = array<i32>} : memref<4x2x7x7x16xf32, #tpu.memory_space<vmem>>, vector<1x1x1x7x16xf32>,
    %88 = vector.extract_strided_slice %79 {offsets = [14, 0], sizes = [7, 16], strides = [1, 1]} : vector<49x16xf32> to vector<7x16xf32>
    %c1_94 = arith.constant 1 : index
    %c0_95 = arith.constant 0 : index
    %c2_96 = arith.constant 2 : index
    %c0_97 = arith.constant 0 : index
    %c0_98 = arith.constant 0 : index
    %89 = vector.load %arg10[%c1_94, %c0_95, %c2_96, %c0_97, %c0_98] : memref<4x2x7x7x16xf32, #tpu.memory_space<vmem>>, vector<1x1x1x7x16xf32>
    %90 = vector.shape_cast %89 : vector<1x1x1x7x16xf32> to vector<7x16xf32>
    %91 = vector.shape_cast %88 : vector<7x16xf32> to vector<1x1x1x7x16xf32>
    tpu.vector_store %arg10[%c1_94, %c0_95, %c2_96, %c0_97, %c0_98], %91 {strides = array<i32>} : memref<4x2x7x7x16xf32, #tpu.memory_space<vmem>>, vector<1x1x1x7x16xf32>,
    %92 = vector.extract_strided_slice %79 {offsets = [21, 0], sizes = [7, 16], strides = [1, 1]} : vector<49x16xf32> to vector<7x16xf32>
    %c1_99 = arith.constant 1 : index
    %c0_100 = arith.constant 0 : index
    %c3_101 = arith.constant 3 : index
    %c0_102 = arith.constant 0 : index
    %c0_103 = arith.constant 0 : index
    %93 = vector.load %arg10[%c1_99, %c0_100, %c3_101, %c0_102, %c0_103] : memref<4x2x7x7x16xf32, #tpu.memory_space<vmem>>, vector<1x1x1x7x16xf32>
    %94 = vector.shape_cast %93 : vector<1x1x1x7x16xf32> to vector<7x16xf32>
    %95 = vector.shape_cast %92 : vector<7x16xf32> to vector<1x1x1x7x16xf32>
    tpu.vector_store %arg10[%c1_99, %c0_100, %c3_101, %c0_102, %c0_103], %95 {strides = array<i32>} : memref<4x2x7x7x16xf32, #tpu.memory_space<vmem>>, vector<1x1x1x7x16xf32>,
    %96 = vector.extract_strided_slice %79 {offsets = [28, 0], sizes = [7, 16], strides = [1, 1]} : vector<49x16xf32> to vector<7x16xf32>
    %c1_104 = arith.constant 1 : index
    %c0_105 = arith.constant 0 : index
    %c4_106 = arith.constant 4 : index
    %c0_107 = arith.constant 0 : index
    %c0_108 = arith.constant 0 : index
    %97 = vector.load %arg10[%c1_104, %c0_105, %c4_106, %c0_107, %c0_108] : memref<4x2x7x7x16xf32, #tpu.memory_space<vmem>>, vector<1x1x1x7x16xf32>
    %98 = vector.shape_cast %97 : vector<1x1x1x7x16xf32> to vector<7x16xf32>
    %99 = vector.shape_cast %96 : vector<7x16xf32> to vector<1x1x1x7x16xf32>
    tpu.vector_store %arg10[%c1_104, %c0_105, %c4_106, %c0_107, %c0_108], %99 {strides = array<i32>} : memref<4x2x7x7x16xf32, #tpu.memory_space<vmem>>, vector<1x1x1x7x16xf32>,
    %100 = vector.extract_strided_slice %79 {offsets = [35, 0], sizes = [7, 16], strides = [1, 1]} : vector<49x16xf32> to vector<7x16xf32>
    %c1_109 = arith.constant 1 : index
    %c0_110 = arith.constant 0 : index
    %c5_111 = arith.constant 5 : index
    %c0_112 = arith.constant 0 : index
    %c0_113 = arith.constant 0 : index
    %101 = vector.load %arg10[%c1_109, %c0_110, %c5_111, %c0_112, %c0_113] : memref<4x2x7x7x16xf32, #tpu.memory_space<vmem>>, vector<1x1x1x7x16xf32>
    %102 = vector.shape_cast %101 : vector<1x1x1x7x16xf32> to vector<7x16xf32>
    %103 = vector.shape_cast %100 : vector<7x16xf32> to vector<1x1x1x7x16xf32>
    tpu.vector_store %arg10[%c1_109, %c0_110, %c5_111, %c0_112, %c0_113], %103 {strides = array<i32>} : memref<4x2x7x7x16xf32, #tpu.memory_space<vmem>>, vector<1x1x1x7x16xf32>,
    %104 = vector.extract_strided_slice %79 {offsets = [42, 0], sizes = [7, 16], strides = [1, 1]} : vector<49x16xf32> to vector<7x16xf32>
    %c1_114 = arith.constant 1 : index
    %c0_115 = arith.constant 0 : index
    %c6_116 = arith.constant 6 : index
    %c0_117 = arith.constant 0 : index
    %c0_118 = arith.constant 0 : index
    %105 = vector.load %arg10[%c1_114, %c0_115, %c6_116, %c0_117, %c0_118] : memref<4x2x7x7x16xf32, #tpu.memory_space<vmem>>, vector<1x1x1x7x16xf32>
    %106 = vector.shape_cast %105 : vector<1x1x1x7x16xf32> to vector<7x16xf32>
    %107 = vector.shape_cast %104 : vector<7x16xf32> to vector<1x1x1x7x16xf32>
    tpu.vector_store %arg10[%c1_114, %c0_115, %c6_116, %c0_117, %c0_118], %107 {strides = array<i32>} : memref<4x2x7x7x16xf32, #tpu.memory_space<vmem>>, vector<1x1x1x7x16xf32>,
    %c147 = arith.constant 147 : index
    %c0_119 = arith.constant 0 : index
    %108 = vector.load %arg0[%c147, %c0_119] : memref<392x64xbf16, #tpu.memory_space<vmem>>, vector<49x64xbf16>
    %c0_120 = arith.constant 0 : index
    %c0_121 = arith.constant 0 : index
    %109 = vector.load %arg1[%c0_120, %c0_121] : memref<64x16xbf16, #tpu.memory_space<vmem>>, vector<64x16xbf16>
    %cst_122 = arith.constant dense<0.000000e+00> : vector<49x16xf32>
    %110 = tpu.matmul %108, %109, %cst_122 {dimension_numbers = #tpu.dot_dimension_numbers<[1], [0], [0], [1], [0, 0, 1, 1], [], []>} : vector<49x64xbf16>, vector<64x16xbf16>, vector<49x16xf32> -> vector<49x16xf32>
    %c0_123 = arith.constant 0 : index
    %c0_124 = arith.constant 0 : index
    %111 = vector.load %arg2[%c0_123, %c0_124] : memref<1x16xf32, #tpu.memory_space<vmem>>, vector<1x16xf32>
    %112 = vector.broadcast %111 : vector<1x16xf32> to vector<49x16xf32>
    %113 = arith.addf %110, %112 : vector<49x16xf32>
    %cst_125 = arith.constant 0.000000e+00 : f32
    %114 = vector.broadcast %cst_125 : f32 to vector<49x16xf32>
    %115 = arith.maximumf %113, %114 : vector<49x16xf32>
    %116 = vector.extract_strided_slice %115 {offsets = [0, 0], sizes = [7, 16], strides = [1, 1]} : vector<49x16xf32> to vector<7x16xf32>
    %c1_126 = arith.constant 1 : index
    %c1_127 = arith.constant 1 : index
    %c0_128 = arith.constant 0 : index
    %c0_129 = arith.constant 0 : index
    %c0_130 = arith.constant 0 : index
    %117 = vector.load %arg10[%c1_126, %c1_127, %c0_128, %c0_129, %c0_130] : memref<4x2x7x7x16xf32, #tpu.memory_space<vmem>>, vector<1x1x1x7x16xf32>
    %118 = vector.shape_cast %117 : vector<1x1x1x7x16xf32> to vector<7x16xf32>
    %119 = vector.shape_cast %116 : vector<7x16xf32> to vector<1x1x1x7x16xf32>
    tpu.vector_store %arg10[%c1_126, %c1_127, %c0_128, %c0_129, %c0_130], %119 {strides = array<i32>} : memref<4x2x7x7x16xf32, #tpu.memory_space<vmem>>, vector<1x1x1x7x16xf32>,
    %120 = vector.extract_strided_slice %115 {offsets = [7, 0], sizes = [7, 16], strides = [1, 1]} : vector<49x16xf32> to vector<7x16xf32>
    %c1_131 = arith.constant 1 : index
    %c1_132 = arith.constant 1 : index
    %c1_133 = arith.constant 1 : index
    %c0_134 = arith.constant 0 : index
    %c0_135 = arith.constant 0 : index
    %121 = vector.load %arg10[%c1_131, %c1_132, %c1_133, %c0_134, %c0_135] : memref<4x2x7x7x16xf32, #tpu.memory_space<vmem>>, vector<1x1x1x7x16xf32>
    %122 = vector.shape_cast %121 : vector<1x1x1x7x16xf32> to vector<7x16xf32>
    %123 = vector.shape_cast %120 : vector<7x16xf32> to vector<1x1x1x7x16xf32>
    tpu.vector_store %arg10[%c1_131, %c1_132, %c1_133, %c0_134, %c0_135], %123 {strides = array<i32>} : memref<4x2x7x7x16xf32, #tpu.memory_space<vmem>>, vector<1x1x1x7x16xf32>,
    %124 = vector.extract_strided_slice %115 {offsets = [14, 0], sizes = [7, 16], strides = [1, 1]} : vector<49x16xf32> to vector<7x16xf32>
    %c1_136 = arith.constant 1 : index
    %c1_137 = arith.constant 1 : index
    %c2_138 = arith.constant 2 : index
    %c0_139 = arith.constant 0 : index
    %c0_140 = arith.constant 0 : index
    %125 = vector.load %arg10[%c1_136, %c1_137, %c2_138, %c0_139, %c0_140] : memref<4x2x7x7x16xf32, #tpu.memory_space<vmem>>, vector<1x1x1x7x16xf32>
    %126 = vector.shape_cast %125 : vector<1x1x1x7x16xf32> to vector<7x16xf32>
    %127 = vector.shape_cast %124 : vector<7x16xf32> to vector<1x1x1x7x16xf32>
    tpu.vector_store %arg10[%c1_136, %c1_137, %c2_138, %c0_139, %c0_140], %127 {strides = array<i32>} : memref<4x2x7x7x16xf32, #tpu.memory_space<vmem>>, vector<1x1x1x7x16xf32>,
    %128 = vector.extract_strided_slice %115 {offsets = [21, 0], sizes = [7, 16], strides = [1, 1]} : vector<49x16xf32> to vector<7x16xf32>
    %c1_141 = arith.constant 1 : index
    %c1_142 = arith.constant 1 : index
    %c3_143 = arith.constant 3 : index
    %c0_144 = arith.constant 0 : index
    %c0_145 = arith.constant 0 : index
    %129 = vector.load %arg10[%c1_141, %c1_142, %c3_143, %c0_144, %c0_145] : memref<4x2x7x7x16xf32, #tpu.memory_space<vmem>>, vector<1x1x1x7x16xf32>
    %130 = vector.shape_cast %129 : vector<1x1x1x7x16xf32> to vector<7x16xf32>
    %131 = vector.shape_cast %128 : vector<7x16xf32> to vector<1x1x1x7x16xf32>
    tpu.vector_store %arg10[%c1_141, %c1_142, %c3_143, %c0_144, %c0_145], %131 {strides = array<i32>} : memref<4x2x7x7x16xf32, #tpu.memory_space<vmem>>, vector<1x1x1x7x16xf32>,
    %132 = vector.extract_strided_slice %115 {offsets = [28, 0], sizes = [7, 16], strides = [1, 1]} : vector<49x16xf32> to vector<7x16xf32>
    %c1_146 = arith.constant 1 : index
    %c1_147 = arith.constant 1 : index
    %c4_148 = arith.constant 4 : index
    %c0_149 = arith.constant 0 : index
    %c0_150 = arith.constant 0 : index
    %133 = vector.load %arg10[%c1_146, %c1_147, %c4_148, %c0_149, %c0_150] : memref<4x2x7x7x16xf32, #tpu.memory_space<vmem>>, vector<1x1x1x7x16xf32>
    %134 = vector.shape_cast %133 : vector<1x1x1x7x16xf32> to vector<7x16xf32>
    %135 = vector.shape_cast %132 : vector<7x16xf32> to vector<1x1x1x7x16xf32>
    tpu.vector_store %arg10[%c1_146, %c1_147, %c4_148, %c0_149, %c0_150], %135 {strides = array<i32>} : memref<4x2x7x7x16xf32, #tpu.memory_space<vmem>>, vector<1x1x1x7x16xf32>,
    %136 = vector.extract_strided_slice %115 {offsets = [35, 0], sizes = [7, 16], strides = [1, 1]} : vector<49x16xf32> to vector<7x16xf32>
    %c1_151 = arith.constant 1 : index
    %c1_152 = arith.constant 1 : index
    %c5_153 = arith.constant 5 : index
    %c0_154 = arith.constant 0 : index
    %c0_155 = arith.constant 0 : index
    %137 = vector.load %arg10[%c1_151, %c1_152, %c5_153, %c0_154, %c0_155] : memref<4x2x7x7x16xf32, #tpu.memory_space<vmem>>, vector<1x1x1x7x16xf32>
    %138 = vector.shape_cast %137 : vector<1x1x1x7x16xf32> to vector<7x16xf32>
    %139 = vector.shape_cast %136 : vector<7x16xf32> to vector<1x1x1x7x16xf32>
    tpu.vector_store %arg10[%c1_151, %c1_152, %c5_153, %c0_154, %c0_155], %139 {strides = array<i32>} : memref<4x2x7x7x16xf32, #tpu.memory_space<vmem>>, vector<1x1x1x7x16xf32>,
    %140 = vector.extract_strided_slice %115 {offsets = [42, 0], sizes = [7, 16], strides = [1, 1]} : vector<49x16xf32> to vector<7x16xf32>
    %c1_156 = arith.constant 1 : index
    %c1_157 = arith.constant 1 : index
    %c6_158 = arith.constant 6 : index
    %c0_159 = arith.constant 0 : index
    %c0_160 = arith.constant 0 : index
    %141 = vector.load %arg10[%c1_156, %c1_157, %c6_158, %c0_159, %c0_160] : memref<4x2x7x7x16xf32, #tpu.memory_space<vmem>>, vector<1x1x1x7x16xf32>
    %142 = vector.shape_cast %141 : vector<1x1x1x7x16xf32> to vector<7x16xf32>
    %143 = vector.shape_cast %140 : vector<7x16xf32> to vector<1x1x1x7x16xf32>
    tpu.vector_store %arg10[%c1_156, %c1_157, %c6_158, %c0_159, %c0_160], %143 {strides = array<i32>} : memref<4x2x7x7x16xf32, #tpu.memory_space<vmem>>, vector<1x1x1x7x16xf32>,
    %c196 = arith.constant 196 : index
    %c0_161 = arith.constant 0 : index
    %144 = vector.load %arg0[%c196, %c0_161] : memref<392x64xbf16, #tpu.memory_space<vmem>>, vector<49x64xbf16>
    %c0_162 = arith.constant 0 : index
    %c0_163 = arith.constant 0 : index
    %145 = vector.load %arg1[%c0_162, %c0_163] : memref<64x16xbf16, #tpu.memory_space<vmem>>, vector<64x16xbf16>
    %cst_164 = arith.constant dense<0.000000e+00> : vector<49x16xf32>
    %146 = tpu.matmul %144, %145, %cst_164 {dimension_numbers = #tpu.dot_dimension_numbers<[1], [0], [0], [1], [0, 0, 1, 1], [], []>} : vector<49x64xbf16>, vector<64x16xbf16>, vector<49x16xf32> -> vector<49x16xf32>
    %c0_165 = arith.constant 0 : index
    %c0_166 = arith.constant 0 : index
    %147 = vector.load %arg2[%c0_165, %c0_166] : memref<1x16xf32, #tpu.memory_space<vmem>>, vector<1x16xf32>
    %148 = vector.broadcast %147 : vector<1x16xf32> to vector<49x16xf32>
    %149 = arith.addf %146, %148 : vector<49x16xf32>
    %cst_167 = arith.constant 0.000000e+00 : f32
    %150 = vector.broadcast %cst_167 : f32 to vector<49x16xf32>
    %151 = arith.maximumf %149, %150 : vector<49x16xf32>
    %152 = vector.extract_strided_slice %151 {offsets = [0, 0], sizes = [7, 16], strides = [1, 1]} : vector<49x16xf32> to vector<7x16xf32>
    %c2_168 = arith.constant 2 : index
    %c0_169 = arith.constant 0 : index
    %c0_170 = arith.constant 0 : index
    %c0_171 = arith.constant 0 : index
    %c0_172 = arith.constant 0 : index
    %153 = vector.load %arg10[%c2_168, %c0_169, %c0_170, %c0_171, %c0_172] : memref<4x2x7x7x16xf32, #tpu.memory_space<vmem>>, vector<1x1x1x7x16xf32>
    %154 = vector.shape_cast %153 : vector<1x1x1x7x16xf32> to vector<7x16xf32>
    %155 = vector.shape_cast %152 : vector<7x16xf32> to vector<1x1x1x7x16xf32>
    tpu.vector_store %arg10[%c2_168, %c0_169, %c0_170, %c0_171, %c0_172], %155 {strides = array<i32>} : memref<4x2x7x7x16xf32, #tpu.memory_space<vmem>>, vector<1x1x1x7x16xf32>,
    %156 = vector.extract_strided_slice %151 {offsets = [7, 0], sizes = [7, 16], strides = [1, 1]} : vector<49x16xf32> to vector<7x16xf32>
    %c2_173 = arith.constant 2 : index
    %c0_174 = arith.constant 0 : index
    %c1_175 = arith.constant 1 : index
    %c0_176 = arith.constant 0 : index
    %c0_177 = arith.constant 0 : index
    %157 = vector.load %arg10[%c2_173, %c0_174, %c1_175, %c0_176, %c0_177] : memref<4x2x7x7x16xf32, #tpu.memory_space<vmem>>, vector<1x1x1x7x16xf32>
    %158 = vector.shape_cast %157 : vector<1x1x1x7x16xf32> to vector<7x16xf32>
    %159 = vector.shape_cast %156 : vector<7x16xf32> to vector<1x1x1x7x16xf32>
    tpu.vector_store %arg10[%c2_173, %c0_174, %c1_175, %c0_176, %c0_177], %159 {strides = array<i32>} : memref<4x2x7x7x16xf32, #tpu.memory_space<vmem>>, vector<1x1x1x7x16xf32>,
    %160 = vector.extract_strided_slice %151 {offsets = [14, 0], sizes = [7, 16], strides = [1, 1]} : vector<49x16xf32> to vector<7x16xf32>
    %c2_178 = arith.constant 2 : index
    %c0_179 = arith.constant 0 : index
    %c2_180 = arith.constant 2 : index
    %c0_181 = arith.constant 0 : index
    %c0_182 = arith.constant 0 : index
    %161 = vector.load %arg10[%c2_178, %c0_179, %c2_180, %c0_181, %c0_182] : memref<4x2x7x7x16xf32, #tpu.memory_space<vmem>>, vector<1x1x1x7x16xf32>
    %162 = vector.shape_cast %161 : vector<1x1x1x7x16xf32> to vector<7x16xf32>
    %163 = vector.shape_cast %160 : vector<7x16xf32> to vector<1x1x1x7x16xf32>
    tpu.vector_store %arg10[%c2_178, %c0_179, %c2_180, %c0_181, %c0_182], %163 {strides = array<i32>} : memref<4x2x7x7x16xf32, #tpu.memory_space<vmem>>, vector<1x1x1x7x16xf32>,
    %164 = vector.extract_strided_slice %151 {offsets = [21, 0], sizes = [7, 16], strides = [1, 1]} : vector<49x16xf32> to vector<7x16xf32>
    %c2_183 = arith.constant 2 : index
    %c0_184 = arith.constant 0 : index
    %c3_185 = arith.constant 3 : index
    %c0_186 = arith.constant 0 : index
    %c0_187 = arith.constant 0 : index
    %165 = vector.load %arg10[%c2_183, %c0_184, %c3_185, %c0_186, %c0_187] : memref<4x2x7x7x16xf32, #tpu.memory_space<vmem>>, vector<1x1x1x7x16xf32>
    %166 = vector.shape_cast %165 : vector<1x1x1x7x16xf32> to vector<7x16xf32>
    %167 = vector.shape_cast %164 : vector<7x16xf32> to vector<1x1x1x7x16xf32>
    tpu.vector_store %arg10[%c2_183, %c0_184, %c3_185, %c0_186, %c0_187], %167 {strides = array<i32>} : memref<4x2x7x7x16xf32, #tpu.memory_space<vmem>>, vector<1x1x1x7x16xf32>,
    %168 = vector.extract_strided_slice %151 {offsets = [28, 0], sizes = [7, 16], strides = [1, 1]} : vector<49x16xf32> to vector<7x16xf32>
    %c2_188 = arith.constant 2 : index
    %c0_189 = arith.constant 0 : index
    %c4_190 = arith.constant 4 : index
    %c0_191 = arith.constant 0 : index
    %c0_192 = arith.constant 0 : index
    %169 = vector.load %arg10[%c2_188, %c0_189, %c4_190, %c0_191, %c0_192] : memref<4x2x7x7x16xf32, #tpu.memory_space<vmem>>, vector<1x1x1x7x16xf32>
    %170 = vector.shape_cast %169 : vector<1x1x1x7x16xf32> to vector<7x16xf32>
    %171 = vector.shape_cast %168 : vector<7x16xf32> to vector<1x1x1x7x16xf32>
    tpu.vector_store %arg10[%c2_188, %c0_189, %c4_190, %c0_191, %c0_192], %171 {strides = array<i32>} : memref<4x2x7x7x16xf32, #tpu.memory_space<vmem>>, vector<1x1x1x7x16xf32>,
    %172 = vector.extract_strided_slice %151 {offsets = [35, 0], sizes = [7, 16], strides = [1, 1]} : vector<49x16xf32> to vector<7x16xf32>
    %c2_193 = arith.constant 2 : index
    %c0_194 = arith.constant 0 : index
    %c5_195 = arith.constant 5 : index
    %c0_196 = arith.constant 0 : index
    %c0_197 = arith.constant 0 : index
    %173 = vector.load %arg10[%c2_193, %c0_194, %c5_195, %c0_196, %c0_197] : memref<4x2x7x7x16xf32, #tpu.memory_space<vmem>>, vector<1x1x1x7x16xf32>
    %174 = vector.shape_cast %173 : vector<1x1x1x7x16xf32> to vector<7x16xf32>
    %175 = vector.shape_cast %172 : vector<7x16xf32> to vector<1x1x1x7x16xf32>
    tpu.vector_store %arg10[%c2_193, %c0_194, %c5_195, %c0_196, %c0_197], %175 {strides = array<i32>} : memref<4x2x7x7x16xf32, #tpu.memory_space<vmem>>, vector<1x1x1x7x16xf32>,
    %176 = vector.extract_strided_slice %151 {offsets = [42, 0], sizes = [7, 16], strides = [1, 1]} : vector<49x16xf32> to vector<7x16xf32>
    %c2_198 = arith.constant 2 : index
    %c0_199 = arith.constant 0 : index
    %c6_200 = arith.constant 6 : index
    %c0_201 = arith.constant 0 : index
    %c0_202 = arith.constant 0 : index
    %177 = vector.load %arg10[%c2_198, %c0_199, %c6_200, %c0_201, %c0_202] : memref<4x2x7x7x16xf32, #tpu.memory_space<vmem>>, vector<1x1x1x7x16xf32>
    %178 = vector.shape_cast %177 : vector<1x1x1x7x16xf32> to vector<7x16xf32>
    %179 = vector.shape_cast %176 : vector<7x16xf32> to vector<1x1x1x7x16xf32>
    tpu.vector_store %arg10[%c2_198, %c0_199, %c6_200, %c0_201, %c0_202], %179 {strides = array<i32>} : memref<4x2x7x7x16xf32, #tpu.memory_space<vmem>>, vector<1x1x1x7x16xf32>,
    %c245 = arith.constant 245 : index
    %c0_203 = arith.constant 0 : index
    %180 = vector.load %arg0[%c245, %c0_203] : memref<392x64xbf16, #tpu.memory_space<vmem>>, vector<49x64xbf16>
    %c0_204 = arith.constant 0 : index
    %c0_205 = arith.constant 0 : index
    %181 = vector.load %arg1[%c0_204, %c0_205] : memref<64x16xbf16, #tpu.memory_space<vmem>>, vector<64x16xbf16>
    %cst_206 = arith.constant dense<0.000000e+00> : vector<49x16xf32>
    %182 = tpu.matmul %180, %181, %cst_206 {dimension_numbers = #tpu.dot_dimension_numbers<[1], [0], [0], [1], [0, 0, 1, 1], [], []>} : vector<49x64xbf16>, vector<64x16xbf16>, vector<49x16xf32> -> vector<49x16xf32>
    %c0_207 = arith.constant 0 : index
    %c0_208 = arith.constant 0 : index
    %183 = vector.load %arg2[%c0_207, %c0_208] : memref<1x16xf32, #tpu.memory_space<vmem>>, vector<1x16xf32>
    %184 = vector.broadcast %183 : vector<1x16xf32> to vector<49x16xf32>
    %185 = arith.addf %182, %184 : vector<49x16xf32>
    %cst_209 = arith.constant 0.000000e+00 : f32
    %186 = vector.broadcast %cst_209 : f32 to vector<49x16xf32>
    %187 = arith.maximumf %185, %186 : vector<49x16xf32>
    %188 = vector.extract_strided_slice %187 {offsets = [0, 0], sizes = [7, 16], strides = [1, 1]} : vector<49x16xf32> to vector<7x16xf32>
    %c2_210 = arith.constant 2 : index
    %c1_211 = arith.constant 1 : index
    %c0_212 = arith.constant 0 : index
    %c0_213 = arith.constant 0 : index
    %c0_214 = arith.constant 0 : index
    %189 = vector.load %arg10[%c2_210, %c1_211, %c0_212, %c0_213, %c0_214] : memref<4x2x7x7x16xf32, #tpu.memory_space<vmem>>, vector<1x1x1x7x16xf32>
    %190 = vector.shape_cast %189 : vector<1x1x1x7x16xf32> to vector<7x16xf32>
    %191 = vector.shape_cast %188 : vector<7x16xf32> to vector<1x1x1x7x16xf32>
    tpu.vector_store %arg10[%c2_210, %c1_211, %c0_212, %c0_213, %c0_214], %191 {strides = array<i32>} : memref<4x2x7x7x16xf32, #tpu.memory_space<vmem>>, vector<1x1x1x7x16xf32>,
    %192 = vector.extract_strided_slice %187 {offsets = [7, 0], sizes = [7, 16], strides = [1, 1]} : vector<49x16xf32> to vector<7x16xf32>
    %c2_215 = arith.constant 2 : index
    %c1_216 = arith.constant 1 : index
    %c1_217 = arith.constant 1 : index
    %c0_218 = arith.constant 0 : index
    %c0_219 = arith.constant 0 : index
    %193 = vector.load %arg10[%c2_215, %c1_216, %c1_217, %c0_218, %c0_219] : memref<4x2x7x7x16xf32, #tpu.memory_space<vmem>>, vector<1x1x1x7x16xf32>
    %194 = vector.shape_cast %193 : vector<1x1x1x7x16xf32> to vector<7x16xf32>
    %195 = vector.shape_cast %192 : vector<7x16xf32> to vector<1x1x1x7x16xf32>
    tpu.vector_store %arg10[%c2_215, %c1_216, %c1_217, %c0_218, %c0_219], %195 {strides = array<i32>} : memref<4x2x7x7x16xf32, #tpu.memory_space<vmem>>, vector<1x1x1x7x16xf32>,
    %196 = vector.extract_strided_slice %187 {offsets = [14, 0], sizes = [7, 16], strides = [1, 1]} : vector<49x16xf32> to vector<7x16xf32>
    %c2_220 = arith.constant 2 : index
    %c1_221 = arith.constant 1 : index
    %c2_222 = arith.constant 2 : index
    %c0_223 = arith.constant 0 : index
    %c0_224 = arith.constant 0 : index
    %197 = vector.load %arg10[%c2_220, %c1_221, %c2_222, %c0_223, %c0_224] : memref<4x2x7x7x16xf32, #tpu.memory_space<vmem>>, vector<1x1x1x7x16xf32>
    %198 = vector.shape_cast %197 : vector<1x1x1x7x16xf32> to vector<7x16xf32>
    %199 = vector.shape_cast %196 : vector<7x16xf32> to vector<1x1x1x7x16xf32>
    tpu.vector_store %arg10[%c2_220, %c1_221, %c2_222, %c0_223, %c0_224], %199 {strides = array<i32>} : memref<4x2x7x7x16xf32, #tpu.memory_space<vmem>>, vector<1x1x1x7x16xf32>,
    %200 = vector.extract_strided_slice %187 {offsets = [21, 0], sizes = [7, 16], strides = [1, 1]} : vector<49x16xf32> to vector<7x16xf32>
    %c2_225 = arith.constant 2 : index
    %c1_226 = arith.constant 1 : index
    %c3_227 = arith.constant 3 : index
    %c0_228 = arith.constant 0 : index
    %c0_229 = arith.constant 0 : index
    %201 = vector.load %arg10[%c2_225, %c1_226, %c3_227, %c0_228, %c0_229] : memref<4x2x7x7x16xf32, #tpu.memory_space<vmem>>, vector<1x1x1x7x16xf32>
    %202 = vector.shape_cast %201 : vector<1x1x1x7x16xf32> to vector<7x16xf32>
    %203 = vector.shape_cast %200 : vector<7x16xf32> to vector<1x1x1x7x16xf32>
    tpu.vector_store %arg10[%c2_225, %c1_226, %c3_227, %c0_228, %c0_229], %203 {strides = array<i32>} : memref<4x2x7x7x16xf32, #tpu.memory_space<vmem>>, vector<1x1x1x7x16xf32>,
    %204 = vector.extract_strided_slice %187 {offsets = [28, 0], sizes = [7, 16], strides = [1, 1]} : vector<49x16xf32> to vector<7x16xf32>
    %c2_230 = arith.constant 2 : index
    %c1_231 = arith.constant 1 : index
    %c4_232 = arith.constant 4 : index
    %c0_233 = arith.constant 0 : index
    %c0_234 = arith.constant 0 : index
    %205 = vector.load %arg10[%c2_230, %c1_231, %c4_232, %c0_233, %c0_234] : memref<4x2x7x7x16xf32, #tpu.memory_space<vmem>>, vector<1x1x1x7x16xf32>
    %206 = vector.shape_cast %205 : vector<1x1x1x7x16xf32> to vector<7x16xf32>
    %207 = vector.shape_cast %204 : vector<7x16xf32> to vector<1x1x1x7x16xf32>
    tpu.vector_store %arg10[%c2_230, %c1_231, %c4_232, %c0_233, %c0_234], %207 {strides = array<i32>} : memref<4x2x7x7x16xf32, #tpu.memory_space<vmem>>, vector<1x1x1x7x16xf32>,
    %208 = vector.extract_strided_slice %187 {offsets = [35, 0], sizes = [7, 16], strides = [1, 1]} : vector<49x16xf32> to vector<7x16xf32>
    %c2_235 = arith.constant 2 : index
    %c1_236 = arith.constant 1 : index
    %c5_237 = arith.constant 5 : index
    %c0_238 = arith.constant 0 : index
    %c0_239 = arith.constant 0 : index
    %209 = vector.load %arg10[%c2_235, %c1_236, %c5_237, %c0_238, %c0_239] : memref<4x2x7x7x16xf32, #tpu.memory_space<vmem>>, vector<1x1x1x7x16xf32>
    %210 = vector.shape_cast %209 : vector<1x1x1x7x16xf32> to vector<7x16xf32>
    %211 = vector.shape_cast %208 : vector<7x16xf32> to vector<1x1x1x7x16xf32>
    tpu.vector_store %arg10[%c2_235, %c1_236, %c5_237, %c0_238, %c0_239], %211 {strides = array<i32>} : memref<4x2x7x7x16xf32, #tpu.memory_space<vmem>>, vector<1x1x1x7x16xf32>,
    %212 = vector.extract_strided_slice %187 {offsets = [42, 0], sizes = [7, 16], strides = [1, 1]} : vector<49x16xf32> to vector<7x16xf32>
    %c2_240 = arith.constant 2 : index
    %c1_241 = arith.constant 1 : index
    %c6_242 = arith.constant 6 : index
    %c0_243 = arith.constant 0 : index
    %c0_244 = arith.constant 0 : index
    %213 = vector.load %arg10[%c2_240, %c1_241, %c6_242, %c0_243, %c0_244] : memref<4x2x7x7x16xf32, #tpu.memory_space<vmem>>, vector<1x1x1x7x16xf32>
    %214 = vector.shape_cast %213 : vector<1x1x1x7x16xf32> to vector<7x16xf32>
    %215 = vector.shape_cast %212 : vector<7x16xf32> to vector<1x1x1x7x16xf32>
    tpu.vector_store %arg10[%c2_240, %c1_241, %c6_242, %c0_243, %c0_244], %215 {strides = array<i32>} : memref<4x2x7x7x16xf32, #tpu.memory_space<vmem>>, vector<1x1x1x7x16xf32>,
    %c294 = arith.constant 294 : index
    %c0_245 = arith.constant 0 : index
    %216 = vector.load %arg0[%c294, %c0_245] : memref<392x64xbf16, #tpu.memory_space<vmem>>, vector<49x64xbf16>
    %c0_246 = arith.constant 0 : index
    %c0_247 = arith.constant 0 : index
    %217 = vector.load %arg1[%c0_246, %c0_247] : memref<64x16xbf16, #tpu.memory_space<vmem>>, vector<64x16xbf16>
    %cst_248 = arith.constant dense<0.000000e+00> : vector<49x16xf32>
    %218 = tpu.matmul %216, %217, %cst_248 {dimension_numbers = #tpu.dot_dimension_numbers<[1], [0], [0], [1], [0, 0, 1, 1], [], []>} : vector<49x64xbf16>, vector<64x16xbf16>, vector<49x16xf32> -> vector<49x16xf32>
    %c0_249 = arith.constant 0 : index
    %c0_250 = arith.constant 0 : index
    %219 = vector.load %arg2[%c0_249, %c0_250] : memref<1x16xf32, #tpu.memory_space<vmem>>, vector<1x16xf32>
    %220 = vector.broadcast %219 : vector<1x16xf32> to vector<49x16xf32>
    %221 = arith.addf %218, %220 : vector<49x16xf32>
    %cst_251 = arith.constant 0.000000e+00 : f32
    %222 = vector.broadcast %cst_251 : f32 to vector<49x16xf32>
    %223 = arith.maximumf %221, %222 : vector<49x16xf32>
    %224 = vector.extract_strided_slice %223 {offsets = [0, 0], sizes = [7, 16], strides = [1, 1]} : vector<49x16xf32> to vector<7x16xf32>
    %c3_252 = arith.constant 3 : index
    %c0_253 = arith.constant 0 : index
    %c0_254 = arith.constant 0 : index
    %c0_255 = arith.constant 0 : index
    %c0_256 = arith.constant 0 : index
    %225 = vector.load %arg10[%c3_252, %c0_253, %c0_254, %c0_255, %c0_256] : memref<4x2x7x7x16xf32, #tpu.memory_space<vmem>>, vector<1x1x1x7x16xf32>
    %226 = vector.shape_cast %225 : vector<1x1x1x7x16xf32> to vector<7x16xf32>
    %227 = vector.shape_cast %224 : vector<7x16xf32> to vector<1x1x1x7x16xf32>
    tpu.vector_store %arg10[%c3_252, %c0_253, %c0_254, %c0_255, %c0_256], %227 {strides = array<i32>} : memref<4x2x7x7x16xf32, #tpu.memory_space<vmem>>, vector<1x1x1x7x16xf32>,
    %228 = vector.extract_strided_slice %223 {offsets = [7, 0], sizes = [7, 16], strides = [1, 1]} : vector<49x16xf32> to vector<7x16xf32>
    %c3_257 = arith.constant 3 : index
    %c0_258 = arith.constant 0 : index
    %c1_259 = arith.constant 1 : index
    %c0_260 = arith.constant 0 : index
    %c0_261 = arith.constant 0 : index
    %229 = vector.load %arg10[%c3_257, %c0_258, %c1_259, %c0_260, %c0_261] : memref<4x2x7x7x16xf32, #tpu.memory_space<vmem>>, vector<1x1x1x7x16xf32>
    %230 = vector.shape_cast %229 : vector<1x1x1x7x16xf32> to vector<7x16xf32>
    %231 = vector.shape_cast %228 : vector<7x16xf32> to vector<1x1x1x7x16xf32>
    tpu.vector_store %arg10[%c3_257, %c0_258, %c1_259, %c0_260, %c0_261], %231 {strides = array<i32>} : memref<4x2x7x7x16xf32, #tpu.memory_space<vmem>>, vector<1x1x1x7x16xf32>,
    %232 = vector.extract_strided_slice %223 {offsets = [14, 0], sizes = [7, 16], strides = [1, 1]} : vector<49x16xf32> to vector<7x16xf32>
    %c3_262 = arith.constant 3 : index
    %c0_263 = arith.constant 0 : index
    %c2_264 = arith.constant 2 : index
    %c0_265 = arith.constant 0 : index
    %c0_266 = arith.constant 0 : index
    %233 = vector.load %arg10[%c3_262, %c0_263, %c2_264, %c0_265, %c0_266] : memref<4x2x7x7x16xf32, #tpu.memory_space<vmem>>, vector<1x1x1x7x16xf32>
    %234 = vector.shape_cast %233 : vector<1x1x1x7x16xf32> to vector<7x16xf32>
    %235 = vector.shape_cast %232 : vector<7x16xf32> to vector<1x1x1x7x16xf32>
    tpu.vector_store %arg10[%c3_262, %c0_263, %c2_264, %c0_265, %c0_266], %235 {strides = array<i32>} : memref<4x2x7x7x16xf32, #tpu.memory_space<vmem>>, vector<1x1x1x7x16xf32>,
    %236 = vector.extract_strided_slice %223 {offsets = [21, 0], sizes = [7, 16], strides = [1, 1]} : vector<49x16xf32> to vector<7x16xf32>
    %c3_267 = arith.constant 3 : index
    %c0_268 = arith.constant 0 : index
    %c3_269 = arith.constant 3 : index
    %c0_270 = arith.constant 0 : index
    %c0_271 = arith.constant 0 : index
    %237 = vector.load %arg10[%c3_267, %c0_268, %c3_269, %c0_270, %c0_271] : memref<4x2x7x7x16xf32, #tpu.memory_space<vmem>>, vector<1x1x1x7x16xf32>
    %238 = vector.shape_cast %237 : vector<1x1x1x7x16xf32> to vector<7x16xf32>
    %239 = vector.shape_cast %236 : vector<7x16xf32> to vector<1x1x1x7x16xf32>
    tpu.vector_store %arg10[%c3_267, %c0_268, %c3_269, %c0_270, %c0_271], %239 {strides = array<i32>} : memref<4x2x7x7x16xf32, #tpu.memory_space<vmem>>, vector<1x1x1x7x16xf32>,
    %240 = vector.extract_strided_slice %223 {offsets = [28, 0], sizes = [7, 16], strides = [1, 1]} : vector<49x16xf32> to vector<7x16xf32>
    %c3_272 = arith.constant 3 : index
    %c0_273 = arith.constant 0 : index
    %c4_274 = arith.constant 4 : index
    %c0_275 = arith.constant 0 : index
    %c0_276 = arith.constant 0 : index
    %241 = vector.load %arg10[%c3_272, %c0_273, %c4_274, %c0_275, %c0_276] : memref<4x2x7x7x16xf32, #tpu.memory_space<vmem>>, vector<1x1x1x7x16xf32>
    %242 = vector.shape_cast %241 : vector<1x1x1x7x16xf32> to vector<7x16xf32>
    %243 = vector.shape_cast %240 : vector<7x16xf32> to vector<1x1x1x7x16xf32>
    tpu.vector_store %arg10[%c3_272, %c0_273, %c4_274, %c0_275, %c0_276], %243 {strides = array<i32>} : memref<4x2x7x7x16xf32, #tpu.memory_space<vmem>>, vector<1x1x1x7x16xf32>,
    %244 = vector.extract_strided_slice %223 {offsets = [35, 0], sizes = [7, 16], strides = [1, 1]} : vector<49x16xf32> to vector<7x16xf32>
    %c3_277 = arith.constant 3 : index
    %c0_278 = arith.constant 0 : index
    %c5_279 = arith.constant 5 : index
    %c0_280 = arith.constant 0 : index
    %c0_281 = arith.constant 0 : index
    %245 = vector.load %arg10[%c3_277, %c0_278, %c5_279, %c0_280, %c0_281] : memref<4x2x7x7x16xf32, #tpu.memory_space<vmem>>, vector<1x1x1x7x16xf32>
    %246 = vector.shape_cast %245 : vector<1x1x1x7x16xf32> to vector<7x16xf32>
    %247 = vector.shape_cast %244 : vector<7x16xf32> to vector<1x1x1x7x16xf32>
    tpu.vector_store %arg10[%c3_277, %c0_278, %c5_279, %c0_280, %c0_281], %247 {strides = array<i32>} : memref<4x2x7x7x16xf32, #tpu.memory_space<vmem>>, vector<1x1x1x7x16xf32>,
    %248 = vector.extract_strided_slice %223 {offsets = [42, 0], sizes = [7, 16], strides = [1, 1]} : vector<49x16xf32> to vector<7x16xf32>
    %c3_282 = arith.constant 3 : index
    %c0_283 = arith.constant 0 : index
    %c6_284 = arith.constant 6 : index
    %c0_285 = arith.constant 0 : index
    %c0_286 = arith.constant 0 : index
    %249 = vector.load %arg10[%c3_282, %c0_283, %c6_284, %c0_285, %c0_286] : memref<4x2x7x7x16xf32, #tpu.memory_space<vmem>>, vector<1x1x1x7x16xf32>
    %250 = vector.shape_cast %249 : vector<1x1x1x7x16xf32> to vector<7x16xf32>
    %251 = vector.shape_cast %248 : vector<7x16xf32> to vector<1x1x1x7x16xf32>
    tpu.vector_store %arg10[%c3_282, %c0_283, %c6_284, %c0_285, %c0_286], %251 {strides = array<i32>} : memref<4x2x7x7x16xf32, #tpu.memory_space<vmem>>, vector<1x1x1x7x16xf32>,
    %c343 = arith.constant 343 : index
    %c0_287 = arith.constant 0 : index
    %252 = vector.load %arg0[%c343, %c0_287] : memref<392x64xbf16, #tpu.memory_space<vmem>>, vector<49x64xbf16>
    %c0_288 = arith.constant 0 : index
    %c0_289 = arith.constant 0 : index
    %253 = vector.load %arg1[%c0_288, %c0_289] : memref<64x16xbf16, #tpu.memory_space<vmem>>, vector<64x16xbf16>
    %cst_290 = arith.constant dense<0.000000e+00> : vector<49x16xf32>
    %254 = tpu.matmul %252, %253, %cst_290 {dimension_numbers = #tpu.dot_dimension_numbers<[1], [0], [0], [1], [0, 0, 1, 1], [], []>} : vector<49x64xbf16>, vector<64x16xbf16>, vector<49x16xf32> -> vector<49x16xf32>
    %c0_291 = arith.constant 0 : index
    %c0_292 = arith.constant 0 : index
    %255 = vector.load %arg2[%c0_291, %c0_292] : memref<1x16xf32, #tpu.memory_space<vmem>>, vector<1x16xf32>
    %256 = vector.broadcast %255 : vector<1x16xf32> to vector<49x16xf32>
    %257 = arith.addf %254, %256 : vector<49x16xf32>
    %cst_293 = arith.constant 0.000000e+00 : f32
    %258 = vector.broadcast %cst_293 : f32 to vector<49x16xf32>
    %259 = arith.maximumf %257, %258 : vector<49x16xf32>
    %260 = vector.extract_strided_slice %259 {offsets = [0, 0], sizes = [7, 16], strides = [1, 1]} : vector<49x16xf32> to vector<7x16xf32>
    %c3_294 = arith.constant 3 : index
    %c1_295 = arith.constant 1 : index
    %c0_296 = arith.constant 0 : index
    %c0_297 = arith.constant 0 : index
    %c0_298 = arith.constant 0 : index
    %261 = vector.load %arg10[%c3_294, %c1_295, %c0_296, %c0_297, %c0_298] : memref<4x2x7x7x16xf32, #tpu.memory_space<vmem>>, vector<1x1x1x7x16xf32>
    %262 = vector.shape_cast %261 : vector<1x1x1x7x16xf32> to vector<7x16xf32>
    %263 = vector.shape_cast %260 : vector<7x16xf32> to vector<1x1x1x7x16xf32>
    tpu.vector_store %arg10[%c3_294, %c1_295, %c0_296, %c0_297, %c0_298], %263 {strides = array<i32>} : memref<4x2x7x7x16xf32, #tpu.memory_space<vmem>>, vector<1x1x1x7x16xf32>,
    %264 = vector.extract_strided_slice %259 {offsets = [7, 0], sizes = [7, 16], strides = [1, 1]} : vector<49x16xf32> to vector<7x16xf32>
    %c3_299 = arith.constant 3 : index
    %c1_300 = arith.constant 1 : index
    %c1_301 = arith.constant 1 : index
    %c0_302 = arith.constant 0 : index
    %c0_303 = arith.constant 0 : index
    %265 = vector.load %arg10[%c3_299, %c1_300, %c1_301, %c0_302, %c0_303] : memref<4x2x7x7x16xf32, #tpu.memory_space<vmem>>, vector<1x1x1x7x16xf32>
    %266 = vector.shape_cast %265 : vector<1x1x1x7x16xf32> to vector<7x16xf32>
    %267 = vector.shape_cast %264 : vector<7x16xf32> to vector<1x1x1x7x16xf32>
    tpu.vector_store %arg10[%c3_299, %c1_300, %c1_301, %c0_302, %c0_303], %267 {strides = array<i32>} : memref<4x2x7x7x16xf32, #tpu.memory_space<vmem>>, vector<1x1x1x7x16xf32>,
    %268 = vector.extract_strided_slice %259 {offsets = [14, 0], sizes = [7, 16], strides = [1, 1]} : vector<49x16xf32> to vector<7x16xf32>
    %c3_304 = arith.constant 3 : index
    %c1_305 = arith.constant 1 : index
    %c2_306 = arith.constant 2 : index
    %c0_307 = arith.constant 0 : index
    %c0_308 = arith.constant 0 : index
    %269 = vector.load %arg10[%c3_304, %c1_305, %c2_306, %c0_307, %c0_308] : memref<4x2x7x7x16xf32, #tpu.memory_space<vmem>>, vector<1x1x1x7x16xf32>
    %270 = vector.shape_cast %269 : vector<1x1x1x7x16xf32> to vector<7x16xf32>
    %271 = vector.shape_cast %268 : vector<7x16xf32> to vector<1x1x1x7x16xf32>
    tpu.vector_store %arg10[%c3_304, %c1_305, %c2_306, %c0_307, %c0_308], %271 {strides = array<i32>} : memref<4x2x7x7x16xf32, #tpu.memory_space<vmem>>, vector<1x1x1x7x16xf32>,
    %272 = vector.extract_strided_slice %259 {offsets = [21, 0], sizes = [7, 16], strides = [1, 1]} : vector<49x16xf32> to vector<7x16xf32>
    %c3_309 = arith.constant 3 : index
    %c1_310 = arith.constant 1 : index
    %c3_311 = arith.constant 3 : index
    %c0_312 = arith.constant 0 : index
    %c0_313 = arith.constant 0 : index
    %273 = vector.load %arg10[%c3_309, %c1_310, %c3_311, %c0_312, %c0_313] : memref<4x2x7x7x16xf32, #tpu.memory_space<vmem>>, vector<1x1x1x7x16xf32>
    %274 = vector.shape_cast %273 : vector<1x1x1x7x16xf32> to vector<7x16xf32>
    %275 = vector.shape_cast %272 : vector<7x16xf32> to vector<1x1x1x7x16xf32>
    tpu.vector_store %arg10[%c3_309, %c1_310, %c3_311, %c0_312, %c0_313], %275 {strides = array<i32>} : memref<4x2x7x7x16xf32, #tpu.memory_space<vmem>>, vector<1x1x1x7x16xf32>,
    %276 = vector.extract_strided_slice %259 {offsets = [28, 0], sizes = [7, 16], strides = [1, 1]} : vector<49x16xf32> to vector<7x16xf32>
    %c3_314 = arith.constant 3 : index
    %c1_315 = arith.constant 1 : index
    %c4_316 = arith.constant 4 : index
    %c0_317 = arith.constant 0 : index
    %c0_318 = arith.constant 0 : index
    %277 = vector.load %arg10[%c3_314, %c1_315, %c4_316, %c0_317, %c0_318] : memref<4x2x7x7x16xf32, #tpu.memory_space<vmem>>, vector<1x1x1x7x16xf32>
    %278 = vector.shape_cast %277 : vector<1x1x1x7x16xf32> to vector<7x16xf32>
    %279 = vector.shape_cast %276 : vector<7x16xf32> to vector<1x1x1x7x16xf32>
    tpu.vector_store %arg10[%c3_314, %c1_315, %c4_316, %c0_317, %c0_318], %279 {strides = array<i32>} : memref<4x2x7x7x16xf32, #tpu.memory_space<vmem>>, vector<1x1x1x7x16xf32>,
    %280 = vector.extract_strided_slice %259 {offsets = [35, 0], sizes = [7, 16], strides = [1, 1]} : vector<49x16xf32> to vector<7x16xf32>
    %c3_319 = arith.constant 3 : index
    %c1_320 = arith.constant 1 : index
    %c5_321 = arith.constant 5 : index
    %c0_322 = arith.constant 0 : index
    %c0_323 = arith.constant 0 : index
    %281 = vector.load %arg10[%c3_319, %c1_320, %c5_321, %c0_322, %c0_323] : memref<4x2x7x7x16xf32, #tpu.memory_space<vmem>>, vector<1x1x1x7x16xf32>
    %282 = vector.shape_cast %281 : vector<1x1x1x7x16xf32> to vector<7x16xf32>
    %283 = vector.shape_cast %280 : vector<7x16xf32> to vector<1x1x1x7x16xf32>
    tpu.vector_store %arg10[%c3_319, %c1_320, %c5_321, %c0_322, %c0_323], %283 {strides = array<i32>} : memref<4x2x7x7x16xf32, #tpu.memory_space<vmem>>, vector<1x1x1x7x16xf32>,
    %284 = vector.extract_strided_slice %259 {offsets = [42, 0], sizes = [7, 16], strides = [1, 1]} : vector<49x16xf32> to vector<7x16xf32>
    %c3_324 = arith.constant 3 : index
    %c1_325 = arith.constant 1 : index
    %c6_326 = arith.constant 6 : index
    %c0_327 = arith.constant 0 : index
    %c0_328 = arith.constant 0 : index
    %285 = vector.load %arg10[%c3_324, %c1_325, %c6_326, %c0_327, %c0_328] : memref<4x2x7x7x16xf32, #tpu.memory_space<vmem>>, vector<1x1x1x7x16xf32>
    %286 = vector.shape_cast %285 : vector<1x1x1x7x16xf32> to vector<7x16xf32>
    %287 = vector.shape_cast %284 : vector<7x16xf32> to vector<1x1x1x7x16xf32>
    tpu.vector_store %arg10[%c3_324, %c1_325, %c6_326, %c0_327, %c0_328], %287 {strides = array<i32>} : memref<4x2x7x7x16xf32, #tpu.memory_space<vmem>>, vector<1x1x1x7x16xf32>,
    %c0_329 = arith.constant 0 : index
    %c0_330 = arith.constant 0 : index
    %c0_331 = arith.constant 0 : index
    %c0_332 = arith.constant 0 : index
    %c0_333 = arith.constant 0 : index
    %288 = vector.load %arg10[%c0_329, %c0_330, %c0_331, %c0_332, %c0_333] : memref<4x2x7x7x16xf32, #tpu.memory_space<vmem>>, vector<1x2x7x7x16xf32>
    %289 = vector.shape_cast %288 : vector<1x2x7x7x16xf32> to vector<2x7x7x16xf32>
    %c1_334 = arith.constant 1 : index
    %c0_335 = arith.constant 0 : index
    %c0_336 = arith.constant 0 : index
    %c0_337 = arith.constant 0 : index
    %c0_338 = arith.constant 0 : index
    %290 = vector.load %arg10[%c1_334, %c0_335, %c0_336, %c0_337, %c0_338] : memref<4x2x7x7x16xf32, #tpu.memory_space<vmem>>, vector<1x2x7x7x16xf32>
    %291 = vector.shape_cast %290 : vector<1x2x7x7x16xf32> to vector<2x7x7x16xf32>
    %292 = arith.maximumf %289, %291 : vector<2x7x7x16xf32>
    %c2_339 = arith.constant 2 : index
    %c0_340 = arith.constant 0 : index
    %c0_341 = arith.constant 0 : index
    %c0_342 = arith.constant 0 : index
    %c0_343 = arith.constant 0 : index
    %293 = vector.load %arg10[%c2_339, %c0_340, %c0_341, %c0_342, %c0_343] : memref<4x2x7x7x16xf32, #tpu.memory_space<vmem>>, vector<1x2x7x7x16xf32>
    %294 = vector.shape_cast %293 : vector<1x2x7x7x16xf32> to vector<2x7x7x16xf32>
    %295 = arith.maximumf %292, %294 : vector<2x7x7x16xf32>
    %c3_344 = arith.constant 3 : index
    %c0_345 = arith.constant 0 : index
    %c0_346 = arith.constant 0 : index
    %c0_347 = arith.constant 0 : index
    %c0_348 = arith.constant 0 : index
    %296 = vector.load %arg10[%c3_344, %c0_345, %c0_346, %c0_347, %c0_348] : memref<4x2x7x7x16xf32, #tpu.memory_space<vmem>>, vector<1x2x7x7x16xf32>
    %297 = vector.shape_cast %296 : vector<1x2x7x7x16xf32> to vector<2x7x7x16xf32>
    %298 = arith.maximumf %295, %297 : vector<2x7x7x16xf32>
    %299 = vector.extract_strided_slice %298 {offsets = [0, 0, 0, 0], sizes = [2, 5, 5, 16], strides = [1, 1, 1, 1]} : vector<2x7x7x16xf32> to vector<2x5x5x16xf32>
    %300 = arith.truncf %299 : vector<2x5x5x16xf32> to vector<2x5x5x16xbf16>
    %c0_349 = arith.constant 0 : index
    %c0_350 = arith.constant 0 : index
    %c0_351 = arith.constant 0 : index
    %c0_352 = arith.constant 0 : index
    %301 = vector.load %arg11[%c0_349, %c0_350, %c0_351, %c0_352] : memref<2x5x5x256xbf16, #tpu.memory_space<vmem>>, vector<2x5x5x16xbf16>
    tpu.vector_store %arg11[%c0_349, %c0_350, %c0_351, %c0_352], %300 {strides = array<i32>} : memref<2x5x5x256xbf16, #tpu.memory_space<vmem>>, vector<2x5x5x16xbf16>,
    %302 = vector.extract_strided_slice %298 {offsets = [0, 0, 1, 0], sizes = [2, 5, 5, 16], strides = [1, 1, 1, 1]} : vector<2x7x7x16xf32> to vector<2x5x5x16xf32>
    %303 = arith.truncf %302 : vector<2x5x5x16xf32> to vector<2x5x5x16xbf16>
    %c0_353 = arith.constant 0 : index
    %c0_354 = arith.constant 0 : index
    %c0_355 = arith.constant 0 : index
    %c32 = arith.constant 32 : index
    %304 = vector.load %arg11[%c0_353, %c0_354, %c0_355, %c32] : memref<2x5x5x256xbf16, #tpu.memory_space<vmem>>, vector<2x5x5x16xbf16>
    tpu.vector_store %arg11[%c0_353, %c0_354, %c0_355, %c32], %303 {strides = array<i32>} : memref<2x5x5x256xbf16, #tpu.memory_space<vmem>>, vector<2x5x5x16xbf16>,
    %305 = vector.extract_strided_slice %298 {offsets = [0, 1, 0, 0], sizes = [2, 5, 5, 16], strides = [1, 1, 1, 1]} : vector<2x7x7x16xf32> to vector<2x5x5x16xf32>
    %306 = arith.truncf %305 : vector<2x5x5x16xf32> to vector<2x5x5x16xbf16>
    %c0_356 = arith.constant 0 : index
    %c0_357 = arith.constant 0 : index
    %c0_358 = arith.constant 0 : index
    %c128 = arith.constant 128 : index
    %307 = vector.load %arg11[%c0_356, %c0_357, %c0_358, %c128] : memref<2x5x5x256xbf16, #tpu.memory_space<vmem>>, vector<2x5x5x16xbf16>
    tpu.vector_store %arg11[%c0_356, %c0_357, %c0_358, %c128], %306 {strides = array<i32>} : memref<2x5x5x256xbf16, #tpu.memory_space<vmem>>, vector<2x5x5x16xbf16>,
    %308 = vector.extract_strided_slice %298 {offsets = [0, 1, 1, 0], sizes = [2, 5, 5, 16], strides = [1, 1, 1, 1]} : vector<2x7x7x16xf32> to vector<2x5x5x16xf32>
    %309 = arith.truncf %308 : vector<2x5x5x16xf32> to vector<2x5x5x16xbf16>
    %c0_359 = arith.constant 0 : index
    %c0_360 = arith.constant 0 : index
    %c0_361 = arith.constant 0 : index
    %c160 = arith.constant 160 : index
    %310 = vector.load %arg11[%c0_359, %c0_360, %c0_361, %c160] : memref<2x5x5x256xbf16, #tpu.memory_space<vmem>>, vector<2x5x5x16xbf16>
    tpu.vector_store %arg11[%c0_359, %c0_360, %c0_361, %c160], %309 {strides = array<i32>} : memref<2x5x5x256xbf16, #tpu.memory_space<vmem>>, vector<2x5x5x16xbf16>,
    %c1_362 = arith.constant 1 : index
    %c0_363 = arith.constant 0 : index
    %c0_364 = arith.constant 0 : index
    %c0_365 = arith.constant 0 : index
    %c0_366 = arith.constant 0 : index
    %311 = vector.load %arg10[%c1_362, %c0_363, %c0_364, %c0_365, %c0_366] : memref<4x2x7x7x16xf32, #tpu.memory_space<vmem>>, vector<1x2x7x6x16xf32>
    %312 = vector.shape_cast %311 : vector<1x2x7x6x16xf32> to vector<2x7x6x16xf32>
    %c0_367 = arith.constant 0 : index
    %c0_368 = arith.constant 0 : index
    %c0_369 = arith.constant 0 : index
    %c1_370 = arith.constant 1 : index
    %c0_371 = arith.constant 0 : index
    %313 = vector.load %arg10[%c0_367, %c0_368, %c0_369, %c1_370, %c0_371] : memref<4x2x7x7x16xf32, #tpu.memory_space<vmem>>, vector<1x2x7x6x16xf32>
    %314 = vector.shape_cast %313 : vector<1x2x7x6x16xf32> to vector<2x7x6x16xf32>
    %315 = arith.maximumf %312, %314 : vector<2x7x6x16xf32>
    %c3_372 = arith.constant 3 : index
    %c0_373 = arith.constant 0 : index
    %c0_374 = arith.constant 0 : index
    %c0_375 = arith.constant 0 : index
    %c0_376 = arith.constant 0 : index
    %316 = vector.load %arg10[%c3_372, %c0_373, %c0_374, %c0_375, %c0_376] : memref<4x2x7x7x16xf32, #tpu.memory_space<vmem>>, vector<1x2x7x6x16xf32>
    %317 = vector.shape_cast %316 : vector<1x2x7x6x16xf32> to vector<2x7x6x16xf32>
    %318 = arith.maximumf %315, %317 : vector<2x7x6x16xf32>
    %c2_377 = arith.constant 2 : index
    %c0_378 = arith.constant 0 : index
    %c0_379 = arith.constant 0 : index
    %c1_380 = arith.constant 1 : index
    %c0_381 = arith.constant 0 : index
    %319 = vector.load %arg10[%c2_377, %c0_378, %c0_379, %c1_380, %c0_381] : memref<4x2x7x7x16xf32, #tpu.memory_space<vmem>>, vector<1x2x7x6x16xf32>
    %320 = vector.shape_cast %319 : vector<1x2x7x6x16xf32> to vector<2x7x6x16xf32>
    %321 = arith.maximumf %318, %320 : vector<2x7x6x16xf32>
    %322 = vector.extract_strided_slice %321 {offsets = [0, 0, 0, 0], sizes = [2, 5, 5, 16], strides = [1, 1, 1, 1]} : vector<2x7x6x16xf32> to vector<2x5x5x16xf32>
    %323 = arith.truncf %322 : vector<2x5x5x16xf32> to vector<2x5x5x16xbf16>
    %c0_382 = arith.constant 0 : index
    %c0_383 = arith.constant 0 : index
    %c0_384 = arith.constant 0 : index
    %c16 = arith.constant 16 : index
    %324 = vector.load %arg11[%c0_382, %c0_383, %c0_384, %c16] : memref<2x5x5x256xbf16, #tpu.memory_space<vmem>>, vector<2x5x5x16xbf16>
    tpu.vector_store %arg11[%c0_382, %c0_383, %c0_384, %c16], %323 {strides = array<i32>} : memref<2x5x5x256xbf16, #tpu.memory_space<vmem>>, vector<2x5x5x16xbf16>,
    %325 = vector.extract_strided_slice %321 {offsets = [0, 0, 1, 0], sizes = [2, 5, 5, 16], strides = [1, 1, 1, 1]} : vector<2x7x6x16xf32> to vector<2x5x5x16xf32>
    %326 = arith.truncf %325 : vector<2x5x5x16xf32> to vector<2x5x5x16xbf16>
    %c0_385 = arith.constant 0 : index
    %c0_386 = arith.constant 0 : index
    %c0_387 = arith.constant 0 : index
    %c48 = arith.constant 48 : index
    %327 = vector.load %arg11[%c0_385, %c0_386, %c0_387, %c48] : memref<2x5x5x256xbf16, #tpu.memory_space<vmem>>, vector<2x5x5x16xbf16>
    tpu.vector_store %arg11[%c0_385, %c0_386, %c0_387, %c48], %326 {strides = array<i32>} : memref<2x5x5x256xbf16, #tpu.memory_space<vmem>>, vector<2x5x5x16xbf16>,
    %328 = vector.extract_strided_slice %321 {offsets = [0, 1, 0, 0], sizes = [2, 5, 5, 16], strides = [1, 1, 1, 1]} : vector<2x7x6x16xf32> to vector<2x5x5x16xf32>
    %329 = arith.truncf %328 : vector<2x5x5x16xf32> to vector<2x5x5x16xbf16>
    %c0_388 = arith.constant 0 : index
    %c0_389 = arith.constant 0 : index
    %c0_390 = arith.constant 0 : index
    %c144 = arith.constant 144 : index
    %330 = vector.load %arg11[%c0_388, %c0_389, %c0_390, %c144] : memref<2x5x5x256xbf16, #tpu.memory_space<vmem>>, vector<2x5x5x16xbf16>
    tpu.vector_store %arg11[%c0_388, %c0_389, %c0_390, %c144], %329 {strides = array<i32>} : memref<2x5x5x256xbf16, #tpu.memory_space<vmem>>, vector<2x5x5x16xbf16>,
    %331 = vector.extract_strided_slice %321 {offsets = [0, 1, 1, 0], sizes = [2, 5, 5, 16], strides = [1, 1, 1, 1]} : vector<2x7x6x16xf32> to vector<2x5x5x16xf32>
    %332 = arith.truncf %331 : vector<2x5x5x16xf32> to vector<2x5x5x16xbf16>
    %c0_391 = arith.constant 0 : index
    %c0_392 = arith.constant 0 : index
    %c0_393 = arith.constant 0 : index
    %c176 = arith.constant 176 : index
    %333 = vector.load %arg11[%c0_391, %c0_392, %c0_393, %c176] : memref<2x5x5x256xbf16, #tpu.memory_space<vmem>>, vector<2x5x5x16xbf16>
    tpu.vector_store %arg11[%c0_391, %c0_392, %c0_393, %c176], %332 {strides = array<i32>} : memref<2x5x5x256xbf16, #tpu.memory_space<vmem>>, vector<2x5x5x16xbf16>,
    %c2_394 = arith.constant 2 : index
    %c0_395 = arith.constant 0 : index
    %c0_396 = arith.constant 0 : index
    %c0_397 = arith.constant 0 : index
    %c0_398 = arith.constant 0 : index
    %334 = vector.load %arg10[%c2_394, %c0_395, %c0_396, %c0_397, %c0_398] : memref<4x2x7x7x16xf32, #tpu.memory_space<vmem>>, vector<1x2x6x7x16xf32>
    %335 = vector.shape_cast %334 : vector<1x2x6x7x16xf32> to vector<2x6x7x16xf32>
    %c3_399 = arith.constant 3 : index
    %c0_400 = arith.constant 0 : index
    %c0_401 = arith.constant 0 : index
    %c0_402 = arith.constant 0 : index
    %c0_403 = arith.constant 0 : index
    %336 = vector.load %arg10[%c3_399, %c0_400, %c0_401, %c0_402, %c0_403] : memref<4x2x7x7x16xf32, #tpu.memory_space<vmem>>, vector<1x2x6x7x16xf32>
    %337 = vector.shape_cast %336 : vector<1x2x6x7x16xf32> to vector<2x6x7x16xf32>
    %338 = arith.maximumf %335, %337 : vector<2x6x7x16xf32>
    %c0_404 = arith.constant 0 : index
    %c0_405 = arith.constant 0 : index
    %c1_406 = arith.constant 1 : index
    %c0_407 = arith.constant 0 : index
    %c0_408 = arith.constant 0 : index
    %339 = vector.load %arg10[%c0_404, %c0_405, %c1_406, %c0_407, %c0_408] : memref<4x2x7x7x16xf32, #tpu.memory_space<vmem>>, vector<1x2x6x7x16xf32>
    %340 = vector.shape_cast %339 : vector<1x2x6x7x16xf32> to vector<2x6x7x16xf32>
    %341 = arith.maximumf %338, %340 : vector<2x6x7x16xf32>
    %c1_409 = arith.constant 1 : index
    %c0_410 = arith.constant 0 : index
    %c1_411 = arith.constant 1 : index
    %c0_412 = arith.constant 0 : index
    %c0_413 = arith.constant 0 : index
    %342 = vector.load %arg10[%c1_409, %c0_410, %c1_411, %c0_412, %c0_413] : memref<4x2x7x7x16xf32, #tpu.memory_space<vmem>>, vector<1x2x6x7x16xf32>
    %343 = vector.shape_cast %342 : vector<1x2x6x7x16xf32> to vector<2x6x7x16xf32>
    %344 = arith.maximumf %341, %343 : vector<2x6x7x16xf32>
    %345 = vector.extract_strided_slice %344 {offsets = [0, 0, 0, 0], sizes = [2, 5, 5, 16], strides = [1, 1, 1, 1]} : vector<2x6x7x16xf32> to vector<2x5x5x16xf32>
    %346 = arith.truncf %345 : vector<2x5x5x16xf32> to vector<2x5x5x16xbf16>
    %c0_414 = arith.constant 0 : index
    %c0_415 = arith.constant 0 : index
    %c0_416 = arith.constant 0 : index
    %c64 = arith.constant 64 : index
    %347 = vector.load %arg11[%c0_414, %c0_415, %c0_416, %c64] : memref<2x5x5x256xbf16, #tpu.memory_space<vmem>>, vector<2x5x5x16xbf16>
    tpu.vector_store %arg11[%c0_414, %c0_415, %c0_416, %c64], %346 {strides = array<i32>} : memref<2x5x5x256xbf16, #tpu.memory_space<vmem>>, vector<2x5x5x16xbf16>,
    %348 = vector.extract_strided_slice %344 {offsets = [0, 0, 1, 0], sizes = [2, 5, 5, 16], strides = [1, 1, 1, 1]} : vector<2x6x7x16xf32> to vector<2x5x5x16xf32>
    %349 = arith.truncf %348 : vector<2x5x5x16xf32> to vector<2x5x5x16xbf16>
    %c0_417 = arith.constant 0 : index
    %c0_418 = arith.constant 0 : index
    %c0_419 = arith.constant 0 : index
    %c96 = arith.constant 96 : index
    %350 = vector.load %arg11[%c0_417, %c0_418, %c0_419, %c96] : memref<2x5x5x256xbf16, #tpu.memory_space<vmem>>, vector<2x5x5x16xbf16>
    tpu.vector_store %arg11[%c0_417, %c0_418, %c0_419, %c96], %349 {strides = array<i32>} : memref<2x5x5x256xbf16, #tpu.memory_space<vmem>>, vector<2x5x5x16xbf16>,
    %351 = vector.extract_strided_slice %344 {offsets = [0, 1, 0, 0], sizes = [2, 5, 5, 16], strides = [1, 1, 1, 1]} : vector<2x6x7x16xf32> to vector<2x5x5x16xf32>
    %352 = arith.truncf %351 : vector<2x5x5x16xf32> to vector<2x5x5x16xbf16>
    %c0_420 = arith.constant 0 : index
    %c0_421 = arith.constant 0 : index
    %c0_422 = arith.constant 0 : index
    %c192 = arith.constant 192 : index
    %353 = vector.load %arg11[%c0_420, %c0_421, %c0_422, %c192] : memref<2x5x5x256xbf16, #tpu.memory_space<vmem>>, vector<2x5x5x16xbf16>
    tpu.vector_store %arg11[%c0_420, %c0_421, %c0_422, %c192], %352 {strides = array<i32>} : memref<2x5x5x256xbf16, #tpu.memory_space<vmem>>, vector<2x5x5x16xbf16>,
    %354 = vector.extract_strided_slice %344 {offsets = [0, 1, 1, 0], sizes = [2, 5, 5, 16], strides = [1, 1, 1, 1]} : vector<2x6x7x16xf32> to vector<2x5x5x16xf32>
    %355 = arith.truncf %354 : vector<2x5x5x16xf32> to vector<2x5x5x16xbf16>
    %c0_423 = arith.constant 0 : index
    %c0_424 = arith.constant 0 : index
    %c0_425 = arith.constant 0 : index
    %c224 = arith.constant 224 : index
    %356 = vector.load %arg11[%c0_423, %c0_424, %c0_425, %c224] : memref<2x5x5x256xbf16, #tpu.memory_space<vmem>>, vector<2x5x5x16xbf16>
    tpu.vector_store %arg11[%c0_423, %c0_424, %c0_425, %c224], %355 {strides = array<i32>} : memref<2x5x5x256xbf16, #tpu.memory_space<vmem>>, vector<2x5x5x16xbf16>,
    %c3_426 = arith.constant 3 : index
    %c0_427 = arith.constant 0 : index
    %c0_428 = arith.constant 0 : index
    %c0_429 = arith.constant 0 : index
    %c0_430 = arith.constant 0 : index
    %357 = vector.load %arg10[%c3_426, %c0_427, %c0_428, %c0_429, %c0_430] : memref<4x2x7x7x16xf32, #tpu.memory_space<vmem>>, vector<1x2x6x6x16xf32>
    %358 = vector.shape_cast %357 : vector<1x2x6x6x16xf32> to vector<2x6x6x16xf32>
    %c2_431 = arith.constant 2 : index
    %c0_432 = arith.constant 0 : index
    %c0_433 = arith.constant 0 : index
    %c1_434 = arith.constant 1 : index
    %c0_435 = arith.constant 0 : index
    %359 = vector.load %arg10[%c2_431, %c0_432, %c0_433, %c1_434, %c0_435] : memref<4x2x7x7x16xf32, #tpu.memory_space<vmem>>, vector<1x2x6x6x16xf32>
    %360 = vector.shape_cast %359 : vector<1x2x6x6x16xf32> to vector<2x6x6x16xf32>
    %361 = arith.maximumf %358, %360 : vector<2x6x6x16xf32>
    %c1_436 = arith.constant 1 : index
    %c0_437 = arith.constant 0 : index
    %c1_438 = arith.constant 1 : index
    %c0_439 = arith.constant 0 : index
    %c0_440 = arith.constant 0 : index
    %362 = vector.load %arg10[%c1_436, %c0_437, %c1_438, %c0_439, %c0_440] : memref<4x2x7x7x16xf32, #tpu.memory_space<vmem>>, vector<1x2x6x6x16xf32>
    %363 = vector.shape_cast %362 : vector<1x2x6x6x16xf32> to vector<2x6x6x16xf32>
    %364 = arith.maximumf %361, %363 : vector<2x6x6x16xf32>
    %c0_441 = arith.constant 0 : index
    %c0_442 = arith.constant 0 : index
    %c1_443 = arith.constant 1 : index
    %c1_444 = arith.constant 1 : index
    %c0_445 = arith.constant 0 : index
    %365 = vector.load %arg10[%c0_441, %c0_442, %c1_443, %c1_444, %c0_445] : memref<4x2x7x7x16xf32, #tpu.memory_space<vmem>>, vector<1x2x6x6x16xf32>
    %366 = vector.shape_cast %365 : vector<1x2x6x6x16xf32> to vector<2x6x6x16xf32>
    %367 = arith.maximumf %364, %366 : vector<2x6x6x16xf32>
    %368 = vector.extract_strided_slice %367 {offsets = [0, 0, 0, 0], sizes = [2, 5, 5, 16], strides = [1, 1, 1, 1]} : vector<2x6x6x16xf32> to vector<2x5x5x16xf32>
    %369 = arith.truncf %368 : vector<2x5x5x16xf32> to vector<2x5x5x16xbf16>
    %c0_446 = arith.constant 0 : index
    %c0_447 = arith.constant 0 : index
    %c0_448 = arith.constant 0 : index
    %c80 = arith.constant 80 : index
    %370 = vector.load %arg11[%c0_446, %c0_447, %c0_448, %c80] : memref<2x5x5x256xbf16, #tpu.memory_space<vmem>>, vector<2x5x5x16xbf16>
    tpu.vector_store %arg11[%c0_446, %c0_447, %c0_448, %c80], %369 {strides = array<i32>} : memref<2x5x5x256xbf16, #tpu.memory_space<vmem>>, vector<2x5x5x16xbf16>,
    %371 = vector.extract_strided_slice %367 {offsets = [0, 0, 1, 0], sizes = [2, 5, 5, 16], strides = [1, 1, 1, 1]} : vector<2x6x6x16xf32> to vector<2x5x5x16xf32>
    %372 = arith.truncf %371 : vector<2x5x5x16xf32> to vector<2x5x5x16xbf16>
    %c0_449 = arith.constant 0 : index
    %c0_450 = arith.constant 0 : index
    %c0_451 = arith.constant 0 : index
    %c112 = arith.constant 112 : index
    %373 = vector.load %arg11[%c0_449, %c0_450, %c0_451, %c112] : memref<2x5x5x256xbf16, #tpu.memory_space<vmem>>, vector<2x5x5x16xbf16>
    tpu.vector_store %arg11[%c0_449, %c0_450, %c0_451, %c112], %372 {strides = array<i32>} : memref<2x5x5x256xbf16, #tpu.memory_space<vmem>>, vector<2x5x5x16xbf16>,
    %374 = vector.extract_strided_slice %367 {offsets = [0, 1, 0, 0], sizes = [2, 5, 5, 16], strides = [1, 1, 1, 1]} : vector<2x6x6x16xf32> to vector<2x5x5x16xf32>
    %375 = arith.truncf %374 : vector<2x5x5x16xf32> to vector<2x5x5x16xbf16>
    %c0_452 = arith.constant 0 : index
    %c0_453 = arith.constant 0 : index
    %c0_454 = arith.constant 0 : index
    %c208 = arith.constant 208 : index
    %376 = vector.load %arg11[%c0_452, %c0_453, %c0_454, %c208] : memref<2x5x5x256xbf16, #tpu.memory_space<vmem>>, vector<2x5x5x16xbf16>
    tpu.vector_store %arg11[%c0_452, %c0_453, %c0_454, %c208], %375 {strides = array<i32>} : memref<2x5x5x256xbf16, #tpu.memory_space<vmem>>, vector<2x5x5x16xbf16>,
    %377 = vector.extract_strided_slice %367 {offsets = [0, 1, 1, 0], sizes = [2, 5, 5, 16], strides = [1, 1, 1, 1]} : vector<2x6x6x16xf32> to vector<2x5x5x16xf32>
    %378 = arith.truncf %377 : vector<2x5x5x16xf32> to vector<2x5x5x16xbf16>
    %c0_455 = arith.constant 0 : index
    %c0_456 = arith.constant 0 : index
    %c0_457 = arith.constant 0 : index
    %c240 = arith.constant 240 : index
    %379 = vector.load %arg11[%c0_455, %c0_456, %c0_457, %c240] : memref<2x5x5x256xbf16, #tpu.memory_space<vmem>>, vector<2x5x5x16xbf16>
    tpu.vector_store %arg11[%c0_455, %c0_456, %c0_457, %c240], %378 {strides = array<i32>} : memref<2x5x5x256xbf16, #tpu.memory_space<vmem>>, vector<2x5x5x16xbf16>,
    %c0_458 = arith.constant 0 : index
    %c0_459 = arith.constant 0 : index
    %c0_460 = arith.constant 0 : index
    %c0_461 = arith.constant 0 : index
    %380 = vector.load %arg11[%c0_458, %c0_459, %c0_460, %c0_461] : memref<2x5x5x256xbf16, #tpu.memory_space<vmem>>, vector<1x1x5x256xbf16>
    %381 = vector.shape_cast %380 : vector<1x1x5x256xbf16> to vector<5x256xbf16>
    %c0_462 = arith.constant 0 : index
    %c0_463 = arith.constant 0 : index
    %382 = vector.load %arg3[%c0_462, %c0_463] : memref<256x32xbf16, #tpu.memory_space<vmem>>, vector<256x32xbf16>
    %cst_464 = arith.constant dense<0.000000e+00> : vector<5x32xf32>
    %383 = tpu.matmul %381, %382, %cst_464 {dimension_numbers = #tpu.dot_dimension_numbers<[1], [0], [0], [1], [0, 0, 1, 1], [], []>} : vector<5x256xbf16>, vector<256x32xbf16>, vector<5x32xf32> -> vector<5x32xf32>
    %c0_465 = arith.constant 0 : index
    %c0_466 = arith.constant 0 : index
    %384 = vector.load %arg4[%c0_465, %c0_466] : memref<1x32xf32, #tpu.memory_space<vmem>>, vector<1x32xf32>
    %385 = vector.broadcast %384 : vector<1x32xf32> to vector<5x32xf32>
    %386 = arith.addf %383, %385 : vector<5x32xf32>
    %cst_467 = arith.constant 0.000000e+00 : f32
    %387 = vector.broadcast %cst_467 : f32 to vector<5x32xf32>
    %388 = arith.maximumf %386, %387 : vector<5x32xf32>
    %c0_468 = arith.constant 0 : index
    %c0_469 = arith.constant 0 : index
    %c0_470 = arith.constant 0 : index
    %c0_471 = arith.constant 0 : index
    %389 = vector.load %arg12[%c0_468, %c0_469, %c0_470, %c0_471] : memref<2x5x5x32xf32, #tpu.memory_space<vmem>>, vector<1x1x5x32xf32>
    %390 = vector.shape_cast %389 : vector<1x1x5x32xf32> to vector<5x32xf32>
    %391 = vector.shape_cast %388 : vector<5x32xf32> to vector<1x1x5x32xf32>
    tpu.vector_store %arg12[%c0_468, %c0_469, %c0_470, %c0_471], %391 {strides = array<i32>} : memref<2x5x5x32xf32, #tpu.memory_space<vmem>>, vector<1x1x5x32xf32>,
    %c0_472 = arith.constant 0 : index
    %c1_473 = arith.constant 1 : index
    %c0_474 = arith.constant 0 : index
    %c0_475 = arith.constant 0 : index
    %392 = vector.load %arg11[%c0_472, %c1_473, %c0_474, %c0_475] : memref<2x5x5x256xbf16, #tpu.memory_space<vmem>>, vector<1x1x5x256xbf16>
    %393 = vector.shape_cast %392 : vector<1x1x5x256xbf16> to vector<5x256xbf16>
    %c0_476 = arith.constant 0 : index
    %c0_477 = arith.constant 0 : index
    %394 = vector.load %arg3[%c0_476, %c0_477] : memref<256x32xbf16, #tpu.memory_space<vmem>>, vector<256x32xbf16>
    %cst_478 = arith.constant dense<0.000000e+00> : vector<5x32xf32>
    %395 = tpu.matmul %393, %394, %cst_478 {dimension_numbers = #tpu.dot_dimension_numbers<[1], [0], [0], [1], [0, 0, 1, 1], [], []>} : vector<5x256xbf16>, vector<256x32xbf16>, vector<5x32xf32> -> vector<5x32xf32>
    %c0_479 = arith.constant 0 : index
    %c0_480 = arith.constant 0 : index
    %396 = vector.load %arg4[%c0_479, %c0_480] : memref<1x32xf32, #tpu.memory_space<vmem>>, vector<1x32xf32>
    %397 = vector.broadcast %396 : vector<1x32xf32> to vector<5x32xf32>
    %398 = arith.addf %395, %397 : vector<5x32xf32>
    %cst_481 = arith.constant 0.000000e+00 : f32
    %399 = vector.broadcast %cst_481 : f32 to vector<5x32xf32>
    %400 = arith.maximumf %398, %399 : vector<5x32xf32>
    %c0_482 = arith.constant 0 : index
    %c1_483 = arith.constant 1 : index
    %c0_484 = arith.constant 0 : index
    %c0_485 = arith.constant 0 : index
    %401 = vector.load %arg12[%c0_482, %c1_483, %c0_484, %c0_485] : memref<2x5x5x32xf32, #tpu.memory_space<vmem>>, vector<1x1x5x32xf32>
    %402 = vector.shape_cast %401 : vector<1x1x5x32xf32> to vector<5x32xf32>
    %403 = vector.shape_cast %400 : vector<5x32xf32> to vector<1x1x5x32xf32>
    tpu.vector_store %arg12[%c0_482, %c1_483, %c0_484, %c0_485], %403 {strides = array<i32>} : memref<2x5x5x32xf32, #tpu.memory_space<vmem>>, vector<1x1x5x32xf32>,
    %c0_486 = arith.constant 0 : index
    %c2_487 = arith.constant 2 : index
    %c0_488 = arith.constant 0 : index
    %c0_489 = arith.constant 0 : index
    %404 = vector.load %arg11[%c0_486, %c2_487, %c0_488, %c0_489] : memref<2x5x5x256xbf16, #tpu.memory_space<vmem>>, vector<1x1x5x256xbf16>
    %405 = vector.shape_cast %404 : vector<1x1x5x256xbf16> to vector<5x256xbf16>
    %c0_490 = arith.constant 0 : index
    %c0_491 = arith.constant 0 : index
    %406 = vector.load %arg3[%c0_490, %c0_491] : memref<256x32xbf16, #tpu.memory_space<vmem>>, vector<256x32xbf16>
    %cst_492 = arith.constant dense<0.000000e+00> : vector<5x32xf32>
    %407 = tpu.matmul %405, %406, %cst_492 {dimension_numbers = #tpu.dot_dimension_numbers<[1], [0], [0], [1], [0, 0, 1, 1], [], []>} : vector<5x256xbf16>, vector<256x32xbf16>, vector<5x32xf32> -> vector<5x32xf32>
    %c0_493 = arith.constant 0 : index
    %c0_494 = arith.constant 0 : index
    %408 = vector.load %arg4[%c0_493, %c0_494] : memref<1x32xf32, #tpu.memory_space<vmem>>, vector<1x32xf32>
    %409 = vector.broadcast %408 : vector<1x32xf32> to vector<5x32xf32>
    %410 = arith.addf %407, %409 : vector<5x32xf32>
    %cst_495 = arith.constant 0.000000e+00 : f32
    %411 = vector.broadcast %cst_495 : f32 to vector<5x32xf32>
    %412 = arith.maximumf %410, %411 : vector<5x32xf32>
    %c0_496 = arith.constant 0 : index
    %c2_497 = arith.constant 2 : index
    %c0_498 = arith.constant 0 : index
    %c0_499 = arith.constant 0 : index
    %413 = vector.load %arg12[%c0_496, %c2_497, %c0_498, %c0_499] : memref<2x5x5x32xf32, #tpu.memory_space<vmem>>, vector<1x1x5x32xf32>
    %414 = vector.shape_cast %413 : vector<1x1x5x32xf32> to vector<5x32xf32>
    %415 = vector.shape_cast %412 : vector<5x32xf32> to vector<1x1x5x32xf32>
    tpu.vector_store %arg12[%c0_496, %c2_497, %c0_498, %c0_499], %415 {strides = array<i32>} : memref<2x5x5x32xf32, #tpu.memory_space<vmem>>, vector<1x1x5x32xf32>,
    %c0_500 = arith.constant 0 : index
    %c3_501 = arith.constant 3 : index
    %c0_502 = arith.constant 0 : index
    %c0_503 = arith.constant 0 : index
    %416 = vector.load %arg11[%c0_500, %c3_501, %c0_502, %c0_503] : memref<2x5x5x256xbf16, #tpu.memory_space<vmem>>, vector<1x1x5x256xbf16>
    %417 = vector.shape_cast %416 : vector<1x1x5x256xbf16> to vector<5x256xbf16>
    %c0_504 = arith.constant 0 : index
    %c0_505 = arith.constant 0 : index
    %418 = vector.load %arg3[%c0_504, %c0_505] : memref<256x32xbf16, #tpu.memory_space<vmem>>, vector<256x32xbf16>
    %cst_506 = arith.constant dense<0.000000e+00> : vector<5x32xf32>
    %419 = tpu.matmul %417, %418, %cst_506 {dimension_numbers = #tpu.dot_dimension_numbers<[1], [0], [0], [1], [0, 0, 1, 1], [], []>} : vector<5x256xbf16>, vector<256x32xbf16>, vector<5x32xf32> -> vector<5x32xf32>
    %c0_507 = arith.constant 0 : index
    %c0_508 = arith.constant 0 : index
    %420 = vector.load %arg4[%c0_507, %c0_508] : memref<1x32xf32, #tpu.memory_space<vmem>>, vector<1x32xf32>
    %421 = vector.broadcast %420 : vector<1x32xf32> to vector<5x32xf32>
    %422 = arith.addf %419, %421 : vector<5x32xf32>
    %cst_509 = arith.constant 0.000000e+00 : f32
    %423 = vector.broadcast %cst_509 : f32 to vector<5x32xf32>
    %424 = arith.maximumf %422, %423 : vector<5x32xf32>
    %c0_510 = arith.constant 0 : index
    %c3_511 = arith.constant 3 : index
    %c0_512 = arith.constant 0 : index
    %c0_513 = arith.constant 0 : index
    %425 = vector.load %arg12[%c0_510, %c3_511, %c0_512, %c0_513] : memref<2x5x5x32xf32, #tpu.memory_space<vmem>>, vector<1x1x5x32xf32>
    %426 = vector.shape_cast %425 : vector<1x1x5x32xf32> to vector<5x32xf32>
    %427 = vector.shape_cast %424 : vector<5x32xf32> to vector<1x1x5x32xf32>
    tpu.vector_store %arg12[%c0_510, %c3_511, %c0_512, %c0_513], %427 {strides = array<i32>} : memref<2x5x5x32xf32, #tpu.memory_space<vmem>>, vector<1x1x5x32xf32>,
    %c0_514 = arith.constant 0 : index
    %c4_515 = arith.constant 4 : index
    %c0_516 = arith.constant 0 : index
    %c0_517 = arith.constant 0 : index
    %428 = vector.load %arg11[%c0_514, %c4_515, %c0_516, %c0_517] : memref<2x5x5x256xbf16, #tpu.memory_space<vmem>>, vector<1x1x5x256xbf16>
    %429 = vector.shape_cast %428 : vector<1x1x5x256xbf16> to vector<5x256xbf16>
    %c0_518 = arith.constant 0 : index
    %c0_519 = arith.constant 0 : index
    %430 = vector.load %arg3[%c0_518, %c0_519] : memref<256x32xbf16, #tpu.memory_space<vmem>>, vector<256x32xbf16>
    %cst_520 = arith.constant dense<0.000000e+00> : vector<5x32xf32>
    %431 = tpu.matmul %429, %430, %cst_520 {dimension_numbers = #tpu.dot_dimension_numbers<[1], [0], [0], [1], [0, 0, 1, 1], [], []>} : vector<5x256xbf16>, vector<256x32xbf16>, vector<5x32xf32> -> vector<5x32xf32>
    %c0_521 = arith.constant 0 : index
    %c0_522 = arith.constant 0 : index
    %432 = vector.load %arg4[%c0_521, %c0_522] : memref<1x32xf32, #tpu.memory_space<vmem>>, vector<1x32xf32>
    %433 = vector.broadcast %432 : vector<1x32xf32> to vector<5x32xf32>
    %434 = arith.addf %431, %433 : vector<5x32xf32>
    %cst_523 = arith.constant 0.000000e+00 : f32
    %435 = vector.broadcast %cst_523 : f32 to vector<5x32xf32>
    %436 = arith.maximumf %434, %435 : vector<5x32xf32>
    %c0_524 = arith.constant 0 : index
    %c4_525 = arith.constant 4 : index
    %c0_526 = arith.constant 0 : index
    %c0_527 = arith.constant 0 : index
    %437 = vector.load %arg12[%c0_524, %c4_525, %c0_526, %c0_527] : memref<2x5x5x32xf32, #tpu.memory_space<vmem>>, vector<1x1x5x32xf32>
    %438 = vector.shape_cast %437 : vector<1x1x5x32xf32> to vector<5x32xf32>
    %439 = vector.shape_cast %436 : vector<5x32xf32> to vector<1x1x5x32xf32>
    tpu.vector_store %arg12[%c0_524, %c4_525, %c0_526, %c0_527], %439 {strides = array<i32>} : memref<2x5x5x32xf32, #tpu.memory_space<vmem>>, vector<1x1x5x32xf32>,
    %c1_528 = arith.constant 1 : index
    %c0_529 = arith.constant 0 : index
    %c0_530 = arith.constant 0 : index
    %c0_531 = arith.constant 0 : index
    %440 = vector.load %arg11[%c1_528, %c0_529, %c0_530, %c0_531] : memref<2x5x5x256xbf16, #tpu.memory_space<vmem>>, vector<1x1x5x256xbf16>
    %441 = vector.shape_cast %440 : vector<1x1x5x256xbf16> to vector<5x256xbf16>
    %c0_532 = arith.constant 0 : index
    %c0_533 = arith.constant 0 : index
    %442 = vector.load %arg3[%c0_532, %c0_533] : memref<256x32xbf16, #tpu.memory_space<vmem>>, vector<256x32xbf16>
    %cst_534 = arith.constant dense<0.000000e+00> : vector<5x32xf32>
    %443 = tpu.matmul %441, %442, %cst_534 {dimension_numbers = #tpu.dot_dimension_numbers<[1], [0], [0], [1], [0, 0, 1, 1], [], []>} : vector<5x256xbf16>, vector<256x32xbf16>, vector<5x32xf32> -> vector<5x32xf32>
    %c0_535 = arith.constant 0 : index
    %c0_536 = arith.constant 0 : index
    %444 = vector.load %arg4[%c0_535, %c0_536] : memref<1x32xf32, #tpu.memory_space<vmem>>, vector<1x32xf32>
    %445 = vector.broadcast %444 : vector<1x32xf32> to vector<5x32xf32>
    %446 = arith.addf %443, %445 : vector<5x32xf32>
    %cst_537 = arith.constant 0.000000e+00 : f32
    %447 = vector.broadcast %cst_537 : f32 to vector<5x32xf32>
    %448 = arith.maximumf %446, %447 : vector<5x32xf32>
    %c1_538 = arith.constant 1 : index
    %c0_539 = arith.constant 0 : index
    %c0_540 = arith.constant 0 : index
    %c0_541 = arith.constant 0 : index
    %449 = vector.load %arg12[%c1_538, %c0_539, %c0_540, %c0_541] : memref<2x5x5x32xf32, #tpu.memory_space<vmem>>, vector<1x1x5x32xf32>
    %450 = vector.shape_cast %449 : vector<1x1x5x32xf32> to vector<5x32xf32>
    %451 = vector.shape_cast %448 : vector<5x32xf32> to vector<1x1x5x32xf32>
    tpu.vector_store %arg12[%c1_538, %c0_539, %c0_540, %c0_541], %451 {strides = array<i32>} : memref<2x5x5x32xf32, #tpu.memory_space<vmem>>, vector<1x1x5x32xf32>,
    %c1_542 = arith.constant 1 : index
    %c1_543 = arith.constant 1 : index
    %c0_544 = arith.constant 0 : index
    %c0_545 = arith.constant 0 : index
    %452 = vector.load %arg11[%c1_542, %c1_543, %c0_544, %c0_545] : memref<2x5x5x256xbf16, #tpu.memory_space<vmem>>, vector<1x1x5x256xbf16>
    %453 = vector.shape_cast %452 : vector<1x1x5x256xbf16> to vector<5x256xbf16>
    %c0_546 = arith.constant 0 : index
    %c0_547 = arith.constant 0 : index
    %454 = vector.load %arg3[%c0_546, %c0_547] : memref<256x32xbf16, #tpu.memory_space<vmem>>, vector<256x32xbf16>
    %cst_548 = arith.constant dense<0.000000e+00> : vector<5x32xf32>
    %455 = tpu.matmul %453, %454, %cst_548 {dimension_numbers = #tpu.dot_dimension_numbers<[1], [0], [0], [1], [0, 0, 1, 1], [], []>} : vector<5x256xbf16>, vector<256x32xbf16>, vector<5x32xf32> -> vector<5x32xf32>
    %c0_549 = arith.constant 0 : index
    %c0_550 = arith.constant 0 : index
    %456 = vector.load %arg4[%c0_549, %c0_550] : memref<1x32xf32, #tpu.memory_space<vmem>>, vector<1x32xf32>
    %457 = vector.broadcast %456 : vector<1x32xf32> to vector<5x32xf32>
    %458 = arith.addf %455, %457 : vector<5x32xf32>
    %cst_551 = arith.constant 0.000000e+00 : f32
    %459 = vector.broadcast %cst_551 : f32 to vector<5x32xf32>
    %460 = arith.maximumf %458, %459 : vector<5x32xf32>
    %c1_552 = arith.constant 1 : index
    %c1_553 = arith.constant 1 : index
    %c0_554 = arith.constant 0 : index
    %c0_555 = arith.constant 0 : index
    %461 = vector.load %arg12[%c1_552, %c1_553, %c0_554, %c0_555] : memref<2x5x5x32xf32, #tpu.memory_space<vmem>>, vector<1x1x5x32xf32>
    %462 = vector.shape_cast %461 : vector<1x1x5x32xf32> to vector<5x32xf32>
    %463 = vector.shape_cast %460 : vector<5x32xf32> to vector<1x1x5x32xf32>
    tpu.vector_store %arg12[%c1_552, %c1_553, %c0_554, %c0_555], %463 {strides = array<i32>} : memref<2x5x5x32xf32, #tpu.memory_space<vmem>>, vector<1x1x5x32xf32>,
    %c1_556 = arith.constant 1 : index
    %c2_557 = arith.constant 2 : index
    %c0_558 = arith.constant 0 : index
    %c0_559 = arith.constant 0 : index
    %464 = vector.load %arg11[%c1_556, %c2_557, %c0_558, %c0_559] : memref<2x5x5x256xbf16, #tpu.memory_space<vmem>>, vector<1x1x5x256xbf16>
    %465 = vector.shape_cast %464 : vector<1x1x5x256xbf16> to vector<5x256xbf16>
    %c0_560 = arith.constant 0 : index
    %c0_561 = arith.constant 0 : index
    %466 = vector.load %arg3[%c0_560, %c0_561] : memref<256x32xbf16, #tpu.memory_space<vmem>>, vector<256x32xbf16>
    %cst_562 = arith.constant dense<0.000000e+00> : vector<5x32xf32>
    %467 = tpu.matmul %465, %466, %cst_562 {dimension_numbers = #tpu.dot_dimension_numbers<[1], [0], [0], [1], [0, 0, 1, 1], [], []>} : vector<5x256xbf16>, vector<256x32xbf16>, vector<5x32xf32> -> vector<5x32xf32>
    %c0_563 = arith.constant 0 : index
    %c0_564 = arith.constant 0 : index
    %468 = vector.load %arg4[%c0_563, %c0_564] : memref<1x32xf32, #tpu.memory_space<vmem>>, vector<1x32xf32>
    %469 = vector.broadcast %468 : vector<1x32xf32> to vector<5x32xf32>
    %470 = arith.addf %467, %469 : vector<5x32xf32>
    %cst_565 = arith.constant 0.000000e+00 : f32
    %471 = vector.broadcast %cst_565 : f32 to vector<5x32xf32>
    %472 = arith.maximumf %470, %471 : vector<5x32xf32>
    %c1_566 = arith.constant 1 : index
    %c2_567 = arith.constant 2 : index
    %c0_568 = arith.constant 0 : index
    %c0_569 = arith.constant 0 : index
    %473 = vector.load %arg12[%c1_566, %c2_567, %c0_568, %c0_569] : memref<2x5x5x32xf32, #tpu.memory_space<vmem>>, vector<1x1x5x32xf32>
    %474 = vector.shape_cast %473 : vector<1x1x5x32xf32> to vector<5x32xf32>
    %475 = vector.shape_cast %472 : vector<5x32xf32> to vector<1x1x5x32xf32>
    tpu.vector_store %arg12[%c1_566, %c2_567, %c0_568, %c0_569], %475 {strides = array<i32>} : memref<2x5x5x32xf32, #tpu.memory_space<vmem>>, vector<1x1x5x32xf32>,
    %c1_570 = arith.constant 1 : index
    %c3_571 = arith.constant 3 : index
    %c0_572 = arith.constant 0 : index
    %c0_573 = arith.constant 0 : index
    %476 = vector.load %arg11[%c1_570, %c3_571, %c0_572, %c0_573] : memref<2x5x5x256xbf16, #tpu.memory_space<vmem>>, vector<1x1x5x256xbf16>
    %477 = vector.shape_cast %476 : vector<1x1x5x256xbf16> to vector<5x256xbf16>
    %c0_574 = arith.constant 0 : index
    %c0_575 = arith.constant 0 : index
    %478 = vector.load %arg3[%c0_574, %c0_575] : memref<256x32xbf16, #tpu.memory_space<vmem>>, vector<256x32xbf16>
    %cst_576 = arith.constant dense<0.000000e+00> : vector<5x32xf32>
    %479 = tpu.matmul %477, %478, %cst_576 {dimension_numbers = #tpu.dot_dimension_numbers<[1], [0], [0], [1], [0, 0, 1, 1], [], []>} : vector<5x256xbf16>, vector<256x32xbf16>, vector<5x32xf32> -> vector<5x32xf32>
    %c0_577 = arith.constant 0 : index
    %c0_578 = arith.constant 0 : index
    %480 = vector.load %arg4[%c0_577, %c0_578] : memref<1x32xf32, #tpu.memory_space<vmem>>, vector<1x32xf32>
    %481 = vector.broadcast %480 : vector<1x32xf32> to vector<5x32xf32>
    %482 = arith.addf %479, %481 : vector<5x32xf32>
    %cst_579 = arith.constant 0.000000e+00 : f32
    %483 = vector.broadcast %cst_579 : f32 to vector<5x32xf32>
    %484 = arith.maximumf %482, %483 : vector<5x32xf32>
    %c1_580 = arith.constant 1 : index
    %c3_581 = arith.constant 3 : index
    %c0_582 = arith.constant 0 : index
    %c0_583 = arith.constant 0 : index
    %485 = vector.load %arg12[%c1_580, %c3_581, %c0_582, %c0_583] : memref<2x5x5x32xf32, #tpu.memory_space<vmem>>, vector<1x1x5x32xf32>
    %486 = vector.shape_cast %485 : vector<1x1x5x32xf32> to vector<5x32xf32>
    %487 = vector.shape_cast %484 : vector<5x32xf32> to vector<1x1x5x32xf32>
    tpu.vector_store %arg12[%c1_580, %c3_581, %c0_582, %c0_583], %487 {strides = array<i32>} : memref<2x5x5x32xf32, #tpu.memory_space<vmem>>, vector<1x1x5x32xf32>,
    %c1_584 = arith.constant 1 : index
    %c4_585 = arith.constant 4 : index
    %c0_586 = arith.constant 0 : index
    %c0_587 = arith.constant 0 : index
    %488 = vector.load %arg11[%c1_584, %c4_585, %c0_586, %c0_587] : memref<2x5x5x256xbf16, #tpu.memory_space<vmem>>, vector<1x1x5x256xbf16>
    %489 = vector.shape_cast %488 : vector<1x1x5x256xbf16> to vector<5x256xbf16>
    %c0_588 = arith.constant 0 : index
    %c0_589 = arith.constant 0 : index
    %490 = vector.load %arg3[%c0_588, %c0_589] : memref<256x32xbf16, #tpu.memory_space<vmem>>, vector<256x32xbf16>
    %cst_590 = arith.constant dense<0.000000e+00> : vector<5x32xf32>
    %491 = tpu.matmul %489, %490, %cst_590 {dimension_numbers = #tpu.dot_dimension_numbers<[1], [0], [0], [1], [0, 0, 1, 1], [], []>} : vector<5x256xbf16>, vector<256x32xbf16>, vector<5x32xf32> -> vector<5x32xf32>
    %c0_591 = arith.constant 0 : index
    %c0_592 = arith.constant 0 : index
    %492 = vector.load %arg4[%c0_591, %c0_592] : memref<1x32xf32, #tpu.memory_space<vmem>>, vector<1x32xf32>
    %493 = vector.broadcast %492 : vector<1x32xf32> to vector<5x32xf32>
    %494 = arith.addf %491, %493 : vector<5x32xf32>
    %cst_593 = arith.constant 0.000000e+00 : f32
    %495 = vector.broadcast %cst_593 : f32 to vector<5x32xf32>
    %496 = arith.maximumf %494, %495 : vector<5x32xf32>
    %c1_594 = arith.constant 1 : index
    %c4_595 = arith.constant 4 : index
    %c0_596 = arith.constant 0 : index
    %c0_597 = arith.constant 0 : index
    %497 = vector.load %arg12[%c1_594, %c4_595, %c0_596, %c0_597] : memref<2x5x5x32xf32, #tpu.memory_space<vmem>>, vector<1x1x5x32xf32>
    %498 = vector.shape_cast %497 : vector<1x1x5x32xf32> to vector<5x32xf32>
    %499 = vector.shape_cast %496 : vector<5x32xf32> to vector<1x1x5x32xf32>
    tpu.vector_store %arg12[%c1_594, %c4_595, %c0_596, %c0_597], %499 {strides = array<i32>} : memref<2x5x5x32xf32, #tpu.memory_space<vmem>>, vector<1x1x5x32xf32>,
    %cst_598 = arith.constant 0.000000e+00 : f32
    %500 = vector.broadcast %cst_598 : f32 to vector<2x32xf32>
    %c0_599 = arith.constant 0 : index
    %c0_600 = arith.constant 0 : index
    %c0_601 = arith.constant 0 : index
    %c0_602 = arith.constant 0 : index
    %501 = vector.load %arg12[%c0_599, %c0_600, %c0_601, %c0_602] : memref<2x5x5x32xf32, #tpu.memory_space<vmem>>, vector<2x1x1x32xf32>
    %502 = vector.shape_cast %501 : vector<2x1x1x32xf32> to vector<2x32xf32>
    %c0_603 = arith.constant 0 : index
    %c0_604 = arith.constant 0 : index
    %c1_605 = arith.constant 1 : index
    %c0_606 = arith.constant 0 : index
    %503 = vector.load %arg12[%c0_603, %c0_604, %c1_605, %c0_606] : memref<2x5x5x32xf32, #tpu.memory_space<vmem>>, vector<2x1x1x32xf32>
    %504 = vector.shape_cast %503 : vector<2x1x1x32xf32> to vector<2x32xf32>
    %505 = arith.maximumf %502, %504 : vector<2x32xf32>
    %c0_607 = arith.constant 0 : index
    %c1_608 = arith.constant 1 : index
    %c0_609 = arith.constant 0 : index
    %c0_610 = arith.constant 0 : index
    %506 = vector.load %arg12[%c0_607, %c1_608, %c0_609, %c0_610] : memref<2x5x5x32xf32, #tpu.memory_space<vmem>>, vector<2x1x1x32xf32>
    %507 = vector.shape_cast %506 : vector<2x1x1x32xf32> to vector<2x32xf32>
    %c0_611 = arith.constant 0 : index
    %c1_612 = arith.constant 1 : index
    %c1_613 = arith.constant 1 : index
    %c0_614 = arith.constant 0 : index
    %508 = vector.load %arg12[%c0_611, %c1_612, %c1_613, %c0_614] : memref<2x5x5x32xf32, #tpu.memory_space<vmem>>, vector<2x1x1x32xf32>
    %509 = vector.shape_cast %508 : vector<2x1x1x32xf32> to vector<2x32xf32>
    %510 = arith.maximumf %507, %509 : vector<2x32xf32>
    %511 = arith.maximumf %505, %510 : vector<2x32xf32>
    %512 = arith.truncf %511 : vector<2x32xf32> to vector<2x32xbf16>
    %c0_615 = arith.constant 0 : index
    %c0_616 = arith.constant 0 : index
    %c0_617 = arith.constant 0 : index
    %513 = vector.load %arg5[%c0_615, %c0_616, %c0_617] : memref<16x32x32xbf16, #tpu.memory_space<vmem>>, vector<1x32x32xbf16>
    %514 = vector.shape_cast %513 : vector<1x32x32xbf16> to vector<32x32xbf16>
    %cst_618 = arith.constant dense<0.000000e+00> : vector<2x32xf32>
    %515 = tpu.matmul %512, %514, %cst_618 {dimension_numbers = #tpu.dot_dimension_numbers<[1], [0], [0], [1], [0, 0, 1, 1], [], []>} : vector<2x32xbf16>, vector<32x32xbf16>, vector<2x32xf32> -> vector<2x32xf32>
    %516 = arith.addf %500, %515 : vector<2x32xf32>
    %c0_619 = arith.constant 0 : index
    %c0_620 = arith.constant 0 : index
    %c1_621 = arith.constant 1 : index
    %c0_622 = arith.constant 0 : index
    %517 = vector.load %arg12[%c0_619, %c0_620, %c1_621, %c0_622] : memref<2x5x5x32xf32, #tpu.memory_space<vmem>>, vector<2x1x1x32xf32>
    %518 = vector.shape_cast %517 : vector<2x1x1x32xf32> to vector<2x32xf32>
    %c0_623 = arith.constant 0 : index
    %c0_624 = arith.constant 0 : index
    %c2_625 = arith.constant 2 : index
    %c0_626 = arith.constant 0 : index
    %519 = vector.load %arg12[%c0_623, %c0_624, %c2_625, %c0_626] : memref<2x5x5x32xf32, #tpu.memory_space<vmem>>, vector<2x1x1x32xf32>
    %520 = vector.shape_cast %519 : vector<2x1x1x32xf32> to vector<2x32xf32>
    %521 = arith.maximumf %518, %520 : vector<2x32xf32>
    %c0_627 = arith.constant 0 : index
    %c1_628 = arith.constant 1 : index
    %c1_629 = arith.constant 1 : index
    %c0_630 = arith.constant 0 : index
    %522 = vector.load %arg12[%c0_627, %c1_628, %c1_629, %c0_630] : memref<2x5x5x32xf32, #tpu.memory_space<vmem>>, vector<2x1x1x32xf32>
    %523 = vector.shape_cast %522 : vector<2x1x1x32xf32> to vector<2x32xf32>
    %c0_631 = arith.constant 0 : index
    %c1_632 = arith.constant 1 : index
    %c2_633 = arith.constant 2 : index
    %c0_634 = arith.constant 0 : index
    %524 = vector.load %arg12[%c0_631, %c1_632, %c2_633, %c0_634] : memref<2x5x5x32xf32, #tpu.memory_space<vmem>>, vector<2x1x1x32xf32>
    %525 = vector.shape_cast %524 : vector<2x1x1x32xf32> to vector<2x32xf32>
    %526 = arith.maximumf %523, %525 : vector<2x32xf32>
    %527 = arith.maximumf %521, %526 : vector<2x32xf32>
    %528 = arith.truncf %527 : vector<2x32xf32> to vector<2x32xbf16>
    %c1_635 = arith.constant 1 : index
    %c0_636 = arith.constant 0 : index
    %c0_637 = arith.constant 0 : index
    %529 = vector.load %arg5[%c1_635, %c0_636, %c0_637] : memref<16x32x32xbf16, #tpu.memory_space<vmem>>, vector<1x32x32xbf16>
    %530 = vector.shape_cast %529 : vector<1x32x32xbf16> to vector<32x32xbf16>
    %cst_638 = arith.constant dense<0.000000e+00> : vector<2x32xf32>
    %531 = tpu.matmul %528, %530, %cst_638 {dimension_numbers = #tpu.dot_dimension_numbers<[1], [0], [0], [1], [0, 0, 1, 1], [], []>} : vector<2x32xbf16>, vector<32x32xbf16>, vector<2x32xf32> -> vector<2x32xf32>
    %532 = arith.addf %516, %531 : vector<2x32xf32>
    %c0_639 = arith.constant 0 : index
    %c0_640 = arith.constant 0 : index
    %c2_641 = arith.constant 2 : index
    %c0_642 = arith.constant 0 : index
    %533 = vector.load %arg12[%c0_639, %c0_640, %c2_641, %c0_642] : memref<2x5x5x32xf32, #tpu.memory_space<vmem>>, vector<2x1x1x32xf32>
    %534 = vector.shape_cast %533 : vector<2x1x1x32xf32> to vector<2x32xf32>
    %c0_643 = arith.constant 0 : index
    %c0_644 = arith.constant 0 : index
    %c3_645 = arith.constant 3 : index
    %c0_646 = arith.constant 0 : index
    %535 = vector.load %arg12[%c0_643, %c0_644, %c3_645, %c0_646] : memref<2x5x5x32xf32, #tpu.memory_space<vmem>>, vector<2x1x1x32xf32>
    %536 = vector.shape_cast %535 : vector<2x1x1x32xf32> to vector<2x32xf32>
    %537 = arith.maximumf %534, %536 : vector<2x32xf32>
    %c0_647 = arith.constant 0 : index
    %c1_648 = arith.constant 1 : index
    %c2_649 = arith.constant 2 : index
    %c0_650 = arith.constant 0 : index
    %538 = vector.load %arg12[%c0_647, %c1_648, %c2_649, %c0_650] : memref<2x5x5x32xf32, #tpu.memory_space<vmem>>, vector<2x1x1x32xf32>
    %539 = vector.shape_cast %538 : vector<2x1x1x32xf32> to vector<2x32xf32>
    %c0_651 = arith.constant 0 : index
    %c1_652 = arith.constant 1 : index
    %c3_653 = arith.constant 3 : index
    %c0_654 = arith.constant 0 : index
    %540 = vector.load %arg12[%c0_651, %c1_652, %c3_653, %c0_654] : memref<2x5x5x32xf32, #tpu.memory_space<vmem>>, vector<2x1x1x32xf32>
    %541 = vector.shape_cast %540 : vector<2x1x1x32xf32> to vector<2x32xf32>
    %542 = arith.maximumf %539, %541 : vector<2x32xf32>
    %543 = arith.maximumf %537, %542 : vector<2x32xf32>
    %544 = arith.truncf %543 : vector<2x32xf32> to vector<2x32xbf16>
    %c2_655 = arith.constant 2 : index
    %c0_656 = arith.constant 0 : index
    %c0_657 = arith.constant 0 : index
    %545 = vector.load %arg5[%c2_655, %c0_656, %c0_657] : memref<16x32x32xbf16, #tpu.memory_space<vmem>>, vector<1x32x32xbf16>
    %546 = vector.shape_cast %545 : vector<1x32x32xbf16> to vector<32x32xbf16>
    %cst_658 = arith.constant dense<0.000000e+00> : vector<2x32xf32>
    %547 = tpu.matmul %544, %546, %cst_658 {dimension_numbers = #tpu.dot_dimension_numbers<[1], [0], [0], [1], [0, 0, 1, 1], [], []>} : vector<2x32xbf16>, vector<32x32xbf16>, vector<2x32xf32> -> vector<2x32xf32>
    %548 = arith.addf %532, %547 : vector<2x32xf32>
    %c0_659 = arith.constant 0 : index
    %c0_660 = arith.constant 0 : index
    %c3_661 = arith.constant 3 : index
    %c0_662 = arith.constant 0 : index
    %549 = vector.load %arg12[%c0_659, %c0_660, %c3_661, %c0_662] : memref<2x5x5x32xf32, #tpu.memory_space<vmem>>, vector<2x1x1x32xf32>
    %550 = vector.shape_cast %549 : vector<2x1x1x32xf32> to vector<2x32xf32>
    %c0_663 = arith.constant 0 : index
    %c0_664 = arith.constant 0 : index
    %c4_665 = arith.constant 4 : index
    %c0_666 = arith.constant 0 : index
    %551 = vector.load %arg12[%c0_663, %c0_664, %c4_665, %c0_666] : memref<2x5x5x32xf32, #tpu.memory_space<vmem>>, vector<2x1x1x32xf32>
    %552 = vector.shape_cast %551 : vector<2x1x1x32xf32> to vector<2x32xf32>
    %553 = arith.maximumf %550, %552 : vector<2x32xf32>
    %c0_667 = arith.constant 0 : index
    %c1_668 = arith.constant 1 : index
    %c3_669 = arith.constant 3 : index
    %c0_670 = arith.constant 0 : index
    %554 = vector.load %arg12[%c0_667, %c1_668, %c3_669, %c0_670] : memref<2x5x5x32xf32, #tpu.memory_space<vmem>>, vector<2x1x1x32xf32>
    %555 = vector.shape_cast %554 : vector<2x1x1x32xf32> to vector<2x32xf32>
    %c0_671 = arith.constant 0 : index
    %c1_672 = arith.constant 1 : index
    %c4_673 = arith.constant 4 : index
    %c0_674 = arith.constant 0 : index
    %556 = vector.load %arg12[%c0_671, %c1_672, %c4_673, %c0_674] : memref<2x5x5x32xf32, #tpu.memory_space<vmem>>, vector<2x1x1x32xf32>
    %557 = vector.shape_cast %556 : vector<2x1x1x32xf32> to vector<2x32xf32>
    %558 = arith.maximumf %555, %557 : vector<2x32xf32>
    %559 = arith.maximumf %553, %558 : vector<2x32xf32>
    %560 = arith.truncf %559 : vector<2x32xf32> to vector<2x32xbf16>
    %c3_675 = arith.constant 3 : index
    %c0_676 = arith.constant 0 : index
    %c0_677 = arith.constant 0 : index
    %561 = vector.load %arg5[%c3_675, %c0_676, %c0_677] : memref<16x32x32xbf16, #tpu.memory_space<vmem>>, vector<1x32x32xbf16>
    %562 = vector.shape_cast %561 : vector<1x32x32xbf16> to vector<32x32xbf16>
    %cst_678 = arith.constant dense<0.000000e+00> : vector<2x32xf32>
    %563 = tpu.matmul %560, %562, %cst_678 {dimension_numbers = #tpu.dot_dimension_numbers<[1], [0], [0], [1], [0, 0, 1, 1], [], []>} : vector<2x32xbf16>, vector<32x32xbf16>, vector<2x32xf32> -> vector<2x32xf32>
    %564 = arith.addf %548, %563 : vector<2x32xf32>
    %c0_679 = arith.constant 0 : index
    %c1_680 = arith.constant 1 : index
    %c0_681 = arith.constant 0 : index
    %c0_682 = arith.constant 0 : index
    %565 = vector.load %arg12[%c0_679, %c1_680, %c0_681, %c0_682] : memref<2x5x5x32xf32, #tpu.memory_space<vmem>>, vector<2x1x1x32xf32>
    %566 = vector.shape_cast %565 : vector<2x1x1x32xf32> to vector<2x32xf32>
    %c0_683 = arith.constant 0 : index
    %c1_684 = arith.constant 1 : index
    %c1_685 = arith.constant 1 : index
    %c0_686 = arith.constant 0 : index
    %567 = vector.load %arg12[%c0_683, %c1_684, %c1_685, %c0_686] : memref<2x5x5x32xf32, #tpu.memory_space<vmem>>, vector<2x1x1x32xf32>
    %568 = vector.shape_cast %567 : vector<2x1x1x32xf32> to vector<2x32xf32>
    %569 = arith.maximumf %566, %568 : vector<2x32xf32>
    %c0_687 = arith.constant 0 : index
    %c2_688 = arith.constant 2 : index
    %c0_689 = arith.constant 0 : index
    %c0_690 = arith.constant 0 : index
    %570 = vector.load %arg12[%c0_687, %c2_688, %c0_689, %c0_690] : memref<2x5x5x32xf32, #tpu.memory_space<vmem>>, vector<2x1x1x32xf32>
    %571 = vector.shape_cast %570 : vector<2x1x1x32xf32> to vector<2x32xf32>
    %c0_691 = arith.constant 0 : index
    %c2_692 = arith.constant 2 : index
    %c1_693 = arith.constant 1 : index
    %c0_694 = arith.constant 0 : index
    %572 = vector.load %arg12[%c0_691, %c2_692, %c1_693, %c0_694] : memref<2x5x5x32xf32, #tpu.memory_space<vmem>>, vector<2x1x1x32xf32>
    %573 = vector.shape_cast %572 : vector<2x1x1x32xf32> to vector<2x32xf32>
    %574 = arith.maximumf %571, %573 : vector<2x32xf32>
    %575 = arith.maximumf %569, %574 : vector<2x32xf32>
    %576 = arith.truncf %575 : vector<2x32xf32> to vector<2x32xbf16>
    %c4_695 = arith.constant 4 : index
    %c0_696 = arith.constant 0 : index
    %c0_697 = arith.constant 0 : index
    %577 = vector.load %arg5[%c4_695, %c0_696, %c0_697] : memref<16x32x32xbf16, #tpu.memory_space<vmem>>, vector<1x32x32xbf16>
    %578 = vector.shape_cast %577 : vector<1x32x32xbf16> to vector<32x32xbf16>
    %cst_698 = arith.constant dense<0.000000e+00> : vector<2x32xf32>
    %579 = tpu.matmul %576, %578, %cst_698 {dimension_numbers = #tpu.dot_dimension_numbers<[1], [0], [0], [1], [0, 0, 1, 1], [], []>} : vector<2x32xbf16>, vector<32x32xbf16>, vector<2x32xf32> -> vector<2x32xf32>
    %580 = arith.addf %564, %579 : vector<2x32xf32>
    %c0_699 = arith.constant 0 : index
    %c1_700 = arith.constant 1 : index
    %c1_701 = arith.constant 1 : index
    %c0_702 = arith.constant 0 : index
    %581 = vector.load %arg12[%c0_699, %c1_700, %c1_701, %c0_702] : memref<2x5x5x32xf32, #tpu.memory_space<vmem>>, vector<2x1x1x32xf32>
    %582 = vector.shape_cast %581 : vector<2x1x1x32xf32> to vector<2x32xf32>
    %c0_703 = arith.constant 0 : index
    %c1_704 = arith.constant 1 : index
    %c2_705 = arith.constant 2 : index
    %c0_706 = arith.constant 0 : index
    %583 = vector.load %arg12[%c0_703, %c1_704, %c2_705, %c0_706] : memref<2x5x5x32xf32, #tpu.memory_space<vmem>>, vector<2x1x1x32xf32>
    %584 = vector.shape_cast %583 : vector<2x1x1x32xf32> to vector<2x32xf32>
    %585 = arith.maximumf %582, %584 : vector<2x32xf32>
    %c0_707 = arith.constant 0 : index
    %c2_708 = arith.constant 2 : index
    %c1_709 = arith.constant 1 : index
    %c0_710 = arith.constant 0 : index
    %586 = vector.load %arg12[%c0_707, %c2_708, %c1_709, %c0_710] : memref<2x5x5x32xf32, #tpu.memory_space<vmem>>, vector<2x1x1x32xf32>
    %587 = vector.shape_cast %586 : vector<2x1x1x32xf32> to vector<2x32xf32>
    %c0_711 = arith.constant 0 : index
    %c2_712 = arith.constant 2 : index
    %c2_713 = arith.constant 2 : index
    %c0_714 = arith.constant 0 : index
    %588 = vector.load %arg12[%c0_711, %c2_712, %c2_713, %c0_714] : memref<2x5x5x32xf32, #tpu.memory_space<vmem>>, vector<2x1x1x32xf32>
    %589 = vector.shape_cast %588 : vector<2x1x1x32xf32> to vector<2x32xf32>
    %590 = arith.maximumf %587, %589 : vector<2x32xf32>
    %591 = arith.maximumf %585, %590 : vector<2x32xf32>
    %592 = arith.truncf %591 : vector<2x32xf32> to vector<2x32xbf16>
    %c5_715 = arith.constant 5 : index
    %c0_716 = arith.constant 0 : index
    %c0_717 = arith.constant 0 : index
    %593 = vector.load %arg5[%c5_715, %c0_716, %c0_717] : memref<16x32x32xbf16, #tpu.memory_space<vmem>>, vector<1x32x32xbf16>
    %594 = vector.shape_cast %593 : vector<1x32x32xbf16> to vector<32x32xbf16>
    %cst_718 = arith.constant dense<0.000000e+00> : vector<2x32xf32>
    %595 = tpu.matmul %592, %594, %cst_718 {dimension_numbers = #tpu.dot_dimension_numbers<[1], [0], [0], [1], [0, 0, 1, 1], [], []>} : vector<2x32xbf16>, vector<32x32xbf16>, vector<2x32xf32> -> vector<2x32xf32>
    %596 = arith.addf %580, %595 : vector<2x32xf32>
    %c0_719 = arith.constant 0 : index
    %c1_720 = arith.constant 1 : index
    %c2_721 = arith.constant 2 : index
    %c0_722 = arith.constant 0 : index
    %597 = vector.load %arg12[%c0_719, %c1_720, %c2_721, %c0_722] : memref<2x5x5x32xf32, #tpu.memory_space<vmem>>, vector<2x1x1x32xf32>
    %598 = vector.shape_cast %597 : vector<2x1x1x32xf32> to vector<2x32xf32>
    %c0_723 = arith.constant 0 : index
    %c1_724 = arith.constant 1 : index
    %c3_725 = arith.constant 3 : index
    %c0_726 = arith.constant 0 : index
    %599 = vector.load %arg12[%c0_723, %c1_724, %c3_725, %c0_726] : memref<2x5x5x32xf32, #tpu.memory_space<vmem>>, vector<2x1x1x32xf32>
    %600 = vector.shape_cast %599 : vector<2x1x1x32xf32> to vector<2x32xf32>
    %601 = arith.maximumf %598, %600 : vector<2x32xf32>
    %c0_727 = arith.constant 0 : index
    %c2_728 = arith.constant 2 : index
    %c2_729 = arith.constant 2 : index
    %c0_730 = arith.constant 0 : index
    %602 = vector.load %arg12[%c0_727, %c2_728, %c2_729, %c0_730] : memref<2x5x5x32xf32, #tpu.memory_space<vmem>>, vector<2x1x1x32xf32>
    %603 = vector.shape_cast %602 : vector<2x1x1x32xf32> to vector<2x32xf32>
    %c0_731 = arith.constant 0 : index
    %c2_732 = arith.constant 2 : index
    %c3_733 = arith.constant 3 : index
    %c0_734 = arith.constant 0 : index
    %604 = vector.load %arg12[%c0_731, %c2_732, %c3_733, %c0_734] : memref<2x5x5x32xf32, #tpu.memory_space<vmem>>, vector<2x1x1x32xf32>
    %605 = vector.shape_cast %604 : vector<2x1x1x32xf32> to vector<2x32xf32>
    %606 = arith.maximumf %603, %605 : vector<2x32xf32>
    %607 = arith.maximumf %601, %606 : vector<2x32xf32>
    %608 = arith.truncf %607 : vector<2x32xf32> to vector<2x32xbf16>
    %c6_735 = arith.constant 6 : index
    %c0_736 = arith.constant 0 : index
    %c0_737 = arith.constant 0 : index
    %609 = vector.load %arg5[%c6_735, %c0_736, %c0_737] : memref<16x32x32xbf16, #tpu.memory_space<vmem>>, vector<1x32x32xbf16>
    %610 = vector.shape_cast %609 : vector<1x32x32xbf16> to vector<32x32xbf16>
    %cst_738 = arith.constant dense<0.000000e+00> : vector<2x32xf32>
    %611 = tpu.matmul %608, %610, %cst_738 {dimension_numbers = #tpu.dot_dimension_numbers<[1], [0], [0], [1], [0, 0, 1, 1], [], []>} : vector<2x32xbf16>, vector<32x32xbf16>, vector<2x32xf32> -> vector<2x32xf32>
    %612 = arith.addf %596, %611 : vector<2x32xf32>
    %c0_739 = arith.constant 0 : index
    %c1_740 = arith.constant 1 : index
    %c3_741 = arith.constant 3 : index
    %c0_742 = arith.constant 0 : index
    %613 = vector.load %arg12[%c0_739, %c1_740, %c3_741, %c0_742] : memref<2x5x5x32xf32, #tpu.memory_space<vmem>>, vector<2x1x1x32xf32>
    %614 = vector.shape_cast %613 : vector<2x1x1x32xf32> to vector<2x32xf32>
    %c0_743 = arith.constant 0 : index
    %c1_744 = arith.constant 1 : index
    %c4_745 = arith.constant 4 : index
    %c0_746 = arith.constant 0 : index
    %615 = vector.load %arg12[%c0_743, %c1_744, %c4_745, %c0_746] : memref<2x5x5x32xf32, #tpu.memory_space<vmem>>, vector<2x1x1x32xf32>
    %616 = vector.shape_cast %615 : vector<2x1x1x32xf32> to vector<2x32xf32>
    %617 = arith.maximumf %614, %616 : vector<2x32xf32>
    %c0_747 = arith.constant 0 : index
    %c2_748 = arith.constant 2 : index
    %c3_749 = arith.constant 3 : index
    %c0_750 = arith.constant 0 : index
    %618 = vector.load %arg12[%c0_747, %c2_748, %c3_749, %c0_750] : memref<2x5x5x32xf32, #tpu.memory_space<vmem>>, vector<2x1x1x32xf32>
    %619 = vector.shape_cast %618 : vector<2x1x1x32xf32> to vector<2x32xf32>
    %c0_751 = arith.constant 0 : index
    %c2_752 = arith.constant 2 : index
    %c4_753 = arith.constant 4 : index
    %c0_754 = arith.constant 0 : index
    %620 = vector.load %arg12[%c0_751, %c2_752, %c4_753, %c0_754] : memref<2x5x5x32xf32, #tpu.memory_space<vmem>>, vector<2x1x1x32xf32>
    %621 = vector.shape_cast %620 : vector<2x1x1x32xf32> to vector<2x32xf32>
    %622 = arith.maximumf %619, %621 : vector<2x32xf32>
    %623 = arith.maximumf %617, %622 : vector<2x32xf32>
    %624 = arith.truncf %623 : vector<2x32xf32> to vector<2x32xbf16>
    %c7 = arith.constant 7 : index
    %c0_755 = arith.constant 0 : index
    %c0_756 = arith.constant 0 : index
    %625 = vector.load %arg5[%c7, %c0_755, %c0_756] : memref<16x32x32xbf16, #tpu.memory_space<vmem>>, vector<1x32x32xbf16>
    %626 = vector.shape_cast %625 : vector<1x32x32xbf16> to vector<32x32xbf16>
    %cst_757 = arith.constant dense<0.000000e+00> : vector<2x32xf32>
    %627 = tpu.matmul %624, %626, %cst_757 {dimension_numbers = #tpu.dot_dimension_numbers<[1], [0], [0], [1], [0, 0, 1, 1], [], []>} : vector<2x32xbf16>, vector<32x32xbf16>, vector<2x32xf32> -> vector<2x32xf32>
    %628 = arith.addf %612, %627 : vector<2x32xf32>
    %c0_758 = arith.constant 0 : index
    %c2_759 = arith.constant 2 : index
    %c0_760 = arith.constant 0 : index
    %c0_761 = arith.constant 0 : index
    %629 = vector.load %arg12[%c0_758, %c2_759, %c0_760, %c0_761] : memref<2x5x5x32xf32, #tpu.memory_space<vmem>>, vector<2x1x1x32xf32>
    %630 = vector.shape_cast %629 : vector<2x1x1x32xf32> to vector<2x32xf32>
    %c0_762 = arith.constant 0 : index
    %c2_763 = arith.constant 2 : index
    %c1_764 = arith.constant 1 : index
    %c0_765 = arith.constant 0 : index
    %631 = vector.load %arg12[%c0_762, %c2_763, %c1_764, %c0_765] : memref<2x5x5x32xf32, #tpu.memory_space<vmem>>, vector<2x1x1x32xf32>
    %632 = vector.shape_cast %631 : vector<2x1x1x32xf32> to vector<2x32xf32>
    %633 = arith.maximumf %630, %632 : vector<2x32xf32>
    %c0_766 = arith.constant 0 : index
    %c3_767 = arith.constant 3 : index
    %c0_768 = arith.constant 0 : index
    %c0_769 = arith.constant 0 : index
    %634 = vector.load %arg12[%c0_766, %c3_767, %c0_768, %c0_769] : memref<2x5x5x32xf32, #tpu.memory_space<vmem>>, vector<2x1x1x32xf32>
    %635 = vector.shape_cast %634 : vector<2x1x1x32xf32> to vector<2x32xf32>
    %c0_770 = arith.constant 0 : index
    %c3_771 = arith.constant 3 : index
    %c1_772 = arith.constant 1 : index
    %c0_773 = arith.constant 0 : index
    %636 = vector.load %arg12[%c0_770, %c3_771, %c1_772, %c0_773] : memref<2x5x5x32xf32, #tpu.memory_space<vmem>>, vector<2x1x1x32xf32>
    %637 = vector.shape_cast %636 : vector<2x1x1x32xf32> to vector<2x32xf32>
    %638 = arith.maximumf %635, %637 : vector<2x32xf32>
    %639 = arith.maximumf %633, %638 : vector<2x32xf32>
    %640 = arith.truncf %639 : vector<2x32xf32> to vector<2x32xbf16>
    %c8 = arith.constant 8 : index
    %c0_774 = arith.constant 0 : index
    %c0_775 = arith.constant 0 : index
    %641 = vector.load %arg5[%c8, %c0_774, %c0_775] : memref<16x32x32xbf16, #tpu.memory_space<vmem>>, vector<1x32x32xbf16>
    %642 = vector.shape_cast %641 : vector<1x32x32xbf16> to vector<32x32xbf16>
    %cst_776 = arith.constant dense<0.000000e+00> : vector<2x32xf32>
    %643 = tpu.matmul %640, %642, %cst_776 {dimension_numbers = #tpu.dot_dimension_numbers<[1], [0], [0], [1], [0, 0, 1, 1], [], []>} : vector<2x32xbf16>, vector<32x32xbf16>, vector<2x32xf32> -> vector<2x32xf32>
    %644 = arith.addf %628, %643 : vector<2x32xf32>
    %c0_777 = arith.constant 0 : index
    %c2_778 = arith.constant 2 : index
    %c1_779 = arith.constant 1 : index
    %c0_780 = arith.constant 0 : index
    %645 = vector.load %arg12[%c0_777, %c2_778, %c1_779, %c0_780] : memref<2x5x5x32xf32, #tpu.memory_space<vmem>>, vector<2x1x1x32xf32>
    %646 = vector.shape_cast %645 : vector<2x1x1x32xf32> to vector<2x32xf32>
    %c0_781 = arith.constant 0 : index
    %c2_782 = arith.constant 2 : index
    %c2_783 = arith.constant 2 : index
    %c0_784 = arith.constant 0 : index
    %647 = vector.load %arg12[%c0_781, %c2_782, %c2_783, %c0_784] : memref<2x5x5x32xf32, #tpu.memory_space<vmem>>, vector<2x1x1x32xf32>
    %648 = vector.shape_cast %647 : vector<2x1x1x32xf32> to vector<2x32xf32>
    %649 = arith.maximumf %646, %648 : vector<2x32xf32>
    %c0_785 = arith.constant 0 : index
    %c3_786 = arith.constant 3 : index
    %c1_787 = arith.constant 1 : index
    %c0_788 = arith.constant 0 : index
    %650 = vector.load %arg12[%c0_785, %c3_786, %c1_787, %c0_788] : memref<2x5x5x32xf32, #tpu.memory_space<vmem>>, vector<2x1x1x32xf32>
    %651 = vector.shape_cast %650 : vector<2x1x1x32xf32> to vector<2x32xf32>
    %c0_789 = arith.constant 0 : index
    %c3_790 = arith.constant 3 : index
    %c2_791 = arith.constant 2 : index
    %c0_792 = arith.constant 0 : index
    %652 = vector.load %arg12[%c0_789, %c3_790, %c2_791, %c0_792] : memref<2x5x5x32xf32, #tpu.memory_space<vmem>>, vector<2x1x1x32xf32>
    %653 = vector.shape_cast %652 : vector<2x1x1x32xf32> to vector<2x32xf32>
    %654 = arith.maximumf %651, %653 : vector<2x32xf32>
    %655 = arith.maximumf %649, %654 : vector<2x32xf32>
    %656 = arith.truncf %655 : vector<2x32xf32> to vector<2x32xbf16>
    %c9 = arith.constant 9 : index
    %c0_793 = arith.constant 0 : index
    %c0_794 = arith.constant 0 : index
    %657 = vector.load %arg5[%c9, %c0_793, %c0_794] : memref<16x32x32xbf16, #tpu.memory_space<vmem>>, vector<1x32x32xbf16>
    %658 = vector.shape_cast %657 : vector<1x32x32xbf16> to vector<32x32xbf16>
    %cst_795 = arith.constant dense<0.000000e+00> : vector<2x32xf32>
    %659 = tpu.matmul %656, %658, %cst_795 {dimension_numbers = #tpu.dot_dimension_numbers<[1], [0], [0], [1], [0, 0, 1, 1], [], []>} : vector<2x32xbf16>, vector<32x32xbf16>, vector<2x32xf32> -> vector<2x32xf32>
    %660 = arith.addf %644, %659 : vector<2x32xf32>
    %c0_796 = arith.constant 0 : index
    %c2_797 = arith.constant 2 : index
    %c2_798 = arith.constant 2 : index
    %c0_799 = arith.constant 0 : index
    %661 = vector.load %arg12[%c0_796, %c2_797, %c2_798, %c0_799] : memref<2x5x5x32xf32, #tpu.memory_space<vmem>>, vector<2x1x1x32xf32>
    %662 = vector.shape_cast %661 : vector<2x1x1x32xf32> to vector<2x32xf32>
    %c0_800 = arith.constant 0 : index
    %c2_801 = arith.constant 2 : index
    %c3_802 = arith.constant 3 : index
    %c0_803 = arith.constant 0 : index
    %663 = vector.load %arg12[%c0_800, %c2_801, %c3_802, %c0_803] : memref<2x5x5x32xf32, #tpu.memory_space<vmem>>, vector<2x1x1x32xf32>
    %664 = vector.shape_cast %663 : vector<2x1x1x32xf32> to vector<2x32xf32>
    %665 = arith.maximumf %662, %664 : vector<2x32xf32>
    %c0_804 = arith.constant 0 : index
    %c3_805 = arith.constant 3 : index
    %c2_806 = arith.constant 2 : index
    %c0_807 = arith.constant 0 : index
    %666 = vector.load %arg12[%c0_804, %c3_805, %c2_806, %c0_807] : memref<2x5x5x32xf32, #tpu.memory_space<vmem>>, vector<2x1x1x32xf32>
    %667 = vector.shape_cast %666 : vector<2x1x1x32xf32> to vector<2x32xf32>
    %c0_808 = arith.constant 0 : index
    %c3_809 = arith.constant 3 : index
    %c3_810 = arith.constant 3 : index
    %c0_811 = arith.constant 0 : index
    %668 = vector.load %arg12[%c0_808, %c3_809, %c3_810, %c0_811] : memref<2x5x5x32xf32, #tpu.memory_space<vmem>>, vector<2x1x1x32xf32>
    %669 = vector.shape_cast %668 : vector<2x1x1x32xf32> to vector<2x32xf32>
    %670 = arith.maximumf %667, %669 : vector<2x32xf32>
    %671 = arith.maximumf %665, %670 : vector<2x32xf32>
    %672 = arith.truncf %671 : vector<2x32xf32> to vector<2x32xbf16>
    %c10 = arith.constant 10 : index
    %c0_812 = arith.constant 0 : index
    %c0_813 = arith.constant 0 : index
    %673 = vector.load %arg5[%c10, %c0_812, %c0_813] : memref<16x32x32xbf16, #tpu.memory_space<vmem>>, vector<1x32x32xbf16>
    %674 = vector.shape_cast %673 : vector<1x32x32xbf16> to vector<32x32xbf16>
    %cst_814 = arith.constant dense<0.000000e+00> : vector<2x32xf32>
    %675 = tpu.matmul %672, %674, %cst_814 {dimension_numbers = #tpu.dot_dimension_numbers<[1], [0], [0], [1], [0, 0, 1, 1], [], []>} : vector<2x32xbf16>, vector<32x32xbf16>, vector<2x32xf32> -> vector<2x32xf32>
    %676 = arith.addf %660, %675 : vector<2x32xf32>
    %c0_815 = arith.constant 0 : index
    %c2_816 = arith.constant 2 : index
    %c3_817 = arith.constant 3 : index
    %c0_818 = arith.constant 0 : index
    %677 = vector.load %arg12[%c0_815, %c2_816, %c3_817, %c0_818] : memref<2x5x5x32xf32, #tpu.memory_space<vmem>>, vector<2x1x1x32xf32>
    %678 = vector.shape_cast %677 : vector<2x1x1x32xf32> to vector<2x32xf32>
    %c0_819 = arith.constant 0 : index
    %c2_820 = arith.constant 2 : index
    %c4_821 = arith.constant 4 : index
    %c0_822 = arith.constant 0 : index
    %679 = vector.load %arg12[%c0_819, %c2_820, %c4_821, %c0_822] : memref<2x5x5x32xf32, #tpu.memory_space<vmem>>, vector<2x1x1x32xf32>
    %680 = vector.shape_cast %679 : vector<2x1x1x32xf32> to vector<2x32xf32>
    %681 = arith.maximumf %678, %680 : vector<2x32xf32>
    %c0_823 = arith.constant 0 : index
    %c3_824 = arith.constant 3 : index
    %c3_825 = arith.constant 3 : index
    %c0_826 = arith.constant 0 : index
    %682 = vector.load %arg12[%c0_823, %c3_824, %c3_825, %c0_826] : memref<2x5x5x32xf32, #tpu.memory_space<vmem>>, vector<2x1x1x32xf32>
    %683 = vector.shape_cast %682 : vector<2x1x1x32xf32> to vector<2x32xf32>
    %c0_827 = arith.constant 0 : index
    %c3_828 = arith.constant 3 : index
    %c4_829 = arith.constant 4 : index
    %c0_830 = arith.constant 0 : index
    %684 = vector.load %arg12[%c0_827, %c3_828, %c4_829, %c0_830] : memref<2x5x5x32xf32, #tpu.memory_space<vmem>>, vector<2x1x1x32xf32>
    %685 = vector.shape_cast %684 : vector<2x1x1x32xf32> to vector<2x32xf32>
    %686 = arith.maximumf %683, %685 : vector<2x32xf32>
    %687 = arith.maximumf %681, %686 : vector<2x32xf32>
    %688 = arith.truncf %687 : vector<2x32xf32> to vector<2x32xbf16>
    %c11 = arith.constant 11 : index
    %c0_831 = arith.constant 0 : index
    %c0_832 = arith.constant 0 : index
    %689 = vector.load %arg5[%c11, %c0_831, %c0_832] : memref<16x32x32xbf16, #tpu.memory_space<vmem>>, vector<1x32x32xbf16>
    %690 = vector.shape_cast %689 : vector<1x32x32xbf16> to vector<32x32xbf16>
    %cst_833 = arith.constant dense<0.000000e+00> : vector<2x32xf32>
    %691 = tpu.matmul %688, %690, %cst_833 {dimension_numbers = #tpu.dot_dimension_numbers<[1], [0], [0], [1], [0, 0, 1, 1], [], []>} : vector<2x32xbf16>, vector<32x32xbf16>, vector<2x32xf32> -> vector<2x32xf32>
    %692 = arith.addf %676, %691 : vector<2x32xf32>
    %c0_834 = arith.constant 0 : index
    %c3_835 = arith.constant 3 : index
    %c0_836 = arith.constant 0 : index
    %c0_837 = arith.constant 0 : index
    %693 = vector.load %arg12[%c0_834, %c3_835, %c0_836, %c0_837] : memref<2x5x5x32xf32, #tpu.memory_space<vmem>>, vector<2x1x1x32xf32>
    %694 = vector.shape_cast %693 : vector<2x1x1x32xf32> to vector<2x32xf32>
    %c0_838 = arith.constant 0 : index
    %c3_839 = arith.constant 3 : index
    %c1_840 = arith.constant 1 : index
    %c0_841 = arith.constant 0 : index
    %695 = vector.load %arg12[%c0_838, %c3_839, %c1_840, %c0_841] : memref<2x5x5x32xf32, #tpu.memory_space<vmem>>, vector<2x1x1x32xf32>
    %696 = vector.shape_cast %695 : vector<2x1x1x32xf32> to vector<2x32xf32>
    %697 = arith.maximumf %694, %696 : vector<2x32xf32>
    %c0_842 = arith.constant 0 : index
    %c4_843 = arith.constant 4 : index
    %c0_844 = arith.constant 0 : index
    %c0_845 = arith.constant 0 : index
    %698 = vector.load %arg12[%c0_842, %c4_843, %c0_844, %c0_845] : memref<2x5x5x32xf32, #tpu.memory_space<vmem>>, vector<2x1x1x32xf32>
    %699 = vector.shape_cast %698 : vector<2x1x1x32xf32> to vector<2x32xf32>
    %c0_846 = arith.constant 0 : index
    %c4_847 = arith.constant 4 : index
    %c1_848 = arith.constant 1 : index
    %c0_849 = arith.constant 0 : index
    %700 = vector.load %arg12[%c0_846, %c4_847, %c1_848, %c0_849] : memref<2x5x5x32xf32, #tpu.memory_space<vmem>>, vector<2x1x1x32xf32>
    %701 = vector.shape_cast %700 : vector<2x1x1x32xf32> to vector<2x32xf32>
    %702 = arith.maximumf %699, %701 : vector<2x32xf32>
    %703 = arith.maximumf %697, %702 : vector<2x32xf32>
    %704 = arith.truncf %703 : vector<2x32xf32> to vector<2x32xbf16>
    %c12 = arith.constant 12 : index
    %c0_850 = arith.constant 0 : index
    %c0_851 = arith.constant 0 : index
    %705 = vector.load %arg5[%c12, %c0_850, %c0_851] : memref<16x32x32xbf16, #tpu.memory_space<vmem>>, vector<1x32x32xbf16>
    %706 = vector.shape_cast %705 : vector<1x32x32xbf16> to vector<32x32xbf16>
    %cst_852 = arith.constant dense<0.000000e+00> : vector<2x32xf32>
    %707 = tpu.matmul %704, %706, %cst_852 {dimension_numbers = #tpu.dot_dimension_numbers<[1], [0], [0], [1], [0, 0, 1, 1], [], []>} : vector<2x32xbf16>, vector<32x32xbf16>, vector<2x32xf32> -> vector<2x32xf32>
    %708 = arith.addf %692, %707 : vector<2x32xf32>
    %c0_853 = arith.constant 0 : index
    %c3_854 = arith.constant 3 : index
    %c1_855 = arith.constant 1 : index
    %c0_856 = arith.constant 0 : index
    %709 = vector.load %arg12[%c0_853, %c3_854, %c1_855, %c0_856] : memref<2x5x5x32xf32, #tpu.memory_space<vmem>>, vector<2x1x1x32xf32>
    %710 = vector.shape_cast %709 : vector<2x1x1x32xf32> to vector<2x32xf32>
    %c0_857 = arith.constant 0 : index
    %c3_858 = arith.constant 3 : index
    %c2_859 = arith.constant 2 : index
    %c0_860 = arith.constant 0 : index
    %711 = vector.load %arg12[%c0_857, %c3_858, %c2_859, %c0_860] : memref<2x5x5x32xf32, #tpu.memory_space<vmem>>, vector<2x1x1x32xf32>
    %712 = vector.shape_cast %711 : vector<2x1x1x32xf32> to vector<2x32xf32>
    %713 = arith.maximumf %710, %712 : vector<2x32xf32>
    %c0_861 = arith.constant 0 : index
    %c4_862 = arith.constant 4 : index
    %c1_863 = arith.constant 1 : index
    %c0_864 = arith.constant 0 : index
    %714 = vector.load %arg12[%c0_861, %c4_862, %c1_863, %c0_864] : memref<2x5x5x32xf32, #tpu.memory_space<vmem>>, vector<2x1x1x32xf32>
    %715 = vector.shape_cast %714 : vector<2x1x1x32xf32> to vector<2x32xf32>
    %c0_865 = arith.constant 0 : index
    %c4_866 = arith.constant 4 : index
    %c2_867 = arith.constant 2 : index
    %c0_868 = arith.constant 0 : index
    %716 = vector.load %arg12[%c0_865, %c4_866, %c2_867, %c0_868] : memref<2x5x5x32xf32, #tpu.memory_space<vmem>>, vector<2x1x1x32xf32>
    %717 = vector.shape_cast %716 : vector<2x1x1x32xf32> to vector<2x32xf32>
    %718 = arith.maximumf %715, %717 : vector<2x32xf32>
    %719 = arith.maximumf %713, %718 : vector<2x32xf32>
    %720 = arith.truncf %719 : vector<2x32xf32> to vector<2x32xbf16>
    %c13 = arith.constant 13 : index
    %c0_869 = arith.constant 0 : index
    %c0_870 = arith.constant 0 : index
    %721 = vector.load %arg5[%c13, %c0_869, %c0_870] : memref<16x32x32xbf16, #tpu.memory_space<vmem>>, vector<1x32x32xbf16>
    %722 = vector.shape_cast %721 : vector<1x32x32xbf16> to vector<32x32xbf16>
    %cst_871 = arith.constant dense<0.000000e+00> : vector<2x32xf32>
    %723 = tpu.matmul %720, %722, %cst_871 {dimension_numbers = #tpu.dot_dimension_numbers<[1], [0], [0], [1], [0, 0, 1, 1], [], []>} : vector<2x32xbf16>, vector<32x32xbf16>, vector<2x32xf32> -> vector<2x32xf32>
    %724 = arith.addf %708, %723 : vector<2x32xf32>
    %c0_872 = arith.constant 0 : index
    %c3_873 = arith.constant 3 : index
    %c2_874 = arith.constant 2 : index
    %c0_875 = arith.constant 0 : index
    %725 = vector.load %arg12[%c0_872, %c3_873, %c2_874, %c0_875] : memref<2x5x5x32xf32, #tpu.memory_space<vmem>>, vector<2x1x1x32xf32>
    %726 = vector.shape_cast %725 : vector<2x1x1x32xf32> to vector<2x32xf32>
    %c0_876 = arith.constant 0 : index
    %c3_877 = arith.constant 3 : index
    %c3_878 = arith.constant 3 : index
    %c0_879 = arith.constant 0 : index
    %727 = vector.load %arg12[%c0_876, %c3_877, %c3_878, %c0_879] : memref<2x5x5x32xf32, #tpu.memory_space<vmem>>, vector<2x1x1x32xf32>
    %728 = vector.shape_cast %727 : vector<2x1x1x32xf32> to vector<2x32xf32>
    %729 = arith.maximumf %726, %728 : vector<2x32xf32>
    %c0_880 = arith.constant 0 : index
    %c4_881 = arith.constant 4 : index
    %c2_882 = arith.constant 2 : index
    %c0_883 = arith.constant 0 : index
    %730 = vector.load %arg12[%c0_880, %c4_881, %c2_882, %c0_883] : memref<2x5x5x32xf32, #tpu.memory_space<vmem>>, vector<2x1x1x32xf32>
    %731 = vector.shape_cast %730 : vector<2x1x1x32xf32> to vector<2x32xf32>
    %c0_884 = arith.constant 0 : index
    %c4_885 = arith.constant 4 : index
    %c3_886 = arith.constant 3 : index
    %c0_887 = arith.constant 0 : index
    %732 = vector.load %arg12[%c0_884, %c4_885, %c3_886, %c0_887] : memref<2x5x5x32xf32, #tpu.memory_space<vmem>>, vector<2x1x1x32xf32>
    %733 = vector.shape_cast %732 : vector<2x1x1x32xf32> to vector<2x32xf32>
    %734 = arith.maximumf %731, %733 : vector<2x32xf32>
    %735 = arith.maximumf %729, %734 : vector<2x32xf32>
    %736 = arith.truncf %735 : vector<2x32xf32> to vector<2x32xbf16>
    %c14 = arith.constant 14 : index
    %c0_888 = arith.constant 0 : index
    %c0_889 = arith.constant 0 : index
    %737 = vector.load %arg5[%c14, %c0_888, %c0_889] : memref<16x32x32xbf16, #tpu.memory_space<vmem>>, vector<1x32x32xbf16>
    %738 = vector.shape_cast %737 : vector<1x32x32xbf16> to vector<32x32xbf16>
    %cst_890 = arith.constant dense<0.000000e+00> : vector<2x32xf32>
    %739 = tpu.matmul %736, %738, %cst_890 {dimension_numbers = #tpu.dot_dimension_numbers<[1], [0], [0], [1], [0, 0, 1, 1], [], []>} : vector<2x32xbf16>, vector<32x32xbf16>, vector<2x32xf32> -> vector<2x32xf32>
    %740 = arith.addf %724, %739 : vector<2x32xf32>
    %c0_891 = arith.constant 0 : index
    %c3_892 = arith.constant 3 : index
    %c3_893 = arith.constant 3 : index
    %c0_894 = arith.constant 0 : index
    %741 = vector.load %arg12[%c0_891, %c3_892, %c3_893, %c0_894] : memref<2x5x5x32xf32, #tpu.memory_space<vmem>>, vector<2x1x1x32xf32>
    %742 = vector.shape_cast %741 : vector<2x1x1x32xf32> to vector<2x32xf32>
    %c0_895 = arith.constant 0 : index
    %c3_896 = arith.constant 3 : index
    %c4_897 = arith.constant 4 : index
    %c0_898 = arith.constant 0 : index
    %743 = vector.load %arg12[%c0_895, %c3_896, %c4_897, %c0_898] : memref<2x5x5x32xf32, #tpu.memory_space<vmem>>, vector<2x1x1x32xf32>
    %744 = vector.shape_cast %743 : vector<2x1x1x32xf32> to vector<2x32xf32>
    %745 = arith.maximumf %742, %744 : vector<2x32xf32>
    %c0_899 = arith.constant 0 : index
    %c4_900 = arith.constant 4 : index
    %c3_901 = arith.constant 3 : index
    %c0_902 = arith.constant 0 : index
    %746 = vector.load %arg12[%c0_899, %c4_900, %c3_901, %c0_902] : memref<2x5x5x32xf32, #tpu.memory_space<vmem>>, vector<2x1x1x32xf32>
    %747 = vector.shape_cast %746 : vector<2x1x1x32xf32> to vector<2x32xf32>
    %c0_903 = arith.constant 0 : index
    %c4_904 = arith.constant 4 : index
    %c4_905 = arith.constant 4 : index
    %c0_906 = arith.constant 0 : index
    %748 = vector.load %arg12[%c0_903, %c4_904, %c4_905, %c0_906] : memref<2x5x5x32xf32, #tpu.memory_space<vmem>>, vector<2x1x1x32xf32>
    %749 = vector.shape_cast %748 : vector<2x1x1x32xf32> to vector<2x32xf32>
    %750 = arith.maximumf %747, %749 : vector<2x32xf32>
    %751 = arith.maximumf %745, %750 : vector<2x32xf32>
    %752 = arith.truncf %751 : vector<2x32xf32> to vector<2x32xbf16>
    %c15 = arith.constant 15 : index
    %c0_907 = arith.constant 0 : index
    %c0_908 = arith.constant 0 : index
    %753 = vector.load %arg5[%c15, %c0_907, %c0_908] : memref<16x32x32xbf16, #tpu.memory_space<vmem>>, vector<1x32x32xbf16>
    %754 = vector.shape_cast %753 : vector<1x32x32xbf16> to vector<32x32xbf16>
    %cst_909 = arith.constant dense<0.000000e+00> : vector<2x32xf32>
    %755 = tpu.matmul %752, %754, %cst_909 {dimension_numbers = #tpu.dot_dimension_numbers<[1], [0], [0], [1], [0, 0, 1, 1], [], []>} : vector<2x32xbf16>, vector<32x32xbf16>, vector<2x32xf32> -> vector<2x32xf32>
    %756 = arith.addf %740, %755 : vector<2x32xf32>
    %c0_910 = arith.constant 0 : index
    %c0_911 = arith.constant 0 : index
    %757 = vector.load %arg6[%c0_910, %c0_911] : memref<1x32xf32, #tpu.memory_space<vmem>>, vector<1x32xf32>
    %758 = vector.broadcast %757 : vector<1x32xf32> to vector<2x32xf32>
    %759 = arith.addf %756, %758 : vector<2x32xf32>
    %cst_912 = arith.constant 0.000000e+00 : f32
    %760 = vector.broadcast %cst_912 : f32 to vector<2x32xf32>
    %761 = arith.maximumf %759, %760 : vector<2x32xf32>
    %762 = arith.truncf %761 : vector<2x32xf32> to vector<2x32xbf16>
    %c0_913 = arith.constant 0 : index
    %c0_914 = arith.constant 0 : index
    %763 = vector.load %arg7[%c0_913, %c0_914] : memref<32x10xbf16, #tpu.memory_space<vmem>>, vector<32x10xbf16>
    %cst_915 = arith.constant dense<0.000000e+00> : vector<2x10xf32>
    %764 = tpu.matmul %762, %763, %cst_915 {dimension_numbers = #tpu.dot_dimension_numbers<[1], [0], [0], [1], [0, 0, 1, 1], [], []>} : vector<2x32xbf16>, vector<32x10xbf16>, vector<2x10xf32> -> vector<2x10xf32>
    %c0_916 = arith.constant 0 : index
    %c0_917 = arith.constant 0 : index
    %765 = vector.load %arg8[%c0_916, %c0_917] : memref<1x10xf32, #tpu.memory_space<vmem>>, vector<1x10xf32>
    %766 = vector.broadcast %765 : vector<1x10xf32> to vector<2x10xf32>
    %767 = arith.addf %764, %766 : vector<2x10xf32>
    %c0_918 = arith.constant 0 : index
    %c0_919 = arith.constant 0 : index
    %768 = vector.load %arg9[%c0_918, %c0_919] : memref<2x10xf32, #tpu.memory_space<vmem>>, vector<2x10xf32>
    tpu.vector_store %arg9[%c0_918, %c0_919], %767 {strides = array<i32>} : memref<2x10xf32, #tpu.memory_space<vmem>>, vector<2x10xf32>,
    return
  }
}

</mosaic_0001>

<llo_original>
// kernel: net_forward.1
$region0: #{net_forward.1}
  #allocation0 [shape = 'u32[]', space=smem, size = 0x4, offset = 0x4, fixed_abs, tag = 'smem constant byte address 0x4 - core index']
  #allocation1 [shape = 'u32[72,128]{1,0:T(1,128)}', space=vmem, size = 0x9000, scoped, tag = 'internal scratch']
  #allocation2 [shape = 'f32[4,2,7,7,16]{4,3,2,1,0:T(8,128)}', space=vmem, size = 0x38000, scoped, tag = 'scratch operand']
  #allocation3 [shape = 'bf16[2,5,5,256]{3,2,1,0:T(8,128)(2,1)}', space=vmem, size = 0xa000, scoped, tag = 'scratch operand']
  #allocation4 [shape = 'f32[2,5,5,32]{3,2,1,0:T(8,128)}', space=vmem, size = 0xa000, scoped, tag = 'scratch operand']
  %s0 = inlined_call_operand.vmem [shape: bf16[392,64], index: 0, kind: input, shape index: {}]
  %s1 = inlined_call_operand.vmem [shape: bf16[64,16], index: 1, kind: input, shape index: {}]
  %s2 = inlined_call_operand.vmem [shape: f32[1,16], index: 2, kind: input, shape index: {}]
  %s3 = inlined_call_operand.vmem [shape: bf16[256,32], index: 3, kind: input, shape index: {}]
  %s4 = inlined_call_operand.vmem [shape: f32[1,32], index: 4, kind: input, shape index: {}]
  %s5 = inlined_call_operand.vmem [shape: bf16[16,32,32], index: 5, kind: input, shape index: {}]
  %s6 = inlined_call_operand.vmem [shape: f32[1,32], index: 6, kind: input, shape index: {}]
  %s7 = inlined_call_operand.vmem [shape: bf16[32,10], index: 7, kind: input, shape index: {}]
  %s8 = inlined_call_operand.vmem [shape: f32[1,10], index: 8, kind: input, shape index: {}]
  %s9 = inlined_call_operand.hbm [shape: f32[2,10], index: 9, kind: output, shape index: {}]
  %s10 = sld [smem:[#allocation0]]
  $region46: #{net_forward.1} parent=0
    _
  %s12 = ssub.s32 1, %s10
  %s13 = scalar_select 0, %s12, %s10
  $region1: #{net_forward.1} parent=0
    #allocation5 [shape = 'u8[1024]{0}', space=vmem, size = 0x400, scoped, tag = 'output window, operand 0, single buffered']
    #allocation6 [shape = 's32[1]{0}', space=sflag, size = 0x4, scoped, tag = 'scoped memory for net_forward.1']
    %14 = vsyncpa [#allocation6], 0
    // Predicated region
    $region2: #{net_forward.1} parent=1 // pred_check
      _
    $region3: #{net_forward.1} parent=1 // pred_check_branch
      %16 = sbr.rel (0) target = $region5
    $region4: #{net_forward.1} parent=1 // pred_region
      _
    $region5: #{net_forward.1} parent=1 // pred_fallthru
      _
    // Predicated region
    $region6: #{net_forward.1} parent=1 // pred_check
      _
    $region7: #{net_forward.1} parent=1 // pred_check_branch
      %18 = sbr.rel (0) target = $region9
    $region8: #{net_forward.1} parent=1 // pred_region
      _
    $region9: #{net_forward.1} parent=1 // pred_fallthru
      _
    // Predicated region
    $region10: #{net_forward.1} parent=1 // pred_check
      _
    $region11: #{net_forward.1} parent=1 // pred_check_branch
      %20 = sbr.rel (0) target = $region13
    $region12: #{net_forward.1} parent=1 // pred_region
      _
    $region13: #{net_forward.1} parent=1 // pred_fallthru
      _
    // Predicated region
    $region14: #{net_forward.1} parent=1 // pred_check
      _
    $region15: #{net_forward.1} parent=1 // pred_check_branch
      %22 = sbr.rel (0) target = $region17
    $region16: #{net_forward.1} parent=1 // pred_region
      _
    $region17: #{net_forward.1} parent=1 // pred_fallthru
      _
    // Predicated region
    $region18: #{net_forward.1} parent=1 // pred_check
      _
    $region19: #{net_forward.1} parent=1 // pred_check_branch
      %24 = sbr.rel (0) target = $region21
    $region20: #{net_forward.1} parent=1 // pred_region
      _
    $region21: #{net_forward.1} parent=1 // pred_fallthru
      _
    // Predicated region
    $region22: #{net_forward.1} parent=1 // pred_check
      _
    $region23: #{net_forward.1} parent=1 // pred_check_branch
      %26 = sbr.rel (0) target = $region25
    $region24: #{net_forward.1} parent=1 // pred_region
      _
    $region25: #{net_forward.1} parent=1 // pred_fallthru
      _
    // Predicated region
    $region26: #{net_forward.1} parent=1 // pred_check
      _
    $region27: #{net_forward.1} parent=1 // pred_check_branch
      %28 = sbr.rel (0) target = $region29
    $region28: #{net_forward.1} parent=1 // pred_region
      _
    $region29: #{net_forward.1} parent=1 // pred_fallthru
      _
    // Predicated region
    $region30: #{net_forward.1} parent=1 // pred_check
      _
    $region31: #{net_forward.1} parent=1 // pred_check_branch
      %30 = sbr.rel (0) target = $region33
    $region32: #{net_forward.1} parent=1 // pred_region
      _
    $region33: #{net_forward.1} parent=1 // pred_fallthru
      _
    // Predicated region
    $region34: #{net_forward.1} parent=1 // pred_check
      _
    $region35: #{net_forward.1} parent=1 // pred_check_branch
      %32 = sbr.rel (0) target = $region37
    $region36: #{net_forward.1} parent=1 // pred_region
      _
    $region37: #{net_forward.1} parent=1 // pred_fallthru
      _
    %v34 = vld [vmem:[%s0] sm:$0xf]
    %v35 = vld [vmem:[%s0 + $0x4] sm:$0xf]
    %v36 = vld [vmem:[%s0 + $0x8] sm:$0xf]
    %v37 = vld [vmem:[%s0 + $0xc] sm:$0xf]
    %v38 = vld [vmem:[%s0 + $0x10] sm:$0xf]
    %v39 = vld [vmem:[%s0 + $0x14] sm:$0xf]
    %v40 = vld [vmem:[%s0 + $0x18] sm:$0x1]
    %v41 = vld [vmem:[%s1] sm:$0xf]
    %v42 = vld [vmem:[%s1 + $0x4] sm:$0xf]
    %v43 = vld [vmem:[%s1 + $0x8] sm:$0xf]
    %v44 = vld [vmem:[%s1 + $0xc] sm:$0xf]
    %v45 = vld [vmem:[%s1 + $0x10] sm:$0xf]
    %v46 = vld [vmem:[%s1 + $0x14] sm:$0xf]
    %v47 = vld [vmem:[%s1 + $0x18] sm:$0xf]
    %v48 = vld [vmem:[%s1 + $0x1c] sm:$0xf]
    %v49 = vld [vmem:[%s2] sm:$0x1]
    %v51 = vperm.slane %v49, 0
    %v60 = vunpack.c.l.b16 %v34
    %v61 = vunpack.c.l.b16 %v35
    %v62 = vunpack.c.l.b16 %v36
    %v63 = vunpack.c.l.b16 %v37
    %v64 = vunpack.c.l.b16 %v38
    %v65 = vunpack.c.l.b16 %v39
    %v66 = vunpack.c.l.b16 %v40
    %v67 = vpack.c.b16 %v61, %v60
    %v68 = vpack.c.b16 %v63, %v62
    %v69 = vpack.c.b16 %v65, %v64
    %v70 = vpack.c.b16 %v66, %v66
    %v79 = vunpack.c.l.b16 %v41
    %v80 = vunpack.c.l.b16 %v42
    %v81 = vunpack.c.l.b16 %v43
    %v82 = vunpack.c.l.b16 %v44
    %v83 = vunpack.c.l.b16 %v45
    %v84 = vunpack.c.l.b16 %v46
    %v85 = vunpack.c.l.b16 %v47
    %v86 = vunpack.c.l.b16 %v48
    %v87 = vpack.c.b16 %v80, %v79
    %v88 = vpack.c.b16 %v82, %v81
    %v89 = vpack.c.b16 %v84, %v83
    %v90 = vpack.c.b16 %v86, %v85
    %vm95 = vcmask 523264
    %v97 = vsel %vm95, %v67, 0
    %v100 = vsel %vm95, %v68, 0
    %v103 = vsel %vm95, %v69, 0
    %v106 = vsel %vm95, %v70, 0
    %108 = vmatpush.bf16.msra.mxu0 0
    %109 = vmatpush.bf16.msra.mxu0 0
    %110 = vmatpush.bf16.msra.mxu0 0
    %111 = vmatpush.bf16.msra.mxu0 0
    %112 = vmatpush.bf16.msra.mxu0 %v90
    %113 = vmatpush.bf16.msra.mxu0 %v89
    %114 = vmatpush.bf16.msra.mxu0 %v88
    %115 = vmatpush.bf16.msra.mxu0 %v87
    %116 = vmatmul.bf16.gmra.mxu0 %v97
    %v117 = vpop.f32.mrf.mxu0
    %v118 = vadd.f32 %v51, %v117
    %v119 = vpop.f32.mrf.mxu0
    %v120 = vadd.f32 %v51, %v119
    %121 = vmatmul.bf16.gmra.mxu0 %v100
    %v122 = vpop.f32.mrf.mxu0
    %v123 = vadd.f32 %v51, %v122
    %v124 = vpop.f32.mrf.mxu0
    %v125 = vadd.f32 %v51, %v124
    %126 = vmatmul.bf16.gmra.mxu0 %v103
    %v127 = vpop.f32.mrf.mxu0
    %v128 = vadd.f32 %v51, %v127
    %v129 = vpop.f32.mrf.mxu0
    %v130 = vadd.f32 %v51, %v129
    %131 = vmatmul.bf16.gmra.mxu0 %v106
    %v132 = vpop.f32.mrf.mxu0
    %v133 = vadd.f32 %v51, %v132
    %v134 = vpop.f32.mrf.mxu0
    %135 = vdwg.mxu0
    %v136 = vmax.f32 %v118, 0.0
    %v137 = vmax.f32 %v120, 0.0
    %v138 = vmax.f32 %v123, 0.0
    %v139 = vmax.f32 %v125, 0.0
    %v140 = vmax.f32 %v128, 0.0
    %v141 = vmax.f32 %v130, 0.0
    %v142 = vmax.f32 %v133, 0.0
    %vm143 = vcmask 129024
    %144 = vst.msk [vmem:[#allocation2] sm:$0x7f] %vm143, %v136
    %s145 = scalar_lea.vmem [#allocation2], 8
    %vm146 = vcmask 130055
    %147 = vst.msk [vmem:[%s145 - $0x7] sm:$0x80] %vm146, %v136
    %vm148 = vcmask 128000
    %149 = vst.msk [vmem:[%s145 + $0x1] sm:$0x3f] %vm148, %v137
    %s150 = scalar_lea.vmem [#allocation2], 16
    %vm151 = vcmask 130054
    %152 = vst.msk [vmem:[%s150 - $0x6] sm:$0xc0] %vm151, %v137
    %vm153 = vcmask 126976
    %154 = vst.msk [vmem:[%s150 + $0x2] sm:$0x1f] %vm153, %v138
    %s155 = scalar_lea.vmem [#allocation2], 24
    %vm156 = vcmask 130053
    %157 = vst.msk [vmem:[%s155 - $0x5] sm:$0xe0] %vm156, %v138
    %vm158 = vcmask 125952
    %159 = vst.msk [vmem:[%s155 + $0x3] sm:$0xf] %vm158, %v139
    %s160 = scalar_lea.vmem [#allocation2], 32
    %vm161 = vcmask 130052
    %162 = vst.msk [vmem:[%s160 - $0x4] sm:$0xf0] %vm161, %v139
    %vm163 = vcmask 124928
    %164 = vst.msk [vmem:[%s160 + $0x4] sm:$0x7] %vm163, %v140
    %s165 = scalar_lea.vmem [#allocation2], 40
    %vm166 = vcmask 130051
    %167 = vst.msk [vmem:[%s165 - $0x3] sm:$0xf8] %vm166, %v140
    %vm168 = vcmask 123904
    %169 = vst.msk [vmem:[%s165 + $0x5] sm:$0x3] %vm168, %v141
    %s170 = scalar_lea.vmem [#allocation2], 48
    %vm171 = vcmask 130050
    %172 = vst.msk [vmem:[%s170 - $0x2] sm:$0xfc] %vm171, %v141
    %vm173 = vcmask 122880
    %174 = vst.msk [vmem:[%s170 + $0x6] sm:$0x1] %vm173, %v142
    %v175 = vld [vmem:[%s0 + $0x18] sm:$0xf]
    %v176 = vld [vmem:[%s0 + $0x1c] sm:$0xf]
    %v177 = vld [vmem:[%s0 + $0x20] sm:$0xf]
    %v178 = vld [vmem:[%s0 + $0x24] sm:$0xf]
    %v179 = vld [vmem:[%s0 + $0x28] sm:$0xf]
    %v180 = vld [vmem:[%s0 + $0x2c] sm:$0xf]
    %v181 = vld [vmem:[%s0 + $0x30] sm:$0x1]
    %v182 = vld [vmem:[%s1] sm:$0xf]
    %v183 = vld [vmem:[%s1 + $0x4] sm:$0xf]
    %v184 = vld [vmem:[%s1 + $0x8] sm:$0xf]
    %v185 = vld [vmem:[%s1 + $0xc] sm:$0xf]
    %v186 = vld [vmem:[%s1 + $0x10] sm:$0xf]
    %v187 = vld [vmem:[%s1 + $0x14] sm:$0xf]
    %v188 = vld [vmem:[%s1 + $0x18] sm:$0xf]
    %v189 = vld [vmem:[%s1 + $0x1c] sm:$0xf]
    %v190 = vld [vmem:[%s2] sm:$0x1]
    %v192 = vperm.slane %v190, 0
    %v201 = vunpack.c.l.b16 %v175
    %v202 = vunpack.c.l.b16 %v176
    %v203 = vunpack.c.l.b16 %v177
    %v204 = vunpack.c.l.b16 %v178
    %v205 = vunpack.c.l.b16 %v179
    %v206 = vunpack.c.l.b16 %v180
    %v207 = vunpack.c.l.b16 %v181
    %v208 = vpack.c.b16 %v202, %v201
    %v209 = vpack.c.b16 %v204, %v203
    %v210 = vpack.c.b16 %v206, %v205
    %v211 = vpack.c.b16 %v207, %v207
    %vm212 = vsmask.f32 7424
    %v214 = vshrl.u32 %v208, 16
    %v216 = vshll.u32 %v208, 16
    %v218 = vrot.slane %v216, 1
    %v219 = vor.u32 %v214, %v218
    %v221 = vshll.u32 %v209, 16
    %v223 = vrot.slane %v221, 1
    %v224 = vsel %vm212, %v219, %v223
    %v225 = vshrl.u32 %v209, 16
    %v227 = vor.u32 %v225, %v223
    %v229 = vshll.u32 %v210, 16
    %v231 = vrot.slane %v229, 1
    %v232 = vsel %vm212, %v227, %v231
    %v233 = vshrl.u32 %v210, 16
    %v235 = vor.u32 %v233, %v231
    %v237 = vshll.u32 %v211, 16
    %v239 = vrot.slane %v237, 1
    %v240 = vsel %vm212, %v235, %v239
    %v241 = vshrl.u32 %v211, 16
    %v251 = vunpack.c.l.b16 %v182
    %v252 = vunpack.c.l.b16 %v183
    %v253 = vunpack.c.l.b16 %v184
    %v254 = vunpack.c.l.b16 %v185
    %v255 = vunpack.c.l.b16 %v186
    %v256 = vunpack.c.l.b16 %v187
    %v257 = vunpack.c.l.b16 %v188
    %v258 = vunpack.c.l.b16 %v189
    %v259 = vpack.c.b16 %v252, %v251
    %v260 = vpack.c.b16 %v254, %v253
    %v261 = vpack.c.b16 %v256, %v255
    %v262 = vpack.c.b16 %v258, %v257
    %v268 = vsel %vm95, %v224, 0
    %v271 = vsel %vm95, %v232, 0
    %v274 = vsel %vm95, %v240, 0
    %v277 = vsel %vm95, %v241, 0
    %279 = vmatpush.bf16.msra.mxu0 0
    %280 = vmatpush.bf16.msra.mxu0 0
    %281 = vmatpush.bf16.msra.mxu0 0
    %282 = vmatpush.bf16.msra.mxu0 0
    %283 = vmatpush.bf16.msra.mxu0 %v262
    %284 = vmatpush.bf16.msra.mxu0 %v261
    %285 = vmatpush.bf16.msra.mxu0 %v260
    %286 = vmatpush.bf16.msra.mxu0 %v259
    %287 = vmatmul.bf16.gmra.mxu0 %v268
    %v288 = vpop.f32.mrf.mxu0
    %v289 = vadd.f32 %v192, %v288
    %v290 = vpop.f32.mrf.mxu0
    %v291 = vadd.f32 %v192, %v290
    %292 = vmatmul.bf16.gmra.mxu0 %v271
    %v293 = vpop.f32.mrf.mxu0
    %v294 = vadd.f32 %v192, %v293
    %v295 = vpop.f32.mrf.mxu0
    %v296 = vadd.f32 %v192, %v295
    %297 = vmatmul.bf16.gmra.mxu0 %v274
    %v298 = vpop.f32.mrf.mxu0
    %v299 = vadd.f32 %v192, %v298
    %v300 = vpop.f32.mrf.mxu0
    %v301 = vadd.f32 %v192, %v300
    %302 = vmatmul.bf16.gmra.mxu0 %v277
    %v303 = vpop.f32.mrf.mxu0
    %v304 = vadd.f32 %v192, %v303
    %v305 = vpop.f32.mrf.mxu0
    %306 = vdwg.mxu0
    %v307 = vmax.f32 %v289, 0.0
    %v308 = vmax.f32 %v291, 0.0
    %v309 = vmax.f32 %v294, 0.0
    %v310 = vmax.f32 %v296, 0.0
    %v311 = vmax.f32 %v299, 0.0
    %v312 = vmax.f32 %v301, 0.0
    %v313 = vmax.f32 %v304, 0.0
    %s314 = scalar_lea.vmem [#allocation2], 56
    %315 = vst.msk [vmem:[%s314] sm:$0x7f] %vm143, %v307
    %s316 = scalar_lea.vmem [#allocation2], 64
    %317 = vst.msk [vmem:[%s316 - $0x7] sm:$0x80] %vm146, %v307
    %318 = vst.msk [vmem:[%s316 + $0x1] sm:$0x3f] %vm148, %v308
    %s319 = scalar_lea.vmem [#allocation2], 72
    %320 = vst.msk [vmem:[%s319 - $0x6] sm:$0xc0] %vm151, %v308
    %321 = vst.msk [vmem:[%s319 + $0x2] sm:$0x1f] %vm153, %v309
    %s322 = scalar_lea.vmem [#allocation2], 80
    %323 = vst.msk [vmem:[%s322 - $0x5] sm:$0xe0] %vm156, %v309
    %324 = vst.msk [vmem:[%s322 + $0x3] sm:$0xf] %vm158, %v310
    %s325 = scalar_lea.vmem [#allocation2], 88
    %326 = vst.msk [vmem:[%s325 - $0x4] sm:$0xf0] %vm161, %v310
    %327 = vst.msk [vmem:[%s325 + $0x4] sm:$0x7] %vm163, %v311
    %s328 = scalar_lea.vmem [#allocation2], 96
    %329 = vst.msk [vmem:[%s328 - $0x3] sm:$0xf8] %vm166, %v311
    %330 = vst.msk [vmem:[%s328 + $0x5] sm:$0x3] %vm168, %v312
    %s331 = scalar_lea.vmem [#allocation2], 104
    %332 = vst.msk [vmem:[%s331 - $0x2] sm:$0xfc] %vm171, %v312
    %333 = vst.msk [vmem:[%s331 + $0x6] sm:$0x1] %vm173, %v313
    %v334 = vld [vmem:[%s0 + $0x30] sm:$0xe]
    %v335 = vld [vmem:[%s0 + $0x34] sm:$0xf]
    %v336 = vld [vmem:[%s0 + $0x38] sm:$0xf]
    %v337 = vld [vmem:[%s0 + $0x3c] sm:$0xf]
    %v338 = vld [vmem:[%s0 + $0x40] sm:$0xf]
    %v339 = vld [vmem:[%s0 + $0x44] sm:$0xf]
    %v340 = vld [vmem:[%s0 + $0x48] sm:$0x3]
    %v341 = vld [vmem:[%s1] sm:$0xf]
    %v342 = vld [vmem:[%s1 + $0x4] sm:$0xf]
    %v343 = vld [vmem:[%s1 + $0x8] sm:$0xf]
    %v344 = vld [vmem:[%s1 + $0xc] sm:$0xf]
    %v345 = vld [vmem:[%s1 + $0x10] sm:$0xf]
    %v346 = vld [vmem:[%s1 + $0x14] sm:$0xf]
    %v347 = vld [vmem:[%s1 + $0x18] sm:$0xf]
    %v348 = vld [vmem:[%s1 + $0x1c] sm:$0xf]
    %v349 = vld [vmem:[%s2] sm:$0x1]
    %v351 = vperm.slane %v349, 0
    %v360 = vunpack.c.l.b16 %v334
    %v361 = vunpack.c.l.b16 %v335
    %v362 = vunpack.c.l.b16 %v336
    %v363 = vunpack.c.l.b16 %v337
    %v364 = vunpack.c.l.b16 %v338
    %v365 = vunpack.c.l.b16 %v339
    %v366 = vunpack.c.l.b16 %v340
    %v367 = vpack.c.b16 %v361, %v360
    %v368 = vpack.c.b16 %v363, %v362
    %v369 = vpack.c.b16 %v365, %v364
    %v370 = vpack.c.b16 %v366, %v366
    %vm371 = vcmask 1046528
    %v372 = vrot.slane %v367, 1
    %v373 = vrot.slane %v368, 1
    %v374 = vsel %vm371, %v372, %v373
    %v375 = vrot.slane %v369, 1
    %v376 = vsel %vm371, %v373, %v375
    %v377 = vrot.slane %v370, 1
    %v378 = vsel %vm371, %v375, %v377
    %v387 = vunpack.c.l.b16 %v341
    %v388 = vunpack.c.l.b16 %v342
    %v389 = vunpack.c.l.b16 %v343
    %v390 = vunpack.c.l.b16 %v344
    %v391 = vunpack.c.l.b16 %v345
    %v392 = vunpack.c.l.b16 %v346
    %v393 = vunpack.c.l.b16 %v347
    %v394 = vunpack.c.l.b16 %v348
    %v395 = vpack.c.b16 %v388, %v387
    %v396 = vpack.c.b16 %v390, %v389
    %v397 = vpack.c.b16 %v392, %v391
    %v398 = vpack.c.b16 %v394, %v393
    %v404 = vsel %vm95, %v374, 0
    %v407 = vsel %vm95, %v376, 0
    %v410 = vsel %vm95, %v378, 0
    %v413 = vsel %vm95, %v377, 0
    %415 = vmatpush.bf16.msra.mxu0 0
    %416 = vmatpush.bf16.msra.mxu0 0
    %417 = vmatpush.bf16.msra.mxu0 0
    %418 = vmatpush.bf16.msra.mxu0 0
    %419 = vmatpush.bf16.msra.mxu0 %v398
    %420 = vmatpush.bf16.msra.mxu0 %v397
    %421 = vmatpush.bf16.msra.mxu0 %v396
    %422 = vmatpush.bf16.msra.mxu0 %v395
    %423 = vmatmul.bf16.gmra.mxu0 %v404
    %v424 = vpop.f32.mrf.mxu0
    %v425 = vadd.f32 %v351, %v424
    %v426 = vpop.f32.mrf.mxu0
    %v427 = vadd.f32 %v351, %v426
    %428 = vmatmul.bf16.gmra.mxu0 %v407
    %v429 = vpop.f32.mrf.mxu0
    %v430 = vadd.f32 %v351, %v429
    %v431 = vpop.f32.mrf.mxu0
    %v432 = vadd.f32 %v351, %v431
    %433 = vmatmul.bf16.gmra.mxu0 %v410
    %v434 = vpop.f32.mrf.mxu0
    %v435 = vadd.f32 %v351, %v434
    %v436 = vpop.f32.mrf.mxu0
    %v437 = vadd.f32 %v351, %v436
    %438 = vmatmul.bf16.gmra.mxu0 %v413
    %v439 = vpop.f32.mrf.mxu0
    %v440 = vadd.f32 %v351, %v439
    %v441 = vpop.f32.mrf.mxu0
    %442 = vdwg.mxu0
    %v443 = vmax.f32 %v425, 0.0
    %v444 = vmax.f32 %v427, 0.0
    %v445 = vmax.f32 %v430, 0.0
    %v446 = vmax.f32 %v432, 0.0
    %v447 = vmax.f32 %v435, 0.0
    %v448 = vmax.f32 %v437, 0.0
    %v449 = vmax.f32 %v440, 0.0
    %s450 = scalar_lea.vmem [#allocation2], 112
    %451 = vst.msk [vmem:[%s450] sm:$0x7f] %vm143, %v443
    %s452 = scalar_lea.vmem [#allocation2], 120
    %453 = vst.msk [vmem:[%s452 - $0x7] sm:$0x80] %vm146, %v443
    %454 = vst.msk [vmem:[%s452 + $0x1] sm:$0x3f] %vm148, %v444
    %s455 = scalar_lea.vmem [#allocation2], 128
    %456 = vst.msk [vmem:[%s455 - $0x6] sm:$0xc0] %vm151, %v444
    %457 = vst.msk [vmem:[%s455 + $0x2] sm:$0x1f] %vm153, %v445
    %s458 = scalar_lea.vmem [#allocation2], 136
    %459 = vst.msk [vmem:[%s458 - $0x5] sm:$0xe0] %vm156, %v445
    %460 = vst.msk [vmem:[%s458 + $0x3] sm:$0xf] %vm158, %v446
    %s461 = scalar_lea.vmem [#allocation2], 144
    %462 = vst.msk [vmem:[%s461 - $0x4] sm:$0xf0] %vm161, %v446
    %463 = vst.msk [vmem:[%s461 + $0x4] sm:$0x7] %vm163, %v447
    %s464 = scalar_lea.vmem [#allocation2], 152
    %465 = vst.msk [vmem:[%s464 - $0x3] sm:$0xf8] %vm166, %v447
    %466 = vst.msk [vmem:[%s464 + $0x5] sm:$0x3] %vm168, %v448
    %s467 = scalar_lea.vmem [#allocation2], 160
    %468 = vst.msk [vmem:[%s467 - $0x2] sm:$0xfc] %vm171, %v448
    %469 = vst.msk [vmem:[%s467 + $0x6] sm:$0x1] %vm173, %v449
    %v470 = vld [vmem:[%s0 + $0x48] sm:$0xe]
    %v471 = vld [vmem:[%s0 + $0x4c] sm:$0xf]
    %v472 = vld [vmem:[%s0 + $0x50] sm:$0xf]
    %v473 = vld [vmem:[%s0 + $0x54] sm:$0xf]
    %v474 = vld [vmem:[%s0 + $0x58] sm:$0xf]
    %v475 = vld [vmem:[%s0 + $0x5c] sm:$0xf]
    %v476 = vld [vmem:[%s0 + $0x60] sm:$0x3]
    %v477 = vld [vmem:[%s1] sm:$0xf]
    %v478 = vld [vmem:[%s1 + $0x4] sm:$0xf]
    %v479 = vld [vmem:[%s1 + $0x8] sm:$0xf]
    %v480 = vld [vmem:[%s1 + $0xc] sm:$0xf]
    %v481 = vld [vmem:[%s1 + $0x10] sm:$0xf]
    %v482 = vld [vmem:[%s1 + $0x14] sm:$0xf]
    %v483 = vld [vmem:[%s1 + $0x18] sm:$0xf]
    %v484 = vld [vmem:[%s1 + $0x1c] sm:$0xf]
    %v485 = vld [vmem:[%s2] sm:$0x1]
    %v487 = vperm.slane %v485, 0
    %v496 = vunpack.c.l.b16 %v470
    %v497 = vunpack.c.l.b16 %v471
    %v498 = vunpack.c.l.b16 %v472
    %v499 = vunpack.c.l.b16 %v473
    %v500 = vunpack.c.l.b16 %v474
    %v501 = vunpack.c.l.b16 %v475
    %v502 = vunpack.c.l.b16 %v476
    %v503 = vpack.c.b16 %v497, %v496
    %v504 = vpack.c.b16 %v499, %v498
    %v505 = vpack.c.b16 %v501, %v500
    %v506 = vpack.c.b16 %v502, %v502
    %vm507 = vsmask.f32 6400
    %v509 = vshrl.u32 %v503, 16
    %v511 = vrot.slane %v509, 1
    %v512 = vshll.u32 %v503, 16
    %v514 = vrot.slane %v512, 2
    %v515 = vor.u32 %v511, %v514
    %v517 = vshrl.u32 %v504, 16
    %v519 = vrot.slane %v517, 1
    %v520 = vshll.u32 %v504, 16
    %v522 = vrot.slane %v520, 2
    %v523 = vor.u32 %v519, %v522
    %v524 = vsel %vm507, %v515, %v523
    %v526 = vshrl.u32 %v505, 16
    %v528 = vrot.slane %v526, 1
    %v529 = vshll.u32 %v505, 16
    %v531 = vrot.slane %v529, 2
    %v532 = vor.u32 %v528, %v531
    %v533 = vsel %vm507, %v523, %v532
    %v535 = vshrl.u32 %v506, 16
    %v537 = vrot.slane %v535, 1
    %v538 = vshll.u32 %v506, 16
    %v540 = vrot.slane %v538, 2
    %v541 = vor.u32 %v537, %v540
    %v542 = vsel %vm507, %v532, %v541
    %v551 = vunpack.c.l.b16 %v477
    %v552 = vunpack.c.l.b16 %v478
    %v553 = vunpack.c.l.b16 %v479
    %v554 = vunpack.c.l.b16 %v480
    %v555 = vunpack.c.l.b16 %v481
    %v556 = vunpack.c.l.b16 %v482
    %v557 = vunpack.c.l.b16 %v483
    %v558 = vunpack.c.l.b16 %v484
    %v559 = vpack.c.b16 %v552, %v551
    %v560 = vpack.c.b16 %v554, %v553
    %v561 = vpack.c.b16 %v556, %v555
    %v562 = vpack.c.b16 %v558, %v557
    %v568 = vsel %vm95, %v524, 0
    %v571 = vsel %vm95, %v533, 0
    %v574 = vsel %vm95, %v542, 0
    %v577 = vsel %vm95, %v537, 0
    %579 = vmatpush.bf16.msra.mxu0 0
    %580 = vmatpush.bf16.msra.mxu0 0
    %581 = vmatpush.bf16.msra.mxu0 0
    %582 = vmatpush.bf16.msra.mxu0 0
    %583 = vmatpush.bf16.msra.mxu0 %v562
    %584 = vmatpush.bf16.msra.mxu0 %v561
    %585 = vmatpush.bf16.msra.mxu0 %v560
    %586 = vmatpush.bf16.msra.mxu0 %v559
    %587 = vmatmul.bf16.gmra.mxu0 %v568
    %v588 = vpop.f32.mrf.mxu0
    %v589 = vadd.f32 %v487, %v588
    %v590 = vpop.f32.mrf.mxu0
    %v591 = vadd.f32 %v487, %v590
    %592 = vmatmul.bf16.gmra.mxu0 %v571
    %v593 = vpop.f32.mrf.mxu0
    %v594 = vadd.f32 %v487, %v593
    %v595 = vpop.f32.mrf.mxu0
    %v596 = vadd.f32 %v487, %v595
    %597 = vmatmul.bf16.gmra.mxu0 %v574
    %v598 = vpop.f32.mrf.mxu0
    %v599 = vadd.f32 %v487, %v598
    %v600 = vpop.f32.mrf.mxu0
    %v601 = vadd.f32 %v487, %v600
    %602 = vmatmul.bf16.gmra.mxu0 %v577
    %v603 = vpop.f32.mrf.mxu0
    %v604 = vadd.f32 %v487, %v603
    %v605 = vpop.f32.mrf.mxu0
    %606 = vdwg.mxu0
    %v607 = vmax.f32 %v589, 0.0
    %v608 = vmax.f32 %v591, 0.0
    %v609 = vmax.f32 %v594, 0.0
    %v610 = vmax.f32 %v596, 0.0
    %v611 = vmax.f32 %v599, 0.0
    %v612 = vmax.f32 %v601, 0.0
    %v613 = vmax.f32 %v604, 0.0
    %s614 = scalar_lea.vmem [#allocation2], 168
    %615 = vst.msk [vmem:[%s614] sm:$0x7f] %vm143, %v607
    %s616 = scalar_lea.vmem [#allocation2], 176
    %617 = vst.msk [vmem:[%s616 - $0x7] sm:$0x80] %vm146, %v607
    %618 = vst.msk [vmem:[%s616 + $0x1] sm:$0x3f] %vm148, %v608
    %s619 = scalar_lea.vmem [#allocation2], 184
    %620 = vst.msk [vmem:[%s619 - $0x6] sm:$0xc0] %vm151, %v608
    %621 = vst.msk [vmem:[%s619 + $0x2] sm:$0x1f] %vm153, %v609
    %s622 = scalar_lea.vmem [#allocation2], 192
    %623 = vst.msk [vmem:[%s622 - $0x5] sm:$0xe0] %vm156, %v609
    %624 = vst.msk [vmem:[%s622 + $0x3] sm:$0xf] %vm158, %v610
    %s625 = scalar_lea.vmem [#allocation2], 200
    %626 = vst.msk [vmem:[%s625 - $0x4] sm:$0xf0] %vm161, %v610
    %627 = vst.msk [vmem:[%s625 + $0x4] sm:$0x7] %vm163, %v611
    %s628 = scalar_lea.vmem [#allocation2], 208
    %629 = vst.msk [vmem:[%s628 - $0x3] sm:$0xf8] %vm166, %v611
    %630 = vst.msk [vmem:[%s628 + $0x5] sm:$0x3] %vm168, %v612
    %s631 = scalar_lea.vmem [#allocation2], 216
    %632 = vst.msk [vmem:[%s631 - $0x2] sm:$0xfc] %vm171, %v612
    %633 = vst.msk [vmem:[%s631 + $0x6] sm:$0x1] %vm173, %v613
    %v634 = vld [vmem:[%s0 + $0x60] sm:$0xc]
    %v635 = vld [vmem:[%s0 + $0x64] sm:$0xf]
    %v636 = vld [vmem:[%s0 + $0x68] sm:$0xf]
    %v637 = vld [vmem:[%s0 + $0x6c] sm:$0xf]
    %v638 = vld [vmem:[%s0 + $0x70] sm:$0xf]
    %v639 = vld [vmem:[%s0 + $0x74] sm:$0xf]
    %v640 = vld [vmem:[%s0 + $0x78] sm:$0x7]
    %v641 = vld [vmem:[%s1] sm:$0xf]
    %v642 = vld [vmem:[%s1 + $0x4] sm:$0xf]
    %v643 = vld [vmem:[%s1 + $0x8] sm:$0xf]
    %v644 = vld [vmem:[%s1 + $0xc] sm:$0xf]
    %v645 = vld [vmem:[%s1 + $0x10] sm:$0xf]
    %v646 = vld [vmem:[%s1 + $0x14] sm:$0xf]
    %v647 = vld [vmem:[%s1 + $0x18] sm:$0xf]
    %v648 = vld [vmem:[%s1 + $0x1c] sm:$0xf]
    %v649 = vld [vmem:[%s2] sm:$0x1]
    %v651 = vperm.slane %v649, 0
    %v660 = vunpack.c.l.b16 %v634
    %v661 = vunpack.c.l.b16 %v635
    %v662 = vunpack.c.l.b16 %v636
    %v663 = vunpack.c.l.b16 %v637
    %v664 = vunpack.c.l.b16 %v638
    %v665 = vunpack.c.l.b16 %v639
    %v666 = vunpack.c.l.b16 %v640
    %v667 = vpack.c.b16 %v661, %v660
    %v668 = vpack.c.b16 %v663, %v662
    %v669 = vpack.c.b16 %v665, %v664
    %v670 = vpack.c.b16 %v666, %v666
    %vm671 = vcmask 1045504
    %v672 = vrot.slane %v667, 2
    %v673 = vrot.slane %v668, 2
    %v674 = vsel %vm671, %v672, %v673
    %v675 = vrot.slane %v669, 2
    %v676 = vsel %vm671, %v673, %v675
    %v677 = vrot.slane %v670, 2
    %v678 = vsel %vm671, %v675, %v677
    %v687 = vunpack.c.l.b16 %v641
    %v688 = vunpack.c.l.b16 %v642
    %v689 = vunpack.c.l.b16 %v643
    %v690 = vunpack.c.l.b16 %v644
    %v691 = vunpack.c.l.b16 %v645
    %v692 = vunpack.c.l.b16 %v646
    %v693 = vunpack.c.l.b16 %v647
    %v694 = vunpack.c.l.b16 %v648
    %v695 = vpack.c.b16 %v688, %v687
    %v696 = vpack.c.b16 %v690, %v689
    %v697 = vpack.c.b16 %v692, %v691
    %v698 = vpack.c.b16 %v694, %v693
    %v704 = vsel %vm95, %v674, 0
    %v707 = vsel %vm95, %v676, 0
    %v710 = vsel %vm95, %v678, 0
    %v713 = vsel %vm95, %v677, 0
    %715 = vmatpush.bf16.msra.mxu0 0
    %716 = vmatpush.bf16.msra.mxu0 0
    %717 = vmatpush.bf16.msra.mxu0 0
    %718 = vmatpush.bf16.msra.mxu0 0
    %719 = vmatpush.bf16.msra.mxu0 %v698
    %720 = vmatpush.bf16.msra.mxu0 %v697
    %721 = vmatpush.bf16.msra.mxu0 %v696
    %722 = vmatpush.bf16.msra.mxu0 %v695
    %723 = vmatmul.bf16.gmra.mxu0 %v704
    %v724 = vpop.f32.mrf.mxu0
    %v725 = vadd.f32 %v651, %v724
    %v726 = vpop.f32.mrf.mxu0
    %v727 = vadd.f32 %v651, %v726
    %728 = vmatmul.bf16.gmra.mxu0 %v707
    %v729 = vpop.f32.mrf.mxu0
    %v730 = vadd.f32 %v651, %v729
    %v731 = vpop.f32.mrf.mxu0
    %v732 = vadd.f32 %v651, %v731
    %733 = vmatmul.bf16.gmra.mxu0 %v710
    %v734 = vpop.f32.mrf.mxu0
    %v735 = vadd.f32 %v651, %v734
    %v736 = vpop.f32.mrf.mxu0
    %v737 = vadd.f32 %v651, %v736
    %738 = vmatmul.bf16.gmra.mxu0 %v713
    %v739 = vpop.f32.mrf.mxu0
    %v740 = vadd.f32 %v651, %v739
    %v741 = vpop.f32.mrf.mxu0
    %742 = vdwg.mxu0
    %v743 = vmax.f32 %v725, 0.0
    %v744 = vmax.f32 %v727, 0.0
    %v745 = vmax.f32 %v730, 0.0
    %v746 = vmax.f32 %v732, 0.0
    %v747 = vmax.f32 %v735, 0.0
    %v748 = vmax.f32 %v737, 0.0
    %v749 = vmax.f32 %v740, 0.0
    %s750 = scalar_lea.vmem [#allocation2], 224
    %751 = vst.msk [vmem:[%s750] sm:$0x7f] %vm143, %v743
    %s752 = scalar_lea.vmem [#allocation2], 232
    %753 = vst.msk [vmem:[%s752 - $0x7] sm:$0x80] %vm146, %v743
    %754 = vst.msk [vmem:[%s752 + $0x1] sm:$0x3f] %vm148, %v744
    %s755 = scalar_lea.vmem [#allocation2], 240
    %756 = vst.msk [vmem:[%s755 - $0x6] sm:$0xc0] %vm151, %v744
    %757 = vst.msk [vmem:[%s755 + $0x2] sm:$0x1f] %vm153, %v745
    %s758 = scalar_lea.vmem [#allocation2], 248
    %759 = vst.msk [vmem:[%s758 - $0x5] sm:$0xe0] %vm156, %v745
    %760 = vst.msk [vmem:[%s758 + $0x3] sm:$0xf] %vm158, %v746
    %s761 = scalar_lea.vmem [#allocation2], 256
    %762 = vst.msk [vmem:[%s761 - $0x4] sm:$0xf0] %vm161, %v746
    %763 = vst.msk [vmem:[%s761 + $0x4] sm:$0x7] %vm163, %v747
    %s764 = scalar_lea.vmem [#allocation2], 264
    %765 = vst.msk [vmem:[%s764 - $0x3] sm:$0xf8] %vm166, %v747
    %766 = vst.msk [vmem:[%s764 + $0x5] sm:$0x3] %vm168, %v748
    %s767 = scalar_lea.vmem [#allocation2], 272
    %768 = vst.msk [vmem:[%s767 - $0x2] sm:$0xfc] %vm171, %v748
    %769 = vst.msk [vmem:[%s767 + $0x6] sm:$0x1] %vm173, %v749
    %v770 = vld [vmem:[%s0 + $0x78] sm:$0xc]
    %v771 = vld [vmem:[%s0 + $0x7c] sm:$0xf]
    %v772 = vld [vmem:[%s0 + $0x80] sm:$0xf]
    %v773 = vld [vmem:[%s0 + $0x84] sm:$0xf]
    %v774 = vld [vmem:[%s0 + $0x88] sm:$0xf]
    %v775 = vld [vmem:[%s0 + $0x8c] sm:$0xf]
    %v776 = vld [vmem:[%s0 + $0x90] sm:$0x7]
    %v777 = vld [vmem:[%s1] sm:$0xf]
    %v778 = vld [vmem:[%s1 + $0x4] sm:$0xf]
    %v779 = vld [vmem:[%s1 + $0x8] sm:$0xf]
    %v780 = vld [vmem:[%s1 + $0xc] sm:$0xf]
    %v781 = vld [vmem:[%s1 + $0x10] sm:$0xf]
    %v782 = vld [vmem:[%s1 + $0x14] sm:$0xf]
    %v783 = vld [vmem:[%s1 + $0x18] sm:$0xf]
    %v784 = vld [vmem:[%s1 + $0x1c] sm:$0xf]
    %v785 = vld [vmem:[%s2] sm:$0x1]
    %v787 = vperm.slane %v785, 0
    %v796 = vunpack.c.l.b16 %v770
    %v797 = vunpack.c.l.b16 %v771
    %v798 = vunpack.c.l.b16 %v772
    %v799 = vunpack.c.l.b16 %v773
    %v800 = vunpack.c.l.b16 %v774
    %v801 = vunpack.c.l.b16 %v775
    %v802 = vunpack.c.l.b16 %v776
    %v803 = vpack.c.b16 %v797, %v796
    %v804 = vpack.c.b16 %v799, %v798
    %v805 = vpack.c.b16 %v801, %v800
    %v806 = vpack.c.b16 %v802, %v802
    %vm807 = vsmask.f32 5376
    %v809 = vshrl.u32 %v803, 16
    %v811 = vrot.slane %v809, 2
    %v812 = vshll.u32 %v803, 16
    %v814 = vrot.slane %v812, 3
    %v815 = vor.u32 %v811, %v814
    %v817 = vshrl.u32 %v804, 16
    %v819 = vrot.slane %v817, 2
    %v820 = vshll.u32 %v804, 16
    %v822 = vrot.slane %v820, 3
    %v823 = vor.u32 %v819, %v822
    %v824 = vsel %vm807, %v815, %v823
    %v826 = vshrl.u32 %v805, 16
    %v828 = vrot.slane %v826, 2
    %v829 = vshll.u32 %v805, 16
    %v831 = vrot.slane %v829, 3
    %v832 = vor.u32 %v828, %v831
    %v833 = vsel %vm807, %v823, %v832
    %v835 = vshrl.u32 %v806, 16
    %v837 = vrot.slane %v835, 2
    %v838 = vshll.u32 %v806, 16
    %v840 = vrot.slane %v838, 3
    %v841 = vor.u32 %v837, %v840
    %v842 = vsel %vm807, %v832, %v841
    %v851 = vunpack.c.l.b16 %v777
    %v852 = vunpack.c.l.b16 %v778
    %v853 = vunpack.c.l.b16 %v779
    %v854 = vunpack.c.l.b16 %v780
    %v855 = vunpack.c.l.b16 %v781
    %v856 = vunpack.c.l.b16 %v782
    %v857 = vunpack.c.l.b16 %v783
    %v858 = vunpack.c.l.b16 %v784
    %v859 = vpack.c.b16 %v852, %v851
    %v860 = vpack.c.b16 %v854, %v853
    %v861 = vpack.c.b16 %v856, %v855
    %v862 = vpack.c.b16 %v858, %v857
    %v868 = vsel %vm95, %v824, 0
    %v871 = vsel %vm95, %v833, 0
    %v874 = vsel %vm95, %v842, 0
    %v877 = vsel %vm95, %v837, 0
    %879 = vmatpush.bf16.msra.mxu0 0
    %880 = vmatpush.bf16.msra.mxu0 0
    %881 = vmatpush.bf16.msra.mxu0 0
    %882 = vmatpush.bf16.msra.mxu0 0
    %883 = vmatpush.bf16.msra.mxu0 %v862
    %884 = vmatpush.bf16.msra.mxu0 %v861
    %885 = vmatpush.bf16.msra.mxu0 %v860
    %886 = vmatpush.bf16.msra.mxu0 %v859
    %887 = vmatmul.bf16.gmra.mxu0 %v868
    %v888 = vpop.f32.mrf.mxu0
    %v889 = vadd.f32 %v787, %v888
    %v890 = vpop.f32.mrf.mxu0
    %v891 = vadd.f32 %v787, %v890
    %892 = vmatmul.bf16.gmra.mxu0 %v871
    %v893 = vpop.f32.mrf.mxu0
    %v894 = vadd.f32 %v787, %v893
    %v895 = vpop.f32.mrf.mxu0
    %v896 = vadd.f32 %v787, %v895
    %897 = vmatmul.bf16.gmra.mxu0 %v874
    %v898 = vpop.f32.mrf.mxu0
    %v899 = vadd.f32 %v787, %v898
    %v900 = vpop.f32.mrf.mxu0
    %v901 = vadd.f32 %v787, %v900
    %902 = vmatmul.bf16.gmra.mxu0 %v877
    %v903 = vpop.f32.mrf.mxu0
    %v904 = vadd.f32 %v787, %v903
    %v905 = vpop.f32.mrf.mxu0
    %906 = vdwg.mxu0
    %v907 = vmax.f32 %v889, 0.0
    %v908 = vmax.f32 %v891, 0.0
    %v909 = vmax.f32 %v894, 0.0
    %v910 = vmax.f32 %v896, 0.0
    %v911 = vmax.f32 %v899, 0.0
    %v912 = vmax.f32 %v901, 0.0
    %v913 = vmax.f32 %v904, 0.0
    %s914 = scalar_lea.vmem [#allocation2], 280
    %915 = vst.msk [vmem:[%s914] sm:$0x7f] %vm143, %v907
    %s916 = scalar_lea.vmem [#allocation2], 288
    %917 = vst.msk [vmem:[%s916 - $0x7] sm:$0x80] %vm146, %v907
    %918 = vst.msk [vmem:[%s916 + $0x1] sm:$0x3f] %vm148, %v908
    %s919 = scalar_lea.vmem [#allocation2], 296
    %920 = vst.msk [vmem:[%s919 - $0x6] sm:$0xc0] %vm151, %v908
    %921 = vst.msk [vmem:[%s919 + $0x2] sm:$0x1f] %vm153, %v909
    %s922 = scalar_lea.vmem [#allocation2], 304
    %923 = vst.msk [vmem:[%s922 - $0x5] sm:$0xe0] %vm156, %v909
    %924 = vst.msk [vmem:[%s922 + $0x3] sm:$0xf] %vm158, %v910
    %s925 = scalar_lea.vmem [#allocation2], 312
    %926 = vst.msk [vmem:[%s925 - $0x4] sm:$0xf0] %vm161, %v910
    %927 = vst.msk [vmem:[%s925 + $0x4] sm:$0x7] %vm163, %v911
    %s928 = scalar_lea.vmem [#allocation2], 320
    %929 = vst.msk [vmem:[%s928 - $0x3] sm:$0xf8] %vm166, %v911
    %930 = vst.msk [vmem:[%s928 + $0x5] sm:$0x3] %vm168, %v912
    %s931 = scalar_lea.vmem [#allocation2], 328
    %932 = vst.msk [vmem:[%s931 - $0x2] sm:$0xfc] %vm171, %v912
    %933 = vst.msk [vmem:[%s931 + $0x6] sm:$0x1] %vm173, %v913
    %v934 = vld [vmem:[%s0 + $0x90] sm:$0x8]
    %v935 = vld [vmem:[%s0 + $0x94] sm:$0xf]
    %v936 = vld [vmem:[%s0 + $0x98] sm:$0xf]
    %v937 = vld [vmem:[%s0 + $0x9c] sm:$0xf]
    %v938 = vld [vmem:[%s0 + $0xa0] sm:$0xf]
    %v939 = vld [vmem:[%s0 + $0xa4] sm:$0xf]
    %v940 = vld [vmem:[%s0 + $0xa8] sm:$0xf]
    %v941 = vld [vmem:[%s1] sm:$0xf]
    %v942 = vld [vmem:[%s1 + $0x4] sm:$0xf]
    %v943 = vld [vmem:[%s1 + $0x8] sm:$0xf]
    %v944 = vld [vmem:[%s1 + $0xc] sm:$0xf]
    %v945 = vld [vmem:[%s1 + $0x10] sm:$0xf]
    %v946 = vld [vmem:[%s1 + $0x14] sm:$0xf]
    %v947 = vld [vmem:[%s1 + $0x18] sm:$0xf]
    %v948 = vld [vmem:[%s1 + $0x1c] sm:$0xf]
    %v949 = vld [vmem:[%s2] sm:$0x1]
    %v951 = vperm.slane %v949, 0
    %v960 = vunpack.c.l.b16 %v934
    %v961 = vunpack.c.l.b16 %v935
    %v962 = vunpack.c.l.b16 %v936
    %v963 = vunpack.c.l.b16 %v937
    %v964 = vunpack.c.l.b16 %v938
    %v965 = vunpack.c.l.b16 %v939
    %v966 = vunpack.c.l.b16 %v940
    %v967 = vpack.c.b16 %v961, %v960
    %v968 = vpack.c.b16 %v963, %v962
    %v969 = vpack.c.b16 %v965, %v964
    %v970 = vpack.c.b16 %v966, %v966
    %vm971 = vcmask 1044480
    %v972 = vrot.slane %v967, 3
    %v973 = vrot.slane %v968, 3
    %v974 = vsel %vm971, %v972, %v973
    %v975 = vrot.slane %v969, 3
    %v976 = vsel %vm971, %v973, %v975
    %v977 = vrot.slane %v970, 3
    %v978 = vsel %vm971, %v975, %v977
    %v987 = vunpack.c.l.b16 %v941
    %v988 = vunpack.c.l.b16 %v942
    %v989 = vunpack.c.l.b16 %v943
    %v990 = vunpack.c.l.b16 %v944
    %v991 = vunpack.c.l.b16 %v945
    %v992 = vunpack.c.l.b16 %v946
    %v993 = vunpack.c.l.b16 %v947
    %v994 = vunpack.c.l.b16 %v948
    %v995 = vpack.c.b16 %v988, %v987
    %v996 = vpack.c.b16 %v990, %v989
    %v997 = vpack.c.b16 %v992, %v991
    %v998 = vpack.c.b16 %v994, %v993
    %v1004 = vsel %vm95, %v974, 0
    %v1007 = vsel %vm95, %v976, 0
    %v1010 = vsel %vm95, %v978, 0
    %v1013 = vsel %vm95, %v977, 0
    %1015 = vmatpush.bf16.msra.mxu0 0
    %1016 = vmatpush.bf16.msra.mxu0 0
    %1017 = vmatpush.bf16.msra.mxu0 0
    %1018 = vmatpush.bf16.msra.mxu0 0
    %1019 = vmatpush.bf16.msra.mxu0 %v998
    %1020 = vmatpush.bf16.msra.mxu0 %v997
    %1021 = vmatpush.bf16.msra.mxu0 %v996
    %1022 = vmatpush.bf16.msra.mxu0 %v995
    %1023 = vmatmul.bf16.gmra.mxu0 %v1004
    %v1024 = vpop.f32.mrf.mxu0
    %v1025 = vadd.f32 %v951, %v1024
    %v1026 = vpop.f32.mrf.mxu0
    %v1027 = vadd.f32 %v951, %v1026
    %1028 = vmatmul.bf16.gmra.mxu0 %v1007
    %v1029 = vpop.f32.mrf.mxu0
    %v1030 = vadd.f32 %v951, %v1029
    %v1031 = vpop.f32.mrf.mxu0
    %v1032 = vadd.f32 %v951, %v1031
    %1033 = vmatmul.bf16.gmra.mxu0 %v1010
    %v1034 = vpop.f32.mrf.mxu0
    %v1035 = vadd.f32 %v951, %v1034
    %v1036 = vpop.f32.mrf.mxu0
    %v1037 = vadd.f32 %v951, %v1036
    %1038 = vmatmul.bf16.gmra.mxu0 %v1013
    %v1039 = vpop.f32.mrf.mxu0
    %v1040 = vadd.f32 %v951, %v1039
    %v1041 = vpop.f32.mrf.mxu0
    %1042 = vdwg.mxu0
    %v1043 = vmax.f32 %v1025, 0.0
    %v1044 = vmax.f32 %v1027, 0.0
    %v1045 = vmax.f32 %v1030, 0.0
    %v1046 = vmax.f32 %v1032, 0.0
    %v1047 = vmax.f32 %v1035, 0.0
    %v1048 = vmax.f32 %v1037, 0.0
    %v1049 = vmax.f32 %v1040, 0.0
    %s1050 = scalar_lea.vmem [#allocation2], 336
    %1051 = vst.msk [vmem:[%s1050] sm:$0x7f] %vm143, %v1043
    %s1052 = scalar_lea.vmem [#allocation2], 344
    %1053 = vst.msk [vmem:[%s1052 - $0x7] sm:$0x80] %vm146, %v1043
    %1054 = vst.msk [vmem:[%s1052 + $0x1] sm:$0x3f] %vm148, %v1044
    %s1055 = scalar_lea.vmem [#allocation2], 352
    %1056 = vst.msk [vmem:[%s1055 - $0x6] sm:$0xc0] %vm151, %v1044
    %1057 = vst.msk [vmem:[%s1055 + $0x2] sm:$0x1f] %vm153, %v1045
    %s1058 = scalar_lea.vmem [#allocation2], 360
    %1059 = vst.msk [vmem:[%s1058 - $0x5] sm:$0xe0] %vm156, %v1045
    %1060 = vst.msk [vmem:[%s1058 + $0x3] sm:$0xf] %vm158, %v1046
    %s1061 = scalar_lea.vmem [#allocation2], 368
    %1062 = vst.msk [vmem:[%s1061 - $0x4] sm:$0xf0] %vm161, %v1046
    %1063 = vst.msk [vmem:[%s1061 + $0x4] sm:$0x7] %vm163, %v1047
    %s1064 = scalar_lea.vmem [#allocation2], 376
    %1065 = vst.msk [vmem:[%s1064 - $0x3] sm:$0xf8] %vm166, %v1047
    %1066 = vst.msk [vmem:[%s1064 + $0x5] sm:$0x3] %vm168, %v1048
    %s1067 = scalar_lea.vmem [#allocation2], 384
    %1068 = vst.msk [vmem:[%s1067 - $0x2] sm:$0xfc] %vm171, %v1048
    %1069 = vst.msk [vmem:[%s1067 + $0x6] sm:$0x1] %vm173, %v1049
    %v1070 = vld [vmem:[%s0 + $0xa8] sm:$0x8]
    %v1071 = vld [vmem:[%s0 + $0xac] sm:$0xf]
    %v1072 = vld [vmem:[%s0 + $0xb0] sm:$0xf]
    %v1073 = vld [vmem:[%s0 + $0xb4] sm:$0xf]
    %v1074 = vld [vmem:[%s0 + $0xb8] sm:$0xf]
    %v1075 = vld [vmem:[%s0 + $0xbc] sm:$0xf]
    %v1076 = vld [vmem:[%s0 + $0xc0] sm:$0xf]
    %v1077 = vld [vmem:[%s1] sm:$0xf]
    %v1078 = vld [vmem:[%s1 + $0x4] sm:$0xf]
    %v1079 = vld [vmem:[%s1 + $0x8] sm:$0xf]
    %v1080 = vld [vmem:[%s1 + $0xc] sm:$0xf]
    %v1081 = vld [vmem:[%s1 + $0x10] sm:$0xf]
    %v1082 = vld [vmem:[%s1 + $0x14] sm:$0xf]
    %v1083 = vld [vmem:[%s1 + $0x18] sm:$0xf]
    %v1084 = vld [vmem:[%s1 + $0x1c] sm:$0xf]
    %v1085 = vld [vmem:[%s2] sm:$0x1]
    %v1087 = vperm.slane %v1085, 0
    %v1096 = vunpack.c.l.b16 %v1070
    %v1097 = vunpack.c.l.b16 %v1071
    %v1098 = vunpack.c.l.b16 %v1072
    %v1099 = vunpack.c.l.b16 %v1073
    %v1100 = vunpack.c.l.b16 %v1074
    %v1101 = vunpack.c.l.b16 %v1075
    %v1102 = vunpack.c.l.b16 %v1076
    %v1103 = vpack.c.b16 %v1097, %v1096
    %v1104 = vpack.c.b16 %v1099, %v1098
    %v1105 = vpack.c.b16 %v1101, %v1100
    %v1106 = vpack.c.b16 %v1102, %v1102
    %vm1107 = vsmask.f32 4352
    %v1109 = vshrl.u32 %v1103, 16
    %v1111 = vrot.slane %v1109, 3
    %v1112 = vshll.u32 %v1103, 16
    %v1114 = vrot.slane %v1112, 4
    %v1115 = vor.u32 %v1111, %v1114
    %v1117 = vshrl.u32 %v1104, 16
    %v1119 = vrot.slane %v1117, 3
    %v1120 = vshll.u32 %v1104, 16
    %v1122 = vrot.slane %v1120, 4
    %v1123 = vor.u32 %v1119, %v1122
    %v1124 = vsel %vm1107, %v1115, %v1123
    %v1126 = vshrl.u32 %v1105, 16
    %v1128 = vrot.slane %v1126, 3
    %v1129 = vshll.u32 %v1105, 16
    %v1131 = vrot.slane %v1129, 4
    %v1132 = vor.u32 %v1128, %v1131
    %v1133 = vsel %vm1107, %v1123, %v1132
    %v1135 = vshrl.u32 %v1106, 16
    %v1137 = vrot.slane %v1135, 3
    %v1138 = vshll.u32 %v1106, 16
    %v1140 = vrot.slane %v1138, 4
    %v1141 = vor.u32 %v1137, %v1140
    %v1142 = vsel %vm1107, %v1132, %v1141
    %v1151 = vunpack.c.l.b16 %v1077
    %v1152 = vunpack.c.l.b16 %v1078
    %v1153 = vunpack.c.l.b16 %v1079
    %v1154 = vunpack.c.l.b16 %v1080
    %v1155 = vunpack.c.l.b16 %v1081
    %v1156 = vunpack.c.l.b16 %v1082
    %v1157 = vunpack.c.l.b16 %v1083
    %v1158 = vunpack.c.l.b16 %v1084
    %v1159 = vpack.c.b16 %v1152, %v1151
    %v1160 = vpack.c.b16 %v1154, %v1153
    %v1161 = vpack.c.b16 %v1156, %v1155
    %v1162 = vpack.c.b16 %v1158, %v1157
    %v1168 = vsel %vm95, %v1124, 0
    %v1171 = vsel %vm95, %v1133, 0
    %v1174 = vsel %vm95, %v1142, 0
    %v1177 = vsel %vm95, %v1137, 0
    %1179 = vmatpush.bf16.msra.mxu0 0
    %1180 = vmatpush.bf16.msra.mxu0 0
    %1181 = vmatpush.bf16.msra.mxu0 0
    %1182 = vmatpush.bf16.msra.mxu0 0
    %1183 = vmatpush.bf16.msra.mxu0 %v1162
    %1184 = vmatpush.bf16.msra.mxu0 %v1161
    %1185 = vmatpush.bf16.msra.mxu0 %v1160
    %1186 = vmatpush.bf16.msra.mxu0 %v1159
    %1187 = vmatmul.bf16.gmra.mxu0 %v1168
    %v1188 = vpop.f32.mrf.mxu0
    %v1189 = vadd.f32 %v1087, %v1188
    %v1190 = vpop.f32.mrf.mxu0
    %v1191 = vadd.f32 %v1087, %v1190
    %1192 = vmatmul.bf16.gmra.mxu0 %v1171
    %v1193 = vpop.f32.mrf.mxu0
    %v1194 = vadd.f32 %v1087, %v1193
    %v1195 = vpop.f32.mrf.mxu0
    %v1196 = vadd.f32 %v1087, %v1195
    %1197 = vmatmul.bf16.gmra.mxu0 %v1174
    %v1198 = vpop.f32.mrf.mxu0
    %v1199 = vadd.f32 %v1087, %v1198
    %v1200 = vpop.f32.mrf.mxu0
    %v1201 = vadd.f32 %v1087, %v1200
    %1202 = vmatmul.bf16.gmra.mxu0 %v1177
    %v1203 = vpop.f32.mrf.mxu0
    %v1204 = vadd.f32 %v1087, %v1203
    %v1205 = vpop.f32.mrf.mxu0
    %1206 = vdwg.mxu0
    %v1207 = vmax.f32 %v1189, 0.0
    %v1208 = vmax.f32 %v1191, 0.0
    %v1209 = vmax.f32 %v1194, 0.0
    %v1210 = vmax.f32 %v1196, 0.0
    %v1211 = vmax.f32 %v1199, 0.0
    %v1212 = vmax.f32 %v1201, 0.0
    %v1213 = vmax.f32 %v1204, 0.0
    %s1214 = scalar_lea.vmem [#allocation2], 392
    %1215 = vst.msk [vmem:[%s1214] sm:$0x7f] %vm143, %v1207
    %s1216 = scalar_lea.vmem [#allocation2], 400
    %1217 = vst.msk [vmem:[%s1216 - $0x7] sm:$0x80] %vm146, %v1207
    %1218 = vst.msk [vmem:[%s1216 + $0x1] sm:$0x3f] %vm148, %v1208
    %s1219 = scalar_lea.vmem [#allocation2], 408
    %1220 = vst.msk [vmem:[%s1219 - $0x6] sm:$0xc0] %vm151, %v1208
    %1221 = vst.msk [vmem:[%s1219 + $0x2] sm:$0x1f] %vm153, %v1209
    %s1222 = scalar_lea.vmem [#allocation2], 416
    %1223 = vst.msk [vmem:[%s1222 - $0x5] sm:$0xe0] %vm156, %v1209
    %1224 = vst.msk [vmem:[%s1222 + $0x3] sm:$0xf] %vm158, %v1210
    %s1225 = scalar_lea.vmem [#allocation2], 424
    %1226 = vst.msk [vmem:[%s1225 - $0x4] sm:$0xf0] %vm161, %v1210
    %1227 = vst.msk [vmem:[%s1225 + $0x4] sm:$0x7] %vm163, %v1211
    %s1228 = scalar_lea.vmem [#allocation2], 432
    %1229 = vst.msk [vmem:[%s1228 - $0x3] sm:$0xf8] %vm166, %v1211
    %1230 = vst.msk [vmem:[%s1228 + $0x5] sm:$0x3] %vm168, %v1212
    %s1231 = scalar_lea.vmem [#allocation2], 440
    %1232 = vst.msk [vmem:[%s1231 - $0x2] sm:$0xfc] %vm171, %v1212
    %1233 = vst.msk [vmem:[%s1231 + $0x6] sm:$0x1] %vm173, %v1213
    %v1234 = vld [vmem:[#allocation2] sm:$0x7f]
    %v1235 = vld [vmem:[#allocation2 + $0x8] sm:$0x7f]
    %v1236 = vld [vmem:[#allocation2 + $0x10] sm:$0x7f]
    %v1237 = vld [vmem:[#allocation2 + $0x18] sm:$0x7f]
    %v1238 = vld [vmem:[#allocation2 + $0x20] sm:$0x7f]
    %v1239 = vld [vmem:[#allocation2 + $0x28] sm:$0x7f]
    %v1240 = vld [vmem:[#allocation2 + $0x38] sm:$0x7f]
    %v1241 = vld [vmem:[#allocation2 + $0x40] sm:$0x7f]
    %v1242 = vld [vmem:[#allocation2 + $0x48] sm:$0x7f]
    %v1243 = vld [vmem:[#allocation2 + $0x50] sm:$0x7f]
    %v1244 = vld [vmem:[#allocation2 + $0x58] sm:$0x7f]
    %v1245 = vld [vmem:[#allocation2 + $0x60] sm:$0x7f]
    %v1246 = vld [vmem:[%s450] sm:$0x7f]
    %v1247 = vld [vmem:[%s450 + $0x8] sm:$0x7f]
    %v1248 = vld [vmem:[%s450 + $0x10] sm:$0x7f]
    %v1249 = vld [vmem:[%s450 + $0x18] sm:$0x7f]
    %v1250 = vld [vmem:[%s450 + $0x20] sm:$0x7f]
    %v1251 = vld [vmem:[%s450 + $0x28] sm:$0x7f]
    %v1252 = vld [vmem:[%s450 + $0x38] sm:$0x7f]
    %v1253 = vld [vmem:[%s450 + $0x40] sm:$0x7f]
    %v1254 = vld [vmem:[%s450 + $0x48] sm:$0x7f]
    %v1255 = vld [vmem:[%s450 + $0x50] sm:$0x7f]
    %v1256 = vld [vmem:[%s450 + $0x58] sm:$0x7f]
    %v1257 = vld [vmem:[%s450 + $0x60] sm:$0x7f]
    %v1258 = vmax.f32 %v1234, %v1246
    %v1259 = vmax.f32 %v1235, %v1247
    %v1260 = vmax.f32 %v1236, %v1248
    %v1261 = vmax.f32 %v1237, %v1249
    %v1262 = vmax.f32 %v1238, %v1250
    %v1263 = vmax.f32 %v1239, %v1251
    %v1264 = vmax.f32 %v1240, %v1252
    %v1265 = vmax.f32 %v1241, %v1253
    %v1266 = vmax.f32 %v1242, %v1254
    %v1267 = vmax.f32 %v1243, %v1255
    %v1268 = vmax.f32 %v1244, %v1256
    %v1269 = vmax.f32 %v1245, %v1257
    %v1270 = vld [vmem:[%s750] sm:$0x7f]
    %v1271 = vld [vmem:[%s750 + $0x8] sm:$0x7f]
    %v1272 = vld [vmem:[%s750 + $0x10] sm:$0x7f]
    %v1273 = vld [vmem:[%s750 + $0x18] sm:$0x7f]
    %v1274 = vld [vmem:[%s750 + $0x20] sm:$0x7f]
    %v1275 = vld [vmem:[%s750 + $0x28] sm:$0x7f]
    %v1276 = vld [vmem:[%s750 + $0x38] sm:$0x7f]
    %v1277 = vld [vmem:[%s750 + $0x40] sm:$0x7f]
    %v1278 = vld [vmem:[%s750 + $0x48] sm:$0x7f]
    %v1279 = vld [vmem:[%s750 + $0x50] sm:$0x7f]
    %v1280 = vld [vmem:[%s750 + $0x58] sm:$0x7f]
    %v1281 = vld [vmem:[%s750 + $0x60] sm:$0x7f]
    %v1282 = vmax.f32 %v1258, %v1270
    %v1283 = vmax.f32 %v1259, %v1271
    %v1284 = vmax.f32 %v1260, %v1272
    %v1285 = vmax.f32 %v1261, %v1273
    %v1286 = vmax.f32 %v1262, %v1274
    %v1287 = vmax.f32 %v1263, %v1275
    %v1288 = vmax.f32 %v1264, %v1276
    %v1289 = vmax.f32 %v1265, %v1277
    %v1290 = vmax.f32 %v1266, %v1278
    %v1291 = vmax.f32 %v1267, %v1279
    %v1292 = vmax.f32 %v1268, %v1280
    %v1293 = vmax.f32 %v1269, %v1281
    %v1294 = vld [vmem:[%s1050] sm:$0x7f]
    %v1295 = vld [vmem:[%s1050 + $0x8] sm:$0x7f]
    %v1296 = vld [vmem:[%s1050 + $0x10] sm:$0x7f]
    %v1297 = vld [vmem:[%s1050 + $0x18] sm:$0x7f]
    %v1298 = vld [vmem:[%s1050 + $0x20] sm:$0x7f]
    %v1299 = vld [vmem:[%s1050 + $0x28] sm:$0x7f]
    %v1300 = vld [vmem:[%s1050 + $0x38] sm:$0x7f]
    %v1301 = vld [vmem:[%s1050 + $0x40] sm:$0x7f]
    %v1302 = vld [vmem:[%s1050 + $0x48] sm:$0x7f]
    %v1303 = vld [vmem:[%s1050 + $0x50] sm:$0x7f]
    %v1304 = vld [vmem:[%s1050 + $0x58] sm:$0x7f]
    %v1305 = vld [vmem:[%s1050 + $0x60] sm:$0x7f]
    %v1306 = vmax.f32 %v1282, %v1294
    %v1307 = vmax.f32 %v1283, %v1295
    %v1308 = vmax.f32 %v1284, %v1296
    %v1309 = vmax.f32 %v1285, %v1297
    %v1310 = vmax.f32 %v1286, %v1298
    %v1311 = vmax.f32 %v1287, %v1299
    %v1312 = vmax.f32 %v1288, %v1300
    %v1313 = vmax.f32 %v1289, %v1301
    %v1314 = vmax.f32 %v1290, %v1302
    %v1315 = vmax.f32 %v1291, %v1303
    %v1316 = vmax.f32 %v1292, %v1304
    %v1317 = vmax.f32 %v1293, %v1305
    %v1318 = vpack.c.bf16 %v1306, %v1306
    %v1319 = vpack.c.bf16 %v1307, %v1307
    %v1320 = vpack.c.bf16 %v1308, %v1308
    %v1321 = vpack.c.bf16 %v1309, %v1309
    %v1322 = vpack.c.bf16 %v1310, %v1310
    %v1323 = vpack.c.bf16 %v1312, %v1312
    %v1324 = vpack.c.bf16 %v1313, %v1313
    %v1325 = vpack.c.bf16 %v1314, %v1314
    %v1326 = vpack.c.bf16 %v1315, %v1315
    %v1327 = vpack.c.bf16 %v1316, %v1316
    %vm1328 = vcmask 124928
    %vm1329 = vsmask.f32 2304
    %vm1330 = vmand %vm1328, %vm1329
    %v1331 = vld [vmem:[#allocation3] sm:$0x7]
    %v1332 = vsel %vm1330, %v1318, %v1331
    %1333 = vst [vmem:[#allocation3] sm:$0x7] %v1332
    %v1334 = vld [vmem:[#allocation3 + $0x8] sm:$0x7]
    %v1335 = vsel %vm1330, %v1319, %v1334
    %1336 = vst [vmem:[#allocation3 + $0x8] sm:$0x7] %v1335
    %v1337 = vld [vmem:[#allocation3 + $0x10] sm:$0x7]
    %v1338 = vsel %vm1330, %v1320, %v1337
    %1339 = vst [vmem:[#allocation3 + $0x10] sm:$0x7] %v1338
    %v1340 = vld [vmem:[#allocation3 + $0x18] sm:$0x7]
    %v1341 = vsel %vm1330, %v1321, %v1340
    %1342 = vst [vmem:[#allocation3 + $0x18] sm:$0x7] %v1341
    %v1343 = vld [vmem:[#allocation3 + $0x20] sm:$0x7]
    %v1344 = vsel %vm1330, %v1322, %v1343
    %1345 = vst [vmem:[#allocation3 + $0x20] sm:$0x7] %v1344
    %v1346 = vld [vmem:[#allocation3 + $0x28] sm:$0x7]
    %v1347 = vsel %vm1330, %v1323, %v1346
    %1348 = vst [vmem:[#allocation3 + $0x28] sm:$0x7] %v1347
    %v1349 = vld [vmem:[#allocation3 + $0x30] sm:$0x7]
    %v1350 = vsel %vm1330, %v1324, %v1349
    %1351 = vst [vmem:[#allocation3 + $0x30] sm:$0x7] %v1350
    %v1352 = vld [vmem:[#allocation3 + $0x38] sm:$0x7]
    %v1353 = vsel %vm1330, %v1325, %v1352
    %1354 = vst [vmem:[#allocation3 + $0x38] sm:$0x7] %v1353
    %v1355 = vld [vmem:[#allocation3 + $0x40] sm:$0x7]
    %v1356 = vsel %vm1330, %v1326, %v1355
    %1357 = vst [vmem:[#allocation3 + $0x40] sm:$0x7] %v1356
    %v1358 = vld [vmem:[#allocation3 + $0x48] sm:$0x7]
    %v1359 = vsel %vm1330, %v1327, %v1358
    %1360 = vst [vmem:[#allocation3 + $0x48] sm:$0x7] %v1359
    %v1362 = vshrl.u32 %v1318, 16
    %v1364 = vrot.slane %v1362, 4
    %v1365 = vshll.u32 %v1318, 16
    %v1367 = vrot.slane %v1365, 5
    %v1368 = vor.u32 %v1364, %v1367
    %v1369 = vrot.slane %v1368, 4
    %v1371 = vshrl.u32 %v1319, 16
    %v1373 = vrot.slane %v1371, 4
    %v1374 = vshll.u32 %v1319, 16
    %v1376 = vrot.slane %v1374, 5
    %v1377 = vor.u32 %v1373, %v1376
    %v1378 = vrot.slane %v1377, 4
    %v1380 = vshrl.u32 %v1320, 16
    %v1382 = vrot.slane %v1380, 4
    %v1383 = vshll.u32 %v1320, 16
    %v1385 = vrot.slane %v1383, 5
    %v1386 = vor.u32 %v1382, %v1385
    %v1387 = vrot.slane %v1386, 4
    %v1389 = vshrl.u32 %v1321, 16
    %v1391 = vrot.slane %v1389, 4
    %v1392 = vshll.u32 %v1321, 16
    %v1394 = vrot.slane %v1392, 5
    %v1395 = vor.u32 %v1391, %v1394
    %v1396 = vrot.slane %v1395, 4
    %v1398 = vshrl.u32 %v1322, 16
    %v1400 = vrot.slane %v1398, 4
    %v1401 = vshll.u32 %v1322, 16
    %v1403 = vrot.slane %v1401, 5
    %v1404 = vor.u32 %v1400, %v1403
    %v1405 = vrot.slane %v1404, 4
    %v1407 = vshrl.u32 %v1323, 16
    %v1409 = vrot.slane %v1407, 4
    %v1410 = vshll.u32 %v1323, 16
    %v1412 = vrot.slane %v1410, 5
    %v1413 = vor.u32 %v1409, %v1412
    %v1414 = vrot.slane %v1413, 4
    %v1416 = vshrl.u32 %v1324, 16
    %v1418 = vrot.slane %v1416, 4
    %v1419 = vshll.u32 %v1324, 16
    %v1421 = vrot.slane %v1419, 5
    %v1422 = vor.u32 %v1418, %v1421
    %v1423 = vrot.slane %v1422, 4
    %v1425 = vshrl.u32 %v1325, 16
    %v1427 = vrot.slane %v1425, 4
    %v1428 = vshll.u32 %v1325, 16
    %v1430 = vrot.slane %v1428, 5
    %v1431 = vor.u32 %v1427, %v1430
    %v1432 = vrot.slane %v1431, 4
    %v1434 = vshrl.u32 %v1326, 16
    %v1436 = vrot.slane %v1434, 4
    %v1437 = vshll.u32 %v1326, 16
    %v1439 = vrot.slane %v1437, 5
    %v1440 = vor.u32 %v1436, %v1439
    %v1441 = vrot.slane %v1440, 4
    %v1443 = vshrl.u32 %v1327, 16
    %v1445 = vrot.slane %v1443, 4
    %v1446 = vshll.u32 %v1327, 16
    %v1448 = vrot.slane %v1446, 5
    %v1449 = vor.u32 %v1445, %v1448
    %v1450 = vrot.slane %v1449, 4
    %1451 = vrot.lane.b32.xlu0 %v1369, 32
    %v1452 = vpop.permute.xlu0 %1451
    %1453 = vrot.lane.b32.xlu0 %v1378, 32
    %v1454 = vpop.permute.xlu0 %1453
    %1455 = vrot.lane.b32.xlu0 %v1387, 32
    %v1456 = vpop.permute.xlu0 %1455
    %1457 = vrot.lane.b32.xlu0 %v1396, 32
    %v1458 = vpop.permute.xlu0 %1457
    %1459 = vrot.lane.b32.xlu0 %v1405, 32
    %v1460 = vpop.permute.xlu0 %1459
    %1461 = vrot.lane.b32.xlu0 %v1414, 32
    %v1462 = vpop.permute.xlu0 %1461
    %1463 = vrot.lane.b32.xlu0 %v1423, 32
    %v1464 = vpop.permute.xlu0 %1463
    %1465 = vrot.lane.b32.xlu0 %v1432, 32
    %v1466 = vpop.permute.xlu0 %1465
    %1467 = vrot.lane.b32.xlu0 %v1441, 32
    %v1468 = vpop.permute.xlu0 %1467
    %1469 = vrot.lane.b32.xlu0 %v1450, 32
    %v1470 = vpop.permute.xlu0 %1469
    %vm1481 = vcmask 387328
    %vm1482 = vmand %vm1481, %vm1329
    %v1483 = vld [vmem:[#allocation3] sm:$0x7]
    %v1484 = vsel %vm1482, %v1452, %v1483
    %1485 = vst [vmem:[#allocation3] sm:$0x7] %v1484
    %v1486 = vld [vmem:[#allocation3 + $0x8] sm:$0x7]
    %v1487 = vsel %vm1482, %v1454, %v1486
    %1488 = vst [vmem:[#allocation3 + $0x8] sm:$0x7] %v1487
    %v1489 = vld [vmem:[#allocation3 + $0x10] sm:$0x7]
    %v1490 = vsel %vm1482, %v1456, %v1489
    %1491 = vst [vmem:[#allocation3 + $0x10] sm:$0x7] %v1490
    %v1492 = vld [vmem:[#allocation3 + $0x18] sm:$0x7]
    %v1493 = vsel %vm1482, %v1458, %v1492
    %1494 = vst [vmem:[#allocation3 + $0x18] sm:$0x7] %v1493
    %v1495 = vld [vmem:[#allocation3 + $0x20] sm:$0x7]
    %v1496 = vsel %vm1482, %v1460, %v1495
    %1497 = vst [vmem:[#allocation3 + $0x20] sm:$0x7] %v1496
    %v1498 = vld [vmem:[#allocation3 + $0x28] sm:$0x7]
    %v1499 = vsel %vm1482, %v1462, %v1498
    %1500 = vst [vmem:[#allocation3 + $0x28] sm:$0x7] %v1499
    %v1501 = vld [vmem:[#allocation3 + $0x30] sm:$0x7]
    %v1502 = vsel %vm1482, %v1464, %v1501
    %1503 = vst [vmem:[#allocation3 + $0x30] sm:$0x7] %v1502
    %v1504 = vld [vmem:[#allocation3 + $0x38] sm:$0x7]
    %v1505 = vsel %vm1482, %v1466, %v1504
    %1506 = vst [vmem:[#allocation3 + $0x38] sm:$0x7] %v1505
    %v1507 = vld [vmem:[#allocation3 + $0x40] sm:$0x7]
    %v1508 = vsel %vm1482, %v1468, %v1507
    %1509 = vst [vmem:[#allocation3 + $0x40] sm:$0x7] %v1508
    %v1510 = vld [vmem:[#allocation3 + $0x48] sm:$0x7]
    %v1511 = vsel %vm1482, %v1470, %v1510
    %1512 = vst [vmem:[#allocation3 + $0x48] sm:$0x7] %v1511
    %v1513 = vpack.c.bf16 %v1311, %v1311
    %v1514 = vpack.c.bf16 %v1317, %v1317
    %v1515 = vld [vmem:[#allocation3 + $0x4] sm:$0x7]
    %v1516 = vsel %vm1330, %v1319, %v1515
    %1517 = vst [vmem:[#allocation3 + $0x4] sm:$0x7] %v1516
    %v1518 = vld [vmem:[#allocation3 + $0xc] sm:$0x7]
    %v1519 = vsel %vm1330, %v1320, %v1518
    %1520 = vst [vmem:[#allocation3 + $0xc] sm:$0x7] %v1519
    %v1521 = vld [vmem:[#allocation3 + $0x14] sm:$0x7]
    %v1522 = vsel %vm1330, %v1321, %v1521
    %1523 = vst [vmem:[#allocation3 + $0x14] sm:$0x7] %v1522
    %v1524 = vld [vmem:[#allocation3 + $0x1c] sm:$0x7]
    %v1525 = vsel %vm1330, %v1322, %v1524
    %1526 = vst [vmem:[#allocation3 + $0x1c] sm:$0x7] %v1525
    %v1527 = vld [vmem:[#allocation3 + $0x24] sm:$0x7]
    %v1528 = vsel %vm1330, %v1513, %v1527
    %1529 = vst [vmem:[#allocation3 + $0x24] sm:$0x7] %v1528
    %v1530 = vld [vmem:[#allocation3 + $0x2c] sm:$0x7]
    %v1531 = vsel %vm1330, %v1324, %v1530
    %1532 = vst [vmem:[#allocation3 + $0x2c] sm:$0x7] %v1531
    %v1533 = vld [vmem:[#allocation3 + $0x34] sm:$0x7]
    %v1534 = vsel %vm1330, %v1325, %v1533
    %1535 = vst [vmem:[#allocation3 + $0x34] sm:$0x7] %v1534
    %v1536 = vld [vmem:[#allocation3 + $0x3c] sm:$0x7]
    %v1537 = vsel %vm1330, %v1326, %v1536
    %1538 = vst [vmem:[#allocation3 + $0x3c] sm:$0x7] %v1537
    %v1539 = vld [vmem:[#allocation3 + $0x44] sm:$0x7]
    %v1540 = vsel %vm1330, %v1327, %v1539
    %1541 = vst [vmem:[#allocation3 + $0x44] sm:$0x7] %v1540
    %v1542 = vld [vmem:[#allocation3 + $0x4c] sm:$0x7]
    %v1543 = vsel %vm1330, %v1514, %v1542
    %1544 = vst [vmem:[#allocation3 + $0x4c] sm:$0x7] %v1543
    %v1546 = vshrl.u32 %v1513, 16
    %v1548 = vrot.slane %v1546, 4
    %v1549 = vshll.u32 %v1513, 16
    %v1551 = vrot.slane %v1549, 5
    %v1552 = vor.u32 %v1548, %v1551
    %v1553 = vrot.slane %v1552, 4
    %v1555 = vshrl.u32 %v1514, 16
    %v1557 = vrot.slane %v1555, 4
    %v1558 = vshll.u32 %v1514, 16
    %v1560 = vrot.slane %v1558, 5
    %v1561 = vor.u32 %v1557, %v1560
    %v1562 = vrot.slane %v1561, 4
    %1563 = vrot.lane.b32.xlu0 %v1553, 32
    %v1564 = vpop.permute.xlu0 %1563
    %1565 = vrot.lane.b32.xlu0 %v1562, 32
    %v1566 = vpop.permute.xlu0 %1565
    %v1569 = vld [vmem:[#allocation3 + $0x4] sm:$0x7]
    %v1570 = vsel %vm1482, %v1454, %v1569
    %1571 = vst [vmem:[#allocation3 + $0x4] sm:$0x7] %v1570
    %v1572 = vld [vmem:[#allocation3 + $0xc] sm:$0x7]
    %v1573 = vsel %vm1482, %v1456, %v1572
    %1574 = vst [vmem:[#allocation3 + $0xc] sm:$0x7] %v1573
    %v1575 = vld [vmem:[#allocation3 + $0x14] sm:$0x7]
    %v1576 = vsel %vm1482, %v1458, %v1575
    %1577 = vst [vmem:[#allocation3 + $0x14] sm:$0x7] %v1576
    %v1578 = vld [vmem:[#allocation3 + $0x1c] sm:$0x7]
    %v1579 = vsel %vm1482, %v1460, %v1578
    %1580 = vst [vmem:[#allocation3 + $0x1c] sm:$0x7] %v1579
    %v1581 = vld [vmem:[#allocation3 + $0x24] sm:$0x7]
    %v1582 = vsel %vm1482, %v1564, %v1581
    %1583 = vst [vmem:[#allocation3 + $0x24] sm:$0x7] %v1582
    %v1584 = vld [vmem:[#allocation3 + $0x2c] sm:$0x7]
    %v1585 = vsel %vm1482, %v1464, %v1584
    %1586 = vst [vmem:[#allocation3 + $0x2c] sm:$0x7] %v1585
    %v1587 = vld [vmem:[#allocation3 + $0x34] sm:$0x7]
    %v1588 = vsel %vm1482, %v1466, %v1587
    %1589 = vst [vmem:[#allocation3 + $0x34] sm:$0x7] %v1588
    %v1590 = vld [vmem:[#allocation3 + $0x3c] sm:$0x7]
    %v1591 = vsel %vm1482, %v1468, %v1590
    %1592 = vst [vmem:[#allocation3 + $0x3c] sm:$0x7] %v1591
    %v1593 = vld [vmem:[#allocation3 + $0x44] sm:$0x7]
    %v1594 = vsel %vm1482, %v1470, %v1593
    %1595 = vst [vmem:[#allocation3 + $0x44] sm:$0x7] %v1594
    %v1596 = vld [vmem:[#allocation3 + $0x4c] sm:$0x7]
    %v1597 = vsel %vm1482, %v1566, %v1596
    %1598 = vst [vmem:[#allocation3 + $0x4c] sm:$0x7] %v1597
    %v1599 = vld [vmem:[%s450] sm:$0x3f]
    %v1600 = vld [vmem:[%s450 + $0x8] sm:$0x3f]
    %v1601 = vld [vmem:[%s450 + $0x10] sm:$0x3f]
    %v1602 = vld [vmem:[%s450 + $0x18] sm:$0x3f]
    %v1603 = vld [vmem:[%s450 + $0x20] sm:$0x3f]
    %v1604 = vld [vmem:[%s450 + $0x28] sm:$0x3f]
    %v1605 = vld [vmem:[%s450 + $0x38] sm:$0x3f]
    %v1606 = vld [vmem:[%s450 + $0x40] sm:$0x3f]
    %v1607 = vld [vmem:[%s450 + $0x48] sm:$0x3f]
    %v1608 = vld [vmem:[%s450 + $0x50] sm:$0x3f]
    %v1609 = vld [vmem:[%s450 + $0x58] sm:$0x3f]
    %v1610 = vld [vmem:[%s450 + $0x60] sm:$0x3f]
    %v1611 = vld [vmem:[#allocation2 + $0x1] sm:$0x3f]
    %v1612 = vld [vmem:[#allocation2 + $0x9] sm:$0x3f]
    %v1613 = vld [vmem:[#allocation2 + $0x11] sm:$0x3f]
    %v1614 = vld [vmem:[#allocation2 + $0x19] sm:$0x3f]
    %v1615 = vld [vmem:[#allocation2 + $0x21] sm:$0x3f]
    %v1616 = vld [vmem:[#allocation2 + $0x29] sm:$0x3f]
    %v1617 = vld [vmem:[#allocation2 + $0x39] sm:$0x3f]
    %v1618 = vld [vmem:[#allocation2 + $0x41] sm:$0x3f]
    %v1619 = vld [vmem:[#allocation2 + $0x49] sm:$0x3f]
    %v1620 = vld [vmem:[#allocation2 + $0x51] sm:$0x3f]
    %v1621 = vld [vmem:[#allocation2 + $0x59] sm:$0x3f]
    %v1622 = vld [vmem:[#allocation2 + $0x61] sm:$0x3f]
    %v1623 = vmax.f32 %v1599, %v1611
    %v1624 = vmax.f32 %v1600, %v1612
    %v1625 = vmax.f32 %v1601, %v1613
    %v1626 = vmax.f32 %v1602, %v1614
    %v1627 = vmax.f32 %v1603, %v1615
    %v1628 = vmax.f32 %v1604, %v1616
    %v1629 = vmax.f32 %v1605, %v1617
    %v1630 = vmax.f32 %v1606, %v1618
    %v1631 = vmax.f32 %v1607, %v1619
    %v1632 = vmax.f32 %v1608, %v1620
    %v1633 = vmax.f32 %v1609, %v1621
    %v1634 = vmax.f32 %v1610, %v1622
    %v1635 = vld [vmem:[%s1050] sm:$0x3f]
    %v1636 = vld [vmem:[%s1050 + $0x8] sm:$0x3f]
    %v1637 = vld [vmem:[%s1050 + $0x10] sm:$0x3f]
    %v1638 = vld [vmem:[%s1050 + $0x18] sm:$0x3f]
    %v1639 = vld [vmem:[%s1050 + $0x20] sm:$0x3f]
    %v1640 = vld [vmem:[%s1050 + $0x28] sm:$0x3f]
    %v1641 = vld [vmem:[%s1050 + $0x38] sm:$0x3f]
    %v1642 = vld [vmem:[%s1050 + $0x40] sm:$0x3f]
    %v1643 = vld [vmem:[%s1050 + $0x48] sm:$0x3f]
    %v1644 = vld [vmem:[%s1050 + $0x50] sm:$0x3f]
    %v1645 = vld [vmem:[%s1050 + $0x58] sm:$0x3f]
    %v1646 = vld [vmem:[%s1050 + $0x60] sm:$0x3f]
    %v1647 = vmax.f32 %v1623, %v1635
    %v1648 = vmax.f32 %v1624, %v1636
    %v1649 = vmax.f32 %v1625, %v1637
    %v1650 = vmax.f32 %v1626, %v1638
    %v1651 = vmax.f32 %v1627, %v1639
    %v1652 = vmax.f32 %v1628, %v1640
    %v1653 = vmax.f32 %v1629, %v1641
    %v1654 = vmax.f32 %v1630, %v1642
    %v1655 = vmax.f32 %v1631, %v1643
    %v1656 = vmax.f32 %v1632, %v1644
    %v1657 = vmax.f32 %v1633, %v1645
    %v1658 = vmax.f32 %v1634, %v1646
    %v1659 = vld [vmem:[%s750 + $0x1] sm:$0x3f]
    %v1660 = vld [vmem:[%s750 + $0x9] sm:$0x3f]
    %v1661 = vld [vmem:[%s750 + $0x11] sm:$0x3f]
    %v1662 = vld [vmem:[%s750 + $0x19] sm:$0x3f]
    %v1663 = vld [vmem:[%s750 + $0x21] sm:$0x3f]
    %v1664 = vld [vmem:[%s750 + $0x29] sm:$0x3f]
    %v1665 = vld [vmem:[%s750 + $0x39] sm:$0x3f]
    %v1666 = vld [vmem:[%s750 + $0x41] sm:$0x3f]
    %v1667 = vld [vmem:[%s750 + $0x49] sm:$0x3f]
    %v1668 = vld [vmem:[%s750 + $0x51] sm:$0x3f]
    %v1669 = vld [vmem:[%s750 + $0x59] sm:$0x3f]
    %v1670 = vld [vmem:[%s750 + $0x61] sm:$0x3f]
    %v1671 = vmax.f32 %v1647, %v1659
    %v1672 = vmax.f32 %v1648, %v1660
    %v1673 = vmax.f32 %v1649, %v1661
    %v1674 = vmax.f32 %v1650, %v1662
    %v1675 = vmax.f32 %v1651, %v1663
    %v1676 = vmax.f32 %v1652, %v1664
    %v1677 = vmax.f32 %v1653, %v1665
    %v1678 = vmax.f32 %v1654, %v1666
    %v1679 = vmax.f32 %v1655, %v1667
    %v1680 = vmax.f32 %v1656, %v1668
    %v1681 = vmax.f32 %v1657, %v1669
    %v1682 = vmax.f32 %v1658, %v1670
    %v1683 = vpack.c.bf16 %v1671, %v1671
    %v1684 = vpack.c.bf16 %v1672, %v1672
    %v1685 = vpack.c.bf16 %v1673, %v1673
    %v1686 = vpack.c.bf16 %v1674, %v1674
    %v1687 = vpack.c.bf16 %v1675, %v1675
    %v1688 = vpack.c.bf16 %v1677, %v1677
    %v1689 = vpack.c.bf16 %v1678, %v1678
    %v1690 = vpack.c.bf16 %v1679, %v1679
    %v1691 = vpack.c.bf16 %v1680, %v1680
    %v1692 = vpack.c.bf16 %v1681, %v1681
    %1703 = vrot.lane.b32.xlu0 %v1683, 16
    %v1704 = vpop.permute.xlu0 %1703
    %1705 = vrot.lane.b32.xlu0 %v1684, 16
    %v1706 = vpop.permute.xlu0 %1705
    %1707 = vrot.lane.b32.xlu0 %v1685, 16
    %v1708 = vpop.permute.xlu0 %1707
    %1709 = vrot.lane.b32.xlu0 %v1686, 16
    %v1710 = vpop.permute.xlu0 %1709
    %1711 = vrot.lane.b32.xlu0 %v1687, 16
    %v1712 = vpop.permute.xlu0 %1711
    %1713 = vrot.lane.b32.xlu0 %v1688, 16
    %v1714 = vpop.permute.xlu0 %1713
    %1715 = vrot.lane.b32.xlu0 %v1689, 16
    %v1716 = vpop.permute.xlu0 %1715
    %1717 = vrot.lane.b32.xlu0 %v1690, 16
    %v1718 = vpop.permute.xlu0 %1717
    %1719 = vrot.lane.b32.xlu0 %v1691, 16
    %v1720 = vpop.permute.xlu0 %1719
    %1721 = vrot.lane.b32.xlu0 %v1692, 16
    %v1722 = vpop.permute.xlu0 %1721
    %vm1733 = vcmask 256128
    %vm1734 = vmand %vm1733, %vm1329
    %v1735 = vld [vmem:[#allocation3] sm:$0x7]
    %v1736 = vsel %vm1734, %v1704, %v1735
    %1737 = vst [vmem:[#allocation3] sm:$0x7] %v1736
    %v1738 = vld [vmem:[#allocation3 + $0x8] sm:$0x7]
    %v1739 = vsel %vm1734, %v1706, %v1738
    %1740 = vst [vmem:[#allocation3 + $0x8] sm:$0x7] %v1739
    %v1741 = vld [vmem:[#allocation3 + $0x10] sm:$0x7]
    %v1742 = vsel %vm1734, %v1708, %v1741
    %1743 = vst [vmem:[#allocation3 + $0x10] sm:$0x7] %v1742
    %v1744 = vld [vmem:[#allocation3 + $0x18] sm:$0x7]
    %v1745 = vsel %vm1734, %v1710, %v1744
    %1746 = vst [vmem:[#allocation3 + $0x18] sm:$0x7] %v1745
    %v1747 = vld [vmem:[#allocation3 + $0x20] sm:$0x7]
    %v1748 = vsel %vm1734, %v1712, %v1747
    %1749 = vst [vmem:[#allocation3 + $0x20] sm:$0x7] %v1748
    %v1750 = vld [vmem:[#allocation3 + $0x28] sm:$0x7]
    %v1751 = vsel %vm1734, %v1714, %v1750
    %1752 = vst [vmem:[#allocation3 + $0x28] sm:$0x7] %v1751
    %v1753 = vld [vmem:[#allocation3 + $0x30] sm:$0x7]
    %v1754 = vsel %vm1734, %v1716, %v1753
    %1755 = vst [vmem:[#allocation3 + $0x30] sm:$0x7] %v1754
    %v1756 = vld [vmem:[#allocation3 + $0x38] sm:$0x7]
    %v1757 = vsel %vm1734, %v1718, %v1756
    %1758 = vst [vmem:[#allocation3 + $0x38] sm:$0x7] %v1757
    %v1759 = vld [vmem:[#allocation3 + $0x40] sm:$0x7]
    %v1760 = vsel %vm1734, %v1720, %v1759
    %1761 = vst [vmem:[#allocation3 + $0x40] sm:$0x7] %v1760
    %v1762 = vld [vmem:[#allocation3 + $0x48] sm:$0x7]
    %v1763 = vsel %vm1734, %v1722, %v1762
    %1764 = vst [vmem:[#allocation3 + $0x48] sm:$0x7] %v1763
    %v1766 = vshrl.u32 %v1683, 16
    %v1768 = vrot.slane %v1766, 4
    %v1769 = vshll.u32 %v1683, 16
    %v1771 = vrot.slane %v1769, 5
    %v1772 = vor.u32 %v1768, %v1771
    %v1773 = vrot.slane %v1772, 4
    %v1775 = vshrl.u32 %v1684, 16
    %v1777 = vrot.slane %v1775, 4
    %v1778 = vshll.u32 %v1684, 16
    %v1780 = vrot.slane %v1778, 5
    %v1781 = vor.u32 %v1777, %v1780
    %v1782 = vrot.slane %v1781, 4
    %v1784 = vshrl.u32 %v1685, 16
    %v1786 = vrot.slane %v1784, 4
    %v1787 = vshll.u32 %v1685, 16
    %v1789 = vrot.slane %v1787, 5
    %v1790 = vor.u32 %v1786, %v1789
    %v1791 = vrot.slane %v1790, 4
    %v1793 = vshrl.u32 %v1686, 16
    %v1795 = vrot.slane %v1793, 4
    %v1796 = vshll.u32 %v1686, 16
    %v1798 = vrot.slane %v1796, 5
    %v1799 = vor.u32 %v1795, %v1798
    %v1800 = vrot.slane %v1799, 4
    %v1802 = vshrl.u32 %v1687, 16
    %v1804 = vrot.slane %v1802, 4
    %v1805 = vshll.u32 %v1687, 16
    %v1807 = vrot.slane %v1805, 5
    %v1808 = vor.u32 %v1804, %v1807
    %v1809 = vrot.slane %v1808, 4
    %v1811 = vshrl.u32 %v1688, 16
    %v1813 = vrot.slane %v1811, 4
    %v1814 = vshll.u32 %v1688, 16
    %v1816 = vrot.slane %v1814, 5
    %v1817 = vor.u32 %v1813, %v1816
    %v1818 = vrot.slane %v1817, 4
    %v1820 = vshrl.u32 %v1689, 16
    %v1822 = vrot.slane %v1820, 4
    %v1823 = vshll.u32 %v1689, 16
    %v1825 = vrot.slane %v1823, 5
    %v1826 = vor.u32 %v1822, %v1825
    %v1827 = vrot.slane %v1826, 4
    %v1829 = vshrl.u32 %v1690, 16
    %v1831 = vrot.slane %v1829, 4
    %v1832 = vshll.u32 %v1690, 16
    %v1834 = vrot.slane %v1832, 5
    %v1835 = vor.u32 %v1831, %v1834
    %v1836 = vrot.slane %v1835, 4
    %v1838 = vshrl.u32 %v1691, 16
    %v1840 = vrot.slane %v1838, 4
    %v1841 = vshll.u32 %v1691, 16
    %v1843 = vrot.slane %v1841, 5
    %v1844 = vor.u32 %v1840, %v1843
    %v1845 = vrot.slane %v1844, 4
    %v1847 = vshrl.u32 %v1692, 16
    %v1849 = vrot.slane %v1847, 4
    %v1850 = vshll.u32 %v1692, 16
    %v1852 = vrot.slane %v1850, 5
    %v1853 = vor.u32 %v1849, %v1852
    %v1854 = vrot.slane %v1853, 4
    %1855 = vrot.lane.b32.xlu0 %v1773, 48
    %v1856 = vpop.permute.xlu0 %1855
    %1857 = vrot.lane.b32.xlu0 %v1782, 48
    %v1858 = vpop.permute.xlu0 %1857
    %1859 = vrot.lane.b32.xlu0 %v1791, 48
    %v1860 = vpop.permute.xlu0 %1859
    %1861 = vrot.lane.b32.xlu0 %v1800, 48
    %v1862 = vpop.permute.xlu0 %1861
    %1863 = vrot.lane.b32.xlu0 %v1809, 48
    %v1864 = vpop.permute.xlu0 %1863
    %1865 = vrot.lane.b32.xlu0 %v1818, 48
    %v1866 = vpop.permute.xlu0 %1865
    %1867 = vrot.lane.b32.xlu0 %v1827, 48
    %v1868 = vpop.permute.xlu0 %1867
    %1869 = vrot.lane.b32.xlu0 %v1836, 48
    %v1870 = vpop.permute.xlu0 %1869
    %1871 = vrot.lane.b32.xlu0 %v1845, 48
    %v1872 = vpop.permute.xlu0 %1871
    %1873 = vrot.lane.b32.xlu0 %v1854, 48
    %v1874 = vpop.permute.xlu0 %1873
    %vm1885 = vcmask 518528
    %vm1886 = vmand %vm1885, %vm1329
    %v1887 = vld [vmem:[#allocation3] sm:$0x7]
    %v1888 = vsel %vm1886, %v1856, %v1887
    %1889 = vst [vmem:[#allocation3] sm:$0x7] %v1888
    %v1890 = vld [vmem:[#allocation3 + $0x8] sm:$0x7]
    %v1891 = vsel %vm1886, %v1858, %v1890
    %1892 = vst [vmem:[#allocation3 + $0x8] sm:$0x7] %v1891
    %v1893 = vld [vmem:[#allocation3 + $0x10] sm:$0x7]
    %v1894 = vsel %vm1886, %v1860, %v1893
    %1895 = vst [vmem:[#allocation3 + $0x10] sm:$0x7] %v1894
    %v1896 = vld [vmem:[#allocation3 + $0x18] sm:$0x7]
    %v1897 = vsel %vm1886, %v1862, %v1896
    %1898 = vst [vmem:[#allocation3 + $0x18] sm:$0x7] %v1897
    %v1899 = vld [vmem:[#allocation3 + $0x20] sm:$0x7]
    %v1900 = vsel %vm1886, %v1864, %v1899
    %1901 = vst [vmem:[#allocation3 + $0x20] sm:$0x7] %v1900
    %v1902 = vld [vmem:[#allocation3 + $0x28] sm:$0x7]
    %v1903 = vsel %vm1886, %v1866, %v1902
    %1904 = vst [vmem:[#allocation3 + $0x28] sm:$0x7] %v1903
    %v1905 = vld [vmem:[#allocation3 + $0x30] sm:$0x7]
    %v1906 = vsel %vm1886, %v1868, %v1905
    %1907 = vst [vmem:[#allocation3 + $0x30] sm:$0x7] %v1906
    %v1908 = vld [vmem:[#allocation3 + $0x38] sm:$0x7]
    %v1909 = vsel %vm1886, %v1870, %v1908
    %1910 = vst [vmem:[#allocation3 + $0x38] sm:$0x7] %v1909
    %v1911 = vld [vmem:[#allocation3 + $0x40] sm:$0x7]
    %v1912 = vsel %vm1886, %v1872, %v1911
    %1913 = vst [vmem:[#allocation3 + $0x40] sm:$0x7] %v1912
    %v1914 = vld [vmem:[#allocation3 + $0x48] sm:$0x7]
    %v1915 = vsel %vm1886, %v1874, %v1914
    %1916 = vst [vmem:[#allocation3 + $0x48] sm:$0x7] %v1915
    %v1917 = vpack.c.bf16 %v1676, %v1676
    %v1918 = vpack.c.bf16 %v1682, %v1682
    %1921 = vrot.lane.b32.xlu0 %v1917, 16
    %v1922 = vpop.permute.xlu0 %1921
    %1923 = vrot.lane.b32.xlu0 %v1918, 16
    %v1924 = vpop.permute.xlu0 %1923
    %v1927 = vld [vmem:[#allocation3 + $0x4] sm:$0x7]
    %v1928 = vsel %vm1734, %v1706, %v1927
    %1929 = vst [vmem:[#allocation3 + $0x4] sm:$0x7] %v1928
    %v1930 = vld [vmem:[#allocation3 + $0xc] sm:$0x7]
    %v1931 = vsel %vm1734, %v1708, %v1930
    %1932 = vst [vmem:[#allocation3 + $0xc] sm:$0x7] %v1931
    %v1933 = vld [vmem:[#allocation3 + $0x14] sm:$0x7]
    %v1934 = vsel %vm1734, %v1710, %v1933
    %1935 = vst [vmem:[#allocation3 + $0x14] sm:$0x7] %v1934
    %v1936 = vld [vmem:[#allocation3 + $0x1c] sm:$0x7]
    %v1937 = vsel %vm1734, %v1712, %v1936
    %1938 = vst [vmem:[#allocation3 + $0x1c] sm:$0x7] %v1937
    %v1939 = vld [vmem:[#allocation3 + $0x24] sm:$0x7]
    %v1940 = vsel %vm1734, %v1922, %v1939
    %1941 = vst [vmem:[#allocation3 + $0x24] sm:$0x7] %v1940
    %v1942 = vld [vmem:[#allocation3 + $0x2c] sm:$0x7]
    %v1943 = vsel %vm1734, %v1716, %v1942
    %1944 = vst [vmem:[#allocation3 + $0x2c] sm:$0x7] %v1943
    %v1945 = vld [vmem:[#allocation3 + $0x34] sm:$0x7]
    %v1946 = vsel %vm1734, %v1718, %v1945
    %1947 = vst [vmem:[#allocation3 + $0x34] sm:$0x7] %v1946
    %v1948 = vld [vmem:[#allocation3 + $0x3c] sm:$0x7]
    %v1949 = vsel %vm1734, %v1720, %v1948
    %1950 = vst [vmem:[#allocation3 + $0x3c] sm:$0x7] %v1949
    %v1951 = vld [vmem:[#allocation3 + $0x44] sm:$0x7]
    %v1952 = vsel %vm1734, %v1722, %v1951
    %1953 = vst [vmem:[#allocation3 + $0x44] sm:$0x7] %v1952
    %v1954 = vld [vmem:[#allocation3 + $0x4c] sm:$0x7]
    %v1955 = vsel %vm1734, %v1924, %v1954
    %1956 = vst [vmem:[#allocation3 + $0x4c] sm:$0x7] %v1955
    %v1958 = vshrl.u32 %v1917, 16
    %v1960 = vrot.slane %v1958, 4
    %v1961 = vshll.u32 %v1917, 16
    %v1963 = vrot.slane %v1961, 5
    %v1964 = vor.u32 %v1960, %v1963
    %v1965 = vrot.slane %v1964, 4
    %v1967 = vshrl.u32 %v1918, 16
    %v1969 = vrot.slane %v1967, 4
    %v1970 = vshll.u32 %v1918, 16
    %v1972 = vrot.slane %v1970, 5
    %v1973 = vor.u32 %v1969, %v1972
    %v1974 = vrot.slane %v1973, 4
    %1975 = vrot.lane.b32.xlu0 %v1965, 48
    %v1976 = vpop.permute.xlu0 %1975
    %1977 = vrot.lane.b32.xlu0 %v1974, 48
    %v1978 = vpop.permute.xlu0 %1977
    %v1981 = vld [vmem:[#allocation3 + $0x4] sm:$0x7]
    %v1982 = vsel %vm1886, %v1858, %v1981
    %1983 = vst [vmem:[#allocation3 + $0x4] sm:$0x7] %v1982
    %v1984 = vld [vmem:[#allocation3 + $0xc] sm:$0x7]
    %v1985 = vsel %vm1886, %v1860, %v1984
    %1986 = vst [vmem:[#allocation3 + $0xc] sm:$0x7] %v1985
    %v1987 = vld [vmem:[#allocation3 + $0x14] sm:$0x7]
    %v1988 = vsel %vm1886, %v1862, %v1987
    %1989 = vst [vmem:[#allocation3 + $0x14] sm:$0x7] %v1988
    %v1990 = vld [vmem:[#allocation3 + $0x1c] sm:$0x7]
    %v1991 = vsel %vm1886, %v1864, %v1990
    %1992 = vst [vmem:[#allocation3 + $0x1c] sm:$0x7] %v1991
    %v1993 = vld [vmem:[#allocation3 + $0x24] sm:$0x7]
    %v1994 = vsel %vm1886, %v1976, %v1993
    %1995 = vst [vmem:[#allocation3 + $0x24] sm:$0x7] %v1994
    %v1996 = vld [vmem:[#allocation3 + $0x2c] sm:$0x7]
    %v1997 = vsel %vm1886, %v1868, %v1996
    %1998 = vst [vmem:[#allocation3 + $0x2c] sm:$0x7] %v1997
    %v1999 = vld [vmem:[#allocation3 + $0x34] sm:$0x7]
    %v2000 = vsel %vm1886, %v1870, %v1999
    %2001 = vst [vmem:[#allocation3 + $0x34] sm:$0x7] %v2000
    %v2002 = vld [vmem:[#allocation3 + $0x3c] sm:$0x7]
    %v2003 = vsel %vm1886, %v1872, %v2002
    %2004 = vst [vmem:[#allocation3 + $0x3c] sm:$0x7] %v2003
    %v2005 = vld [vmem:[#allocation3 + $0x44] sm:$0x7]
    %v2006 = vsel %vm1886, %v1874, %v2005
    %2007 = vst [vmem:[#allocation3 + $0x44] sm:$0x7] %v2006
    %v2008 = vld [vmem:[#allocation3 + $0x4c] sm:$0x7]
    %v2009 = vsel %vm1886, %v1978, %v2008
    %2010 = vst [vmem:[#allocation3 + $0x4c] sm:$0x7] %v2009
    %v2011 = vld [vmem:[%s750] sm:$0x7f]
    %v2012 = vld [vmem:[%s750 + $0x8] sm:$0x7f]
    %v2013 = vld [vmem:[%s750 + $0x10] sm:$0x7f]
    %v2014 = vld [vmem:[%s750 + $0x18] sm:$0x7f]
    %v2015 = vld [vmem:[%s750 + $0x20] sm:$0x7f]
    %v2016 = vld [vmem:[%s750 + $0x28] sm:$0x7f]
    %v2017 = vld [vmem:[%s750 + $0x38] sm:$0x7f]
    %v2018 = vld [vmem:[%s750 + $0x40] sm:$0x7f]
    %v2019 = vld [vmem:[%s750 + $0x48] sm:$0x7f]
    %v2020 = vld [vmem:[%s750 + $0x50] sm:$0x7f]
    %v2021 = vld [vmem:[%s750 + $0x58] sm:$0x7f]
    %v2022 = vld [vmem:[%s750 + $0x60] sm:$0x7f]
    %v2023 = vld [vmem:[%s1050] sm:$0x7f]
    %v2024 = vld [vmem:[%s1050 + $0x8] sm:$0x7f]
    %v2025 = vld [vmem:[%s1050 + $0x10] sm:$0x7f]
    %v2026 = vld [vmem:[%s1050 + $0x18] sm:$0x7f]
    %v2027 = vld [vmem:[%s1050 + $0x20] sm:$0x7f]
    %v2028 = vld [vmem:[%s1050 + $0x28] sm:$0x7f]
    %v2029 = vld [vmem:[%s1050 + $0x38] sm:$0x7f]
    %v2030 = vld [vmem:[%s1050 + $0x40] sm:$0x7f]
    %v2031 = vld [vmem:[%s1050 + $0x48] sm:$0x7f]
    %v2032 = vld [vmem:[%s1050 + $0x50] sm:$0x7f]
    %v2033 = vld [vmem:[%s1050 + $0x58] sm:$0x7f]
    %v2034 = vld [vmem:[%s1050 + $0x60] sm:$0x7f]
    %v2035 = vmax.f32 %v2011, %v2023
    %v2036 = vmax.f32 %v2012, %v2024
    %v2037 = vmax.f32 %v2013, %v2025
    %v2038 = vmax.f32 %v2014, %v2026
    %v2039 = vmax.f32 %v2015, %v2027
    %v2040 = vmax.f32 %v2016, %v2028
    %v2041 = vmax.f32 %v2017, %v2029
    %v2042 = vmax.f32 %v2018, %v2030
    %v2043 = vmax.f32 %v2019, %v2031
    %v2044 = vmax.f32 %v2020, %v2032
    %v2045 = vmax.f32 %v2021, %v2033
    %v2046 = vmax.f32 %v2022, %v2034
    %v2047 = vld [vmem:[%s145] sm:$0x7f]
    %v2048 = vld [vmem:[%s145 + $0x8] sm:$0x7f]
    %v2049 = vld [vmem:[%s145 + $0x10] sm:$0x7f]
    %v2050 = vld [vmem:[%s145 + $0x18] sm:$0x7f]
    %v2051 = vld [vmem:[%s145 + $0x20] sm:$0x7f]
    %v2052 = vld [vmem:[%s145 + $0x28] sm:$0x7f]
    %v2053 = vld [vmem:[%s145 + $0x38] sm:$0x7f]
    %v2054 = vld [vmem:[%s145 + $0x40] sm:$0x7f]
    %v2055 = vld [vmem:[%s145 + $0x48] sm:$0x7f]
    %v2056 = vld [vmem:[%s145 + $0x50] sm:$0x7f]
    %v2057 = vld [vmem:[%s145 + $0x58] sm:$0x7f]
    %v2058 = vld [vmem:[%s145 + $0x60] sm:$0x7f]
    %v2059 = vmax.f32 %v2035, %v2047
    %v2060 = vmax.f32 %v2036, %v2048
    %v2061 = vmax.f32 %v2037, %v2049
    %v2062 = vmax.f32 %v2038, %v2050
    %v2063 = vmax.f32 %v2039, %v2051
    %v2064 = vmax.f32 %v2040, %v2052
    %v2065 = vmax.f32 %v2041, %v2053
    %v2066 = vmax.f32 %v2042, %v2054
    %v2067 = vmax.f32 %v2043, %v2055
    %v2068 = vmax.f32 %v2044, %v2056
    %v2069 = vmax.f32 %v2045, %v2057
    %v2070 = vmax.f32 %v2046, %v2058
    %v2071 = vld [vmem:[%s452] sm:$0x7f]
    %v2072 = vld [vmem:[%s452 + $0x8] sm:$0x7f]
    %v2073 = vld [vmem:[%s452 + $0x10] sm:$0x7f]
    %v2074 = vld [vmem:[%s452 + $0x18] sm:$0x7f]
    %v2075 = vld [vmem:[%s452 + $0x20] sm:$0x7f]
    %v2076 = vld [vmem:[%s452 + $0x28] sm:$0x7f]
    %v2077 = vld [vmem:[%s452 + $0x38] sm:$0x7f]
    %v2078 = vld [vmem:[%s452 + $0x40] sm:$0x7f]
    %v2079 = vld [vmem:[%s452 + $0x48] sm:$0x7f]
    %v2080 = vld [vmem:[%s452 + $0x50] sm:$0x7f]
    %v2081 = vld [vmem:[%s452 + $0x58] sm:$0x7f]
    %v2082 = vld [vmem:[%s452 + $0x60] sm:$0x7f]
    %v2083 = vmax.f32 %v2059, %v2071
    %v2084 = vmax.f32 %v2060, %v2072
    %v2085 = vmax.f32 %v2061, %v2073
    %v2086 = vmax.f32 %v2062, %v2074
    %v2087 = vmax.f32 %v2063, %v2075
    %v2088 = vmax.f32 %v2064, %v2076
    %v2089 = vmax.f32 %v2065, %v2077
    %v2090 = vmax.f32 %v2066, %v2078
    %v2091 = vmax.f32 %v2067, %v2079
    %v2092 = vmax.f32 %v2068, %v2080
    %v2093 = vmax.f32 %v2069, %v2081
    %v2094 = vmax.f32 %v2070, %v2082
    %v2095 = vpack.c.bf16 %v2083, %v2083
    %v2096 = vpack.c.bf16 %v2084, %v2084
    %v2097 = vpack.c.bf16 %v2085, %v2085
    %v2098 = vpack.c.bf16 %v2086, %v2086
    %v2099 = vpack.c.bf16 %v2087, %v2087
    %v2100 = vpack.c.bf16 %v2089, %v2089
    %v2101 = vpack.c.bf16 %v2090, %v2090
    %v2102 = vpack.c.bf16 %v2091, %v2091
    %v2103 = vpack.c.bf16 %v2092, %v2092
    %v2104 = vpack.c.bf16 %v2093, %v2093
    %2115 = vrot.lane.b32.xlu0 %v2095, 64
    %v2116 = vpop.permute.xlu0 %2115
    %2117 = vrot.lane.b32.xlu0 %v2096, 64
    %v2118 = vpop.permute.xlu0 %2117
    %2119 = vrot.lane.b32.xlu0 %v2097, 64
    %v2120 = vpop.permute.xlu0 %2119
    %2121 = vrot.lane.b32.xlu0 %v2098, 64
    %v2122 = vpop.permute.xlu0 %2121
    %2123 = vrot.lane.b32.xlu0 %v2099, 64
    %v2124 = vpop.permute.xlu0 %2123
    %2125 = vrot.lane.b32.xlu0 %v2100, 64
    %v2126 = vpop.permute.xlu0 %2125
    %2127 = vrot.lane.b32.xlu0 %v2101, 64
    %v2128 = vpop.permute.xlu0 %2127
    %2129 = vrot.lane.b32.xlu0 %v2102, 64
    %v2130 = vpop.permute.xlu0 %2129
    %2131 = vrot.lane.b32.xlu0 %v2103, 64
    %v2132 = vpop.permute.xlu0 %2131
    %2133 = vrot.lane.b32.xlu0 %v2104, 64
    %v2134 = vpop.permute.xlu0 %2133
    %vm2145 = vcmask 649728
    %vm2146 = vmand %vm2145, %vm1329
    %v2147 = vld [vmem:[#allocation3] sm:$0x7]
    %v2148 = vsel %vm2146, %v2116, %v2147
    %2149 = vst [vmem:[#allocation3] sm:$0x7] %v2148
    %v2150 = vld [vmem:[#allocation3 + $0x8] sm:$0x7]
    %v2151 = vsel %vm2146, %v2118, %v2150
    %2152 = vst [vmem:[#allocation3 + $0x8] sm:$0x7] %v2151
    %v2153 = vld [vmem:[#allocation3 + $0x10] sm:$0x7]
    %v2154 = vsel %vm2146, %v2120, %v2153
    %2155 = vst [vmem:[#allocation3 + $0x10] sm:$0x7] %v2154
    %v2156 = vld [vmem:[#allocation3 + $0x18] sm:$0x7]
    %v2157 = vsel %vm2146, %v2122, %v2156
    %2158 = vst [vmem:[#allocation3 + $0x18] sm:$0x7] %v2157
    %v2159 = vld [vmem:[#allocation3 + $0x20] sm:$0x7]
    %v2160 = vsel %vm2146, %v2124, %v2159
    %2161 = vst [vmem:[#allocation3 + $0x20] sm:$0x7] %v2160
    %v2162 = vld [vmem:[#allocation3 + $0x28] sm:$0x7]
    %v2163 = vsel %vm2146, %v2126, %v2162
    %2164 = vst [vmem:[#allocation3 + $0x28] sm:$0x7] %v2163
    %v2165 = vld [vmem:[#allocation3 + $0x30] sm:$0x7]
    %v2166 = vsel %vm2146, %v2128, %v2165
    %2167 = vst [vmem:[#allocation3 + $0x30] sm:$0x7] %v2166
    %v2168 = vld [vmem:[#allocation3 + $0x38] sm:$0x7]
    %v2169 = vsel %vm2146, %v2130, %v2168
    %2170 = vst [vmem:[#allocation3 + $0x38] sm:$0x7] %v2169
    %v2171 = vld [vmem:[#allocation3 + $0x40] sm:$0x7]
    %v2172 = vsel %vm2146, %v2132, %v2171
    %2173 = vst [vmem:[#allocation3 + $0x40] sm:$0x7] %v2172
    %v2174 = vld [vmem:[#allocation3 + $0x48] sm:$0x7]
    %v2175 = vsel %vm2146, %v2134, %v2174
    %2176 = vst [vmem:[#allocation3 + $0x48] sm:$0x7] %v2175
    %v2178 = vshrl.u32 %v2095, 16
    %v2180 = vrot.slane %v2178, 4
    %v2181 = vshll.u32 %v2095, 16
    %v2183 = vrot.slane %v2181, 5
    %v2184 = vor.u32 %v2180, %v2183
    %v2185 = vrot.slane %v2184, 4
    %v2187 = vshrl.u32 %v2096, 16
    %v2189 = vrot.slane %v2187, 4
    %v2190 = vshll.u32 %v2096, 16
    %v2192 = vrot.slane %v2190, 5
    %v2193 = vor.u32 %v2189, %v2192
    %v2194 = vrot.slane %v2193, 4
    %v2196 = vshrl.u32 %v2097, 16
    %v2198 = vrot.slane %v2196, 4
    %v2199 = vshll.u32 %v2097, 16
    %v2201 = vrot.slane %v2199, 5
    %v2202 = vor.u32 %v2198, %v2201
    %v2203 = vrot.slane %v2202, 4
    %v2205 = vshrl.u32 %v2098, 16
    %v2207 = vrot.slane %v2205, 4
    %v2208 = vshll.u32 %v2098, 16
    %v2210 = vrot.slane %v2208, 5
    %v2211 = vor.u32 %v2207, %v2210
    %v2212 = vrot.slane %v2211, 4
    %v2214 = vshrl.u32 %v2099, 16
    %v2216 = vrot.slane %v2214, 4
    %v2217 = vshll.u32 %v2099, 16
    %v2219 = vrot.slane %v2217, 5
    %v2220 = vor.u32 %v2216, %v2219
    %v2221 = vrot.slane %v2220, 4
    %v2223 = vshrl.u32 %v2100, 16
    %v2225 = vrot.slane %v2223, 4
    %v2226 = vshll.u32 %v2100, 16
    %v2228 = vrot.slane %v2226, 5
    %v2229 = vor.u32 %v2225, %v2228
    %v2230 = vrot.slane %v2229, 4
    %v2232 = vshrl.u32 %v2101, 16
    %v2234 = vrot.slane %v2232, 4
    %v2235 = vshll.u32 %v2101, 16
    %v2237 = vrot.slane %v2235, 5
    %v2238 = vor.u32 %v2234, %v2237
    %v2239 = vrot.slane %v2238, 4
    %v2241 = vshrl.u32 %v2102, 16
    %v2243 = vrot.slane %v2241, 4
    %v2244 = vshll.u32 %v2102, 16
    %v2246 = vrot.slane %v2244, 5
    %v2247 = vor.u32 %v2243, %v2246
    %v2248 = vrot.slane %v2247, 4
    %v2250 = vshrl.u32 %v2103, 16
    %v2252 = vrot.slane %v2250, 4
    %v2253 = vshll.u32 %v2103, 16
    %v2255 = vrot.slane %v2253, 5
    %v2256 = vor.u32 %v2252, %v2255
    %v2257 = vrot.slane %v2256, 4
    %v2259 = vshrl.u32 %v2104, 16
    %v2261 = vrot.slane %v2259, 4
    %v2262 = vshll.u32 %v2104, 16
    %v2264 = vrot.slane %v2262, 5
    %v2265 = vor.u32 %v2261, %v2264
    %v2266 = vrot.slane %v2265, 4
    %2267 = vrot.lane.b32.xlu0 %v2185, 96
    %v2268 = vpop.permute.xlu0 %2267
    %2269 = vrot.lane.b32.xlu0 %v2194, 96
    %v2270 = vpop.permute.xlu0 %2269
    %2271 = vrot.lane.b32.xlu0 %v2203, 96
    %v2272 = vpop.permute.xlu0 %2271
    %2273 = vrot.lane.b32.xlu0 %v2212, 96
    %v2274 = vpop.permute.xlu0 %2273
    %2275 = vrot.lane.b32.xlu0 %v2221, 96
    %v2276 = vpop.permute.xlu0 %2275
    %2277 = vrot.lane.b32.xlu0 %v2230, 96
    %v2278 = vpop.permute.xlu0 %2277
    %2279 = vrot.lane.b32.xlu0 %v2239, 96
    %v2280 = vpop.permute.xlu0 %2279
    %2281 = vrot.lane.b32.xlu0 %v2248, 96
    %v2282 = vpop.permute.xlu0 %2281
    %2283 = vrot.lane.b32.xlu0 %v2257, 96
    %v2284 = vpop.permute.xlu0 %2283
    %2285 = vrot.lane.b32.xlu0 %v2266, 96
    %v2286 = vpop.permute.xlu0 %2285
    %vm2297 = vcmask 912128
    %vm2298 = vmand %vm2297, %vm1329
    %v2299 = vld [vmem:[#allocation3] sm:$0x7]
    %v2300 = vsel %vm2298, %v2268, %v2299
    %2301 = vst [vmem:[#allocation3] sm:$0x7] %v2300
    %v2302 = vld [vmem:[#allocation3 + $0x8] sm:$0x7]
    %v2303 = vsel %vm2298, %v2270, %v2302
    %2304 = vst [vmem:[#allocation3 + $0x8] sm:$0x7] %v2303
    %v2305 = vld [vmem:[#allocation3 + $0x10] sm:$0x7]
    %v2306 = vsel %vm2298, %v2272, %v2305
    %2307 = vst [vmem:[#allocation3 + $0x10] sm:$0x7] %v2306
    %v2308 = vld [vmem:[#allocation3 + $0x18] sm:$0x7]
    %v2309 = vsel %vm2298, %v2274, %v2308
    %2310 = vst [vmem:[#allocation3 + $0x18] sm:$0x7] %v2309
    %v2311 = vld [vmem:[#allocation3 + $0x20] sm:$0x7]
    %v2312 = vsel %vm2298, %v2276, %v2311
    %2313 = vst [vmem:[#allocation3 + $0x20] sm:$0x7] %v2312
    %v2314 = vld [vmem:[#allocation3 + $0x28] sm:$0x7]
    %v2315 = vsel %vm2298, %v2278, %v2314
    %2316 = vst [vmem:[#allocation3 + $0x28] sm:$0x7] %v2315
    %v2317 = vld [vmem:[#allocation3 + $0x30] sm:$0x7]
    %v2318 = vsel %vm2298, %v2280, %v2317
    %2319 = vst [vmem:[#allocation3 + $0x30] sm:$0x7] %v2318
    %v2320 = vld [vmem:[#allocation3 + $0x38] sm:$0x7]
    %v2321 = vsel %vm2298, %v2282, %v2320
    %2322 = vst [vmem:[#allocation3 + $0x38] sm:$0x7] %v2321
    %v2323 = vld [vmem:[#allocation3 + $0x40] sm:$0x7]
    %v2324 = vsel %vm2298, %v2284, %v2323
    %2325 = vst [vmem:[#allocation3 + $0x40] sm:$0x7] %v2324
    %v2326 = vld [vmem:[#allocation3 + $0x48] sm:$0x7]
    %v2327 = vsel %vm2298, %v2286, %v2326
    %2328 = vst [vmem:[#allocation3 + $0x48] sm:$0x7] %v2327
    %v2329 = vpack.c.bf16 %v2088, %v2088
    %v2330 = vpack.c.bf16 %v2094, %v2094
    %2333 = vrot.lane.b32.xlu0 %v2329, 64
    %v2334 = vpop.permute.xlu0 %2333
    %2335 = vrot.lane.b32.xlu0 %v2330, 64
    %v2336 = vpop.permute.xlu0 %2335
    %v2339 = vld [vmem:[#allocation3 + $0x4] sm:$0x7]
    %v2340 = vsel %vm2146, %v2118, %v2339
    %2341 = vst [vmem:[#allocation3 + $0x4] sm:$0x7] %v2340
    %v2342 = vld [vmem:[#allocation3 + $0xc] sm:$0x7]
    %v2343 = vsel %vm2146, %v2120, %v2342
    %2344 = vst [vmem:[#allocation3 + $0xc] sm:$0x7] %v2343
    %v2345 = vld [vmem:[#allocation3 + $0x14] sm:$0x7]
    %v2346 = vsel %vm2146, %v2122, %v2345
    %2347 = vst [vmem:[#allocation3 + $0x14] sm:$0x7] %v2346
    %v2348 = vld [vmem:[#allocation3 + $0x1c] sm:$0x7]
    %v2349 = vsel %vm2146, %v2124, %v2348
    %2350 = vst [vmem:[#allocation3 + $0x1c] sm:$0x7] %v2349
    %v2351 = vld [vmem:[#allocation3 + $0x24] sm:$0x7]
    %v2352 = vsel %vm2146, %v2334, %v2351
    %2353 = vst [vmem:[#allocation3 + $0x24] sm:$0x7] %v2352
    %v2354 = vld [vmem:[#allocation3 + $0x2c] sm:$0x7]
    %v2355 = vsel %vm2146, %v2128, %v2354
    %2356 = vst [vmem:[#allocation3 + $0x2c] sm:$0x7] %v2355
    %v2357 = vld [vmem:[#allocation3 + $0x34] sm:$0x7]
    %v2358 = vsel %vm2146, %v2130, %v2357
    %2359 = vst [vmem:[#allocation3 + $0x34] sm:$0x7] %v2358
    %v2360 = vld [vmem:[#allocation3 + $0x3c] sm:$0x7]
    %v2361 = vsel %vm2146, %v2132, %v2360
    %2362 = vst [vmem:[#allocation3 + $0x3c] sm:$0x7] %v2361
    %v2363 = vld [vmem:[#allocation3 + $0x44] sm:$0x7]
    %v2364 = vsel %vm2146, %v2134, %v2363
    %2365 = vst [vmem:[#allocation3 + $0x44] sm:$0x7] %v2364
    %v2366 = vld [vmem:[#allocation3 + $0x4c] sm:$0x7]
    %v2367 = vsel %vm2146, %v2336, %v2366
    %2368 = vst [vmem:[#allocation3 + $0x4c] sm:$0x7] %v2367
    %v2370 = vshrl.u32 %v2329, 16
    %v2372 = vrot.slane %v2370, 4
    %v2373 = vshll.u32 %v2329, 16
    %v2375 = vrot.slane %v2373, 5
    %v2376 = vor.u32 %v2372, %v2375
    %v2377 = vrot.slane %v2376, 4
    %v2379 = vshrl.u32 %v2330, 16
    %v2381 = vrot.slane %v2379, 4
    %v2382 = vshll.u32 %v2330, 16
    %v2384 = vrot.slane %v2382, 5
    %v2385 = vor.u32 %v2381, %v2384
    %v2386 = vrot.slane %v2385, 4
    %2387 = vrot.lane.b32.xlu0 %v2377, 96
    %v2388 = vpop.permute.xlu0 %2387
    %2389 = vrot.lane.b32.xlu0 %v2386, 96
    %v2390 = vpop.permute.xlu0 %2389
    %v2393 = vld [vmem:[#allocation3 + $0x4] sm:$0x7]
    %v2394 = vsel %vm2298, %v2270, %v2393
    %2395 = vst [vmem:[#allocation3 + $0x4] sm:$0x7] %v2394
    %v2396 = vld [vmem:[#allocation3 + $0xc] sm:$0x7]
    %v2397 = vsel %vm2298, %v2272, %v2396
    %2398 = vst [vmem:[#allocation3 + $0xc] sm:$0x7] %v2397
    %v2399 = vld [vmem:[#allocation3 + $0x14] sm:$0x7]
    %v2400 = vsel %vm2298, %v2274, %v2399
    %2401 = vst [vmem:[#allocation3 + $0x14] sm:$0x7] %v2400
    %v2402 = vld [vmem:[#allocation3 + $0x1c] sm:$0x7]
    %v2403 = vsel %vm2298, %v2276, %v2402
    %2404 = vst [vmem:[#allocation3 + $0x1c] sm:$0x7] %v2403
    %v2405 = vld [vmem:[#allocation3 + $0x24] sm:$0x7]
    %v2406 = vsel %vm2298, %v2388, %v2405
    %2407 = vst [vmem:[#allocation3 + $0x24] sm:$0x7] %v2406
    %v2408 = vld [vmem:[#allocation3 + $0x2c] sm:$0x7]
    %v2409 = vsel %vm2298, %v2280, %v2408
    %2410 = vst [vmem:[#allocation3 + $0x2c] sm:$0x7] %v2409
    %v2411 = vld [vmem:[#allocation3 + $0x34] sm:$0x7]
    %v2412 = vsel %vm2298, %v2282, %v2411
    %2413 = vst [vmem:[#allocation3 + $0x34] sm:$0x7] %v2412
    %v2414 = vld [vmem:[#allocation3 + $0x3c] sm:$0x7]
    %v2415 = vsel %vm2298, %v2284, %v2414
    %2416 = vst [vmem:[#allocation3 + $0x3c] sm:$0x7] %v2415
    %v2417 = vld [vmem:[#allocation3 + $0x44] sm:$0x7]
    %v2418 = vsel %vm2298, %v2286, %v2417
    %2419 = vst [vmem:[#allocation3 + $0x44] sm:$0x7] %v2418
    %v2420 = vld [vmem:[#allocation3 + $0x4c] sm:$0x7]
    %v2421 = vsel %vm2298, %v2390, %v2420
    %2422 = vst [vmem:[#allocation3 + $0x4c] sm:$0x7] %v2421
    %v2423 = vld [vmem:[%s1050] sm:$0x3f]
    %v2424 = vld [vmem:[%s1050 + $0x8] sm:$0x3f]
    %v2425 = vld [vmem:[%s1050 + $0x10] sm:$0x3f]
    %v2426 = vld [vmem:[%s1050 + $0x18] sm:$0x3f]
    %v2427 = vld [vmem:[%s1050 + $0x20] sm:$0x3f]
    %v2428 = vld [vmem:[%s1050 + $0x28] sm:$0x3f]
    %v2429 = vld [vmem:[%s1050 + $0x38] sm:$0x3f]
    %v2430 = vld [vmem:[%s1050 + $0x40] sm:$0x3f]
    %v2431 = vld [vmem:[%s1050 + $0x48] sm:$0x3f]
    %v2432 = vld [vmem:[%s1050 + $0x50] sm:$0x3f]
    %v2433 = vld [vmem:[%s1050 + $0x58] sm:$0x3f]
    %v2434 = vld [vmem:[%s1050 + $0x60] sm:$0x3f]
    %v2435 = vld [vmem:[%s750 + $0x1] sm:$0x3f]
    %v2436 = vld [vmem:[%s750 + $0x9] sm:$0x3f]
    %v2437 = vld [vmem:[%s750 + $0x11] sm:$0x3f]
    %v2438 = vld [vmem:[%s750 + $0x19] sm:$0x3f]
    %v2439 = vld [vmem:[%s750 + $0x21] sm:$0x3f]
    %v2440 = vld [vmem:[%s750 + $0x29] sm:$0x3f]
    %v2441 = vld [vmem:[%s750 + $0x39] sm:$0x3f]
    %v2442 = vld [vmem:[%s750 + $0x41] sm:$0x3f]
    %v2443 = vld [vmem:[%s750 + $0x49] sm:$0x3f]
    %v2444 = vld [vmem:[%s750 + $0x51] sm:$0x3f]
    %v2445 = vld [vmem:[%s750 + $0x59] sm:$0x3f]
    %v2446 = vld [vmem:[%s750 + $0x61] sm:$0x3f]
    %v2447 = vmax.f32 %v2423, %v2435
    %v2448 = vmax.f32 %v2424, %v2436
    %v2449 = vmax.f32 %v2425, %v2437
    %v2450 = vmax.f32 %v2426, %v2438
    %v2451 = vmax.f32 %v2427, %v2439
    %v2452 = vmax.f32 %v2428, %v2440
    %v2453 = vmax.f32 %v2429, %v2441
    %v2454 = vmax.f32 %v2430, %v2442
    %v2455 = vmax.f32 %v2431, %v2443
    %v2456 = vmax.f32 %v2432, %v2444
    %v2457 = vmax.f32 %v2433, %v2445
    %v2458 = vmax.f32 %v2434, %v2446
    %v2459 = vld [vmem:[%s452] sm:$0x3f]
    %v2460 = vld [vmem:[%s452 + $0x8] sm:$0x3f]
    %v2461 = vld [vmem:[%s452 + $0x10] sm:$0x3f]
    %v2462 = vld [vmem:[%s452 + $0x18] sm:$0x3f]
    %v2463 = vld [vmem:[%s452 + $0x20] sm:$0x3f]
    %v2464 = vld [vmem:[%s452 + $0x28] sm:$0x3f]
    %v2465 = vld [vmem:[%s452 + $0x38] sm:$0x3f]
    %v2466 = vld [vmem:[%s452 + $0x40] sm:$0x3f]
    %v2467 = vld [vmem:[%s452 + $0x48] sm:$0x3f]
    %v2468 = vld [vmem:[%s452 + $0x50] sm:$0x3f]
    %v2469 = vld [vmem:[%s452 + $0x58] sm:$0x3f]
    %v2470 = vld [vmem:[%s452 + $0x60] sm:$0x3f]
    %v2471 = vmax.f32 %v2447, %v2459
    %v2472 = vmax.f32 %v2448, %v2460
    %v2473 = vmax.f32 %v2449, %v2461
    %v2474 = vmax.f32 %v2450, %v2462
    %v2475 = vmax.f32 %v2451, %v2463
    %v2476 = vmax.f32 %v2452, %v2464
    %v2477 = vmax.f32 %v2453, %v2465
    %v2478 = vmax.f32 %v2454, %v2466
    %v2479 = vmax.f32 %v2455, %v2467
    %v2480 = vmax.f32 %v2456, %v2468
    %v2481 = vmax.f32 %v2457, %v2469
    %v2482 = vmax.f32 %v2458, %v2470
    %v2483 = vld [vmem:[%s145 + $0x1] sm:$0x3f]
    %v2484 = vld [vmem:[%s145 + $0x9] sm:$0x3f]
    %v2485 = vld [vmem:[%s145 + $0x11] sm:$0x3f]
    %v2486 = vld [vmem:[%s145 + $0x19] sm:$0x3f]
    %v2487 = vld [vmem:[%s145 + $0x21] sm:$0x3f]
    %v2488 = vld [vmem:[%s145 + $0x29] sm:$0x3f]
    %v2489 = vld [vmem:[%s145 + $0x39] sm:$0x3f]
    %v2490 = vld [vmem:[%s145 + $0x41] sm:$0x3f]
    %v2491 = vld [vmem:[%s145 + $0x49] sm:$0x3f]
    %v2492 = vld [vmem:[%s145 + $0x51] sm:$0x3f]
    %v2493 = vld [vmem:[%s145 + $0x59] sm:$0x3f]
    %v2494 = vld [vmem:[%s145 + $0x61] sm:$0x3f]
    %v2495 = vmax.f32 %v2471, %v2483
    %v2496 = vmax.f32 %v2472, %v2484
    %v2497 = vmax.f32 %v2473, %v2485
    %v2498 = vmax.f32 %v2474, %v2486
    %v2499 = vmax.f32 %v2475, %v2487
    %v2500 = vmax.f32 %v2476, %v2488
    %v2501 = vmax.f32 %v2477, %v2489
    %v2502 = vmax.f32 %v2478, %v2490
    %v2503 = vmax.f32 %v2479, %v2491
    %v2504 = vmax.f32 %v2480, %v2492
    %v2505 = vmax.f32 %v2481, %v2493
    %v2506 = vmax.f32 %v2482, %v2494
    %v2507 = vpack.c.bf16 %v2495, %v2495
    %v2508 = vpack.c.bf16 %v2496, %v2496
    %v2509 = vpack.c.bf16 %v2497, %v2497
    %v2510 = vpack.c.bf16 %v2498, %v2498
    %v2511 = vpack.c.bf16 %v2499, %v2499
    %v2512 = vpack.c.bf16 %v2501, %v2501
    %v2513 = vpack.c.bf16 %v2502, %v2502
    %v2514 = vpack.c.bf16 %v2503, %v2503
    %v2515 = vpack.c.bf16 %v2504, %v2504
    %v2516 = vpack.c.bf16 %v2505, %v2505
    %2527 = vrot.lane.b32.xlu0 %v2507, 80
    %v2528 = vpop.permute.xlu0 %2527
    %2529 = vrot.lane.b32.xlu0 %v2508, 80
    %v2530 = vpop.permute.xlu0 %2529
    %2531 = vrot.lane.b32.xlu0 %v2509, 80
    %v2532 = vpop.permute.xlu0 %2531
    %2533 = vrot.lane.b32.xlu0 %v2510, 80
    %v2534 = vpop.permute.xlu0 %2533
    %2535 = vrot.lane.b32.xlu0 %v2511, 80
    %v2536 = vpop.permute.xlu0 %2535
    %2537 = vrot.lane.b32.xlu0 %v2512, 80
    %v2538 = vpop.permute.xlu0 %2537
    %2539 = vrot.lane.b32.xlu0 %v2513, 80
    %v2540 = vpop.permute.xlu0 %2539
    %2541 = vrot.lane.b32.xlu0 %v2514, 80
    %v2542 = vpop.permute.xlu0 %2541
    %2543 = vrot.lane.b32.xlu0 %v2515, 80
    %v2544 = vpop.permute.xlu0 %2543
    %2545 = vrot.lane.b32.xlu0 %v2516, 80
    %v2546 = vpop.permute.xlu0 %2545
    %vm2557 = vcmask 780928
    %vm2558 = vmand %vm2557, %vm1329
    %v2559 = vld [vmem:[#allocation3] sm:$0x7]
    %v2560 = vsel %vm2558, %v2528, %v2559
    %2561 = vst [vmem:[#allocation3] sm:$0x7] %v2560
    %v2562 = vld [vmem:[#allocation3 + $0x8] sm:$0x7]
    %v2563 = vsel %vm2558, %v2530, %v2562
    %2564 = vst [vmem:[#allocation3 + $0x8] sm:$0x7] %v2563
    %v2565 = vld [vmem:[#allocation3 + $0x10] sm:$0x7]
    %v2566 = vsel %vm2558, %v2532, %v2565
    %2567 = vst [vmem:[#allocation3 + $0x10] sm:$0x7] %v2566
    %v2568 = vld [vmem:[#allocation3 + $0x18] sm:$0x7]
    %v2569 = vsel %vm2558, %v2534, %v2568
    %2570 = vst [vmem:[#allocation3 + $0x18] sm:$0x7] %v2569
    %v2571 = vld [vmem:[#allocation3 + $0x20] sm:$0x7]
    %v2572 = vsel %vm2558, %v2536, %v2571
    %2573 = vst [vmem:[#allocation3 + $0x20] sm:$0x7] %v2572
    %v2574 = vld [vmem:[#allocation3 + $0x28] sm:$0x7]
    %v2575 = vsel %vm2558, %v2538, %v2574
    %2576 = vst [vmem:[#allocation3 + $0x28] sm:$0x7] %v2575
    %v2577 = vld [vmem:[#allocation3 + $0x30] sm:$0x7]
    %v2578 = vsel %vm2558, %v2540, %v2577
    %2579 = vst [vmem:[#allocation3 + $0x30] sm:$0x7] %v2578
    %v2580 = vld [vmem:[#allocation3 + $0x38] sm:$0x7]
    %v2581 = vsel %vm2558, %v2542, %v2580
    %2582 = vst [vmem:[#allocation3 + $0x38] sm:$0x7] %v2581
    %v2583 = vld [vmem:[#allocation3 + $0x40] sm:$0x7]
    %v2584 = vsel %vm2558, %v2544, %v2583
    %2585 = vst [vmem:[#allocation3 + $0x40] sm:$0x7] %v2584
    %v2586 = vld [vmem:[#allocation3 + $0x48] sm:$0x7]
    %v2587 = vsel %vm2558, %v2546, %v2586
    %2588 = vst [vmem:[#allocation3 + $0x48] sm:$0x7] %v2587
    %v2590 = vshrl.u32 %v2507, 16
    %v2592 = vrot.slane %v2590, 4
    %v2593 = vshll.u32 %v2507, 16
    %v2595 = vrot.slane %v2593, 5
    %v2596 = vor.u32 %v2592, %v2595
    %v2597 = vrot.slane %v2596, 4
    %v2599 = vshrl.u32 %v2508, 16
    %v2601 = vrot.slane %v2599, 4
    %v2602 = vshll.u32 %v2508, 16
    %v2604 = vrot.slane %v2602, 5
    %v2605 = vor.u32 %v2601, %v2604
    %v2606 = vrot.slane %v2605, 4
    %v2608 = vshrl.u32 %v2509, 16
    %v2610 = vrot.slane %v2608, 4
    %v2611 = vshll.u32 %v2509, 16
    %v2613 = vrot.slane %v2611, 5
    %v2614 = vor.u32 %v2610, %v2613
    %v2615 = vrot.slane %v2614, 4
    %v2617 = vshrl.u32 %v2510, 16
    %v2619 = vrot.slane %v2617, 4
    %v2620 = vshll.u32 %v2510, 16
    %v2622 = vrot.slane %v2620, 5
    %v2623 = vor.u32 %v2619, %v2622
    %v2624 = vrot.slane %v2623, 4
    %v2626 = vshrl.u32 %v2511, 16
    %v2628 = vrot.slane %v2626, 4
    %v2629 = vshll.u32 %v2511, 16
    %v2631 = vrot.slane %v2629, 5
    %v2632 = vor.u32 %v2628, %v2631
    %v2633 = vrot.slane %v2632, 4
    %v2635 = vshrl.u32 %v2512, 16
    %v2637 = vrot.slane %v2635, 4
    %v2638 = vshll.u32 %v2512, 16
    %v2640 = vrot.slane %v2638, 5
    %v2641 = vor.u32 %v2637, %v2640
    %v2642 = vrot.slane %v2641, 4
    %v2644 = vshrl.u32 %v2513, 16
    %v2646 = vrot.slane %v2644, 4
    %v2647 = vshll.u32 %v2513, 16
    %v2649 = vrot.slane %v2647, 5
    %v2650 = vor.u32 %v2646, %v2649
    %v2651 = vrot.slane %v2650, 4
    %v2653 = vshrl.u32 %v2514, 16
    %v2655 = vrot.slane %v2653, 4
    %v2656 = vshll.u32 %v2514, 16
    %v2658 = vrot.slane %v2656, 5
    %v2659 = vor.u32 %v2655, %v2658
    %v2660 = vrot.slane %v2659, 4
    %v2662 = vshrl.u32 %v2515, 16
    %v2664 = vrot.slane %v2662, 4
    %v2665 = vshll.u32 %v2515, 16
    %v2667 = vrot.slane %v2665, 5
    %v2668 = vor.u32 %v2664, %v2667
    %v2669 = vrot.slane %v2668, 4
    %v2671 = vshrl.u32 %v2516, 16
    %v2673 = vrot.slane %v2671, 4
    %v2674 = vshll.u32 %v2516, 16
    %v2676 = vrot.slane %v2674, 5
    %v2677 = vor.u32 %v2673, %v2676
    %v2678 = vrot.slane %v2677, 4
    %2679 = vrot.lane.b32.xlu0 %v2597, 112
    %v2680 = vpop.permute.xlu0 %2679
    %2681 = vrot.lane.b32.xlu0 %v2606, 112
    %v2682 = vpop.permute.xlu0 %2681
    %2683 = vrot.lane.b32.xlu0 %v2615, 112
    %v2684 = vpop.permute.xlu0 %2683
    %2685 = vrot.lane.b32.xlu0 %v2624, 112
    %v2686 = vpop.permute.xlu0 %2685
    %2687 = vrot.lane.b32.xlu0 %v2633, 112
    %v2688 = vpop.permute.xlu0 %2687
    %2689 = vrot.lane.b32.xlu0 %v2642, 112
    %v2690 = vpop.permute.xlu0 %2689
    %2691 = vrot.lane.b32.xlu0 %v2651, 112
    %v2692 = vpop.permute.xlu0 %2691
    %2693 = vrot.lane.b32.xlu0 %v2660, 112
    %v2694 = vpop.permute.xlu0 %2693
    %2695 = vrot.lane.b32.xlu0 %v2669, 112
    %v2696 = vpop.permute.xlu0 %2695
    %2697 = vrot.lane.b32.xlu0 %v2678, 112
    %v2698 = vpop.permute.xlu0 %2697
    %vm2709 = vcmask 1043328
    %vm2710 = vmand %vm2709, %vm1329
    %v2711 = vld [vmem:[#allocation3] sm:$0x7]
    %v2712 = vsel %vm2710, %v2680, %v2711
    %2713 = vst [vmem:[#allocation3] sm:$0x7] %v2712
    %v2714 = vld [vmem:[#allocation3 + $0x8] sm:$0x7]
    %v2715 = vsel %vm2710, %v2682, %v2714
    %2716 = vst [vmem:[#allocation3 + $0x8] sm:$0x7] %v2715
    %v2717 = vld [vmem:[#allocation3 + $0x10] sm:$0x7]
    %v2718 = vsel %vm2710, %v2684, %v2717
    %2719 = vst [vmem:[#allocation3 + $0x10] sm:$0x7] %v2718
    %v2720 = vld [vmem:[#allocation3 + $0x18] sm:$0x7]
    %v2721 = vsel %vm2710, %v2686, %v2720
    %2722 = vst [vmem:[#allocation3 + $0x18] sm:$0x7] %v2721
    %v2723 = vld [vmem:[#allocation3 + $0x20] sm:$0x7]
    %v2724 = vsel %vm2710, %v2688, %v2723
    %2725 = vst [vmem:[#allocation3 + $0x20] sm:$0x7] %v2724
    %v2726 = vld [vmem:[#allocation3 + $0x28] sm:$0x7]
    %v2727 = vsel %vm2710, %v2690, %v2726
    %2728 = vst [vmem:[#allocation3 + $0x28] sm:$0x7] %v2727
    %v2729 = vld [vmem:[#allocation3 + $0x30] sm:$0x7]
    %v2730 = vsel %vm2710, %v2692, %v2729
    %2731 = vst [vmem:[#allocation3 + $0x30] sm:$0x7] %v2730
    %v2732 = vld [vmem:[#allocation3 + $0x38] sm:$0x7]
    %v2733 = vsel %vm2710, %v2694, %v2732
    %2734 = vst [vmem:[#allocation3 + $0x38] sm:$0x7] %v2733
    %v2735 = vld [vmem:[#allocation3 + $0x40] sm:$0x7]
    %v2736 = vsel %vm2710, %v2696, %v2735
    %2737 = vst [vmem:[#allocation3 + $0x40] sm:$0x7] %v2736
    %v2738 = vld [vmem:[#allocation3 + $0x48] sm:$0x7]
    %v2739 = vsel %vm2710, %v2698, %v2738
    %2740 = vst [vmem:[#allocation3 + $0x48] sm:$0x7] %v2739
    %v2741 = vpack.c.bf16 %v2500, %v2500
    %v2742 = vpack.c.bf16 %v2506, %v2506
    %2745 = vrot.lane.b32.xlu0 %v2741, 80
    %v2746 = vpop.permute.xlu0 %2745
    %2747 = vrot.lane.b32.xlu0 %v2742, 80
    %v2748 = vpop.permute.xlu0 %2747
    %v2751 = vld [vmem:[#allocation3 + $0x4] sm:$0x7]
    %v2752 = vsel %vm2558, %v2530, %v2751
    %2753 = vst [vmem:[#allocation3 + $0x4] sm:$0x7] %v2752
    %v2754 = vld [vmem:[#allocation3 + $0xc] sm:$0x7]
    %v2755 = vsel %vm2558, %v2532, %v2754
    %2756 = vst [vmem:[#allocation3 + $0xc] sm:$0x7] %v2755
    %v2757 = vld [vmem:[#allocation3 + $0x14] sm:$0x7]
    %v2758 = vsel %vm2558, %v2534, %v2757
    %2759 = vst [vmem:[#allocation3 + $0x14] sm:$0x7] %v2758
    %v2760 = vld [vmem:[#allocation3 + $0x1c] sm:$0x7]
    %v2761 = vsel %vm2558, %v2536, %v2760
    %2762 = vst [vmem:[#allocation3 + $0x1c] sm:$0x7] %v2761
    %v2763 = vld [vmem:[#allocation3 + $0x24] sm:$0x7]
    %v2764 = vsel %vm2558, %v2746, %v2763
    %2765 = vst [vmem:[#allocation3 + $0x24] sm:$0x7] %v2764
    %v2766 = vld [vmem:[#allocation3 + $0x2c] sm:$0x7]
    %v2767 = vsel %vm2558, %v2540, %v2766
    %2768 = vst [vmem:[#allocation3 + $0x2c] sm:$0x7] %v2767
    %v2769 = vld [vmem:[#allocation3 + $0x34] sm:$0x7]
    %v2770 = vsel %vm2558, %v2542, %v2769
    %2771 = vst [vmem:[#allocation3 + $0x34] sm:$0x7] %v2770
    %v2772 = vld [vmem:[#allocation3 + $0x3c] sm:$0x7]
    %v2773 = vsel %vm2558, %v2544, %v2772
    %2774 = vst [vmem:[#allocation3 + $0x3c] sm:$0x7] %v2773
    %v2775 = vld [vmem:[#allocation3 + $0x44] sm:$0x7]
    %v2776 = vsel %vm2558, %v2546, %v2775
    %2777 = vst [vmem:[#allocation3 + $0x44] sm:$0x7] %v2776
    %v2778 = vld [vmem:[#allocation3 + $0x4c] sm:$0x7]
    %v2779 = vsel %vm2558, %v2748, %v2778
    %2780 = vst [vmem:[#allocation3 + $0x4c] sm:$0x7] %v2779
    %v2782 = vshrl.u32 %v2741, 16
    %v2784 = vrot.slane %v2782, 4
    %v2785 = vshll.u32 %v2741, 16
    %v2787 = vrot.slane %v2785, 5
    %v2788 = vor.u32 %v2784, %v2787
    %v2789 = vrot.slane %v2788, 4
    %v2791 = vshrl.u32 %v2742, 16
    %v2793 = vrot.slane %v2791, 4
    %v2794 = vshll.u32 %v2742, 16
    %v2796 = vrot.slane %v2794, 5
    %v2797 = vor.u32 %v2793, %v2796
    %v2798 = vrot.slane %v2797, 4
    %2799 = vrot.lane.b32.xlu0 %v2789, 112
    %v2800 = vpop.permute.xlu0 %2799
    %2801 = vrot.lane.b32.xlu0 %v2798, 112
    %v2802 = vpop.permute.xlu0 %2801
    %v2805 = vld [vmem:[#allocation3 + $0x4] sm:$0x7]
    %v2806 = vsel %vm2710, %v2682, %v2805
    %2807 = vst [vmem:[#allocation3 + $0x4] sm:$0x7] %v2806
    %v2808 = vld [vmem:[#allocation3 + $0xc] sm:$0x7]
    %v2809 = vsel %vm2710, %v2684, %v2808
    %2810 = vst [vmem:[#allocation3 + $0xc] sm:$0x7] %v2809
    %v2811 = vld [vmem:[#allocation3 + $0x14] sm:$0x7]
    %v2812 = vsel %vm2710, %v2686, %v2811
    %2813 = vst [vmem:[#allocation3 + $0x14] sm:$0x7] %v2812
    %v2814 = vld [vmem:[#allocation3 + $0x1c] sm:$0x7]
    %v2815 = vsel %vm2710, %v2688, %v2814
    %2816 = vst [vmem:[#allocation3 + $0x1c] sm:$0x7] %v2815
    %v2817 = vld [vmem:[#allocation3 + $0x24] sm:$0x7]
    %v2818 = vsel %vm2710, %v2800, %v2817
    %2819 = vst [vmem:[#allocation3 + $0x24] sm:$0x7] %v2818
    %v2820 = vld [vmem:[#allocation3 + $0x2c] sm:$0x7]
    %v2821 = vsel %vm2710, %v2692, %v2820
    %2822 = vst [vmem:[#allocation3 + $0x2c] sm:$0x7] %v2821
    %v2823 = vld [vmem:[#allocation3 + $0x34] sm:$0x7]
    %v2824 = vsel %vm2710, %v2694, %v2823
    %2825 = vst [vmem:[#allocation3 + $0x34] sm:$0x7] %v2824
    %v2826 = vld [vmem:[#allocation3 + $0x3c] sm:$0x7]
    %v2827 = vsel %vm2710, %v2696, %v2826
    %2828 = vst [vmem:[#allocation3 + $0x3c] sm:$0x7] %v2827
    %v2829 = vld [vmem:[#allocation3 + $0x44] sm:$0x7]
    %v2830 = vsel %vm2710, %v2698, %v2829
    %2831 = vst [vmem:[#allocation3 + $0x44] sm:$0x7] %v2830
    %v2832 = vld [vmem:[#allocation3 + $0x4c] sm:$0x7]
    %v2833 = vsel %vm2710, %v2802, %v2832
    %2834 = vst [vmem:[#allocation3 + $0x4c] sm:$0x7] %v2833
    %v2835 = vld [vmem:[#allocation3] sm:$0x77]
    %v2836 = vld [vmem:[%s3] sm:$0xf]
    %v2837 = vld [vmem:[%s3 + $0x4] sm:$0xf]
    %v2838 = vld [vmem:[%s3 + $0x8] sm:$0xf]
    %v2839 = vld [vmem:[%s3 + $0xc] sm:$0xf]
    %v2840 = vld [vmem:[%s3 + $0x10] sm:$0xf]
    %v2841 = vld [vmem:[%s3 + $0x14] sm:$0xf]
    %v2842 = vld [vmem:[%s3 + $0x18] sm:$0xf]
    %v2843 = vld [vmem:[%s3 + $0x1c] sm:$0xf]
    %v2844 = vld [vmem:[%s3 + $0x20] sm:$0xf]
    %v2845 = vld [vmem:[%s3 + $0x24] sm:$0xf]
    %v2846 = vld [vmem:[%s3 + $0x28] sm:$0xf]
    %v2847 = vld [vmem:[%s3 + $0x2c] sm:$0xf]
    %v2848 = vld [vmem:[%s3 + $0x30] sm:$0xf]
    %v2849 = vld [vmem:[%s3 + $0x34] sm:$0xf]
    %v2850 = vld [vmem:[%s3 + $0x38] sm:$0xf]
    %v2851 = vld [vmem:[%s3 + $0x3c] sm:$0xf]
    %v2852 = vld [vmem:[%s3 + $0x40] sm:$0xf]
    %v2853 = vld [vmem:[%s3 + $0x44] sm:$0xf]
    %v2854 = vld [vmem:[%s3 + $0x48] sm:$0xf]
    %v2855 = vld [vmem:[%s3 + $0x4c] sm:$0xf]
    %v2856 = vld [vmem:[%s3 + $0x50] sm:$0xf]
    %v2857 = vld [vmem:[%s3 + $0x54] sm:$0xf]
    %v2858 = vld [vmem:[%s3 + $0x58] sm:$0xf]
    %v2859 = vld [vmem:[%s3 + $0x5c] sm:$0xf]
    %v2860 = vld [vmem:[%s3 + $0x60] sm:$0xf]
    %v2861 = vld [vmem:[%s3 + $0x64] sm:$0xf]
    %v2862 = vld [vmem:[%s3 + $0x68] sm:$0xf]
    %v2863 = vld [vmem:[%s3 + $0x6c] sm:$0xf]
    %v2864 = vld [vmem:[%s3 + $0x70] sm:$0xf]
    %v2865 = vld [vmem:[%s3 + $0x74] sm:$0xf]
    %v2866 = vld [vmem:[%s3 + $0x78] sm:$0xf]
    %v2867 = vld [vmem:[%s3 + $0x7c] sm:$0xf]
    %v2868 = vld [vmem:[%s4] sm:$0x1]
    %v2870 = vperm.slane %v2868, 0
    %v2873 = vunpack.c.l.b16 %v2835
    %v2874 = vunpack.c.h.b16 %v2835
    %v2875 = vpack.c.b16 %v2873, %v2873
    %v2876 = vpack.c.b16 %v2874, %v2874
    %v2911 = vunpack.c.l.b16 %v2836
    %v2912 = vunpack.c.l.b16 %v2837
    %v2913 = vunpack.c.l.b16 %v2838
    %v2914 = vunpack.c.l.b16 %v2839
    %v2915 = vunpack.c.l.b16 %v2840
    %v2916 = vunpack.c.l.b16 %v2841
    %v2917 = vunpack.c.l.b16 %v2842
    %v2918 = vunpack.c.l.b16 %v2843
    %v2919 = vunpack.c.l.b16 %v2844
    %v2920 = vunpack.c.l.b16 %v2845
    %v2921 = vunpack.c.l.b16 %v2846
    %v2922 = vunpack.c.l.b16 %v2847
    %v2923 = vunpack.c.l.b16 %v2848
    %v2924 = vunpack.c.l.b16 %v2849
    %v2925 = vunpack.c.l.b16 %v2850
    %v2926 = vunpack.c.l.b16 %v2851
    %v2927 = vunpack.c.l.b16 %v2852
    %v2928 = vunpack.c.l.b16 %v2853
    %v2929 = vunpack.c.l.b16 %v2854
    %v2930 = vunpack.c.l.b16 %v2855
    %v2931 = vunpack.c.l.b16 %v2856
    %v2932 = vunpack.c.l.b16 %v2857
    %v2933 = vunpack.c.l.b16 %v2858
    %v2934 = vunpack.c.l.b16 %v2859
    %v2935 = vunpack.c.l.b16 %v2860
    %v2936 = vunpack.c.l.b16 %v2861
    %v2937 = vunpack.c.l.b16 %v2862
    %v2938 = vunpack.c.l.b16 %v2863
    %v2939 = vunpack.c.l.b16 %v2864
    %v2940 = vunpack.c.l.b16 %v2865
    %v2941 = vunpack.c.l.b16 %v2866
    %v2942 = vunpack.c.l.b16 %v2867
    %v2943 = vpack.c.b16 %v2912, %v2911
    %v2944 = vpack.c.b16 %v2914, %v2913
    %v2945 = vpack.c.b16 %v2916, %v2915
    %v2946 = vpack.c.b16 %v2918, %v2917
    %v2947 = vpack.c.b16 %v2920, %v2919
    %v2948 = vpack.c.b16 %v2922, %v2921
    %v2949 = vpack.c.b16 %v2924, %v2923
    %v2950 = vpack.c.b16 %v2926, %v2925
    %v2951 = vpack.c.b16 %v2928, %v2927
    %v2952 = vpack.c.b16 %v2930, %v2929
    %v2953 = vpack.c.b16 %v2932, %v2931
    %v2954 = vpack.c.b16 %v2934, %v2933
    %v2955 = vpack.c.b16 %v2936, %v2935
    %v2956 = vpack.c.b16 %v2938, %v2937
    %v2957 = vpack.c.b16 %v2940, %v2939
    %v2958 = vpack.c.b16 %v2942, %v2941
    %2975 = vmatpush.bf16.msra.mxu0 %v2950
    %2976 = vmatpush.bf16.msra.mxu0 %v2949
    %2977 = vmatpush.bf16.msra.mxu0 %v2948
    %2978 = vmatpush.bf16.msra.mxu0 %v2947
    %2979 = vmatpush.bf16.msra.mxu0 %v2946
    %2980 = vmatpush.bf16.msra.mxu0 %v2945
    %2981 = vmatpush.bf16.msra.mxu0 %v2944
    %2982 = vmatpush.bf16.msra.mxu0 %v2943
    %2983 = vmatmul.bf16.gmra.mxu0 %v2875
    %v2984 = vpop.f32.mrf.mxu0
    %v2985 = vadd.f32 %v2870, %v2984
    %v2986 = vpop.f32.mrf.mxu0
    %2987 = vdwg.mxu0
    %2988 = vmatpush.bf16.msra.mxu0 %v2958
    %2989 = vmatpush.bf16.msra.mxu0 %v2957
    %2990 = vmatpush.bf16.msra.mxu0 %v2956
    %2991 = vmatpush.bf16.msra.mxu0 %v2955
    %2992 = vmatpush.bf16.msra.mxu0 %v2954
    %2993 = vmatpush.bf16.msra.mxu0 %v2953
    %2994 = vmatpush.bf16.msra.mxu0 %v2952
    %2995 = vmatpush.bf16.msra.mxu0 %v2951
    %2996 = vmatmul.bf16.gmra.mxu0 %v2876
    %v2997 = vpop.f32.mrf.mxu0
    %v2998 = vadd.f32 %v2985, %v2997
    %v2999 = vpop.f32.mrf.mxu0
    %3000 = vdwg.mxu0
    %v3001 = vmax.f32 %v2998, 0.0
    %vm3002 = vcmask 258048
    %3003 = vst.msk [vmem:[#allocation4] sm:$0x1f] %vm3002, %v3001
    %s3004 = scalar_lea.vmem [#allocation3], 8
    %v3005 = vld [vmem:[%s3004] sm:$0x77]
    %v3006 = vld [vmem:[%s3] sm:$0xf]
    %v3007 = vld [vmem:[%s3 + $0x4] sm:$0xf]
    %v3008 = vld [vmem:[%s3 + $0x8] sm:$0xf]
    %v3009 = vld [vmem:[%s3 + $0xc] sm:$0xf]
    %v3010 = vld [vmem:[%s3 + $0x10] sm:$0xf]
    %v3011 = vld [vmem:[%s3 + $0x14] sm:$0xf]
    %v3012 = vld [vmem:[%s3 + $0x18] sm:$0xf]
    %v3013 = vld [vmem:[%s3 + $0x1c] sm:$0xf]
    %v3014 = vld [vmem:[%s3 + $0x20] sm:$0xf]
    %v3015 = vld [vmem:[%s3 + $0x24] sm:$0xf]
    %v3016 = vld [vmem:[%s3 + $0x28] sm:$0xf]
    %v3017 = vld [vmem:[%s3 + $0x2c] sm:$0xf]
    %v3018 = vld [vmem:[%s3 + $0x30] sm:$0xf]
    %v3019 = vld [vmem:[%s3 + $0x34] sm:$0xf]
    %v3020 = vld [vmem:[%s3 + $0x38] sm:$0xf]
    %v3021 = vld [vmem:[%s3 + $0x3c] sm:$0xf]
    %v3022 = vld [vmem:[%s3 + $0x40] sm:$0xf]
    %v3023 = vld [vmem:[%s3 + $0x44] sm:$0xf]
    %v3024 = vld [vmem:[%s3 + $0x48] sm:$0xf]
    %v3025 = vld [vmem:[%s3 + $0x4c] sm:$0xf]
    %v3026 = vld [vmem:[%s3 + $0x50] sm:$0xf]
    %v3027 = vld [vmem:[%s3 + $0x54] sm:$0xf]
    %v3028 = vld [vmem:[%s3 + $0x58] sm:$0xf]
    %v3029 = vld [vmem:[%s3 + $0x5c] sm:$0xf]
    %v3030 = vld [vmem:[%s3 + $0x60] sm:$0xf]
    %v3031 = vld [vmem:[%s3 + $0x64] sm:$0xf]
    %v3032 = vld [vmem:[%s3 + $0x68] sm:$0xf]
    %v3033 = vld [vmem:[%s3 + $0x6c] sm:$0xf]
    %v3034 = vld [vmem:[%s3 + $0x70] sm:$0xf]
    %v3035 = vld [vmem:[%s3 + $0x74] sm:$0xf]
    %v3036 = vld [vmem:[%s3 + $0x78] sm:$0xf]
    %v3037 = vld [vmem:[%s3 + $0x7c] sm:$0xf]
    %v3038 = vld [vmem:[%s4] sm:$0x1]
    %v3040 = vperm.slane %v3038, 0
    %v3043 = vunpack.c.l.b16 %v3005
    %v3044 = vunpack.c.h.b16 %v3005
    %v3045 = vpack.c.b16 %v3043, %v3043
    %v3046 = vpack.c.b16 %v3044, %v3044
    %v3081 = vunpack.c.l.b16 %v3006
    %v3082 = vunpack.c.l.b16 %v3007
    %v3083 = vunpack.c.l.b16 %v3008
    %v3084 = vunpack.c.l.b16 %v3009
    %v3085 = vunpack.c.l.b16 %v3010
    %v3086 = vunpack.c.l.b16 %v3011
    %v3087 = vunpack.c.l.b16 %v3012
    %v3088 = vunpack.c.l.b16 %v3013
    %v3089 = vunpack.c.l.b16 %v3014
    %v3090 = vunpack.c.l.b16 %v3015
    %v3091 = vunpack.c.l.b16 %v3016
    %v3092 = vunpack.c.l.b16 %v3017
    %v3093 = vunpack.c.l.b16 %v3018
    %v3094 = vunpack.c.l.b16 %v3019
    %v3095 = vunpack.c.l.b16 %v3020
    %v3096 = vunpack.c.l.b16 %v3021
    %v3097 = vunpack.c.l.b16 %v3022
    %v3098 = vunpack.c.l.b16 %v3023
    %v3099 = vunpack.c.l.b16 %v3024
    %v3100 = vunpack.c.l.b16 %v3025
    %v3101 = vunpack.c.l.b16 %v3026
    %v3102 = vunpack.c.l.b16 %v3027
    %v3103 = vunpack.c.l.b16 %v3028
    %v3104 = vunpack.c.l.b16 %v3029
    %v3105 = vunpack.c.l.b16 %v3030
    %v3106 = vunpack.c.l.b16 %v3031
    %v3107 = vunpack.c.l.b16 %v3032
    %v3108 = vunpack.c.l.b16 %v3033
    %v3109 = vunpack.c.l.b16 %v3034
    %v3110 = vunpack.c.l.b16 %v3035
    %v3111 = vunpack.c.l.b16 %v3036
    %v3112 = vunpack.c.l.b16 %v3037
    %v3113 = vpack.c.b16 %v3082, %v3081
    %v3114 = vpack.c.b16 %v3084, %v3083
    %v3115 = vpack.c.b16 %v3086, %v3085
    %v3116 = vpack.c.b16 %v3088, %v3087
    %v3117 = vpack.c.b16 %v3090, %v3089
    %v3118 = vpack.c.b16 %v3092, %v3091
    %v3119 = vpack.c.b16 %v3094, %v3093
    %v3120 = vpack.c.b16 %v3096, %v3095
    %v3121 = vpack.c.b16 %v3098, %v3097
    %v3122 = vpack.c.b16 %v3100, %v3099
    %v3123 = vpack.c.b16 %v3102, %v3101
    %v3124 = vpack.c.b16 %v3104, %v3103
    %v3125 = vpack.c.b16 %v3106, %v3105
    %v3126 = vpack.c.b16 %v3108, %v3107
    %v3127 = vpack.c.b16 %v3110, %v3109
    %v3128 = vpack.c.b16 %v3112, %v3111
    %3145 = vmatpush.bf16.msra.mxu0 %v3120
    %3146 = vmatpush.bf16.msra.mxu0 %v3119
    %3147 = vmatpush.bf16.msra.mxu0 %v3118
    %3148 = vmatpush.bf16.msra.mxu0 %v3117
    %3149 = vmatpush.bf16.msra.mxu0 %v3116
    %3150 = vmatpush.bf16.msra.mxu0 %v3115
    %3151 = vmatpush.bf16.msra.mxu0 %v3114
    %3152 = vmatpush.bf16.msra.mxu0 %v3113
    %3153 = vmatmul.bf16.gmra.mxu0 %v3045
    %v3154 = vpop.f32.mrf.mxu0
    %v3155 = vadd.f32 %v3040, %v3154
    %v3156 = vpop.f32.mrf.mxu0
    %3157 = vdwg.mxu0
    %3158 = vmatpush.bf16.msra.mxu0 %v3128
    %3159 = vmatpush.bf16.msra.mxu0 %v3127
    %3160 = vmatpush.bf16.msra.mxu0 %v3126
    %3161 = vmatpush.bf16.msra.mxu0 %v3125
    %3162 = vmatpush.bf16.msra.mxu0 %v3124
    %3163 = vmatpush.bf16.msra.mxu0 %v3123
    %3164 = vmatpush.bf16.msra.mxu0 %v3122
    %3165 = vmatpush.bf16.msra.mxu0 %v3121
    %3166 = vmatmul.bf16.gmra.mxu0 %v3046
    %v3167 = vpop.f32.mrf.mxu0
    %v3168 = vadd.f32 %v3155, %v3167
    %v3169 = vpop.f32.mrf.mxu0
    %3170 = vdwg.mxu0
    %v3171 = vmax.f32 %v3168, 0.0
    %s3172 = scalar_lea.vmem [#allocation4], 8
    %3173 = vst.msk [vmem:[%s3172] sm:$0x1f] %vm3002, %v3171
    %s3174 = scalar_lea.vmem [#allocation3], 16
    %v3175 = vld [vmem:[%s3174] sm:$0x77]
    %v3176 = vld [vmem:[%s3] sm:$0xf]
    %v3177 = vld [vmem:[%s3 + $0x4] sm:$0xf]
    %v3178 = vld [vmem:[%s3 + $0x8] sm:$0xf]
    %v3179 = vld [vmem:[%s3 + $0xc] sm:$0xf]
    %v3180 = vld [vmem:[%s3 + $0x10] sm:$0xf]
    %v3181 = vld [vmem:[%s3 + $0x14] sm:$0xf]
    %v3182 = vld [vmem:[%s3 + $0x18] sm:$0xf]
    %v3183 = vld [vmem:[%s3 + $0x1c] sm:$0xf]
    %v3184 = vld [vmem:[%s3 + $0x20] sm:$0xf]
    %v3185 = vld [vmem:[%s3 + $0x24] sm:$0xf]
    %v3186 = vld [vmem:[%s3 + $0x28] sm:$0xf]
    %v3187 = vld [vmem:[%s3 + $0x2c] sm:$0xf]
    %v3188 = vld [vmem:[%s3 + $0x30] sm:$0xf]
    %v3189 = vld [vmem:[%s3 + $0x34] sm:$0xf]
    %v3190 = vld [vmem:[%s3 + $0x38] sm:$0xf]
    %v3191 = vld [vmem:[%s3 + $0x3c] sm:$0xf]
    %v3192 = vld [vmem:[%s3 + $0x40] sm:$0xf]
    %v3193 = vld [vmem:[%s3 + $0x44] sm:$0xf]
    %v3194 = vld [vmem:[%s3 + $0x48] sm:$0xf]
    %v3195 = vld [vmem:[%s3 + $0x4c] sm:$0xf]
    %v3196 = vld [vmem:[%s3 + $0x50] sm:$0xf]
    %v3197 = vld [vmem:[%s3 + $0x54] sm:$0xf]
    %v3198 = vld [vmem:[%s3 + $0x58] sm:$0xf]
    %v3199 = vld [vmem:[%s3 + $0x5c] sm:$0xf]
    %v3200 = vld [vmem:[%s3 + $0x60] sm:$0xf]
    %v3201 = vld [vmem:[%s3 + $0x64] sm:$0xf]
    %v3202 = vld [vmem:[%s3 + $0x68] sm:$0xf]
    %v3203 = vld [vmem:[%s3 + $0x6c] sm:$0xf]
    %v3204 = vld [vmem:[%s3 + $0x70] sm:$0xf]
    %v3205 = vld [vmem:[%s3 + $0x74] sm:$0xf]
    %v3206 = vld [vmem:[%s3 + $0x78] sm:$0xf]
    %v3207 = vld [vmem:[%s3 + $0x7c] sm:$0xf]
    %v3208 = vld [vmem:[%s4] sm:$0x1]
    %v3210 = vperm.slane %v3208, 0
    %v3213 = vunpack.c.l.b16 %v3175
    %v3214 = vunpack.c.h.b16 %v3175
    %v3215 = vpack.c.b16 %v3213, %v3213
    %v3216 = vpack.c.b16 %v3214, %v3214
    %v3251 = vunpack.c.l.b16 %v3176
    %v3252 = vunpack.c.l.b16 %v3177
    %v3253 = vunpack.c.l.b16 %v3178
    %v3254 = vunpack.c.l.b16 %v3179
    %v3255 = vunpack.c.l.b16 %v3180
    %v3256 = vunpack.c.l.b16 %v3181
    %v3257 = vunpack.c.l.b16 %v3182
    %v3258 = vunpack.c.l.b16 %v3183
    %v3259 = vunpack.c.l.b16 %v3184
    %v3260 = vunpack.c.l.b16 %v3185
    %v3261 = vunpack.c.l.b16 %v3186
    %v3262 = vunpack.c.l.b16 %v3187
    %v3263 = vunpack.c.l.b16 %v3188
    %v3264 = vunpack.c.l.b16 %v3189
    %v3265 = vunpack.c.l.b16 %v3190
    %v3266 = vunpack.c.l.b16 %v3191
    %v3267 = vunpack.c.l.b16 %v3192
    %v3268 = vunpack.c.l.b16 %v3193
    %v3269 = vunpack.c.l.b16 %v3194
    %v3270 = vunpack.c.l.b16 %v3195
    %v3271 = vunpack.c.l.b16 %v3196
    %v3272 = vunpack.c.l.b16 %v3197
    %v3273 = vunpack.c.l.b16 %v3198
    %v3274 = vunpack.c.l.b16 %v3199
    %v3275 = vunpack.c.l.b16 %v3200
    %v3276 = vunpack.c.l.b16 %v3201
    %v3277 = vunpack.c.l.b16 %v3202
    %v3278 = vunpack.c.l.b16 %v3203
    %v3279 = vunpack.c.l.b16 %v3204
    %v3280 = vunpack.c.l.b16 %v3205
    %v3281 = vunpack.c.l.b16 %v3206
    %v3282 = vunpack.c.l.b16 %v3207
    %v3283 = vpack.c.b16 %v3252, %v3251
    %v3284 = vpack.c.b16 %v3254, %v3253
    %v3285 = vpack.c.b16 %v3256, %v3255
    %v3286 = vpack.c.b16 %v3258, %v3257
    %v3287 = vpack.c.b16 %v3260, %v3259
    %v3288 = vpack.c.b16 %v3262, %v3261
    %v3289 = vpack.c.b16 %v3264, %v3263
    %v3290 = vpack.c.b16 %v3266, %v3265
    %v3291 = vpack.c.b16 %v3268, %v3267
    %v3292 = vpack.c.b16 %v3270, %v3269
    %v3293 = vpack.c.b16 %v3272, %v3271
    %v3294 = vpack.c.b16 %v3274, %v3273
    %v3295 = vpack.c.b16 %v3276, %v3275
    %v3296 = vpack.c.b16 %v3278, %v3277
    %v3297 = vpack.c.b16 %v3280, %v3279
    %v3298 = vpack.c.b16 %v3282, %v3281
    %3315 = vmatpush.bf16.msra.mxu0 %v3290
    %3316 = vmatpush.bf16.msra.mxu0 %v3289
    %3317 = vmatpush.bf16.msra.mxu0 %v3288
    %3318 = vmatpush.bf16.msra.mxu0 %v3287
    %3319 = vmatpush.bf16.msra.mxu0 %v3286
    %3320 = vmatpush.bf16.msra.mxu0 %v3285
    %3321 = vmatpush.bf16.msra.mxu0 %v3284
    %3322 = vmatpush.bf16.msra.mxu0 %v3283
    %3323 = vmatmul.bf16.gmra.mxu0 %v3215
    %v3324 = vpop.f32.mrf.mxu0
    %v3325 = vadd.f32 %v3210, %v3324
    %v3326 = vpop.f32.mrf.mxu0
    %3327 = vdwg.mxu0
    %3328 = vmatpush.bf16.msra.mxu0 %v3298
    %3329 = vmatpush.bf16.msra.mxu0 %v3297
    %3330 = vmatpush.bf16.msra.mxu0 %v3296
    %3331 = vmatpush.bf16.msra.mxu0 %v3295
    %3332 = vmatpush.bf16.msra.mxu0 %v3294
    %3333 = vmatpush.bf16.msra.mxu0 %v3293
    %3334 = vmatpush.bf16.msra.mxu0 %v3292
    %3335 = vmatpush.bf16.msra.mxu0 %v3291
    %3336 = vmatmul.bf16.gmra.mxu0 %v3216
    %v3337 = vpop.f32.mrf.mxu0
    %v3338 = vadd.f32 %v3325, %v3337
    %v3339 = vpop.f32.mrf.mxu0
    %3340 = vdwg.mxu0
    %v3341 = vmax.f32 %v3338, 0.0
    %s3342 = scalar_lea.vmem [#allocation4], 16
    %3343 = vst.msk [vmem:[%s3342] sm:$0x1f] %vm3002, %v3341
    %s3344 = scalar_lea.vmem [#allocation3], 24
    %v3345 = vld [vmem:[%s3344] sm:$0x77]
    %v3346 = vld [vmem:[%s3] sm:$0xf]
    %v3347 = vld [vmem:[%s3 + $0x4] sm:$0xf]
    %v3348 = vld [vmem:[%s3 + $0x8] sm:$0xf]
    %v3349 = vld [vmem:[%s3 + $0xc] sm:$0xf]
    %v3350 = vld [vmem:[%s3 + $0x10] sm:$0xf]
    %v3351 = vld [vmem:[%s3 + $0x14] sm:$0xf]
    %v3352 = vld [vmem:[%s3 + $0x18] sm:$0xf]
    %v3353 = vld [vmem:[%s3 + $0x1c] sm:$0xf]
    %v3354 = vld [vmem:[%s3 + $0x20] sm:$0xf]
    %v3355 = vld [vmem:[%s3 + $0x24] sm:$0xf]
    %v3356 = vld [vmem:[%s3 + $0x28] sm:$0xf]
    %v3357 = vld [vmem:[%s3 + $0x2c] sm:$0xf]
    %v3358 = vld [vmem:[%s3 + $0x30] sm:$0xf]
    %v3359 = vld [vmem:[%s3 + $0x34] sm:$0xf]
    %v3360 = vld [vmem:[%s3 + $0x38] sm:$0xf]
    %v3361 = vld [vmem:[%s3 + $0x3c] sm:$0xf]
    %v3362 = vld [vmem:[%s3 + $0x40] sm:$0xf]
    %v3363 = vld [vmem:[%s3 + $0x44] sm:$0xf]
    %v3364 = vld [vmem:[%s3 + $0x48] sm:$0xf]
    %v3365 = vld [vmem:[%s3 + $0x4c] sm:$0xf]
    %v3366 = vld [vmem:[%s3 + $0x50] sm:$0xf]
    %v3367 = vld [vmem:[%s3 + $0x54] sm:$0xf]
    %v3368 = vld [vmem:[%s3 + $0x58] sm:$0xf]
    %v3369 = vld [vmem:[%s3 + $0x5c] sm:$0xf]
    %v3370 = vld [vmem:[%s3 + $0x60] sm:$0xf]
    %v3371 = vld [vmem:[%s3 + $0x64] sm:$0xf]
    %v3372 = vld [vmem:[%s3 + $0x68] sm:$0xf]
    %v3373 = vld [vmem:[%s3 + $0x6c] sm:$0xf]
    %v3374 = vld [vmem:[%s3 + $0x70] sm:$0xf]
    %v3375 = vld [vmem:[%s3 + $0x74] sm:$0xf]
    %v3376 = vld [vmem:[%s3 + $0x78] sm:$0xf]
    %v3377 = vld [vmem:[%s3 + $0x7c] sm:$0xf]
    %v3378 = vld [vmem:[%s4] sm:$0x1]
    %v3380 = vperm.slane %v3378, 0
    %v3383 = vunpack.c.l.b16 %v3345
    %v3384 = vunpack.c.h.b16 %v3345
    %v3385 = vpack.c.b16 %v3383, %v3383
    %v3386 = vpack.c.b16 %v3384, %v3384
    %v3421 = vunpack.c.l.b16 %v3346
    %v3422 = vunpack.c.l.b16 %v3347
    %v3423 = vunpack.c.l.b16 %v3348
    %v3424 = vunpack.c.l.b16 %v3349
    %v3425 = vunpack.c.l.b16 %v3350
    %v3426 = vunpack.c.l.b16 %v3351
    %v3427 = vunpack.c.l.b16 %v3352
    %v3428 = vunpack.c.l.b16 %v3353
    %v3429 = vunpack.c.l.b16 %v3354
    %v3430 = vunpack.c.l.b16 %v3355
    %v3431 = vunpack.c.l.b16 %v3356
    %v3432 = vunpack.c.l.b16 %v3357
    %v3433 = vunpack.c.l.b16 %v3358
    %v3434 = vunpack.c.l.b16 %v3359
    %v3435 = vunpack.c.l.b16 %v3360
    %v3436 = vunpack.c.l.b16 %v3361
    %v3437 = vunpack.c.l.b16 %v3362
    %v3438 = vunpack.c.l.b16 %v3363
    %v3439 = vunpack.c.l.b16 %v3364
    %v3440 = vunpack.c.l.b16 %v3365
    %v3441 = vunpack.c.l.b16 %v3366
    %v3442 = vunpack.c.l.b16 %v3367
    %v3443 = vunpack.c.l.b16 %v3368
    %v3444 = vunpack.c.l.b16 %v3369
    %v3445 = vunpack.c.l.b16 %v3370
    %v3446 = vunpack.c.l.b16 %v3371
    %v3447 = vunpack.c.l.b16 %v3372
    %v3448 = vunpack.c.l.b16 %v3373
    %v3449 = vunpack.c.l.b16 %v3374
    %v3450 = vunpack.c.l.b16 %v3375
    %v3451 = vunpack.c.l.b16 %v3376
    %v3452 = vunpack.c.l.b16 %v3377
    %v3453 = vpack.c.b16 %v3422, %v3421
    %v3454 = vpack.c.b16 %v3424, %v3423
    %v3455 = vpack.c.b16 %v3426, %v3425
    %v3456 = vpack.c.b16 %v3428, %v3427
    %v3457 = vpack.c.b16 %v3430, %v3429
    %v3458 = vpack.c.b16 %v3432, %v3431
    %v3459 = vpack.c.b16 %v3434, %v3433
    %v3460 = vpack.c.b16 %v3436, %v3435
    %v3461 = vpack.c.b16 %v3438, %v3437
    %v3462 = vpack.c.b16 %v3440, %v3439
    %v3463 = vpack.c.b16 %v3442, %v3441
    %v3464 = vpack.c.b16 %v3444, %v3443
    %v3465 = vpack.c.b16 %v3446, %v3445
    %v3466 = vpack.c.b16 %v3448, %v3447
    %v3467 = vpack.c.b16 %v3450, %v3449
    %v3468 = vpack.c.b16 %v3452, %v3451
    %3485 = vmatpush.bf16.msra.mxu0 %v3460
    %3486 = vmatpush.bf16.msra.mxu0 %v3459
    %3487 = vmatpush.bf16.msra.mxu0 %v3458
    %3488 = vmatpush.bf16.msra.mxu0 %v3457
    %3489 = vmatpush.bf16.msra.mxu0 %v3456
    %3490 = vmatpush.bf16.msra.mxu0 %v3455
    %3491 = vmatpush.bf16.msra.mxu0 %v3454
    %3492 = vmatpush.bf16.msra.mxu0 %v3453
    %3493 = vmatmul.bf16.gmra.mxu0 %v3385
    %v3494 = vpop.f32.mrf.mxu0
    %v3495 = vadd.f32 %v3380, %v3494
    %v3496 = vpop.f32.mrf.mxu0
    %3497 = vdwg.mxu0
    %3498 = vmatpush.bf16.msra.mxu0 %v3468
    %3499 = vmatpush.bf16.msra.mxu0 %v3467
    %3500 = vmatpush.bf16.msra.mxu0 %v3466
    %3501 = vmatpush.bf16.msra.mxu0 %v3465
    %3502 = vmatpush.bf16.msra.mxu0 %v3464
    %3503 = vmatpush.bf16.msra.mxu0 %v3463
    %3504 = vmatpush.bf16.msra.mxu0 %v3462
    %3505 = vmatpush.bf16.msra.mxu0 %v3461
    %3506 = vmatmul.bf16.gmra.mxu0 %v3386
    %v3507 = vpop.f32.mrf.mxu0
    %v3508 = vadd.f32 %v3495, %v3507
    %v3509 = vpop.f32.mrf.mxu0
    %3510 = vdwg.mxu0
    %v3511 = vmax.f32 %v3508, 0.0
    %s3512 = scalar_lea.vmem [#allocation4], 24
    %3513 = vst.msk [vmem:[%s3512] sm:$0x1f] %vm3002, %v3511
    %s3514 = scalar_lea.vmem [#allocation3], 32
    %v3515 = vld [vmem:[%s3514] sm:$0x77]
    %v3516 = vld [vmem:[%s3] sm:$0xf]
    %v3517 = vld [vmem:[%s3 + $0x4] sm:$0xf]
    %v3518 = vld [vmem:[%s3 + $0x8] sm:$0xf]
    %v3519 = vld [vmem:[%s3 + $0xc] sm:$0xf]
    %v3520 = vld [vmem:[%s3 + $0x10] sm:$0xf]
    %v3521 = vld [vmem:[%s3 + $0x14] sm:$0xf]
    %v3522 = vld [vmem:[%s3 + $0x18] sm:$0xf]
    %v3523 = vld [vmem:[%s3 + $0x1c] sm:$0xf]
    %v3524 = vld [vmem:[%s3 + $0x20] sm:$0xf]
    %v3525 = vld [vmem:[%s3 + $0x24] sm:$0xf]
    %v3526 = vld [vmem:[%s3 + $0x28] sm:$0xf]
    %v3527 = vld [vmem:[%s3 + $0x2c] sm:$0xf]
    %v3528 = vld [vmem:[%s3 + $0x30] sm:$0xf]
    %v3529 = vld [vmem:[%s3 + $0x34] sm:$0xf]
    %v3530 = vld [vmem:[%s3 + $0x38] sm:$0xf]
    %v3531 = vld [vmem:[%s3 + $0x3c] sm:$0xf]
    %v3532 = vld [vmem:[%s3 + $0x40] sm:$0xf]
    %v3533 = vld [vmem:[%s3 + $0x44] sm:$0xf]
    %v3534 = vld [vmem:[%s3 + $0x48] sm:$0xf]
    %v3535 = vld [vmem:[%s3 + $0x4c] sm:$0xf]
    %v3536 = vld [vmem:[%s3 + $0x50] sm:$0xf]
    %v3537 = vld [vmem:[%s3 + $0x54] sm:$0xf]
    %v3538 = vld [vmem:[%s3 + $0x58] sm:$0xf]
    %v3539 = vld [vmem:[%s3 + $0x5c] sm:$0xf]
    %v3540 = vld [vmem:[%s3 + $0x60] sm:$0xf]
    %v3541 = vld [vmem:[%s3 + $0x64] sm:$0xf]
    %v3542 = vld [vmem:[%s3 + $0x68] sm:$0xf]
    %v3543 = vld [vmem:[%s3 + $0x6c] sm:$0xf]
    %v3544 = vld [vmem:[%s3 + $0x70] sm:$0xf]
    %v3545 = vld [vmem:[%s3 + $0x74] sm:$0xf]
    %v3546 = vld [vmem:[%s3 + $0x78] sm:$0xf]
    %v3547 = vld [vmem:[%s3 + $0x7c] sm:$0xf]
    %v3548 = vld [vmem:[%s4] sm:$0x1]
    %v3550 = vperm.slane %v3548, 0
    %v3553 = vunpack.c.l.b16 %v3515
    %v3554 = vunpack.c.h.b16 %v3515
    %v3555 = vpack.c.b16 %v3553, %v3553
    %v3556 = vpack.c.b16 %v3554, %v3554
    %v3591 = vunpack.c.l.b16 %v3516
    %v3592 = vunpack.c.l.b16 %v3517
    %v3593 = vunpack.c.l.b16 %v3518
    %v3594 = vunpack.c.l.b16 %v3519
    %v3595 = vunpack.c.l.b16 %v3520
    %v3596 = vunpack.c.l.b16 %v3521
    %v3597 = vunpack.c.l.b16 %v3522
    %v3598 = vunpack.c.l.b16 %v3523
    %v3599 = vunpack.c.l.b16 %v3524
    %v3600 = vunpack.c.l.b16 %v3525
    %v3601 = vunpack.c.l.b16 %v3526
    %v3602 = vunpack.c.l.b16 %v3527
    %v3603 = vunpack.c.l.b16 %v3528
    %v3604 = vunpack.c.l.b16 %v3529
    %v3605 = vunpack.c.l.b16 %v3530
    %v3606 = vunpack.c.l.b16 %v3531
    %v3607 = vunpack.c.l.b16 %v3532
    %v3608 = vunpack.c.l.b16 %v3533
    %v3609 = vunpack.c.l.b16 %v3534
    %v3610 = vunpack.c.l.b16 %v3535
    %v3611 = vunpack.c.l.b16 %v3536
    %v3612 = vunpack.c.l.b16 %v3537
    %v3613 = vunpack.c.l.b16 %v3538
    %v3614 = vunpack.c.l.b16 %v3539
    %v3615 = vunpack.c.l.b16 %v3540
    %v3616 = vunpack.c.l.b16 %v3541
    %v3617 = vunpack.c.l.b16 %v3542
    %v3618 = vunpack.c.l.b16 %v3543
    %v3619 = vunpack.c.l.b16 %v3544
    %v3620 = vunpack.c.l.b16 %v3545
    %v3621 = vunpack.c.l.b16 %v3546
    %v3622 = vunpack.c.l.b16 %v3547
    %v3623 = vpack.c.b16 %v3592, %v3591
    %v3624 = vpack.c.b16 %v3594, %v3593
    %v3625 = vpack.c.b16 %v3596, %v3595
    %v3626 = vpack.c.b16 %v3598, %v3597
    %v3627 = vpack.c.b16 %v3600, %v3599
    %v3628 = vpack.c.b16 %v3602, %v3601
    %v3629 = vpack.c.b16 %v3604, %v3603
    %v3630 = vpack.c.b16 %v3606, %v3605
    %v3631 = vpack.c.b16 %v3608, %v3607
    %v3632 = vpack.c.b16 %v3610, %v3609
    %v3633 = vpack.c.b16 %v3612, %v3611
    %v3634 = vpack.c.b16 %v3614, %v3613
    %v3635 = vpack.c.b16 %v3616, %v3615
    %v3636 = vpack.c.b16 %v3618, %v3617
    %v3637 = vpack.c.b16 %v3620, %v3619
    %v3638 = vpack.c.b16 %v3622, %v3621
    %3655 = vmatpush.bf16.msra.mxu0 %v3630
    %3656 = vmatpush.bf16.msra.mxu0 %v3629
    %3657 = vmatpush.bf16.msra.mxu0 %v3628
    %3658 = vmatpush.bf16.msra.mxu0 %v3627
    %3659 = vmatpush.bf16.msra.mxu0 %v3626
    %3660 = vmatpush.bf16.msra.mxu0 %v3625
    %3661 = vmatpush.bf16.msra.mxu0 %v3624
    %3662 = vmatpush.bf16.msra.mxu0 %v3623
    %3663 = vmatmul.bf16.gmra.mxu0 %v3555
    %v3664 = vpop.f32.mrf.mxu0
    %v3665 = vadd.f32 %v3550, %v3664
    %v3666 = vpop.f32.mrf.mxu0
    %3667 = vdwg.mxu0
    %3668 = vmatpush.bf16.msra.mxu0 %v3638
    %3669 = vmatpush.bf16.msra.mxu0 %v3637
    %3670 = vmatpush.bf16.msra.mxu0 %v3636
    %3671 = vmatpush.bf16.msra.mxu0 %v3635
    %3672 = vmatpush.bf16.msra.mxu0 %v3634
    %3673 = vmatpush.bf16.msra.mxu0 %v3633
    %3674 = vmatpush.bf16.msra.mxu0 %v3632
    %3675 = vmatpush.bf16.msra.mxu0 %v3631
    %3676 = vmatmul.bf16.gmra.mxu0 %v3556
    %v3677 = vpop.f32.mrf.mxu0
    %v3678 = vadd.f32 %v3665, %v3677
    %v3679 = vpop.f32.mrf.mxu0
    %3680 = vdwg.mxu0
    %v3681 = vmax.f32 %v3678, 0.0
    %s3682 = scalar_lea.vmem [#allocation4], 32
    %3683 = vst.msk [vmem:[%s3682] sm:$0x1f] %vm3002, %v3681
    %s3684 = scalar_lea.vmem [#allocation3], 40
    %v3685 = vld [vmem:[%s3684] sm:$0x77]
    %v3686 = vld [vmem:[%s3] sm:$0xf]
    %v3687 = vld [vmem:[%s3 + $0x4] sm:$0xf]
    %v3688 = vld [vmem:[%s3 + $0x8] sm:$0xf]
    %v3689 = vld [vmem:[%s3 + $0xc] sm:$0xf]
    %v3690 = vld [vmem:[%s3 + $0x10] sm:$0xf]
    %v3691 = vld [vmem:[%s3 + $0x14] sm:$0xf]
    %v3692 = vld [vmem:[%s3 + $0x18] sm:$0xf]
    %v3693 = vld [vmem:[%s3 + $0x1c] sm:$0xf]
    %v3694 = vld [vmem:[%s3 + $0x20] sm:$0xf]
    %v3695 = vld [vmem:[%s3 + $0x24] sm:$0xf]
    %v3696 = vld [vmem:[%s3 + $0x28] sm:$0xf]
    %v3697 = vld [vmem:[%s3 + $0x2c] sm:$0xf]
    %v3698 = vld [vmem:[%s3 + $0x30] sm:$0xf]
    %v3699 = vld [vmem:[%s3 + $0x34] sm:$0xf]
    %v3700 = vld [vmem:[%s3 + $0x38] sm:$0xf]
    %v3701 = vld [vmem:[%s3 + $0x3c] sm:$0xf]
    %v3702 = vld [vmem:[%s3 + $0x40] sm:$0xf]
    %v3703 = vld [vmem:[%s3 + $0x44] sm:$0xf]
    %v3704 = vld [vmem:[%s3 + $0x48] sm:$0xf]
    %v3705 = vld [vmem:[%s3 + $0x4c] sm:$0xf]
    %v3706 = vld [vmem:[%s3 + $0x50] sm:$0xf]
    %v3707 = vld [vmem:[%s3 + $0x54] sm:$0xf]
    %v3708 = vld [vmem:[%s3 + $0x58] sm:$0xf]
    %v3709 = vld [vmem:[%s3 + $0x5c] sm:$0xf]
    %v3710 = vld [vmem:[%s3 + $0x60] sm:$0xf]
    %v3711 = vld [vmem:[%s3 + $0x64] sm:$0xf]
    %v3712 = vld [vmem:[%s3 + $0x68] sm:$0xf]
    %v3713 = vld [vmem:[%s3 + $0x6c] sm:$0xf]
    %v3714 = vld [vmem:[%s3 + $0x70] sm:$0xf]
    %v3715 = vld [vmem:[%s3 + $0x74] sm:$0xf]
    %v3716 = vld [vmem:[%s3 + $0x78] sm:$0xf]
    %v3717 = vld [vmem:[%s3 + $0x7c] sm:$0xf]
    %v3718 = vld [vmem:[%s4] sm:$0x1]
    %v3720 = vperm.slane %v3718, 0
    %v3723 = vunpack.c.l.b16 %v3685
    %v3724 = vunpack.c.h.b16 %v3685
    %v3725 = vpack.c.b16 %v3723, %v3723
    %v3726 = vpack.c.b16 %v3724, %v3724
    %v3761 = vunpack.c.l.b16 %v3686
    %v3762 = vunpack.c.l.b16 %v3687
    %v3763 = vunpack.c.l.b16 %v3688
    %v3764 = vunpack.c.l.b16 %v3689
    %v3765 = vunpack.c.l.b16 %v3690
    %v3766 = vunpack.c.l.b16 %v3691
    %v3767 = vunpack.c.l.b16 %v3692
    %v3768 = vunpack.c.l.b16 %v3693
    %v3769 = vunpack.c.l.b16 %v3694
    %v3770 = vunpack.c.l.b16 %v3695
    %v3771 = vunpack.c.l.b16 %v3696
    %v3772 = vunpack.c.l.b16 %v3697
    %v3773 = vunpack.c.l.b16 %v3698
    %v3774 = vunpack.c.l.b16 %v3699
    %v3775 = vunpack.c.l.b16 %v3700
    %v3776 = vunpack.c.l.b16 %v3701
    %v3777 = vunpack.c.l.b16 %v3702
    %v3778 = vunpack.c.l.b16 %v3703
    %v3779 = vunpack.c.l.b16 %v3704
    %v3780 = vunpack.c.l.b16 %v3705
    %v3781 = vunpack.c.l.b16 %v3706
    %v3782 = vunpack.c.l.b16 %v3707
    %v3783 = vunpack.c.l.b16 %v3708
    %v3784 = vunpack.c.l.b16 %v3709
    %v3785 = vunpack.c.l.b16 %v3710
    %v3786 = vunpack.c.l.b16 %v3711
    %v3787 = vunpack.c.l.b16 %v3712
    %v3788 = vunpack.c.l.b16 %v3713
    %v3789 = vunpack.c.l.b16 %v3714
    %v3790 = vunpack.c.l.b16 %v3715
    %v3791 = vunpack.c.l.b16 %v3716
    %v3792 = vunpack.c.l.b16 %v3717
    %v3793 = vpack.c.b16 %v3762, %v3761
    %v3794 = vpack.c.b16 %v3764, %v3763
    %v3795 = vpack.c.b16 %v3766, %v3765
    %v3796 = vpack.c.b16 %v3768, %v3767
    %v3797 = vpack.c.b16 %v3770, %v3769
    %v3798 = vpack.c.b16 %v3772, %v3771
    %v3799 = vpack.c.b16 %v3774, %v3773
    %v3800 = vpack.c.b16 %v3776, %v3775
    %v3801 = vpack.c.b16 %v3778, %v3777
    %v3802 = vpack.c.b16 %v3780, %v3779
    %v3803 = vpack.c.b16 %v3782, %v3781
    %v3804 = vpack.c.b16 %v3784, %v3783
    %v3805 = vpack.c.b16 %v3786, %v3785
    %v3806 = vpack.c.b16 %v3788, %v3787
    %v3807 = vpack.c.b16 %v3790, %v3789
    %v3808 = vpack.c.b16 %v3792, %v3791
    %3825 = vmatpush.bf16.msra.mxu0 %v3800
    %3826 = vmatpush.bf16.msra.mxu0 %v3799
    %3827 = vmatpush.bf16.msra.mxu0 %v3798
    %3828 = vmatpush.bf16.msra.mxu0 %v3797
    %3829 = vmatpush.bf16.msra.mxu0 %v3796
    %3830 = vmatpush.bf16.msra.mxu0 %v3795
    %3831 = vmatpush.bf16.msra.mxu0 %v3794
    %3832 = vmatpush.bf16.msra.mxu0 %v3793
    %3833 = vmatmul.bf16.gmra.mxu0 %v3725
    %v3834 = vpop.f32.mrf.mxu0
    %v3835 = vadd.f32 %v3720, %v3834
    %v3836 = vpop.f32.mrf.mxu0
    %3837 = vdwg.mxu0
    %3838 = vmatpush.bf16.msra.mxu0 %v3808
    %3839 = vmatpush.bf16.msra.mxu0 %v3807
    %3840 = vmatpush.bf16.msra.mxu0 %v3806
    %3841 = vmatpush.bf16.msra.mxu0 %v3805
    %3842 = vmatpush.bf16.msra.mxu0 %v3804
    %3843 = vmatpush.bf16.msra.mxu0 %v3803
    %3844 = vmatpush.bf16.msra.mxu0 %v3802
    %3845 = vmatpush.bf16.msra.mxu0 %v3801
    %3846 = vmatmul.bf16.gmra.mxu0 %v3726
    %v3847 = vpop.f32.mrf.mxu0
    %v3848 = vadd.f32 %v3835, %v3847
    %v3849 = vpop.f32.mrf.mxu0
    %3850 = vdwg.mxu0
    %v3851 = vmax.f32 %v3848, 0.0
    %s3852 = scalar_lea.vmem [#allocation4], 40
    %3853 = vst.msk [vmem:[%s3852] sm:$0x1f] %vm3002, %v3851
    %s3854 = scalar_lea.vmem [#allocation3], 48
    %v3855 = vld [vmem:[%s3854] sm:$0x77]
    %v3856 = vld [vmem:[%s3] sm:$0xf]
    %v3857 = vld [vmem:[%s3 + $0x4] sm:$0xf]
    %v3858 = vld [vmem:[%s3 + $0x8] sm:$0xf]
    %v3859 = vld [vmem:[%s3 + $0xc] sm:$0xf]
    %v3860 = vld [vmem:[%s3 + $0x10] sm:$0xf]
    %v3861 = vld [vmem:[%s3 + $0x14] sm:$0xf]
    %v3862 = vld [vmem:[%s3 + $0x18] sm:$0xf]
    %v3863 = vld [vmem:[%s3 + $0x1c] sm:$0xf]
    %v3864 = vld [vmem:[%s3 + $0x20] sm:$0xf]
    %v3865 = vld [vmem:[%s3 + $0x24] sm:$0xf]
    %v3866 = vld [vmem:[%s3 + $0x28] sm:$0xf]
    %v3867 = vld [vmem:[%s3 + $0x2c] sm:$0xf]
    %v3868 = vld [vmem:[%s3 + $0x30] sm:$0xf]
    %v3869 = vld [vmem:[%s3 + $0x34] sm:$0xf]
    %v3870 = vld [vmem:[%s3 + $0x38] sm:$0xf]
    %v3871 = vld [vmem:[%s3 + $0x3c] sm:$0xf]
    %v3872 = vld [vmem:[%s3 + $0x40] sm:$0xf]
    %v3873 = vld [vmem:[%s3 + $0x44] sm:$0xf]
    %v3874 = vld [vmem:[%s3 + $0x48] sm:$0xf]
    %v3875 = vld [vmem:[%s3 + $0x4c] sm:$0xf]
    %v3876 = vld [vmem:[%s3 + $0x50] sm:$0xf]
    %v3877 = vld [vmem:[%s3 + $0x54] sm:$0xf]
    %v3878 = vld [vmem:[%s3 + $0x58] sm:$0xf]
    %v3879 = vld [vmem:[%s3 + $0x5c] sm:$0xf]
    %v3880 = vld [vmem:[%s3 + $0x60] sm:$0xf]
    %v3881 = vld [vmem:[%s3 + $0x64] sm:$0xf]
    %v3882 = vld [vmem:[%s3 + $0x68] sm:$0xf]
    %v3883 = vld [vmem:[%s3 + $0x6c] sm:$0xf]
    %v3884 = vld [vmem:[%s3 + $0x70] sm:$0xf]
    %v3885 = vld [vmem:[%s3 + $0x74] sm:$0xf]
    %v3886 = vld [vmem:[%s3 + $0x78] sm:$0xf]
    %v3887 = vld [vmem:[%s3 + $0x7c] sm:$0xf]
    %v3888 = vld [vmem:[%s4] sm:$0x1]
    %v3890 = vperm.slane %v3888, 0
    %v3893 = vunpack.c.l.b16 %v3855
    %v3894 = vunpack.c.h.b16 %v3855
    %v3895 = vpack.c.b16 %v3893, %v3893
    %v3896 = vpack.c.b16 %v3894, %v3894
    %v3931 = vunpack.c.l.b16 %v3856
    %v3932 = vunpack.c.l.b16 %v3857
    %v3933 = vunpack.c.l.b16 %v3858
    %v3934 = vunpack.c.l.b16 %v3859
    %v3935 = vunpack.c.l.b16 %v3860
    %v3936 = vunpack.c.l.b16 %v3861
    %v3937 = vunpack.c.l.b16 %v3862
    %v3938 = vunpack.c.l.b16 %v3863
    %v3939 = vunpack.c.l.b16 %v3864
    %v3940 = vunpack.c.l.b16 %v3865
    %v3941 = vunpack.c.l.b16 %v3866
    %v3942 = vunpack.c.l.b16 %v3867
    %v3943 = vunpack.c.l.b16 %v3868
    %v3944 = vunpack.c.l.b16 %v3869
    %v3945 = vunpack.c.l.b16 %v3870
    %v3946 = vunpack.c.l.b16 %v3871
    %v3947 = vunpack.c.l.b16 %v3872
    %v3948 = vunpack.c.l.b16 %v3873
    %v3949 = vunpack.c.l.b16 %v3874
    %v3950 = vunpack.c.l.b16 %v3875
    %v3951 = vunpack.c.l.b16 %v3876
    %v3952 = vunpack.c.l.b16 %v3877
    %v3953 = vunpack.c.l.b16 %v3878
    %v3954 = vunpack.c.l.b16 %v3879
    %v3955 = vunpack.c.l.b16 %v3880
    %v3956 = vunpack.c.l.b16 %v3881
    %v3957 = vunpack.c.l.b16 %v3882
    %v3958 = vunpack.c.l.b16 %v3883
    %v3959 = vunpack.c.l.b16 %v3884
    %v3960 = vunpack.c.l.b16 %v3885
    %v3961 = vunpack.c.l.b16 %v3886
    %v3962 = vunpack.c.l.b16 %v3887
    %v3963 = vpack.c.b16 %v3932, %v3931
    %v3964 = vpack.c.b16 %v3934, %v3933
    %v3965 = vpack.c.b16 %v3936, %v3935
    %v3966 = vpack.c.b16 %v3938, %v3937
    %v3967 = vpack.c.b16 %v3940, %v3939
    %v3968 = vpack.c.b16 %v3942, %v3941
    %v3969 = vpack.c.b16 %v3944, %v3943
    %v3970 = vpack.c.b16 %v3946, %v3945
    %v3971 = vpack.c.b16 %v3948, %v3947
    %v3972 = vpack.c.b16 %v3950, %v3949
    %v3973 = vpack.c.b16 %v3952, %v3951
    %v3974 = vpack.c.b16 %v3954, %v3953
    %v3975 = vpack.c.b16 %v3956, %v3955
    %v3976 = vpack.c.b16 %v3958, %v3957
    %v3977 = vpack.c.b16 %v3960, %v3959
    %v3978 = vpack.c.b16 %v3962, %v3961
    %3995 = vmatpush.bf16.msra.mxu0 %v3970
    %3996 = vmatpush.bf16.msra.mxu0 %v3969
    %3997 = vmatpush.bf16.msra.mxu0 %v3968
    %3998 = vmatpush.bf16.msra.mxu0 %v3967
    %3999 = vmatpush.bf16.msra.mxu0 %v3966
    %4000 = vmatpush.bf16.msra.mxu0 %v3965
    %4001 = vmatpush.bf16.msra.mxu0 %v3964
    %4002 = vmatpush.bf16.msra.mxu0 %v3963
    %4003 = vmatmul.bf16.gmra.mxu0 %v3895
    %v4004 = vpop.f32.mrf.mxu0
    %v4005 = vadd.f32 %v3890, %v4004
    %v4006 = vpop.f32.mrf.mxu0
    %4007 = vdwg.mxu0
    %4008 = vmatpush.bf16.msra.mxu0 %v3978
    %4009 = vmatpush.bf16.msra.mxu0 %v3977
    %4010 = vmatpush.bf16.msra.mxu0 %v3976
    %4011 = vmatpush.bf16.msra.mxu0 %v3975
    %4012 = vmatpush.bf16.msra.mxu0 %v3974
    %4013 = vmatpush.bf16.msra.mxu0 %v3973
    %4014 = vmatpush.bf16.msra.mxu0 %v3972
    %4015 = vmatpush.bf16.msra.mxu0 %v3971
    %4016 = vmatmul.bf16.gmra.mxu0 %v3896
    %v4017 = vpop.f32.mrf.mxu0
    %v4018 = vadd.f32 %v4005, %v4017
    %v4019 = vpop.f32.mrf.mxu0
    %4020 = vdwg.mxu0
    %v4021 = vmax.f32 %v4018, 0.0
    %s4022 = scalar_lea.vmem [#allocation4], 48
    %4023 = vst.msk [vmem:[%s4022] sm:$0x1f] %vm3002, %v4021
    %s4024 = scalar_lea.vmem [#allocation3], 56
    %v4025 = vld [vmem:[%s4024] sm:$0x77]
    %v4026 = vld [vmem:[%s3] sm:$0xf]
    %v4027 = vld [vmem:[%s3 + $0x4] sm:$0xf]
    %v4028 = vld [vmem:[%s3 + $0x8] sm:$0xf]
    %v4029 = vld [vmem:[%s3 + $0xc] sm:$0xf]
    %v4030 = vld [vmem:[%s3 + $0x10] sm:$0xf]
    %v4031 = vld [vmem:[%s3 + $0x14] sm:$0xf]
    %v4032 = vld [vmem:[%s3 + $0x18] sm:$0xf]
    %v4033 = vld [vmem:[%s3 + $0x1c] sm:$0xf]
    %v4034 = vld [vmem:[%s3 + $0x20] sm:$0xf]
    %v4035 = vld [vmem:[%s3 + $0x24] sm:$0xf]
    %v4036 = vld [vmem:[%s3 + $0x28] sm:$0xf]
    %v4037 = vld [vmem:[%s3 + $0x2c] sm:$0xf]
    %v4038 = vld [vmem:[%s3 + $0x30] sm:$0xf]
    %v4039 = vld [vmem:[%s3 + $0x34] sm:$0xf]
    %v4040 = vld [vmem:[%s3 + $0x38] sm:$0xf]
    %v4041 = vld [vmem:[%s3 + $0x3c] sm:$0xf]
    %v4042 = vld [vmem:[%s3 + $0x40] sm:$0xf]
    %v4043 = vld [vmem:[%s3 + $0x44] sm:$0xf]
    %v4044 = vld [vmem:[%s3 + $0x48] sm:$0xf]
    %v4045 = vld [vmem:[%s3 + $0x4c] sm:$0xf]
    %v4046 = vld [vmem:[%s3 + $0x50] sm:$0xf]
    %v4047 = vld [vmem:[%s3 + $0x54] sm:$0xf]
    %v4048 = vld [vmem:[%s3 + $0x58] sm:$0xf]
    %v4049 = vld [vmem:[%s3 + $0x5c] sm:$0xf]
    %v4050 = vld [vmem:[%s3 + $0x60] sm:$0xf]
    %v4051 = vld [vmem:[%s3 + $0x64] sm:$0xf]
    %v4052 = vld [vmem:[%s3 + $0x68] sm:$0xf]
    %v4053 = vld [vmem:[%s3 + $0x6c] sm:$0xf]
    %v4054 = vld [vmem:[%s3 + $0x70] sm:$0xf]
    %v4055 = vld [vmem:[%s3 + $0x74] sm:$0xf]
    %v4056 = vld [vmem:[%s3 + $0x78] sm:$0xf]
    %v4057 = vld [vmem:[%s3 + $0x7c] sm:$0xf]
    %v4058 = vld [vmem:[%s4] sm:$0x1]
    %v4060 = vperm.slane %v4058, 0
    %v4063 = vunpack.c.l.b16 %v4025
    %v4064 = vunpack.c.h.b16 %v4025
    %v4065 = vpack.c.b16 %v4063, %v4063
    %v4066 = vpack.c.b16 %v4064, %v4064
    %v4101 = vunpack.c.l.b16 %v4026
    %v4102 = vunpack.c.l.b16 %v4027
    %v4103 = vunpack.c.l.b16 %v4028
    %v4104 = vunpack.c.l.b16 %v4029
    %v4105 = vunpack.c.l.b16 %v4030
    %v4106 = vunpack.c.l.b16 %v4031
    %v4107 = vunpack.c.l.b16 %v4032
    %v4108 = vunpack.c.l.b16 %v4033
    %v4109 = vunpack.c.l.b16 %v4034
    %v4110 = vunpack.c.l.b16 %v4035
    %v4111 = vunpack.c.l.b16 %v4036
    %v4112 = vunpack.c.l.b16 %v4037
    %v4113 = vunpack.c.l.b16 %v4038
    %v4114 = vunpack.c.l.b16 %v4039
    %v4115 = vunpack.c.l.b16 %v4040
    %v4116 = vunpack.c.l.b16 %v4041
    %v4117 = vunpack.c.l.b16 %v4042
    %v4118 = vunpack.c.l.b16 %v4043
    %v4119 = vunpack.c.l.b16 %v4044
    %v4120 = vunpack.c.l.b16 %v4045
    %v4121 = vunpack.c.l.b16 %v4046
    %v4122 = vunpack.c.l.b16 %v4047
    %v4123 = vunpack.c.l.b16 %v4048
    %v4124 = vunpack.c.l.b16 %v4049
    %v4125 = vunpack.c.l.b16 %v4050
    %v4126 = vunpack.c.l.b16 %v4051
    %v4127 = vunpack.c.l.b16 %v4052
    %v4128 = vunpack.c.l.b16 %v4053
    %v4129 = vunpack.c.l.b16 %v4054
    %v4130 = vunpack.c.l.b16 %v4055
    %v4131 = vunpack.c.l.b16 %v4056
    %v4132 = vunpack.c.l.b16 %v4057
    %v4133 = vpack.c.b16 %v4102, %v4101
    %v4134 = vpack.c.b16 %v4104, %v4103
    %v4135 = vpack.c.b16 %v4106, %v4105
    %v4136 = vpack.c.b16 %v4108, %v4107
    %v4137 = vpack.c.b16 %v4110, %v4109
    %v4138 = vpack.c.b16 %v4112, %v4111
    %v4139 = vpack.c.b16 %v4114, %v4113
    %v4140 = vpack.c.b16 %v4116, %v4115
    %v4141 = vpack.c.b16 %v4118, %v4117
    %v4142 = vpack.c.b16 %v4120, %v4119
    %v4143 = vpack.c.b16 %v4122, %v4121
    %v4144 = vpack.c.b16 %v4124, %v4123
    %v4145 = vpack.c.b16 %v4126, %v4125
    %v4146 = vpack.c.b16 %v4128, %v4127
    %v4147 = vpack.c.b16 %v4130, %v4129
    %v4148 = vpack.c.b16 %v4132, %v4131
    %4165 = vmatpush.bf16.msra.mxu0 %v4140
    %4166 = vmatpush.bf16.msra.mxu0 %v4139
    %4167 = vmatpush.bf16.msra.mxu0 %v4138
    %4168 = vmatpush.bf16.msra.mxu0 %v4137
    %4169 = vmatpush.bf16.msra.mxu0 %v4136
    %4170 = vmatpush.bf16.msra.mxu0 %v4135
    %4171 = vmatpush.bf16.msra.mxu0 %v4134
    %4172 = vmatpush.bf16.msra.mxu0 %v4133
    %4173 = vmatmul.bf16.gmra.mxu0 %v4065
    %v4174 = vpop.f32.mrf.mxu0
    %v4175 = vadd.f32 %v4060, %v4174
    %v4176 = vpop.f32.mrf.mxu0
    %4177 = vdwg.mxu0
    %4178 = vmatpush.bf16.msra.mxu0 %v4148
    %4179 = vmatpush.bf16.msra.mxu0 %v4147
    %4180 = vmatpush.bf16.msra.mxu0 %v4146
    %4181 = vmatpush.bf16.msra.mxu0 %v4145
    %4182 = vmatpush.bf16.msra.mxu0 %v4144
    %4183 = vmatpush.bf16.msra.mxu0 %v4143
    %4184 = vmatpush.bf16.msra.mxu0 %v4142
    %4185 = vmatpush.bf16.msra.mxu0 %v4141
    %4186 = vmatmul.bf16.gmra.mxu0 %v4066
    %v4187 = vpop.f32.mrf.mxu0
    %v4188 = vadd.f32 %v4175, %v4187
    %v4189 = vpop.f32.mrf.mxu0
    %4190 = vdwg.mxu0
    %v4191 = vmax.f32 %v4188, 0.0
    %s4192 = scalar_lea.vmem [#allocation4], 56
    %4193 = vst.msk [vmem:[%s4192] sm:$0x1f] %vm3002, %v4191
    %s4194 = scalar_lea.vmem [#allocation3], 64
    %v4195 = vld [vmem:[%s4194] sm:$0x77]
    %v4196 = vld [vmem:[%s3] sm:$0xf]
    %v4197 = vld [vmem:[%s3 + $0x4] sm:$0xf]
    %v4198 = vld [vmem:[%s3 + $0x8] sm:$0xf]
    %v4199 = vld [vmem:[%s3 + $0xc] sm:$0xf]
    %v4200 = vld [vmem:[%s3 + $0x10] sm:$0xf]
    %v4201 = vld [vmem:[%s3 + $0x14] sm:$0xf]
    %v4202 = vld [vmem:[%s3 + $0x18] sm:$0xf]
    %v4203 = vld [vmem:[%s3 + $0x1c] sm:$0xf]
    %v4204 = vld [vmem:[%s3 + $0x20] sm:$0xf]
    %v4205 = vld [vmem:[%s3 + $0x24] sm:$0xf]
    %v4206 = vld [vmem:[%s3 + $0x28] sm:$0xf]
    %v4207 = vld [vmem:[%s3 + $0x2c] sm:$0xf]
    %v4208 = vld [vmem:[%s3 + $0x30] sm:$0xf]
    %v4209 = vld [vmem:[%s3 + $0x34] sm:$0xf]
    %v4210 = vld [vmem:[%s3 + $0x38] sm:$0xf]
    %v4211 = vld [vmem:[%s3 + $0x3c] sm:$0xf]
    %v4212 = vld [vmem:[%s3 + $0x40] sm:$0xf]
    %v4213 = vld [vmem:[%s3 + $0x44] sm:$0xf]
    %v4214 = vld [vmem:[%s3 + $0x48] sm:$0xf]
    %v4215 = vld [vmem:[%s3 + $0x4c] sm:$0xf]
    %v4216 = vld [vmem:[%s3 + $0x50] sm:$0xf]
    %v4217 = vld [vmem:[%s3 + $0x54] sm:$0xf]
    %v4218 = vld [vmem:[%s3 + $0x58] sm:$0xf]
    %v4219 = vld [vmem:[%s3 + $0x5c] sm:$0xf]
    %v4220 = vld [vmem:[%s3 + $0x60] sm:$0xf]
    %v4221 = vld [vmem:[%s3 + $0x64] sm:$0xf]
    %v4222 = vld [vmem:[%s3 + $0x68] sm:$0xf]
    %v4223 = vld [vmem:[%s3 + $0x6c] sm:$0xf]
    %v4224 = vld [vmem:[%s3 + $0x70] sm:$0xf]
    %v4225 = vld [vmem:[%s3 + $0x74] sm:$0xf]
    %v4226 = vld [vmem:[%s3 + $0x78] sm:$0xf]
    %v4227 = vld [vmem:[%s3 + $0x7c] sm:$0xf]
    %v4228 = vld [vmem:[%s4] sm:$0x1]
    %v4230 = vperm.slane %v4228, 0
    %v4233 = vunpack.c.l.b16 %v4195
    %v4234 = vunpack.c.h.b16 %v4195
    %v4235 = vpack.c.b16 %v4233, %v4233
    %v4236 = vpack.c.b16 %v4234, %v4234
    %v4271 = vunpack.c.l.b16 %v4196
    %v4272 = vunpack.c.l.b16 %v4197
    %v4273 = vunpack.c.l.b16 %v4198
    %v4274 = vunpack.c.l.b16 %v4199
    %v4275 = vunpack.c.l.b16 %v4200
    %v4276 = vunpack.c.l.b16 %v4201
    %v4277 = vunpack.c.l.b16 %v4202
    %v4278 = vunpack.c.l.b16 %v4203
    %v4279 = vunpack.c.l.b16 %v4204
    %v4280 = vunpack.c.l.b16 %v4205
    %v4281 = vunpack.c.l.b16 %v4206
    %v4282 = vunpack.c.l.b16 %v4207
    %v4283 = vunpack.c.l.b16 %v4208
    %v4284 = vunpack.c.l.b16 %v4209
    %v4285 = vunpack.c.l.b16 %v4210
    %v4286 = vunpack.c.l.b16 %v4211
    %v4287 = vunpack.c.l.b16 %v4212
    %v4288 = vunpack.c.l.b16 %v4213
    %v4289 = vunpack.c.l.b16 %v4214
    %v4290 = vunpack.c.l.b16 %v4215
    %v4291 = vunpack.c.l.b16 %v4216
    %v4292 = vunpack.c.l.b16 %v4217
    %v4293 = vunpack.c.l.b16 %v4218
    %v4294 = vunpack.c.l.b16 %v4219
    %v4295 = vunpack.c.l.b16 %v4220
    %v4296 = vunpack.c.l.b16 %v4221
    %v4297 = vunpack.c.l.b16 %v4222
    %v4298 = vunpack.c.l.b16 %v4223
    %v4299 = vunpack.c.l.b16 %v4224
    %v4300 = vunpack.c.l.b16 %v4225
    %v4301 = vunpack.c.l.b16 %v4226
    %v4302 = vunpack.c.l.b16 %v4227
    %v4303 = vpack.c.b16 %v4272, %v4271
    %v4304 = vpack.c.b16 %v4274, %v4273
    %v4305 = vpack.c.b16 %v4276, %v4275
    %v4306 = vpack.c.b16 %v4278, %v4277
    %v4307 = vpack.c.b16 %v4280, %v4279
    %v4308 = vpack.c.b16 %v4282, %v4281
    %v4309 = vpack.c.b16 %v4284, %v4283
    %v4310 = vpack.c.b16 %v4286, %v4285
    %v4311 = vpack.c.b16 %v4288, %v4287
    %v4312 = vpack.c.b16 %v4290, %v4289
    %v4313 = vpack.c.b16 %v4292, %v4291
    %v4314 = vpack.c.b16 %v4294, %v4293
    %v4315 = vpack.c.b16 %v4296, %v4295
    %v4316 = vpack.c.b16 %v4298, %v4297
    %v4317 = vpack.c.b16 %v4300, %v4299
    %v4318 = vpack.c.b16 %v4302, %v4301
    %4335 = vmatpush.bf16.msra.mxu0 %v4310
    %4336 = vmatpush.bf16.msra.mxu0 %v4309
    %4337 = vmatpush.bf16.msra.mxu0 %v4308
    %4338 = vmatpush.bf16.msra.mxu0 %v4307
    %4339 = vmatpush.bf16.msra.mxu0 %v4306
    %4340 = vmatpush.bf16.msra.mxu0 %v4305
    %4341 = vmatpush.bf16.msra.mxu0 %v4304
    %4342 = vmatpush.bf16.msra.mxu0 %v4303
    %4343 = vmatmul.bf16.gmra.mxu0 %v4235
    %v4344 = vpop.f32.mrf.mxu0
    %v4345 = vadd.f32 %v4230, %v4344
    %v4346 = vpop.f32.mrf.mxu0
    %4347 = vdwg.mxu0
    %4348 = vmatpush.bf16.msra.mxu0 %v4318
    %4349 = vmatpush.bf16.msra.mxu0 %v4317
    %4350 = vmatpush.bf16.msra.mxu0 %v4316
    %4351 = vmatpush.bf16.msra.mxu0 %v4315
    %4352 = vmatpush.bf16.msra.mxu0 %v4314
    %4353 = vmatpush.bf16.msra.mxu0 %v4313
    %4354 = vmatpush.bf16.msra.mxu0 %v4312
    %4355 = vmatpush.bf16.msra.mxu0 %v4311
    %4356 = vmatmul.bf16.gmra.mxu0 %v4236
    %v4357 = vpop.f32.mrf.mxu0
    %v4358 = vadd.f32 %v4345, %v4357
    %v4359 = vpop.f32.mrf.mxu0
    %4360 = vdwg.mxu0
    %v4361 = vmax.f32 %v4358, 0.0
    %s4362 = scalar_lea.vmem [#allocation4], 64
    %4363 = vst.msk [vmem:[%s4362] sm:$0x1f] %vm3002, %v4361
    %s4364 = scalar_lea.vmem [#allocation3], 72
    %v4365 = vld [vmem:[%s4364] sm:$0x77]
    %v4366 = vld [vmem:[%s3] sm:$0xf]
    %v4367 = vld [vmem:[%s3 + $0x4] sm:$0xf]
    %v4368 = vld [vmem:[%s3 + $0x8] sm:$0xf]
    %v4369 = vld [vmem:[%s3 + $0xc] sm:$0xf]
    %v4370 = vld [vmem:[%s3 + $0x10] sm:$0xf]
    %v4371 = vld [vmem:[%s3 + $0x14] sm:$0xf]
    %v4372 = vld [vmem:[%s3 + $0x18] sm:$0xf]
    %v4373 = vld [vmem:[%s3 + $0x1c] sm:$0xf]
    %v4374 = vld [vmem:[%s3 + $0x20] sm:$0xf]
    %v4375 = vld [vmem:[%s3 + $0x24] sm:$0xf]
    %v4376 = vld [vmem:[%s3 + $0x28] sm:$0xf]
    %v4377 = vld [vmem:[%s3 + $0x2c] sm:$0xf]
    %v4378 = vld [vmem:[%s3 + $0x30] sm:$0xf]
    %v4379 = vld [vmem:[%s3 + $0x34] sm:$0xf]
    %v4380 = vld [vmem:[%s3 + $0x38] sm:$0xf]
    %v4381 = vld [vmem:[%s3 + $0x3c] sm:$0xf]
    %v4382 = vld [vmem:[%s3 + $0x40] sm:$0xf]
    %v4383 = vld [vmem:[%s3 + $0x44] sm:$0xf]
    %v4384 = vld [vmem:[%s3 + $0x48] sm:$0xf]
    %v4385 = vld [vmem:[%s3 + $0x4c] sm:$0xf]
    %v4386 = vld [vmem:[%s3 + $0x50] sm:$0xf]
    %v4387 = vld [vmem:[%s3 + $0x54] sm:$0xf]
    %v4388 = vld [vmem:[%s3 + $0x58] sm:$0xf]
    %v4389 = vld [vmem:[%s3 + $0x5c] sm:$0xf]
    %v4390 = vld [vmem:[%s3 + $0x60] sm:$0xf]
    %v4391 = vld [vmem:[%s3 + $0x64] sm:$0xf]
    %v4392 = vld [vmem:[%s3 + $0x68] sm:$0xf]
    %v4393 = vld [vmem:[%s3 + $0x6c] sm:$0xf]
    %v4394 = vld [vmem:[%s3 + $0x70] sm:$0xf]
    %v4395 = vld [vmem:[%s3 + $0x74] sm:$0xf]
    %v4396 = vld [vmem:[%s3 + $0x78] sm:$0xf]
    %v4397 = vld [vmem:[%s3 + $0x7c] sm:$0xf]
    %v4398 = vld [vmem:[%s4] sm:$0x1]
    %v4400 = vperm.slane %v4398, 0
    %v4403 = vunpack.c.l.b16 %v4365
    %v4404 = vunpack.c.h.b16 %v4365
    %v4405 = vpack.c.b16 %v4403, %v4403
    %v4406 = vpack.c.b16 %v4404, %v4404
    %v4441 = vunpack.c.l.b16 %v4366
    %v4442 = vunpack.c.l.b16 %v4367
    %v4443 = vunpack.c.l.b16 %v4368
    %v4444 = vunpack.c.l.b16 %v4369
    %v4445 = vunpack.c.l.b16 %v4370
    %v4446 = vunpack.c.l.b16 %v4371
    %v4447 = vunpack.c.l.b16 %v4372
    %v4448 = vunpack.c.l.b16 %v4373
    %v4449 = vunpack.c.l.b16 %v4374
    %v4450 = vunpack.c.l.b16 %v4375
    %v4451 = vunpack.c.l.b16 %v4376
    %v4452 = vunpack.c.l.b16 %v4377
    %v4453 = vunpack.c.l.b16 %v4378
    %v4454 = vunpack.c.l.b16 %v4379
    %v4455 = vunpack.c.l.b16 %v4380
    %v4456 = vunpack.c.l.b16 %v4381
    %v4457 = vunpack.c.l.b16 %v4382
    %v4458 = vunpack.c.l.b16 %v4383
    %v4459 = vunpack.c.l.b16 %v4384
    %v4460 = vunpack.c.l.b16 %v4385
    %v4461 = vunpack.c.l.b16 %v4386
    %v4462 = vunpack.c.l.b16 %v4387
    %v4463 = vunpack.c.l.b16 %v4388
    %v4464 = vunpack.c.l.b16 %v4389
    %v4465 = vunpack.c.l.b16 %v4390
    %v4466 = vunpack.c.l.b16 %v4391
    %v4467 = vunpack.c.l.b16 %v4392
    %v4468 = vunpack.c.l.b16 %v4393
    %v4469 = vunpack.c.l.b16 %v4394
    %v4470 = vunpack.c.l.b16 %v4395
    %v4471 = vunpack.c.l.b16 %v4396
    %v4472 = vunpack.c.l.b16 %v4397
    %v4473 = vpack.c.b16 %v4442, %v4441
    %v4474 = vpack.c.b16 %v4444, %v4443
    %v4475 = vpack.c.b16 %v4446, %v4445
    %v4476 = vpack.c.b16 %v4448, %v4447
    %v4477 = vpack.c.b16 %v4450, %v4449
    %v4478 = vpack.c.b16 %v4452, %v4451
    %v4479 = vpack.c.b16 %v4454, %v4453
    %v4480 = vpack.c.b16 %v4456, %v4455
    %v4481 = vpack.c.b16 %v4458, %v4457
    %v4482 = vpack.c.b16 %v4460, %v4459
    %v4483 = vpack.c.b16 %v4462, %v4461
    %v4484 = vpack.c.b16 %v4464, %v4463
    %v4485 = vpack.c.b16 %v4466, %v4465
    %v4486 = vpack.c.b16 %v4468, %v4467
    %v4487 = vpack.c.b16 %v4470, %v4469
    %v4488 = vpack.c.b16 %v4472, %v4471
    %4505 = vmatpush.bf16.msra.mxu0 %v4480
    %4506 = vmatpush.bf16.msra.mxu0 %v4479
    %4507 = vmatpush.bf16.msra.mxu0 %v4478
    %4508 = vmatpush.bf16.msra.mxu0 %v4477
    %4509 = vmatpush.bf16.msra.mxu0 %v4476
    %4510 = vmatpush.bf16.msra.mxu0 %v4475
    %4511 = vmatpush.bf16.msra.mxu0 %v4474
    %4512 = vmatpush.bf16.msra.mxu0 %v4473
    %4513 = vmatmul.bf16.gmra.mxu0 %v4405
    %v4514 = vpop.f32.mrf.mxu0
    %v4515 = vadd.f32 %v4400, %v4514
    %v4516 = vpop.f32.mrf.mxu0
    %4517 = vdwg.mxu0
    %4518 = vmatpush.bf16.msra.mxu0 %v4488
    %4519 = vmatpush.bf16.msra.mxu0 %v4487
    %4520 = vmatpush.bf16.msra.mxu0 %v4486
    %4521 = vmatpush.bf16.msra.mxu0 %v4485
    %4522 = vmatpush.bf16.msra.mxu0 %v4484
    %4523 = vmatpush.bf16.msra.mxu0 %v4483
    %4524 = vmatpush.bf16.msra.mxu0 %v4482
    %4525 = vmatpush.bf16.msra.mxu0 %v4481
    %4526 = vmatmul.bf16.gmra.mxu0 %v4406
    %v4527 = vpop.f32.mrf.mxu0
    %v4528 = vadd.f32 %v4515, %v4527
    %v4529 = vpop.f32.mrf.mxu0
    %4530 = vdwg.mxu0
    %v4531 = vmax.f32 %v4528, 0.0
    %s4532 = scalar_lea.vmem [#allocation4], 72
    %4533 = vst.msk [vmem:[%s4532] sm:$0x1f] %vm3002, %v4531
    %v4534 = vld [vmem:[#allocation4] sm:$0x1]
    %v4535 = vld [vmem:[#allocation4 + $0x28] sm:$0x1]
    %v4536 = vld [vmem:[#allocation4 + $0x1] sm:$0x1]
    %v4537 = vld [vmem:[#allocation4 + $0x29] sm:$0x1]
    %v4538 = vmax.f32 %v4534, %v4536
    %v4539 = vmax.f32 %v4535, %v4537
    %v4540 = vld [vmem:[%s3172] sm:$0x1]
    %v4541 = vld [vmem:[%s3172 + $0x28] sm:$0x1]
    %v4542 = vld [vmem:[%s3172 + $0x1] sm:$0x1]
    %v4543 = vld [vmem:[%s3172 + $0x29] sm:$0x1]
    %v4544 = vmax.f32 %v4540, %v4542
    %v4545 = vmax.f32 %v4541, %v4543
    %v4546 = vmax.f32 %v4538, %v4544
    %v4547 = vmax.f32 %v4539, %v4545
    %v4548 = vpack.c.bf16 %v4546, %v4546
    %v4549 = vpack.c.bf16 %v4547, %v4547
    %v4550 = vld [vmem:[%s5] sm:$0xf]
    %v4551 = vld [vmem:[%s5 + $0x4] sm:$0xf]
    %v4552 = vld [vmem:[%s5 + $0x8] sm:$0xf]
    %v4553 = vld [vmem:[%s5 + $0xc] sm:$0xf]
    %v4554 = vld [vmem:[#allocation4 + $0x2] sm:$0x1]
    %v4555 = vld [vmem:[#allocation4 + $0x2a] sm:$0x1]
    %v4556 = vmax.f32 %v4536, %v4554
    %v4557 = vmax.f32 %v4537, %v4555
    %v4558 = vld [vmem:[%s3172 + $0x2] sm:$0x1]
    %v4559 = vld [vmem:[%s3172 + $0x2a] sm:$0x1]
    %v4560 = vmax.f32 %v4542, %v4558
    %v4561 = vmax.f32 %v4543, %v4559
    %v4562 = vmax.f32 %v4556, %v4560
    %v4563 = vmax.f32 %v4557, %v4561
    %v4564 = vpack.c.bf16 %v4562, %v4562
    %v4565 = vpack.c.bf16 %v4563, %v4563
    %s4566 = scalar_lea.vmem %s5, 16
    %v4567 = vld [vmem:[%s4566] sm:$0xf]
    %v4568 = vld [vmem:[%s4566 + $0x4] sm:$0xf]
    %v4569 = vld [vmem:[%s4566 + $0x8] sm:$0xf]
    %v4570 = vld [vmem:[%s4566 + $0xc] sm:$0xf]
    %v4573 = vunpack.c.l.b16 %v4564
    %v4574 = vunpack.c.l.b16 %v4565
    %v4575 = vrot.slane %v4574, 7
    %vm4576 = vcmask 1041409
    %v4577 = vsel %vm4576, %v4575, %v4573
    %v4578 = vpack.c.b16 %v4577, %v4577
    %v4583 = vunpack.c.l.b16 %v4567
    %v4584 = vunpack.c.l.b16 %v4568
    %v4585 = vunpack.c.l.b16 %v4569
    %v4586 = vunpack.c.l.b16 %v4570
    %v4587 = vpack.c.b16 %v4584, %v4583
    %v4588 = vpack.c.b16 %v4586, %v4585
    %vm4591 = vcmask 261120
    %v4593 = vsel %vm4591, %v4578, 0
    %4595 = vmatpush.bf16.msra.mxu0 0
    %4596 = vmatpush.bf16.msra.mxu0 0
    %4597 = vmatpush.bf16.msra.mxu0 0
    %4598 = vmatpush.bf16.msra.mxu0 0
    %4599 = vmatpush.bf16.msra.mxu0 0
    %4600 = vmatpush.bf16.msra.mxu0 0
    %4601 = vmatpush.bf16.msra.mxu0 %v4588
    %4602 = vmatpush.bf16.msra.mxu0 %v4587
    %4603 = vmatmul.bf16.gmra.mxu0 %v4593
    %v4604 = vpop.f32.mrf.mxu0
    %v4605 = vadd.f32 0.0, %v4604
    %v4606 = vpop.f32.mrf.mxu0
    %4607 = vdwg.mxu0
    %v4610 = vunpack.c.l.b16 %v4548
    %v4611 = vunpack.c.l.b16 %v4549
    %v4612 = vrot.slane %v4611, 7
    %v4613 = vsel %vm4576, %v4612, %v4610
    %v4614 = vpack.c.b16 %v4613, %v4613
    %v4619 = vunpack.c.l.b16 %v4550
    %v4620 = vunpack.c.l.b16 %v4551
    %v4621 = vunpack.c.l.b16 %v4552
    %v4622 = vunpack.c.l.b16 %v4553
    %v4623 = vpack.c.b16 %v4620, %v4619
    %v4624 = vpack.c.b16 %v4622, %v4621
    %v4628 = vsel %vm4591, %v4614, 0
    %4630 = vmatpush.bf16.msra.mxu0 0
    %4631 = vmatpush.bf16.msra.mxu0 0
    %4632 = vmatpush.bf16.msra.mxu0 0
    %4633 = vmatpush.bf16.msra.mxu0 0
    %4634 = vmatpush.bf16.msra.mxu0 0
    %4635 = vmatpush.bf16.msra.mxu0 0
    %4636 = vmatpush.bf16.msra.mxu0 %v4624
    %4637 = vmatpush.bf16.msra.mxu0 %v4623
    %4638 = vmatmul.bf16.gmra.mxu0 %v4628
    %v4639 = vpop.f32.mrf.mxu0
    %v4640 = vadd.f32 %v4605, %v4639
    %v4641 = vpop.f32.mrf.mxu0
    %4642 = vdwg.mxu0
    %v4643 = vld [vmem:[#allocation4 + $0x3] sm:$0x1]
    %v4644 = vld [vmem:[#allocation4 + $0x2b] sm:$0x1]
    %v4645 = vmax.f32 %v4554, %v4643
    %v4646 = vmax.f32 %v4555, %v4644
    %v4647 = vld [vmem:[%s3172 + $0x3] sm:$0x1]
    %v4648 = vld [vmem:[%s3172 + $0x2b] sm:$0x1]
    %v4649 = vmax.f32 %v4558, %v4647
    %v4650 = vmax.f32 %v4559, %v4648
    %v4651 = vmax.f32 %v4645, %v4649
    %v4652 = vmax.f32 %v4646, %v4650
    %v4653 = vpack.c.bf16 %v4651, %v4651
    %v4654 = vpack.c.bf16 %v4652, %v4652
    %s4655 = scalar_lea.vmem %s5, 32
    %v4656 = vld [vmem:[%s4655] sm:$0xf]
    %v4657 = vld [vmem:[%s4655 + $0x4] sm:$0xf]
    %v4658 = vld [vmem:[%s4655 + $0x8] sm:$0xf]
    %v4659 = vld [vmem:[%s4655 + $0xc] sm:$0xf]
    %v4662 = vunpack.c.l.b16 %v4653
    %v4663 = vunpack.c.l.b16 %v4654
    %v4664 = vrot.slane %v4663, 7
    %v4665 = vsel %vm4576, %v4664, %v4662
    %v4666 = vpack.c.b16 %v4665, %v4665
    %v4671 = vunpack.c.l.b16 %v4656
    %v4672 = vunpack.c.l.b16 %v4657
    %v4673 = vunpack.c.l.b16 %v4658
    %v4674 = vunpack.c.l.b16 %v4659
    %v4675 = vpack.c.b16 %v4672, %v4671
    %v4676 = vpack.c.b16 %v4674, %v4673
    %v4680 = vsel %vm4591, %v4666, 0
    %4682 = vmatpush.bf16.msra.mxu0 0
    %4683 = vmatpush.bf16.msra.mxu0 0
    %4684 = vmatpush.bf16.msra.mxu0 0
    %4685 = vmatpush.bf16.msra.mxu0 0
    %4686 = vmatpush.bf16.msra.mxu0 0
    %4687 = vmatpush.bf16.msra.mxu0 0
    %4688 = vmatpush.bf16.msra.mxu0 %v4676
    %4689 = vmatpush.bf16.msra.mxu0 %v4675
    %4690 = vmatmul.bf16.gmra.mxu0 %v4680
    %v4691 = vpop.f32.mrf.mxu0
    %v4692 = vadd.f32 0.0, %v4691
    %v4693 = vpop.f32.mrf.mxu0
    %4694 = vdwg.mxu0
    %v4695 = vadd.f32 %v4640, %v4692
    %v4696 = vld [vmem:[#allocation4 + $0x4] sm:$0x1]
    %v4697 = vld [vmem:[#allocation4 + $0x2c] sm:$0x1]
    %v4698 = vmax.f32 %v4643, %v4696
    %v4699 = vmax.f32 %v4644, %v4697
    %v4700 = vld [vmem:[%s3172 + $0x4] sm:$0x1]
    %v4701 = vld [vmem:[%s3172 + $0x2c] sm:$0x1]
    %v4702 = vmax.f32 %v4647, %v4700
    %v4703 = vmax.f32 %v4648, %v4701
    %v4704 = vmax.f32 %v4698, %v4702
    %v4705 = vmax.f32 %v4699, %v4703
    %v4706 = vpack.c.bf16 %v4704, %v4704
    %v4707 = vpack.c.bf16 %v4705, %v4705
    %s4708 = scalar_lea.vmem %s5, 48
    %v4709 = vld [vmem:[%s4708] sm:$0xf]
    %v4710 = vld [vmem:[%s4708 + $0x4] sm:$0xf]
    %v4711 = vld [vmem:[%s4708 + $0x8] sm:$0xf]
    %v4712 = vld [vmem:[%s4708 + $0xc] sm:$0xf]
    %v4715 = vunpack.c.l.b16 %v4706
    %v4716 = vunpack.c.l.b16 %v4707
    %v4717 = vrot.slane %v4716, 7
    %v4718 = vsel %vm4576, %v4717, %v4715
    %v4719 = vpack.c.b16 %v4718, %v4718
    %v4724 = vunpack.c.l.b16 %v4709
    %v4725 = vunpack.c.l.b16 %v4710
    %v4726 = vunpack.c.l.b16 %v4711
    %v4727 = vunpack.c.l.b16 %v4712
    %v4728 = vpack.c.b16 %v4725, %v4724
    %v4729 = vpack.c.b16 %v4727, %v4726
    %v4733 = vsel %vm4591, %v4719, 0
    %4735 = vmatpush.bf16.msra.mxu0 0
    %4736 = vmatpush.bf16.msra.mxu0 0
    %4737 = vmatpush.bf16.msra.mxu0 0
    %4738 = vmatpush.bf16.msra.mxu0 0
    %4739 = vmatpush.bf16.msra.mxu0 0
    %4740 = vmatpush.bf16.msra.mxu0 0
    %4741 = vmatpush.bf16.msra.mxu0 %v4729
    %4742 = vmatpush.bf16.msra.mxu0 %v4728
    %4743 = vmatmul.bf16.gmra.mxu0 %v4733
    %v4744 = vpop.f32.mrf.mxu0
    %v4745 = vadd.f32 0.0, %v4744
    %v4746 = vpop.f32.mrf.mxu0
    %4747 = vdwg.mxu0
    %v4748 = vadd.f32 %v4695, %v4745
    %v4749 = vld [vmem:[%s3342] sm:$0x1]
    %v4750 = vld [vmem:[%s3342 + $0x28] sm:$0x1]
    %v4751 = vld [vmem:[%s3342 + $0x1] sm:$0x1]
    %v4752 = vld [vmem:[%s3342 + $0x29] sm:$0x1]
    %v4753 = vmax.f32 %v4749, %v4751
    %v4754 = vmax.f32 %v4750, %v4752
    %v4755 = vmax.f32 %v4544, %v4753
    %v4756 = vmax.f32 %v4545, %v4754
    %v4757 = vpack.c.bf16 %v4755, %v4755
    %v4758 = vpack.c.bf16 %v4756, %v4756
    %s4759 = scalar_lea.vmem %s5, 64
    %v4760 = vld [vmem:[%s4759] sm:$0xf]
    %v4761 = vld [vmem:[%s4759 + $0x4] sm:$0xf]
    %v4762 = vld [vmem:[%s4759 + $0x8] sm:$0xf]
    %v4763 = vld [vmem:[%s4759 + $0xc] sm:$0xf]
    %v4766 = vunpack.c.l.b16 %v4757
    %v4767 = vunpack.c.l.b16 %v4758
    %v4768 = vrot.slane %v4767, 7
    %v4769 = vsel %vm4576, %v4768, %v4766
    %v4770 = vpack.c.b16 %v4769, %v4769
    %v4775 = vunpack.c.l.b16 %v4760
    %v4776 = vunpack.c.l.b16 %v4761
    %v4777 = vunpack.c.l.b16 %v4762
    %v4778 = vunpack.c.l.b16 %v4763
    %v4779 = vpack.c.b16 %v4776, %v4775
    %v4780 = vpack.c.b16 %v4778, %v4777
    %v4784 = vsel %vm4591, %v4770, 0
    %4786 = vmatpush.bf16.msra.mxu0 0
    %4787 = vmatpush.bf16.msra.mxu0 0
    %4788 = vmatpush.bf16.msra.mxu0 0
    %4789 = vmatpush.bf16.msra.mxu0 0
    %4790 = vmatpush.bf16.msra.mxu0 0
    %4791 = vmatpush.bf16.msra.mxu0 0
    %4792 = vmatpush.bf16.msra.mxu0 %v4780
    %4793 = vmatpush.bf16.msra.mxu0 %v4779
    %4794 = vmatmul.bf16.gmra.mxu0 %v4784
    %v4795 = vpop.f32.mrf.mxu0
    %v4796 = vadd.f32 0.0, %v4795
    %v4797 = vpop.f32.mrf.mxu0
    %4798 = vdwg.mxu0
    %v4799 = vadd.f32 %v4748, %v4796
    %v4800 = vld [vmem:[%s3342 + $0x2] sm:$0x1]
    %v4801 = vld [vmem:[%s3342 + $0x2a] sm:$0x1]
    %v4802 = vmax.f32 %v4751, %v4800
    %v4803 = vmax.f32 %v4752, %v4801
    %v4804 = vmax.f32 %v4560, %v4802
    %v4805 = vmax.f32 %v4561, %v4803
    %v4806 = vpack.c.bf16 %v4804, %v4804
    %v4807 = vpack.c.bf16 %v4805, %v4805
    %s4808 = scalar_lea.vmem %s5, 80
    %v4809 = vld [vmem:[%s4808] sm:$0xf]
    %v4810 = vld [vmem:[%s4808 + $0x4] sm:$0xf]
    %v4811 = vld [vmem:[%s4808 + $0x8] sm:$0xf]
    %v4812 = vld [vmem:[%s4808 + $0xc] sm:$0xf]
    %v4815 = vunpack.c.l.b16 %v4806
    %v4816 = vunpack.c.l.b16 %v4807
    %v4817 = vrot.slane %v4816, 7
    %v4818 = vsel %vm4576, %v4817, %v4815
    %v4819 = vpack.c.b16 %v4818, %v4818
    %v4824 = vunpack.c.l.b16 %v4809
    %v4825 = vunpack.c.l.b16 %v4810
    %v4826 = vunpack.c.l.b16 %v4811
    %v4827 = vunpack.c.l.b16 %v4812
    %v4828 = vpack.c.b16 %v4825, %v4824
    %v4829 = vpack.c.b16 %v4827, %v4826
    %v4833 = vsel %vm4591, %v4819, 0
    %4835 = vmatpush.bf16.msra.mxu0 0
    %4836 = vmatpush.bf16.msra.mxu0 0
    %4837 = vmatpush.bf16.msra.mxu0 0
    %4838 = vmatpush.bf16.msra.mxu0 0
    %4839 = vmatpush.bf16.msra.mxu0 0
    %4840 = vmatpush.bf16.msra.mxu0 0
    %4841 = vmatpush.bf16.msra.mxu0 %v4829
    %4842 = vmatpush.bf16.msra.mxu0 %v4828
    %4843 = vmatmul.bf16.gmra.mxu0 %v4833
    %v4844 = vpop.f32.mrf.mxu0
    %v4845 = vadd.f32 0.0, %v4844
    %v4846 = vpop.f32.mrf.mxu0
    %4847 = vdwg.mxu0
    %v4848 = vadd.f32 %v4799, %v4845
    %v4849 = vld [vmem:[%s3342 + $0x3] sm:$0x1]
    %v4850 = vld [vmem:[%s3342 + $0x2b] sm:$0x1]
    %v4851 = vmax.f32 %v4800, %v4849
    %v4852 = vmax.f32 %v4801, %v4850
    %v4853 = vmax.f32 %v4649, %v4851
    %v4854 = vmax.f32 %v4650, %v4852
    %v4855 = vpack.c.bf16 %v4853, %v4853
    %v4856 = vpack.c.bf16 %v4854, %v4854
    %s4857 = scalar_lea.vmem %s5, 96
    %v4858 = vld [vmem:[%s4857] sm:$0xf]
    %v4859 = vld [vmem:[%s4857 + $0x4] sm:$0xf]
    %v4860 = vld [vmem:[%s4857 + $0x8] sm:$0xf]
    %v4861 = vld [vmem:[%s4857 + $0xc] sm:$0xf]
    %v4864 = vunpack.c.l.b16 %v4855
    %v4865 = vunpack.c.l.b16 %v4856
    %v4866 = vrot.slane %v4865, 7
    %v4867 = vsel %vm4576, %v4866, %v4864
    %v4868 = vpack.c.b16 %v4867, %v4867
    %v4873 = vunpack.c.l.b16 %v4858
    %v4874 = vunpack.c.l.b16 %v4859
    %v4875 = vunpack.c.l.b16 %v4860
    %v4876 = vunpack.c.l.b16 %v4861
    %v4877 = vpack.c.b16 %v4874, %v4873
    %v4878 = vpack.c.b16 %v4876, %v4875
    %v4882 = vsel %vm4591, %v4868, 0
    %4884 = vmatpush.bf16.msra.mxu0 0
    %4885 = vmatpush.bf16.msra.mxu0 0
    %4886 = vmatpush.bf16.msra.mxu0 0
    %4887 = vmatpush.bf16.msra.mxu0 0
    %4888 = vmatpush.bf16.msra.mxu0 0
    %4889 = vmatpush.bf16.msra.mxu0 0
    %4890 = vmatpush.bf16.msra.mxu0 %v4878
    %4891 = vmatpush.bf16.msra.mxu0 %v4877
    %4892 = vmatmul.bf16.gmra.mxu0 %v4882
    %v4893 = vpop.f32.mrf.mxu0
    %v4894 = vadd.f32 0.0, %v4893
    %v4895 = vpop.f32.mrf.mxu0
    %4896 = vdwg.mxu0
    %v4897 = vadd.f32 %v4848, %v4894
    %v4898 = vld [vmem:[%s3342 + $0x4] sm:$0x1]
    %v4899 = vld [vmem:[%s3342 + $0x2c] sm:$0x1]
    %v4900 = vmax.f32 %v4849, %v4898
    %v4901 = vmax.f32 %v4850, %v4899
    %v4902 = vmax.f32 %v4702, %v4900
    %v4903 = vmax.f32 %v4703, %v4901
    %v4904 = vpack.c.bf16 %v4902, %v4902
    %v4905 = vpack.c.bf16 %v4903, %v4903
    %s4906 = scalar_lea.vmem %s5, 112
    %v4907 = vld [vmem:[%s4906] sm:$0xf]
    %v4908 = vld [vmem:[%s4906 + $0x4] sm:$0xf]
    %v4909 = vld [vmem:[%s4906 + $0x8] sm:$0xf]
    %v4910 = vld [vmem:[%s4906 + $0xc] sm:$0xf]
    %v4913 = vunpack.c.l.b16 %v4904
    %v4914 = vunpack.c.l.b16 %v4905
    %v4915 = vrot.slane %v4914, 7
    %v4916 = vsel %vm4576, %v4915, %v4913
    %v4917 = vpack.c.b16 %v4916, %v4916
    %v4922 = vunpack.c.l.b16 %v4907
    %v4923 = vunpack.c.l.b16 %v4908
    %v4924 = vunpack.c.l.b16 %v4909
    %v4925 = vunpack.c.l.b16 %v4910
    %v4926 = vpack.c.b16 %v4923, %v4922
    %v4927 = vpack.c.b16 %v4925, %v4924
    %v4931 = vsel %vm4591, %v4917, 0
    %4933 = vmatpush.bf16.msra.mxu0 0
    %4934 = vmatpush.bf16.msra.mxu0 0
    %4935 = vmatpush.bf16.msra.mxu0 0
    %4936 = vmatpush.bf16.msra.mxu0 0
    %4937 = vmatpush.bf16.msra.mxu0 0
    %4938 = vmatpush.bf16.msra.mxu0 0
    %4939 = vmatpush.bf16.msra.mxu0 %v4927
    %4940 = vmatpush.bf16.msra.mxu0 %v4926
    %4941 = vmatmul.bf16.gmra.mxu0 %v4931
    %v4942 = vpop.f32.mrf.mxu0
    %v4943 = vadd.f32 0.0, %v4942
    %v4944 = vpop.f32.mrf.mxu0
    %4945 = vdwg.mxu0
    %v4946 = vadd.f32 %v4897, %v4943
    %v4947 = vld [vmem:[%s3512] sm:$0x1]
    %v4948 = vld [vmem:[%s3512 + $0x28] sm:$0x1]
    %v4949 = vld [vmem:[%s3512 + $0x1] sm:$0x1]
    %v4950 = vld [vmem:[%s3512 + $0x29] sm:$0x1]
    %v4951 = vmax.f32 %v4947, %v4949
    %v4952 = vmax.f32 %v4948, %v4950
    %v4953 = vmax.f32 %v4753, %v4951
    %v4954 = vmax.f32 %v4754, %v4952
    %v4955 = vpack.c.bf16 %v4953, %v4953
    %v4956 = vpack.c.bf16 %v4954, %v4954
    %s4957 = scalar_lea.vmem %s5, 128
    %v4958 = vld [vmem:[%s4957] sm:$0xf]
    %v4959 = vld [vmem:[%s4957 + $0x4] sm:$0xf]
    %v4960 = vld [vmem:[%s4957 + $0x8] sm:$0xf]
    %v4961 = vld [vmem:[%s4957 + $0xc] sm:$0xf]
    %v4964 = vunpack.c.l.b16 %v4955
    %v4965 = vunpack.c.l.b16 %v4956
    %v4966 = vrot.slane %v4965, 7
    %v4967 = vsel %vm4576, %v4966, %v4964
    %v4968 = vpack.c.b16 %v4967, %v4967
    %v4973 = vunpack.c.l.b16 %v4958
    %v4974 = vunpack.c.l.b16 %v4959
    %v4975 = vunpack.c.l.b16 %v4960
    %v4976 = vunpack.c.l.b16 %v4961
    %v4977 = vpack.c.b16 %v4974, %v4973
    %v4978 = vpack.c.b16 %v4976, %v4975
    %v4982 = vsel %vm4591, %v4968, 0
    %4984 = vmatpush.bf16.msra.mxu0 0
    %4985 = vmatpush.bf16.msra.mxu0 0
    %4986 = vmatpush.bf16.msra.mxu0 0
    %4987 = vmatpush.bf16.msra.mxu0 0
    %4988 = vmatpush.bf16.msra.mxu0 0
    %4989 = vmatpush.bf16.msra.mxu0 0
    %4990 = vmatpush.bf16.msra.mxu0 %v4978
    %4991 = vmatpush.bf16.msra.mxu0 %v4977
    %4992 = vmatmul.bf16.gmra.mxu0 %v4982
    %v4993 = vpop.f32.mrf.mxu0
    %v4994 = vadd.f32 0.0, %v4993
    %v4995 = vpop.f32.mrf.mxu0
    %4996 = vdwg.mxu0
    %v4997 = vadd.f32 %v4946, %v4994
    %v4998 = vld [vmem:[%s3512 + $0x2] sm:$0x1]
    %v4999 = vld [vmem:[%s3512 + $0x2a] sm:$0x1]
    %v5000 = vmax.f32 %v4949, %v4998
    %v5001 = vmax.f32 %v4950, %v4999
    %v5002 = vmax.f32 %v4802, %v5000
    %v5003 = vmax.f32 %v4803, %v5001
    %v5004 = vpack.c.bf16 %v5002, %v5002
    %v5005 = vpack.c.bf16 %v5003, %v5003
    %s5006 = scalar_lea.vmem %s5, 144
    %v5007 = vld [vmem:[%s5006] sm:$0xf]
    %v5008 = vld [vmem:[%s5006 + $0x4] sm:$0xf]
    %v5009 = vld [vmem:[%s5006 + $0x8] sm:$0xf]
    %v5010 = vld [vmem:[%s5006 + $0xc] sm:$0xf]
    %v5013 = vunpack.c.l.b16 %v5004
    %v5014 = vunpack.c.l.b16 %v5005
    %v5015 = vrot.slane %v5014, 7
    %v5016 = vsel %vm4576, %v5015, %v5013
    %v5017 = vpack.c.b16 %v5016, %v5016
    %v5022 = vunpack.c.l.b16 %v5007
    %v5023 = vunpack.c.l.b16 %v5008
    %v5024 = vunpack.c.l.b16 %v5009
    %v5025 = vunpack.c.l.b16 %v5010
    %v5026 = vpack.c.b16 %v5023, %v5022
    %v5027 = vpack.c.b16 %v5025, %v5024
    %v5031 = vsel %vm4591, %v5017, 0
    %5033 = vmatpush.bf16.msra.mxu0 0
    %5034 = vmatpush.bf16.msra.mxu0 0
    %5035 = vmatpush.bf16.msra.mxu0 0
    %5036 = vmatpush.bf16.msra.mxu0 0
    %5037 = vmatpush.bf16.msra.mxu0 0
    %5038 = vmatpush.bf16.msra.mxu0 0
    %5039 = vmatpush.bf16.msra.mxu0 %v5027
    %5040 = vmatpush.bf16.msra.mxu0 %v5026
    %5041 = vmatmul.bf16.gmra.mxu0 %v5031
    %v5042 = vpop.f32.mrf.mxu0
    %v5043 = vadd.f32 0.0, %v5042
    %v5044 = vpop.f32.mrf.mxu0
    %5045 = vdwg.mxu0
    %v5046 = vadd.f32 %v4997, %v5043
    %v5047 = vld [vmem:[%s3512 + $0x3] sm:$0x1]
    %v5048 = vld [vmem:[%s3512 + $0x2b] sm:$0x1]
    %v5049 = vmax.f32 %v4998, %v5047
    %v5050 = vmax.f32 %v4999, %v5048
    %v5051 = vmax.f32 %v4851, %v5049
    %v5052 = vmax.f32 %v4852, %v5050
    %v5053 = vpack.c.bf16 %v5051, %v5051
    %v5054 = vpack.c.bf16 %v5052, %v5052
    %s5055 = scalar_lea.vmem %s5, 160
    %v5056 = vld [vmem:[%s5055] sm:$0xf]
    %v5057 = vld [vmem:[%s5055 + $0x4] sm:$0xf]
    %v5058 = vld [vmem:[%s5055 + $0x8] sm:$0xf]
    %v5059 = vld [vmem:[%s5055 + $0xc] sm:$0xf]
    %v5062 = vunpack.c.l.b16 %v5053
    %v5063 = vunpack.c.l.b16 %v5054
    %v5064 = vrot.slane %v5063, 7
    %v5065 = vsel %vm4576, %v5064, %v5062
    %v5066 = vpack.c.b16 %v5065, %v5065
    %v5071 = vunpack.c.l.b16 %v5056
    %v5072 = vunpack.c.l.b16 %v5057
    %v5073 = vunpack.c.l.b16 %v5058
    %v5074 = vunpack.c.l.b16 %v5059
    %v5075 = vpack.c.b16 %v5072, %v5071
    %v5076 = vpack.c.b16 %v5074, %v5073
    %v5080 = vsel %vm4591, %v5066, 0
    %5082 = vmatpush.bf16.msra.mxu0 0
    %5083 = vmatpush.bf16.msra.mxu0 0
    %5084 = vmatpush.bf16.msra.mxu0 0
    %5085 = vmatpush.bf16.msra.mxu0 0
    %5086 = vmatpush.bf16.msra.mxu0 0
    %5087 = vmatpush.bf16.msra.mxu0 0
    %5088 = vmatpush.bf16.msra.mxu0 %v5076
    %5089 = vmatpush.bf16.msra.mxu0 %v5075
    %5090 = vmatmul.bf16.gmra.mxu0 %v5080
    %v5091 = vpop.f32.mrf.mxu0
    %v5092 = vadd.f32 0.0, %v5091
    %v5093 = vpop.f32.mrf.mxu0
    %5094 = vdwg.mxu0
    %v5095 = vadd.f32 %v5046, %v5092
    %v5096 = vld [vmem:[%s3512 + $0x4] sm:$0x1]
    %v5097 = vld [vmem:[%s3512 + $0x2c] sm:$0x1]
    %v5098 = vmax.f32 %v5047, %v5096
    %v5099 = vmax.f32 %v5048, %v5097
    %v5100 = vmax.f32 %v4900, %v5098
    %v5101 = vmax.f32 %v4901, %v5099
    %v5102 = vpack.c.bf16 %v5100, %v5100
    %v5103 = vpack.c.bf16 %v5101, %v5101
    %s5104 = scalar_lea.vmem %s5, 176
    %v5105 = vld [vmem:[%s5104] sm:$0xf]
    %v5106 = vld [vmem:[%s5104 + $0x4] sm:$0xf]
    %v5107 = vld [vmem:[%s5104 + $0x8] sm:$0xf]
    %v5108 = vld [vmem:[%s5104 + $0xc] sm:$0xf]
    %v5111 = vunpack.c.l.b16 %v5102
    %v5112 = vunpack.c.l.b16 %v5103
    %v5113 = vrot.slane %v5112, 7
    %v5114 = vsel %vm4576, %v5113, %v5111
    %v5115 = vpack.c.b16 %v5114, %v5114
    %v5120 = vunpack.c.l.b16 %v5105
    %v5121 = vunpack.c.l.b16 %v5106
    %v5122 = vunpack.c.l.b16 %v5107
    %v5123 = vunpack.c.l.b16 %v5108
    %v5124 = vpack.c.b16 %v5121, %v5120
    %v5125 = vpack.c.b16 %v5123, %v5122
    %v5129 = vsel %vm4591, %v5115, 0
    %5131 = vmatpush.bf16.msra.mxu0 0
    %5132 = vmatpush.bf16.msra.mxu0 0
    %5133 = vmatpush.bf16.msra.mxu0 0
    %5134 = vmatpush.bf16.msra.mxu0 0
    %5135 = vmatpush.bf16.msra.mxu0 0
    %5136 = vmatpush.bf16.msra.mxu0 0
    %5137 = vmatpush.bf16.msra.mxu0 %v5125
    %5138 = vmatpush.bf16.msra.mxu0 %v5124
    %5139 = vmatmul.bf16.gmra.mxu0 %v5129
    %v5140 = vpop.f32.mrf.mxu0
    %v5141 = vadd.f32 0.0, %v5140
    %v5142 = vpop.f32.mrf.mxu0
    %5143 = vdwg.mxu0
    %v5144 = vadd.f32 %v5095, %v5141
    %v5145 = vld [vmem:[%s3682] sm:$0x1]
    %v5146 = vld [vmem:[%s3682 + $0x28] sm:$0x1]
    %v5147 = vld [vmem:[%s3682 + $0x1] sm:$0x1]
    %v5148 = vld [vmem:[%s3682 + $0x29] sm:$0x1]
    %v5149 = vmax.f32 %v5145, %v5147
    %v5150 = vmax.f32 %v5146, %v5148
    %v5151 = vmax.f32 %v4951, %v5149
    %v5152 = vmax.f32 %v4952, %v5150
    %v5153 = vpack.c.bf16 %v5151, %v5151
    %v5154 = vpack.c.bf16 %v5152, %v5152
    %s5155 = scalar_lea.vmem %s5, 192
    %v5156 = vld [vmem:[%s5155] sm:$0xf]
    %v5157 = vld [vmem:[%s5155 + $0x4] sm:$0xf]
    %v5158 = vld [vmem:[%s5155 + $0x8] sm:$0xf]
    %v5159 = vld [vmem:[%s5155 + $0xc] sm:$0xf]
    %v5162 = vunpack.c.l.b16 %v5153
    %v5163 = vunpack.c.l.b16 %v5154
    %v5164 = vrot.slane %v5163, 7
    %v5165 = vsel %vm4576, %v5164, %v5162
    %v5166 = vpack.c.b16 %v5165, %v5165
    %v5171 = vunpack.c.l.b16 %v5156
    %v5172 = vunpack.c.l.b16 %v5157
    %v5173 = vunpack.c.l.b16 %v5158
    %v5174 = vunpack.c.l.b16 %v5159
    %v5175 = vpack.c.b16 %v5172, %v5171
    %v5176 = vpack.c.b16 %v5174, %v5173
    %v5180 = vsel %vm4591, %v5166, 0
    %5182 = vmatpush.bf16.msra.mxu0 0
    %5183 = vmatpush.bf16.msra.mxu0 0
    %5184 = vmatpush.bf16.msra.mxu0 0
    %5185 = vmatpush.bf16.msra.mxu0 0
    %5186 = vmatpush.bf16.msra.mxu0 0
    %5187 = vmatpush.bf16.msra.mxu0 0
    %5188 = vmatpush.bf16.msra.mxu0 %v5176
    %5189 = vmatpush.bf16.msra.mxu0 %v5175
    %5190 = vmatmul.bf16.gmra.mxu0 %v5180
    %v5191 = vpop.f32.mrf.mxu0
    %v5192 = vadd.f32 0.0, %v5191
    %v5193 = vpop.f32.mrf.mxu0
    %5194 = vdwg.mxu0
    %v5195 = vadd.f32 %v5144, %v5192
    %v5196 = vld [vmem:[%s3682 + $0x2] sm:$0x1]
    %v5197 = vld [vmem:[%s3682 + $0x2a] sm:$0x1]
    %v5198 = vmax.f32 %v5147, %v5196
    %v5199 = vmax.f32 %v5148, %v5197
    %v5200 = vmax.f32 %v5000, %v5198
    %v5201 = vmax.f32 %v5001, %v5199
    %v5202 = vpack.c.bf16 %v5200, %v5200
    %v5203 = vpack.c.bf16 %v5201, %v5201
    %s5204 = scalar_lea.vmem %s5, 208
    %v5205 = vld [vmem:[%s5204] sm:$0xf]
    %v5206 = vld [vmem:[%s5204 + $0x4] sm:$0xf]
    %v5207 = vld [vmem:[%s5204 + $0x8] sm:$0xf]
    %v5208 = vld [vmem:[%s5204 + $0xc] sm:$0xf]
    %v5211 = vunpack.c.l.b16 %v5202
    %v5212 = vunpack.c.l.b16 %v5203
    %v5213 = vrot.slane %v5212, 7
    %v5214 = vsel %vm4576, %v5213, %v5211
    %v5215 = vpack.c.b16 %v5214, %v5214
    %v5220 = vunpack.c.l.b16 %v5205
    %v5221 = vunpack.c.l.b16 %v5206
    %v5222 = vunpack.c.l.b16 %v5207
    %v5223 = vunpack.c.l.b16 %v5208
    %v5224 = vpack.c.b16 %v5221, %v5220
    %v5225 = vpack.c.b16 %v5223, %v5222
    %v5229 = vsel %vm4591, %v5215, 0
    %5231 = vmatpush.bf16.msra.mxu0 0
    %5232 = vmatpush.bf16.msra.mxu0 0
    %5233 = vmatpush.bf16.msra.mxu0 0
    %5234 = vmatpush.bf16.msra.mxu0 0
    %5235 = vmatpush.bf16.msra.mxu0 0
    %5236 = vmatpush.bf16.msra.mxu0 0
    %5237 = vmatpush.bf16.msra.mxu0 %v5225
    %5238 = vmatpush.bf16.msra.mxu0 %v5224
    %5239 = vmatmul.bf16.gmra.mxu0 %v5229
    %v5240 = vpop.f32.mrf.mxu0
    %v5241 = vadd.f32 0.0, %v5240
    %v5242 = vpop.f32.mrf.mxu0
    %5243 = vdwg.mxu0
    %v5244 = vadd.f32 %v5195, %v5241
    %v5245 = vld [vmem:[%s3682 + $0x3] sm:$0x1]
    %v5246 = vld [vmem:[%s3682 + $0x2b] sm:$0x1]
    %v5247 = vmax.f32 %v5196, %v5245
    %v5248 = vmax.f32 %v5197, %v5246
    %v5249 = vmax.f32 %v5049, %v5247
    %v5250 = vmax.f32 %v5050, %v5248
    %v5251 = vpack.c.bf16 %v5249, %v5249
    %v5252 = vpack.c.bf16 %v5250, %v5250
    %s5253 = scalar_lea.vmem %s5, 224
    %v5254 = vld [vmem:[%s5253] sm:$0xf]
    %v5255 = vld [vmem:[%s5253 + $0x4] sm:$0xf]
    %v5256 = vld [vmem:[%s5253 + $0x8] sm:$0xf]
    %v5257 = vld [vmem:[%s5253 + $0xc] sm:$0xf]
    %v5260 = vunpack.c.l.b16 %v5251
    %v5261 = vunpack.c.l.b16 %v5252
    %v5262 = vrot.slane %v5261, 7
    %v5263 = vsel %vm4576, %v5262, %v5260
    %v5264 = vpack.c.b16 %v5263, %v5263
    %v5269 = vunpack.c.l.b16 %v5254
    %v5270 = vunpack.c.l.b16 %v5255
    %v5271 = vunpack.c.l.b16 %v5256
    %v5272 = vunpack.c.l.b16 %v5257
    %v5273 = vpack.c.b16 %v5270, %v5269
    %v5274 = vpack.c.b16 %v5272, %v5271
    %v5278 = vsel %vm4591, %v5264, 0
    %5280 = vmatpush.bf16.msra.mxu0 0
    %5281 = vmatpush.bf16.msra.mxu0 0
    %5282 = vmatpush.bf16.msra.mxu0 0
    %5283 = vmatpush.bf16.msra.mxu0 0
    %5284 = vmatpush.bf16.msra.mxu0 0
    %5285 = vmatpush.bf16.msra.mxu0 0
    %5286 = vmatpush.bf16.msra.mxu0 %v5274
    %5287 = vmatpush.bf16.msra.mxu0 %v5273
    %5288 = vmatmul.bf16.gmra.mxu0 %v5278
    %v5289 = vpop.f32.mrf.mxu0
    %v5290 = vadd.f32 0.0, %v5289
    %v5291 = vpop.f32.mrf.mxu0
    %5292 = vdwg.mxu0
    %v5293 = vadd.f32 %v5244, %v5290
    %v5294 = vld [vmem:[%s3682 + $0x4] sm:$0x1]
    %v5295 = vld [vmem:[%s3682 + $0x2c] sm:$0x1]
    %v5296 = vmax.f32 %v5245, %v5294
    %v5297 = vmax.f32 %v5246, %v5295
    %v5298 = vmax.f32 %v5098, %v5296
    %v5299 = vmax.f32 %v5099, %v5297
    %v5300 = vpack.c.bf16 %v5298, %v5298
    %v5301 = vpack.c.bf16 %v5299, %v5299
    %s5302 = scalar_lea.vmem %s5, 240
    %v5303 = vld [vmem:[%s5302] sm:$0xf]
    %v5304 = vld [vmem:[%s5302 + $0x4] sm:$0xf]
    %v5305 = vld [vmem:[%s5302 + $0x8] sm:$0xf]
    %v5306 = vld [vmem:[%s5302 + $0xc] sm:$0xf]
    %v5309 = vunpack.c.l.b16 %v5300
    %v5310 = vunpack.c.l.b16 %v5301
    %v5311 = vrot.slane %v5310, 7
    %v5312 = vsel %vm4576, %v5311, %v5309
    %v5313 = vpack.c.b16 %v5312, %v5312
    %v5318 = vunpack.c.l.b16 %v5303
    %v5319 = vunpack.c.l.b16 %v5304
    %v5320 = vunpack.c.l.b16 %v5305
    %v5321 = vunpack.c.l.b16 %v5306
    %v5322 = vpack.c.b16 %v5319, %v5318
    %v5323 = vpack.c.b16 %v5321, %v5320
    %v5327 = vsel %vm4591, %v5313, 0
    %5329 = vmatpush.bf16.msra.mxu0 0
    %5330 = vmatpush.bf16.msra.mxu0 0
    %5331 = vmatpush.bf16.msra.mxu0 0
    %5332 = vmatpush.bf16.msra.mxu0 0
    %5333 = vmatpush.bf16.msra.mxu0 0
    %5334 = vmatpush.bf16.msra.mxu0 0
    %5335 = vmatpush.bf16.msra.mxu0 %v5323
    %5336 = vmatpush.bf16.msra.mxu0 %v5322
    %5337 = vmatmul.bf16.gmra.mxu0 %v5327
    %v5338 = vpop.f32.mrf.mxu0
    %v5339 = vadd.f32 0.0, %v5338
    %v5340 = vpop.f32.mrf.mxu0
    %5341 = vdwg.mxu0
    %v5342 = vadd.f32 %v5293, %v5339
    %v5343 = vld [vmem:[%s6] sm:$0x1]
    %v5345 = vperm.slane %v5343, 0
    %v5347 = vadd.f32 %v5342, %v5345
    %v5348 = vmax.f32 %v5347, 0.0
    %v5349 = vpack.c.bf16 %v5348, %v5348
    %v5350 = vld [vmem:[%s7] sm:$0xf]
    %v5351 = vld [vmem:[%s7 + $0x4] sm:$0xf]
    %v5352 = vld [vmem:[%s7 + $0x8] sm:$0xf]
    %v5353 = vld [vmem:[%s7 + $0xc] sm:$0xf]
    %v5354 = vld [vmem:[%s8] sm:$0x1]
    %v5356 = vperm.slane %v5354, 0
    %v5362 = vunpack.c.l.b16 %v5350
    %v5363 = vunpack.c.l.b16 %v5351
    %v5364 = vunpack.c.l.b16 %v5352
    %v5365 = vunpack.c.l.b16 %v5353
    %v5366 = vpack.c.b16 %v5363, %v5362
    %v5367 = vpack.c.b16 %v5365, %v5364
    %v5371 = vsel %vm4591, %v5349, 0
    %5373 = vmatpush.bf16.msra.mxu0 0
    %5374 = vmatpush.bf16.msra.mxu0 0
    %5375 = vmatpush.bf16.msra.mxu0 0
    %5376 = vmatpush.bf16.msra.mxu0 0
    %5377 = vmatpush.bf16.msra.mxu0 0
    %5378 = vmatpush.bf16.msra.mxu0 0
    %5379 = vmatpush.bf16.msra.mxu0 %v5367
    %5380 = vmatpush.bf16.msra.mxu0 %v5366
    %5381 = vmatmul.bf16.gmra.mxu0 %v5371
    %v5382 = vpop.f32.mrf.mxu0
    %v5383 = vadd.f32 %v5356, %v5382
    %v5384 = vpop.f32.mrf.mxu0
    %5385 = vdwg.mxu0
    %vm5386 = vcmask 74752
    %5387 = vst.msk [vmem:[#allocation5] sm:$0x3] %vm5386, %v5383
    // Predicated region
    $region38: #{net_forward.1} parent=1 // pred_check
      _
    $region39: #{net_forward.1} parent=1 // pred_check_branch
      %5389 = sbr.rel (0) target = $region41
    $region40: #{net_forward.1} parent=1 // pred_region
      %5391 = vsyncadd [#allocation6], 0
      %s5393 = sshll.u32 [#allocation5], 4
      %s5394 = int_to_ptr.vmem [resolvable:$true] %s5393
      %s5395 = sshll.u32 %s9, 4
      %s5396 = int_to_ptr.hbm [resolvable:$true] %s5395
      %5398 = dma.vmem_to_hbm [thread:$0]  %s5394, 32, %s5396, [#allocation6]
    $region41: #{net_forward.1} parent=1 // pred_fallthru
      _
    // Predicated region
    $region42: #{net_forward.1} parent=1 // pred_check
      _
    $region43: #{net_forward.1} parent=1 // pred_check_branch
      %5400 = sbr.rel (0) target = $region45
    $region44: #{net_forward.1} parent=1 // pred_region
      %5402 = dma.done [#allocation6], 32
    $region45: #{net_forward.1} parent=1 // pred_fallthru
      _
    %5403 = vsyncpa [#allocation6], 1

</llo_original>
